<compile_context>
chip_gen: v7x
topology: tpu7x:2x2x1
jax: 0.10.0
libtpu: 0.0.40
codegen_flags: <defaults>
</compile_context>

<pallas_src>
import functools

import jax
import jax.numpy as jnp
from jax.experimental import pallas as pl
from jax.experimental.pallas import tpu as pltpu


# ----------------------------- Pallas kernels ------------------------------

def _conv_band_kernel(*refs, mode, wc):
    """Fused-im2col 3x3 conv (stride 1, pad 1) over one row band + fused epilogue.

    Inputs (layout L, flat rows = row*Wc + col, channels on lanes):
      xm_ref : (tile_h*Wc, Cin)  main band of the zero-padded activation
      xh_ref : (4*Wc,     Cin)   4-row halo (the rows just below the band)
      [ex_ref: (tile_h*Wc, Cx)]  residual / gate-body input   (gate / residual modes)
      w_ref  : (9*Cin, Cout) bf16, b_ref : (1, Cout) f32
      [gate weights wa1/ba1/wa2/ba2]                          (gate mode)
      m_ref  : (tile_h*Wc, 1) f32 column mask (1 on real cols, 0 on junk/pad cols)
    Output:
      o_ref  : (tile_h*Wc, Cout) f32, junk columns forced to zero (layout L).
    """
    if mode == "gate":
        (xm_ref, xh_ref, ex_ref, w_ref, b_ref,
         wa1_ref, ba1_ref, wa2_ref, ba2_ref, m_ref, o_ref) = refs
    elif mode == "residual":
        xm_ref, xh_ref, ex_ref, w_ref, b_ref, m_ref, o_ref = refs
    else:
        xm_ref, xh_ref, w_ref, b_ref, m_ref, o_ref = refs

    rows = o_ref.shape[0]

    # (tile_h + 4) * Wc padded rows for this band (sublane-aligned concat).
    win = jnp.concatenate([xm_ref[...], xh_ref[...]], axis=0)

    # Stack the 9 taps along the contraction axis -> a single K = 9*Cin matmul.
    parts = []
    for ki in range(3):
        for kj in range(3):
            off = (ki + 1) * wc + (kj - 1)
            parts.append(win[off:off + rows, :])
    im = jnp.concatenate(parts, axis=-1).astype(jnp.bfloat16)       # (rows, 9*Cin)

    acc = jnp.dot(im, w_ref[...], preferred_element_type=jnp.float32) + b_ref[...]

    if mode == "gelu":
        # TODO(synk): PyTorch nn.GELU defaults to exact erf; tanh approx used here.
        y = jax.nn.gelu(acc)
    elif mode == "gate":
        body = ex_ref[...]
        a = jnp.dot(acc.astype(jnp.bfloat16), wa1_ref[...],
                    preferred_element_type=jnp.float32) + ba1_ref[...]
        a = jax.nn.gelu(a)  # TODO(synk): erf vs tanh as above.
        a = jnp.dot(a.astype(jnp.bfloat16), wa2_ref[...],
                    preferred_element_type=jnp.float32) + ba2_ref[...]
        a = jax.nn.sigmoid(a)
        y = body + acc * a
    elif mode == "residual":
        y = acc + ex_ref[...]
    else:
        y = acc

    # Zero the junk columns so the next layer can reuse them as horizontal zero pad.
    o_ref[...] = jnp.where(m_ref[...] > 0.5, y, 0.0).astype(o_ref.dtype)


def _pick_tile_h(h, wc, cin, cout, cextra, budget=20 * 1024 * 1024):
    """Largest tile_h (multiple of 8, dividing H) whose band footprint fits the budget."""
    assert h % 8 == 0, "H must be a multiple of 8"  # TODO(synk): generic H via edge band.
    best = 8
    for th in range(8, h + 1, 8):
        if h % th:
            continue
        rows = th * wc
        blocks = rows * (cin + cout + cextra) * 4 + 4 * wc * cin * 4
        temps = rows * cin * 4 + rows * 9 * cin * 2 + rows * cout * 4
        if 2 * blocks + temps <= budget:
            best = th
    return best


def conv3x3(x_flat, w_hwio, bias, *, h, w, wc, mode="plain", extra=None, gate=None):
    """3x3 / stride 1 / pad 1 conv on a layout-L activation, with fused epilogue.

    x_flat : (b, h*wc, cin) f32 layout L (each row = [w data cols, wc-w zero cols]).
    mode   : "plain" | "gelu" | "gate" (needs extra=body, gate=(wa1,ba1,wa2,ba2))
             | "residual" (needs extra=residual).
    Returns (b, h*wc, cout) f32 in layout L.
    """
    b = x_flat.shape[0]
    cin = x_flat.shape[-1]
    cout = w_hwio.shape[-1]
    cextra = extra.shape[-1] if extra is not None else 0
    tile_h = _pick_tile_h(h, wc, cin, cout, cextra)
    num_bands = h // tile_h
    rows = tile_h * wc

    # 2 zero rows above / below: together with the zeroed junk columns this provides
    # the full zero halo of the 3x3 conv without a column pad or an output slice.
    xp = jnp.pad(x_flat, ((0, 0), (2 * wc, 2 * wc), (0, 0)))        # (b, (h+4)*wc, cin)

    wflat = w_hwio.reshape(9 * cin, cout).astype(jnp.bfloat16)
    bias2 = bias.reshape(1, cout).astype(jnp.float32)
    colmask = ((jnp.arange(rows, dtype=jnp.int32) % wc) < w
               ).astype(jnp.float32).reshape(rows, 1)

    ins = [xp, xp]
    in_specs = [
        # main band : padded rows [ri*tile_h, (ri+1)*tile_h)
        pl.BlockSpec((None, rows, cin), lambda bi, ri: (bi, ri, 0)),
        # 4-row halo: padded rows [(ri+1)*tile_h, (ri+1)*tile_h + 4)
        pl.BlockSpec((None, 4 * wc, cin),
                     lambda bi, ri: (bi, (ri + 1) * (tile_h // 4), 0)),
    ]
    if extra is not None:
        ins.append(extra)
        in_specs.append(
            pl.BlockSpec((None, rows, cextra), lambda bi, ri: (bi, ri, 0)))
    ins += [wflat, bias2]
    in_specs += [
        pl.BlockSpec((9 * cin, cout), lambda bi, ri: (0, 0)),       # VMEM-resident
        pl.BlockSpec((1, cout), lambda bi, ri: (0, 0)),
    ]
    if mode == "gate":
        wa1, ba1, wa2, ba2 = gate
        a_dim = wa1.shape[-1]
        ins += [wa1.astype(jnp.bfloat16),
                ba1.reshape(1, a_dim).astype(jnp.float32),
                wa2.astype(jnp.bfloat16),
                ba2.reshape(1, cout).astype(jnp.float32)]
        in_specs += [
            pl.BlockSpec((cout, a_dim), lambda bi, ri: (0, 0)),
            pl.BlockSpec((1, a_dim), lambda bi, ri: (0, 0)),
            pl.BlockSpec((a_dim, cout), lambda bi, ri: (0, 0)),
            pl.BlockSpec((1, cout), lambda bi, ri: (0, 0)),
        ]
    ins.append(colmask)
    in_specs.append(pl.BlockSpec((rows, 1), lambda bi, ri: (0, 0)))

    kern = functools.partial(_conv_band_kernel, mode=mode, wc=wc)
    return pl.pallas_call(
        kern,
        out_shape=jax.ShapeDtypeStruct((b, h * wc, cout), jnp.float32),
        grid=(b, num_bands),
        in_specs=in_specs,
        out_specs=pl.BlockSpec((None, rows, cout), lambda bi, ri: (bi, ri, 0)),
        compiler_params=pltpu.CompilerParams(
            dimension_semantics=("parallel", "parallel")),
    )(*ins)


def _wsum_kernel(d_ref, w_ref, o_ref):
    """Lane-dense weighted sum over the 9 unfold taps.

    d_ref, w_ref : (9, TILE_R, 4W)   o_ref : (TILE_R, 4W)
    """
    acc = d_ref[0] * w_ref[0]
    for t in range(1, 9):
        acc = acc + d_ref[t] * w_ref[t]
    o_ref[...] = acc


def pallas_weighted_sum(depth_unfold_nchw, up_weights, vmem_budget=12 * 1024 * 1024):
    """(B,9,4H,4W) * (B,9,4H,4W) -> sum over taps -> (B,4H,4W)."""
    b, c, h4, w4 = depth_unfold_nchw.shape
    assert c == 9
    # 2 inputs + 1 output, 9 taps, double-buffered, f32 -> bytes per output row.
    per_row = (2 * 9 + 1) * w4 * 4 * 2
    tile_r = max(8, min(h4, (vmem_budget // per_row) // 8 * 8))
    grid = (b, pl.cdiv(h4, tile_r))
    return pl.pallas_call(
        _wsum_kernel,
        out_shape=jax.ShapeDtypeStruct((b, h4, w4), jnp.float32),
        grid=grid,
        in_specs=[
            pl.BlockSpec((None, 9, tile_r, w4), lambda i, j: (i, 0, j, 0)),
            pl.BlockSpec((None, 9, tile_r, w4), lambda i, j: (i, 0, j, 0)),
        ],
        out_specs=pl.BlockSpec((None, tile_r, w4), lambda i, j: (i, j, 0)),
        compiler_params=pltpu.CompilerParams(
            dimension_semantics=("parallel", "parallel")),
    )(depth_unfold_nchw, up_weights)


# ------------------------------- glue (JAX) --------------------------------

def unfold3x3_nhwc(depth_low):
    """F.unfold(depth, 3, 1, 1) for a 1-channel map, emitted as NHWC (b,h,w,9)."""
    b, c, h, w = depth_low.shape
    assert c == 1
    x = depth_low[:, 0]                                    # (b, h, w)
    xp = jnp.pad(x, ((0, 0), (1, 1), (1, 1)))
    taps = [xp[:, ki:ki + h, kj:kj + w] for ki in range(3) for kj in range(3)]
    return jnp.stack(taps, axis=-1)                        # tap order (ki, kj)


def to_layout_l(x_nhwc, wc):
    """NHWC -> layout-L flat: append zero columns up to wc and flatten rows."""
    b, h, w, c = x_nhwc.shape
    xl = jnp.pad(x_nhwc, ((0, 0), (0, 0), (0, wc - w), (0, 0)))
    return xl.reshape(b, h * wc, c)


def pixel_shuffle_to_nchw(x_nhwc, r, c_out):
    """nn.PixelShuffle semantics (channel = c*r*r + i*r + j), output NCHW."""
    b, h, w, crr = x_nhwc.shape
    assert crr == c_out * r * r
    x = x_nhwc.reshape(b, h, w, c_out, r, r)
    x = x.transpose(0, 3, 1, 4, 2, 5)                      # b, c, h, i, w, j
    return x.reshape(b, c_out, h * r, w * r)


# -------------------------- CLKA_Refinement body ---------------------------

def clka_refinement(p, x_l, h, w, wc, scale=4):
    # TODO(synk): the CLKA_Refinement class body is not in the provided source; this is
    # a structurally matching SR head (conv_first -> residual blocks with a sigmoid
    # attention gate through d_atten channels -> conv_after_body -> pixelshuffle x4);
    # conv_groups=2 of the unpublished block is not reproduced.
    feat = conv3x3(x_l, p["w_first"], p["b_first"], h=h, w=w, wc=wc)
    body = feat
    for blk in p["blocks"]:
        y = conv3x3(body, blk["w1"], blk["b1"], h=h, w=w, wc=wc, mode="gelu")
        body = conv3x3(y, blk["w2"], blk["b2"], h=h, w=w, wc=wc, mode="gate",
                       extra=body,
                       gate=(blk["wa1"], blk["ba1"], blk["wa2"], blk["ba2"]))
    body = conv3x3(body, p["w_body"], p["b_body"], h=h, w=w, wc=wc,
                   mode="residual", extra=feat)
    up = conv3x3(body, p["w_up"], p["b_up"], h=h, w=w, wc=wc)      # (b, h*wc, 144)
    return up


def init_params(key, num_block=2, num_in_ch=9, num_out_ch=9, num_feat=32,
                d_atten=64, scale=4):
    keys = iter(jax.random.split(key, 8 + 8 * num_block))

    def nrm(shape, s=0.05):
        return (s * jax.random.normal(next(keys), shape)).astype(jnp.float32)

    params = {
        "w_first": nrm((3, 3, num_in_ch, num_feat)), "b_first": nrm((num_feat,)),
        "w_body": nrm((3, 3, num_feat, num_feat)), "b_body": nrm((num_feat,)),
        "w_up": nrm((3, 3, num_feat, num_out_ch * scale * scale)),
        "b_up": nrm((num_out_ch * scale * scale,)),
        "blocks": [],
    }
    for _ in range(num_block):
        params["blocks"].append({
            "w1": nrm((3, 3, num_feat, num_feat)), "b1": nrm((num_feat,)),
            "w2": nrm((3, 3, num_feat, num_feat)), "b2": nrm((num_feat,)),
            "wa1": nrm((num_feat, d_atten)), "ba1": nrm((d_atten,)),
            "wa2": nrm((d_atten, num_feat)), "ba2": nrm((num_feat,)),
        })
    return params


# ------------------------------ module forward -----------------------------

def sr_context_upsample_forward(params, depth_low, up_weights, scale=4):
    b, c, h, w = depth_low.shape
    wc = w + 2 + ((w + 2) % 2)                 # even, >= w+2 (halo block alignment)
    x = unfold3x3_nhwc(depth_low)              # (b, h, w, 9)
    x_l = to_layout_l(x, wc)                   # (b, h*wc, 9) layout L
    up = clka_refinement(params, x_l, h, w, wc, scale)       # (b, h*wc, 9*scale^2)
    up4 = up.reshape(b, h, wc, -1)[:, :, :w, :]
    # TODO(synk): the pixel-shuffle transpose is still one XLA relayout pass; fusing it
    # into the up-conv epilogue needs an in-VMEM depth-to-space and is left out.
    depth_unfold = pixel_shuffle_to_nchw(up4, scale, 9)      # (b, 9, 4h, 4w)
    depth = pallas_weighted_sum(depth_unfold, up_weights)    # (b, 4h, 4w)
    return depth


# ----------------------------------- main -----------------------------------

if __name__ == "__main__":
    key = jax.random.PRNGKey(0)
    kp, kd, kw = jax.random.split(key, 3)

    b, c, h, w = 2, 1, 8, 8
    scale = 4
    num_block = 2  # small config for the synthetic test (module default is 10)

    depth_low = jax.random.normal(kd, (b, c, h, w), dtype=jnp.float32)
    up_weights = jax.nn.softmax(
        jax.random.normal(kw, (b, 9, h * scale, w * scale), dtype=jnp.float32),
        axis=1,
    )
    params = init_params(kp, num_block=num_block)

    fwd = jax.jit(functools.partial(sr_context_upsample_forward, scale=scale))
    depth = fwd(params, depth_low, up_weights)
    jax.block_until_ready(depth)

    assert depth.shape == (b, h * scale, w * scale), depth.shape
    assert depth.dtype == jnp.float32
    assert bool(jnp.all(jnp.isfinite(depth)))
    print("KERNEL_OK")
</pallas_src>

<mosaic_0001>
module attributes {stable_mosaic.version = 11 : i64} {
  func.func @_conv_band_kernel(%arg0: i32, %arg1: i32, %arg2: memref<1x80x9xf32, #tpu.memory_space<vmem>>, %arg3: memref<1x40x9xf32, #tpu.memory_space<vmem>>, %arg4: memref<81x32xbf16, #tpu.memory_space<vmem>>, %arg5: memref<1x32xf32, #tpu.memory_space<vmem>>, %arg6: memref<80x1xf32, #tpu.memory_space<vmem>>, %arg7: memref<1x80x32xf32, #tpu.memory_space<vmem>>) attributes {dimension_semantics = [#tpu.dimension_semantics<parallel>, #tpu.dimension_semantics<parallel>], iteration_bounds = array<i64: 2, 1>, scalar_prefetch = 0 : i64, scratch_operands = 0 : i64, tpu.core_type = #tpu.core_type<tc>, window_params = [{transform_indices = @transform_0, window_bounds = array<i64: 1, 80, 9>}, {transform_indices = @transform_1, window_bounds = array<i64: 1, 40, 9>}, {pipeline_mode = #tpu.pipeline_mode<synchronous>, transform_indices = @transform_2, window_bounds = array<i64: 81, 32>}, {pipeline_mode = #tpu.pipeline_mode<synchronous>, transform_indices = @transform_3, window_bounds = array<i64: 1, 32>}, {pipeline_mode = #tpu.pipeline_mode<synchronous>, transform_indices = @transform_4, window_bounds = array<i64: 80, 1>}, {transform_indices = @transform_5, window_bounds = array<i64: 1, 80, 32>}]} {
    %c0 = arith.constant 0 : index
    %c0_0 = arith.constant 0 : index
    %c0_1 = arith.constant 0 : index
    %0 = vector.load %arg2[%c0, %c0_0, %c0_1] : memref<1x80x9xf32, #tpu.memory_space<vmem>>, vector<1x80x9xf32>
    %1 = vector.shape_cast %0 : vector<1x80x9xf32> to vector<80x9xf32>
    %c0_2 = arith.constant 0 : index
    %c0_3 = arith.constant 0 : index
    %c0_4 = arith.constant 0 : index
    %2 = vector.load %arg3[%c0_2, %c0_3, %c0_4] : memref<1x40x9xf32, #tpu.memory_space<vmem>>, vector<1x40x9xf32>
    %3 = vector.shape_cast %2 : vector<1x40x9xf32> to vector<40x9xf32>
    %4 = tpu.concatenate %1, %3 in 0 : vector<80x9xf32>, vector<40x9xf32> -> vector<120x9xf32>
    %5 = vector.extract_strided_slice %4 {offsets = [9, 0], sizes = [80, 9], strides = [1, 1]} : vector<120x9xf32> to vector<80x9xf32>
    %6 = vector.extract_strided_slice %4 {offsets = [10, 0], sizes = [80, 9], strides = [1, 1]} : vector<120x9xf32> to vector<80x9xf32>
    %7 = vector.extract_strided_slice %4 {offsets = [11, 0], sizes = [80, 9], strides = [1, 1]} : vector<120x9xf32> to vector<80x9xf32>
    %8 = vector.extract_strided_slice %4 {offsets = [19, 0], sizes = [80, 9], strides = [1, 1]} : vector<120x9xf32> to vector<80x9xf32>
    %9 = vector.extract_strided_slice %4 {offsets = [20, 0], sizes = [80, 9], strides = [1, 1]} : vector<120x9xf32> to vector<80x9xf32>
    %10 = vector.extract_strided_slice %4 {offsets = [21, 0], sizes = [80, 9], strides = [1, 1]} : vector<120x9xf32> to vector<80x9xf32>
    %11 = vector.extract_strided_slice %4 {offsets = [29, 0], sizes = [80, 9], strides = [1, 1]} : vector<120x9xf32> to vector<80x9xf32>
    %12 = vector.extract_strided_slice %4 {offsets = [30, 0], sizes = [80, 9], strides = [1, 1]} : vector<120x9xf32> to vector<80x9xf32>
    %13 = vector.extract_strided_slice %4 {offsets = [31, 0], sizes = [80, 9], strides = [1, 1]} : vector<120x9xf32> to vector<80x9xf32>
    %14 = tpu.concatenate %5, %6, %7, %8, %9, %10, %11, %12, %13 in 1 : vector<80x9xf32>, vector<80x9xf32>, vector<80x9xf32>, vector<80x9xf32>, vector<80x9xf32>, vector<80x9xf32>, vector<80x9xf32>, vector<80x9xf32>, vector<80x9xf32> -> vector<80x81xf32>
    %15 = arith.truncf %14 : vector<80x81xf32> to vector<80x81xbf16>
    %c0_5 = arith.constant 0 : index
    %c0_6 = arith.constant 0 : index
    %16 = vector.load %arg4[%c0_5, %c0_6] : memref<81x32xbf16, #tpu.memory_space<vmem>>, vector<81x32xbf16>
    %cst = arith.constant dense<0.000000e+00> : vector<80x32xf32>
    %17 = tpu.matmul %15, %16, %cst {dimension_numbers = #tpu.dot_dimension_numbers<[1], [0], [0], [1], [0, 0, 1, 1], [], []>} : vector<80x81xbf16>, vector<81x32xbf16>, vector<80x32xf32> -> vector<80x32xf32>
    %c0_7 = arith.constant 0 : index
    %c0_8 = arith.constant 0 : index
    %18 = vector.load %arg5[%c0_7, %c0_8] : memref<1x32xf32, #tpu.memory_space<vmem>>, vector<1x32xf32>
    %19 = vector.broadcast %18 : vector<1x32xf32> to vector<80x32xf32>
    %20 = arith.addf %17, %19 : vector<80x32xf32>
    %c0_9 = arith.constant 0 : index
    %c0_10 = arith.constant 0 : index
    %21 = vector.load %arg6[%c0_9, %c0_10] : memref<80x1xf32, #tpu.memory_space<vmem>>, vector<80x1xf32>
    %cst_11 = arith.constant 5.000000e-01 : f32
    %22 = vector.broadcast %cst_11 : f32 to vector<80x1xf32>
    %23 = arith.cmpf ogt, %21, %22 : vector<80x1xf32>
    %cst_12 = arith.constant 0.000000e+00 : f32
    %24 = vector.shape_cast %23 : vector<80x1xi1> to vector<80x1xi1>
    %25 = vector.broadcast %24 : vector<80x1xi1> to vector<80x32xi1>
    %26 = vector.broadcast %cst_12 : f32 to vector<80x32xf32>
    %27 = arith.select %25, %20, %26 : vector<80x32xi1>, vector<80x32xf32>
    %c0_13 = arith.constant 0 : index
    %c0_14 = arith.constant 0 : index
    %c0_15 = arith.constant 0 : index
    %28 = vector.load %arg7[%c0_13, %c0_14, %c0_15] : memref<1x80x32xf32, #tpu.memory_space<vmem>>, vector<1x80x32xf32>
    %29 = vector.shape_cast %28 : vector<1x80x32xf32> to vector<80x32xf32>
    %30 = vector.shape_cast %27 : vector<80x32xf32> to vector<1x80x32xf32>
    tpu.vector_store %arg7[%c0_13, %c0_14, %c0_15], %30 {strides = array<i32>} : memref<1x80x32xf32, #tpu.memory_space<vmem>>, vector<1x80x32xf32>,
    return
  }
  func.func @transform_0(%arg0: i32, %arg1: i32) -> (i32, i32, i32) {
    %c0_i32 = arith.constant 0 : i32
    %c0_i32_0 = arith.constant 0 : i32
    return %arg0, %arg1, %c0_i32 : i32, i32, i32
  }
  func.func @transform_1(%arg0: i32, %arg1: i32) -> (i32, i32, i32) {
    %c1_i32 = arith.constant 1 : i32
    %0 = arith.addi %arg1, %c1_i32 : i32
    %c2_i32 = arith.constant 2 : i32
    %1 = arith.muli %0, %c2_i32 : i32
    %c0_i32 = arith.constant 0 : i32
    %c0_i32_0 = arith.constant 0 : i32
    return %arg0, %1, %c0_i32 : i32, i32, i32
  }
  func.func @transform_2(%arg0: i32, %arg1: i32) -> (i32, i32) {
    %c0_i32 = arith.constant 0 : i32
    %c0_i32_0 = arith.constant 0 : i32
    %c0_i32_1 = arith.constant 0 : i32
    return %c0_i32, %c0_i32_0 : i32, i32
  }
  func.func @transform_3(%arg0: i32, %arg1: i32) -> (i32, i32) {
    %c0_i32 = arith.constant 0 : i32
    %c0_i32_0 = arith.constant 0 : i32
    %c0_i32_1 = arith.constant 0 : i32
    return %c0_i32, %c0_i32_0 : i32, i32
  }
  func.func @transform_4(%arg0: i32, %arg1: i32) -> (i32, i32) {
    %c0_i32 = arith.constant 0 : i32
    %c0_i32_0 = arith.constant 0 : i32
    %c0_i32_1 = arith.constant 0 : i32
    return %c0_i32, %c0_i32_0 : i32, i32
  }
  func.func @transform_5(%arg0: i32, %arg1: i32) -> (i32, i32, i32) {
    %c0_i32 = arith.constant 0 : i32
    %c0_i32_0 = arith.constant 0 : i32
    return %arg0, %arg1, %c0_i32 : i32, i32, i32
  }
}

module attributes {stable_mosaic.version = 11 : i64} {
  func.func @_conv_band_kernel(%arg0: i32, %arg1: i32, %arg2: memref<1x80x32xf32, #tpu.memory_space<vmem>>, %arg3: memref<1x40x32xf32, #tpu.memory_space<vmem>>, %arg4: memref<288x32xbf16, #tpu.memory_space<vmem>>, %arg5: memref<1x32xf32, #tpu.memory_space<vmem>>, %arg6: memref<80x1xf32, #tpu.memory_space<vmem>>, %arg7: memref<1x80x32xf32, #tpu.memory_space<vmem>>) attributes {dimension_semantics = [#tpu.dimension_semantics<parallel>, #tpu.dimension_semantics<parallel>], iteration_bounds = array<i64: 2, 1>, scalar_prefetch = 0 : i64, scratch_operands = 0 : i64, tpu.core_type = #tpu.core_type<tc>, window_params = [{transform_indices = @transform_0, window_bounds = array<i64: 1, 80, 32>}, {transform_indices = @transform_1, window_bounds = array<i64: 1, 40, 32>}, {pipeline_mode = #tpu.pipeline_mode<synchronous>, transform_indices = @transform_2, window_bounds = array<i64: 288, 32>}, {pipeline_mode = #tpu.pipeline_mode<synchronous>, transform_indices = @transform_3, window_bounds = array<i64: 1, 32>}, {pipeline_mode = #tpu.pipeline_mode<synchronous>, transform_indices = @transform_4, window_bounds = array<i64: 80, 1>}, {transform_indices = @transform_5, window_bounds = array<i64: 1, 80, 32>}]} {
    %c0 = arith.constant 0 : index
    %c0_0 = arith.constant 0 : index
    %c0_1 = arith.constant 0 : index
    %0 = vector.load %arg2[%c0, %c0_0, %c0_1] : memref<1x80x32xf32, #tpu.memory_space<vmem>>, vector<1x80x32xf32>
    %1 = vector.shape_cast %0 : vector<1x80x32xf32> to vector<80x32xf32>
    %c0_2 = arith.constant 0 : index
    %c0_3 = arith.constant 0 : index
    %c0_4 = arith.constant 0 : index
    %2 = vector.load %arg3[%c0_2, %c0_3, %c0_4] : memref<1x40x32xf32, #tpu.memory_space<vmem>>, vector<1x40x32xf32>
    %3 = vector.shape_cast %2 : vector<1x40x32xf32> to vector<40x32xf32>
    %4 = tpu.concatenate %1, %3 in 0 : vector<80x32xf32>, vector<40x32xf32> -> vector<120x32xf32>
    %5 = vector.extract_strided_slice %4 {offsets = [9, 0], sizes = [80, 32], strides = [1, 1]} : vector<120x32xf32> to vector<80x32xf32>
    %6 = vector.extract_strided_slice %4 {offsets = [10, 0], sizes = [80, 32], strides = [1, 1]} : vector<120x32xf32> to vector<80x32xf32>
    %7 = vector.extract_strided_slice %4 {offsets = [11, 0], sizes = [80, 32], strides = [1, 1]} : vector<120x32xf32> to vector<80x32xf32>
    %8 = vector.extract_strided_slice %4 {offsets = [19, 0], sizes = [80, 32], strides = [1, 1]} : vector<120x32xf32> to vector<80x32xf32>
    %9 = vector.extract_strided_slice %4 {offsets = [20, 0], sizes = [80, 32], strides = [1, 1]} : vector<120x32xf32> to vector<80x32xf32>
    %10 = vector.extract_strided_slice %4 {offsets = [21, 0], sizes = [80, 32], strides = [1, 1]} : vector<120x32xf32> to vector<80x32xf32>
    %11 = vector.extract_strided_slice %4 {offsets = [29, 0], sizes = [80, 32], strides = [1, 1]} : vector<120x32xf32> to vector<80x32xf32>
    %12 = vector.extract_strided_slice %4 {offsets = [30, 0], sizes = [80, 32], strides = [1, 1]} : vector<120x32xf32> to vector<80x32xf32>
    %13 = vector.extract_strided_slice %4 {offsets = [31, 0], sizes = [80, 32], strides = [1, 1]} : vector<120x32xf32> to vector<80x32xf32>
    %14 = tpu.concatenate %5, %6, %7, %8, %9, %10, %11, %12, %13 in 1 : vector<80x32xf32>, vector<80x32xf32>, vector<80x32xf32>, vector<80x32xf32>, vector<80x32xf32>, vector<80x32xf32>, vector<80x32xf32>, vector<80x32xf32>, vector<80x32xf32> -> vector<80x288xf32>
    %15 = arith.truncf %14 : vector<80x288xf32> to vector<80x288xbf16>
    %c0_5 = arith.constant 0 : index
    %c0_6 = arith.constant 0 : index
    %16 = vector.load %arg4[%c0_5, %c0_6] : memref<288x32xbf16, #tpu.memory_space<vmem>>, vector<288x32xbf16>
    %cst = arith.constant dense<0.000000e+00> : vector<80x32xf32>
    %17 = tpu.matmul %15, %16, %cst {dimension_numbers = #tpu.dot_dimension_numbers<[1], [0], [0], [1], [0, 0, 1, 1], [], []>} : vector<80x288xbf16>, vector<288x32xbf16>, vector<80x32xf32> -> vector<80x32xf32>
    %c0_7 = arith.constant 0 : index
    %c0_8 = arith.constant 0 : index
    %18 = vector.load %arg5[%c0_7, %c0_8] : memref<1x32xf32, #tpu.memory_space<vmem>>, vector<1x32xf32>
    %19 = vector.broadcast %18 : vector<1x32xf32> to vector<80x32xf32>
    %20 = arith.addf %17, %19 : vector<80x32xf32>
    %21 = arith.mulf %20, %20 : vector<80x32xf32>
    %22 = arith.mulf %20, %21 : vector<80x32xf32>
    %cst_9 = arith.constant 4.471500e-02 : f32
    %23 = vector.broadcast %cst_9 : f32 to vector<80x32xf32>
    %24 = arith.mulf %23, %22 : vector<80x32xf32>
    %25 = arith.addf %20, %24 : vector<80x32xf32>
    %cst_10 = arith.constant 0.797884583 : f32
    %26 = vector.broadcast %cst_10 : f32 to vector<80x32xf32>
    %27 = arith.mulf %26, %25 : vector<80x32xf32>
    %28 = math.tanh %27 : vector<80x32xf32>
    %cst_11 = arith.constant 1.000000e+00 : f32
    %29 = vector.broadcast %cst_11 : f32 to vector<80x32xf32>
    %30 = arith.addf %29, %28 : vector<80x32xf32>
    %cst_12 = arith.constant 5.000000e-01 : f32
    %31 = vector.broadcast %cst_12 : f32 to vector<80x32xf32>
    %32 = arith.mulf %31, %30 : vector<80x32xf32>
    %33 = arith.mulf %20, %32 : vector<80x32xf32>
    %c0_13 = arith.constant 0 : index
    %c0_14 = arith.constant 0 : index
    %34 = vector.load %arg6[%c0_13, %c0_14] : memref<80x1xf32, #tpu.memory_space<vmem>>, vector<80x1xf32>
    %cst_15 = arith.constant 5.000000e-01 : f32
    %35 = vector.broadcast %cst_15 : f32 to vector<80x1xf32>
    %36 = arith.cmpf ogt, %34, %35 : vector<80x1xf32>
    %cst_16 = arith.constant 0.000000e+00 : f32
    %37 = vector.shape_cast %36 : vector<80x1xi1> to vector<80x1xi1>
    %38 = vector.broadcast %37 : vector<80x1xi1> to vector<80x32xi1>
    %39 = vector.broadcast %cst_16 : f32 to vector<80x32xf32>
    %40 = arith.select %38, %33, %39 : vector<80x32xi1>, vector<80x32xf32>
    %c0_17 = arith.constant 0 : index
    %c0_18 = arith.constant 0 : index
    %c0_19 = arith.constant 0 : index
    %41 = vector.load %arg7[%c0_17, %c0_18, %c0_19] : memref<1x80x32xf32, #tpu.memory_space<vmem>>, vector<1x80x32xf32>
    %42 = vector.shape_cast %41 : vector<1x80x32xf32> to vector<80x32xf32>
    %43 = vector.shape_cast %40 : vector<80x32xf32> to vector<1x80x32xf32>
    tpu.vector_store %arg7[%c0_17, %c0_18, %c0_19], %43 {strides = array<i32>} : memref<1x80x32xf32, #tpu.memory_space<vmem>>, vector<1x80x32xf32>,
    return
  }
  func.func @transform_0(%arg0: i32, %arg1: i32) -> (i32, i32, i32) {
    %c0_i32 = arith.constant 0 : i32
    %c0_i32_0 = arith.constant 0 : i32
    return %arg0, %arg1, %c0_i32 : i32, i32, i32
  }
  func.func @transform_1(%arg0: i32, %arg1: i32) -> (i32, i32, i32) {
    %c1_i32 = arith.constant 1 : i32
    %0 = arith.addi %arg1, %c1_i32 : i32
    %c2_i32 = arith.constant 2 : i32
    %1 = arith.muli %0, %c2_i32 : i32
    %c0_i32 = arith.constant 0 : i32
    %c0_i32_0 = arith.constant 0 : i32
    return %arg0, %1, %c0_i32 : i32, i32, i32
  }
  func.func @transform_2(%arg0: i32, %arg1: i32) -> (i32, i32) {
    %c0_i32 = arith.constant 0 : i32
    %c0_i32_0 = arith.constant 0 : i32
    %c0_i32_1 = arith.constant 0 : i32
    return %c0_i32, %c0_i32_0 : i32, i32
  }
  func.func @transform_3(%arg0: i32, %arg1: i32) -> (i32, i32) {
    %c0_i32 = arith.constant 0 : i32
    %c0_i32_0 = arith.constant 0 : i32
    %c0_i32_1 = arith.constant 0 : i32
    return %c0_i32, %c0_i32_0 : i32, i32
  }
  func.func @transform_4(%arg0: i32, %arg1: i32) -> (i32, i32) {
    %c0_i32 = arith.constant 0 : i32
    %c0_i32_0 = arith.constant 0 : i32
    %c0_i32_1 = arith.constant 0 : i32
    return %c0_i32, %c0_i32_0 : i32, i32
  }
  func.func @transform_5(%arg0: i32, %arg1: i32) -> (i32, i32, i32) {
    %c0_i32 = arith.constant 0 : i32
    %c0_i32_0 = arith.constant 0 : i32
    return %arg0, %arg1, %c0_i32 : i32, i32, i32
  }
}

module attributes {stable_mosaic.version = 11 : i64} {
  func.func @_conv_band_kernel(%arg0: i32, %arg1: i32, %arg2: memref<1x80x32xf32, #tpu.memory_space<vmem>>, %arg3: memref<1x40x32xf32, #tpu.memory_space<vmem>>, %arg4: memref<1x80x32xf32, #tpu.memory_space<vmem>>, %arg5: memref<288x32xbf16, #tpu.memory_space<vmem>>, %arg6: memref<1x32xf32, #tpu.memory_space<vmem>>, %arg7: memref<80x1xf32, #tpu.memory_space<vmem>>, %arg8: memref<1x80x32xf32, #tpu.memory_space<vmem>>) attributes {dimension_semantics = [#tpu.dimension_semantics<parallel>, #tpu.dimension_semantics<parallel>], iteration_bounds = array<i64: 2, 1>, scalar_prefetch = 0 : i64, scratch_operands = 0 : i64, tpu.core_type = #tpu.core_type<tc>, window_params = [{transform_indices = @transform_0, window_bounds = array<i64: 1, 80, 32>}, {transform_indices = @transform_1, window_bounds = array<i64: 1, 40, 32>}, {transform_indices = @transform_2, window_bounds = array<i64: 1, 80, 32>}, {pipeline_mode = #tpu.pipeline_mode<synchronous>, transform_indices = @transform_3, window_bounds = array<i64: 288, 32>}, {pipeline_mode = #tpu.pipeline_mode<synchronous>, transform_indices = @transform_4, window_bounds = array<i64: 1, 32>}, {pipeline_mode = #tpu.pipeline_mode<synchronous>, transform_indices = @transform_5, window_bounds = array<i64: 80, 1>}, {transform_indices = @transform_6, window_bounds = array<i64: 1, 80, 32>}]} {
    %c0 = arith.constant 0 : index
    %c0_0 = arith.constant 0 : index
    %c0_1 = arith.constant 0 : index
    %0 = vector.load %arg2[%c0, %c0_0, %c0_1] : memref<1x80x32xf32, #tpu.memory_space<vmem>>, vector<1x80x32xf32>
    %1 = vector.shape_cast %0 : vector<1x80x32xf32> to vector<80x32xf32>
    %c0_2 = arith.constant 0 : index
    %c0_3 = arith.constant 0 : index
    %c0_4 = arith.constant 0 : index
    %2 = vector.load %arg3[%c0_2, %c0_3, %c0_4] : memref<1x40x32xf32, #tpu.memory_space<vmem>>, vector<1x40x32xf32>
    %3 = vector.shape_cast %2 : vector<1x40x32xf32> to vector<40x32xf32>
    %4 = tpu.concatenate %1, %3 in 0 : vector<80x32xf32>, vector<40x32xf32> -> vector<120x32xf32>
    %5 = vector.extract_strided_slice %4 {offsets = [9, 0], sizes = [80, 32], strides = [1, 1]} : vector<120x32xf32> to vector<80x32xf32>
    %6 = vector.extract_strided_slice %4 {offsets = [10, 0], sizes = [80, 32], strides = [1, 1]} : vector<120x32xf32> to vector<80x32xf32>
    %7 = vector.extract_strided_slice %4 {offsets = [11, 0], sizes = [80, 32], strides = [1, 1]} : vector<120x32xf32> to vector<80x32xf32>
    %8 = vector.extract_strided_slice %4 {offsets = [19, 0], sizes = [80, 32], strides = [1, 1]} : vector<120x32xf32> to vector<80x32xf32>
    %9 = vector.extract_strided_slice %4 {offsets = [20, 0], sizes = [80, 32], strides = [1, 1]} : vector<120x32xf32> to vector<80x32xf32>
    %10 = vector.extract_strided_slice %4 {offsets = [21, 0], sizes = [80, 32], strides = [1, 1]} : vector<120x32xf32> to vector<80x32xf32>
    %11 = vector.extract_strided_slice %4 {offsets = [29, 0], sizes = [80, 32], strides = [1, 1]} : vector<120x32xf32> to vector<80x32xf32>
    %12 = vector.extract_strided_slice %4 {offsets = [30, 0], sizes = [80, 32], strides = [1, 1]} : vector<120x32xf32> to vector<80x32xf32>
    %13 = vector.extract_strided_slice %4 {offsets = [31, 0], sizes = [80, 32], strides = [1, 1]} : vector<120x32xf32> to vector<80x32xf32>
    %14 = tpu.concatenate %5, %6, %7, %8, %9, %10, %11, %12, %13 in 1 : vector<80x32xf32>, vector<80x32xf32>, vector<80x32xf32>, vector<80x32xf32>, vector<80x32xf32>, vector<80x32xf32>, vector<80x32xf32>, vector<80x32xf32>, vector<80x32xf32> -> vector<80x288xf32>
    %15 = arith.truncf %14 : vector<80x288xf32> to vector<80x288xbf16>
    %c0_5 = arith.constant 0 : index
    %c0_6 = arith.constant 0 : index
    %16 = vector.load %arg5[%c0_5, %c0_6] : memref<288x32xbf16, #tpu.memory_space<vmem>>, vector<288x32xbf16>
    %cst = arith.constant dense<0.000000e+00> : vector<80x32xf32>
    %17 = tpu.matmul %15, %16, %cst {dimension_numbers = #tpu.dot_dimension_numbers<[1], [0], [0], [1], [0, 0, 1, 1], [], []>} : vector<80x288xbf16>, vector<288x32xbf16>, vector<80x32xf32> -> vector<80x32xf32>
    %c0_7 = arith.constant 0 : index
    %c0_8 = arith.constant 0 : index
    %18 = vector.load %arg6[%c0_7, %c0_8] : memref<1x32xf32, #tpu.memory_space<vmem>>, vector<1x32xf32>
    %19 = vector.broadcast %18 : vector<1x32xf32> to vector<80x32xf32>
    %20 = arith.addf %17, %19 : vector<80x32xf32>
    %c0_9 = arith.constant 0 : index
    %c0_10 = arith.constant 0 : index
    %c0_11 = arith.constant 0 : index
    %21 = vector.load %arg4[%c0_9, %c0_10, %c0_11] : memref<1x80x32xf32, #tpu.memory_space<vmem>>, vector<1x80x32xf32>
    %22 = vector.shape_cast %21 : vector<1x80x32xf32> to vector<80x32xf32>
    %23 = arith.addf %20, %22 : vector<80x32xf32>
    %c0_12 = arith.constant 0 : index
    %c0_13 = arith.constant 0 : index
    %24 = vector.load %arg7[%c0_12, %c0_13] : memref<80x1xf32, #tpu.memory_space<vmem>>, vector<80x1xf32>
    %cst_14 = arith.constant 5.000000e-01 : f32
    %25 = vector.broadcast %cst_14 : f32 to vector<80x1xf32>
    %26 = arith.cmpf ogt, %24, %25 : vector<80x1xf32>
    %cst_15 = arith.constant 0.000000e+00 : f32
    %27 = vector.shape_cast %26 : vector<80x1xi1> to vector<80x1xi1>
    %28 = vector.broadcast %27 : vector<80x1xi1> to vector<80x32xi1>
    %29 = vector.broadcast %cst_15 : f32 to vector<80x32xf32>
    %30 = arith.select %28, %23, %29 : vector<80x32xi1>, vector<80x32xf32>
    %c0_16 = arith.constant 0 : index
    %c0_17 = arith.constant 0 : index
    %c0_18 = arith.constant 0 : index
    %31 = vector.load %arg8[%c0_16, %c0_17, %c0_18] : memref<1x80x32xf32, #tpu.memory_space<vmem>>, vector<1x80x32xf32>
    %32 = vector.shape_cast %31 : vector<1x80x32xf32> to vector<80x32xf32>
    %33 = vector.shape_cast %30 : vector<80x32xf32> to vector<1x80x32xf32>
    tpu.vector_store %arg8[%c0_16, %c0_17, %c0_18], %33 {strides = array<i32>} : memref<1x80x32xf32, #tpu.memory_space<vmem>>, vector<1x80x32xf32>,
    return
  }
  func.func @transform_0(%arg0: i32, %arg1: i32) -> (i32, i32, i32) {
    %c0_i32 = arith.constant 0 : i32
    %c0_i32_0 = arith.constant 0 : i32
    return %arg0, %arg1, %c0_i32 : i32, i32, i32
  }
  func.func @transform_1(%arg0: i32, %arg1: i32) -> (i32, i32, i32) {
    %c1_i32 = arith.constant 1 : i32
    %0 = arith.addi %arg1, %c1_i32 : i32
    %c2_i32 = arith.constant 2 : i32
    %1 = arith.muli %0, %c2_i32 : i32
    %c0_i32 = arith.constant 0 : i32
    %c0_i32_0 = arith.constant 0 : i32
    return %arg0, %1, %c0_i32 : i32, i32, i32
  }
  func.func @transform_2(%arg0: i32, %arg1: i32) -> (i32, i32, i32) {
    %c0_i32 = arith.constant 0 : i32
    %c0_i32_0 = arith.constant 0 : i32
    return %arg0, %arg1, %c0_i32 : i32, i32, i32
  }
  func.func @transform_3(%arg0: i32, %arg1: i32) -> (i32, i32) {
    %c0_i32 = arith.constant 0 : i32
    %c0_i32_0 = arith.constant 0 : i32
    %c0_i32_1 = arith.constant 0 : i32
    return %c0_i32, %c0_i32_0 : i32, i32
  }
  func.func @transform_4(%arg0: i32, %arg1: i32) -> (i32, i32) {
    %c0_i32 = arith.constant 0 : i32
    %c0_i32_0 = arith.constant 0 : i32
    %c0_i32_1 = arith.constant 0 : i32
    return %c0_i32, %c0_i32_0 : i32, i32
  }
  func.func @transform_5(%arg0: i32, %arg1: i32) -> (i32, i32) {
    %c0_i32 = arith.constant 0 : i32
    %c0_i32_0 = arith.constant 0 : i32
    %c0_i32_1 = arith.constant 0 : i32
    return %c0_i32, %c0_i32_0 : i32, i32
  }
  func.func @transform_6(%arg0: i32, %arg1: i32) -> (i32, i32, i32) {
    %c0_i32 = arith.constant 0 : i32
    %c0_i32_0 = arith.constant 0 : i32
    return %arg0, %arg1, %c0_i32 : i32, i32, i32
  }
}

module attributes {stable_mosaic.version = 11 : i64} {
  func.func @_conv_band_kernel(%arg0: i32, %arg1: i32, %arg2: memref<1x80x32xf32, #tpu.memory_space<vmem>>, %arg3: memref<1x40x32xf32, #tpu.memory_space<vmem>>, %arg4: memref<1x80x32xf32, #tpu.memory_space<vmem>>, %arg5: memref<288x32xbf16, #tpu.memory_space<vmem>>, %arg6: memref<1x32xf32, #tpu.memory_space<vmem>>, %arg7: memref<32x64xbf16, #tpu.memory_space<vmem>>, %arg8: memref<1x64xf32, #tpu.memory_space<vmem>>, %arg9: memref<64x32xbf16, #tpu.memory_space<vmem>>, %arg10: memref<1x32xf32, #tpu.memory_space<vmem>>, %arg11: memref<80x1xf32, #tpu.memory_space<vmem>>, %arg12: memref<1x80x32xf32, #tpu.memory_space<vmem>>) attributes {dimension_semantics = [#tpu.dimension_semantics<parallel>, #tpu.dimension_semantics<parallel>], iteration_bounds = array<i64: 2, 1>, scalar_prefetch = 0 : i64, scratch_operands = 0 : i64, tpu.core_type = #tpu.core_type<tc>, window_params = [{transform_indices = @transform_0, window_bounds = array<i64: 1, 80, 32>}, {transform_indices = @transform_1, window_bounds = array<i64: 1, 40, 32>}, {transform_indices = @transform_2, window_bounds = array<i64: 1, 80, 32>}, {pipeline_mode = #tpu.pipeline_mode<synchronous>, transform_indices = @transform_3, window_bounds = array<i64: 288, 32>}, {pipeline_mode = #tpu.pipeline_mode<synchronous>, transform_indices = @transform_4, window_bounds = array<i64: 1, 32>}, {pipeline_mode = #tpu.pipeline_mode<synchronous>, transform_indices = @transform_5, window_bounds = array<i64: 32, 64>}, {pipeline_mode = #tpu.pipeline_mode<synchronous>, transform_indices = @transform_6, window_bounds = array<i64: 1, 64>}, {pipeline_mode = #tpu.pipeline_mode<synchronous>, transform_indices = @transform_7, window_bounds = array<i64: 64, 32>}, {pipeline_mode = #tpu.pipeline_mode<synchronous>, transform_indices = @transform_8, window_bounds = array<i64: 1, 32>}, {pipeline_mode = #tpu.pipeline_mode<synchronous>, transform_indices = @transform_9, window_bounds = array<i64: 80, 1>}, {transform_indices = @transform_10, window_bounds = array<i64: 1, 80, 32>}]} {
    %c0 = arith.constant 0 : index
    %c0_0 = arith.constant 0 : index
    %c0_1 = arith.constant 0 : index
    %0 = vector.load %arg2[%c0, %c0_0, %c0_1] : memref<1x80x32xf32, #tpu.memory_space<vmem>>, vector<1x80x32xf32>
    %1 = vector.shape_cast %0 : vector<1x80x32xf32> to vector<80x32xf32>
    %c0_2 = arith.constant 0 : index
    %c0_3 = arith.constant 0 : index
    %c0_4 = arith.constant 0 : index
    %2 = vector.load %arg3[%c0_2, %c0_3, %c0_4] : memref<1x40x32xf32, #tpu.memory_space<vmem>>, vector<1x40x32xf32>
    %3 = vector.shape_cast %2 : vector<1x40x32xf32> to vector<40x32xf32>
    %4 = tpu.concatenate %1, %3 in 0 : vector<80x32xf32>, vector<40x32xf32> -> vector<120x32xf32>
    %5 = vector.extract_strided_slice %4 {offsets = [9, 0], sizes = [80, 32], strides = [1, 1]} : vector<120x32xf32> to vector<80x32xf32>
    %6 = vector.extract_strided_slice %4 {offsets = [10, 0], sizes = [80, 32], strides = [1, 1]} : vector<120x32xf32> to vector<80x32xf32>
    %7 = vector.extract_strided_slice %4 {offsets = [11, 0], sizes = [80, 32], strides = [1, 1]} : vector<120x32xf32> to vector<80x32xf32>
    %8 = vector.extract_strided_slice %4 {offsets = [19, 0], sizes = [80, 32], strides = [1, 1]} : vector<120x32xf32> to vector<80x32xf32>
    %9 = vector.extract_strided_slice %4 {offsets = [20, 0], sizes = [80, 32], strides = [1, 1]} : vector<120x32xf32> to vector<80x32xf32>
    %10 = vector.extract_strided_slice %4 {offsets = [21, 0], sizes = [80, 32], strides = [1, 1]} : vector<120x32xf32> to vector<80x32xf32>
    %11 = vector.extract_strided_slice %4 {offsets = [29, 0], sizes = [80, 32], strides = [1, 1]} : vector<120x32xf32> to vector<80x32xf32>
    %12 = vector.extract_strided_slice %4 {offsets = [30, 0], sizes = [80, 32], strides = [1, 1]} : vector<120x32xf32> to vector<80x32xf32>
    %13 = vector.extract_strided_slice %4 {offsets = [31, 0], sizes = [80, 32], strides = [1, 1]} : vector<120x32xf32> to vector<80x32xf32>
    %14 = tpu.concatenate %5, %6, %7, %8, %9, %10, %11, %12, %13 in 1 : vector<80x32xf32>, vector<80x32xf32>, vector<80x32xf32>, vector<80x32xf32>, vector<80x32xf32>, vector<80x32xf32>, vector<80x32xf32>, vector<80x32xf32>, vector<80x32xf32> -> vector<80x288xf32>
    %15 = arith.truncf %14 : vector<80x288xf32> to vector<80x288xbf16>
    %c0_5 = arith.constant 0 : index
    %c0_6 = arith.constant 0 : index
    %16 = vector.load %arg5[%c0_5, %c0_6] : memref<288x32xbf16, #tpu.memory_space<vmem>>, vector<288x32xbf16>
    %cst = arith.constant dense<0.000000e+00> : vector<80x32xf32>
    %17 = tpu.matmul %15, %16, %cst {dimension_numbers = #tpu.dot_dimension_numbers<[1], [0], [0], [1], [0, 0, 1, 1], [], []>} : vector<80x288xbf16>, vector<288x32xbf16>, vector<80x32xf32> -> vector<80x32xf32>
    %c0_7 = arith.constant 0 : index
    %c0_8 = arith.constant 0 : index
    %18 = vector.load %arg6[%c0_7, %c0_8] : memref<1x32xf32, #tpu.memory_space<vmem>>, vector<1x32xf32>
    %19 = vector.broadcast %18 : vector<1x32xf32> to vector<80x32xf32>
    %20 = arith.addf %17, %19 : vector<80x32xf32>
    %c0_9 = arith.constant 0 : index
    %c0_10 = arith.constant 0 : index
    %c0_11 = arith.constant 0 : index
    %21 = vector.load %arg4[%c0_9, %c0_10, %c0_11] : memref<1x80x32xf32, #tpu.memory_space<vmem>>, vector<1x80x32xf32>
    %22 = vector.shape_cast %21 : vector<1x80x32xf32> to vector<80x32xf32>
    %23 = arith.truncf %20 : vector<80x32xf32> to vector<80x32xbf16>
    %c0_12 = arith.constant 0 : index
    %c0_13 = arith.constant 0 : index
    %24 = vector.load %arg7[%c0_12, %c0_13] : memref<32x64xbf16, #tpu.memory_space<vmem>>, vector<32x64xbf16>
    %cst_14 = arith.constant dense<0.000000e+00> : vector<80x64xf32>
    %25 = tpu.matmul %23, %24, %cst_14 {dimension_numbers = #tpu.dot_dimension_numbers<[1], [0], [0], [1], [0, 0, 1, 1], [], []>} : vector<80x32xbf16>, vector<32x64xbf16>, vector<80x64xf32> -> vector<80x64xf32>
    %c0_15 = arith.constant 0 : index
    %c0_16 = arith.constant 0 : index
    %26 = vector.load %arg8[%c0_15, %c0_16] : memref<1x64xf32, #tpu.memory_space<vmem>>, vector<1x64xf32>
    %27 = vector.broadcast %26 : vector<1x64xf32> to vector<80x64xf32>
    %28 = arith.addf %25, %27 : vector<80x64xf32>
    %29 = arith.mulf %28, %28 : vector<80x64xf32>
    %30 = arith.mulf %28, %29 : vector<80x64xf32>
    %cst_17 = arith.constant 4.471500e-02 : f32
    %31 = vector.broadcast %cst_17 : f32 to vector<80x64xf32>
    %32 = arith.mulf %31, %30 : vector<80x64xf32>
    %33 = arith.addf %28, %32 : vector<80x64xf32>
    %cst_18 = arith.constant 0.797884583 : f32
    %34 = vector.broadcast %cst_18 : f32 to vector<80x64xf32>
    %35 = arith.mulf %34, %33 : vector<80x64xf32>
    %36 = math.tanh %35 : vector<80x64xf32>
    %cst_19 = arith.constant 1.000000e+00 : f32
    %37 = vector.broadcast %cst_19 : f32 to vector<80x64xf32>
    %38 = arith.addf %37, %36 : vector<80x64xf32>
    %cst_20 = arith.constant 5.000000e-01 : f32
    %39 = vector.broadcast %cst_20 : f32 to vector<80x64xf32>
    %40 = arith.mulf %39, %38 : vector<80x64xf32>
    %41 = arith.mulf %28, %40 : vector<80x64xf32>
    %42 = arith.truncf %41 : vector<80x64xf32> to vector<80x64xbf16>
    %c0_21 = arith.constant 0 : index
    %c0_22 = arith.constant 0 : index
    %43 = vector.load %arg9[%c0_21, %c0_22] : memref<64x32xbf16, #tpu.memory_space<vmem>>, vector<64x32xbf16>
    %cst_23 = arith.constant dense<0.000000e+00> : vector<80x32xf32>
    %44 = tpu.matmul %42, %43, %cst_23 {dimension_numbers = #tpu.dot_dimension_numbers<[1], [0], [0], [1], [0, 0, 1, 1], [], []>} : vector<80x64xbf16>, vector<64x32xbf16>, vector<80x32xf32> -> vector<80x32xf32>
    %c0_24 = arith.constant 0 : index
    %c0_25 = arith.constant 0 : index
    %45 = vector.load %arg10[%c0_24, %c0_25] : memref<1x32xf32, #tpu.memory_space<vmem>>, vector<1x32xf32>
    %46 = vector.broadcast %45 : vector<1x32xf32> to vector<80x32xf32>
    %47 = arith.addf %44, %46 : vector<80x32xf32>
    %48 = arith.negf %47 : vector<80x32xf32>
    %49 = math.exp %48 : vector<80x32xf32>
    %cst_26 = arith.constant 1.000000e+00 : f32
    %50 = vector.broadcast %cst_26 : f32 to vector<80x32xf32>
    %51 = arith.addf %50, %49 : vector<80x32xf32>
    %52 = arith.divf %50, %51 : vector<80x32xf32>
    %53 = arith.mulf %20, %52 : vector<80x32xf32>
    %54 = arith.addf %22, %53 : vector<80x32xf32>
    %c0_27 = arith.constant 0 : index
    %c0_28 = arith.constant 0 : index
    %55 = vector.load %arg11[%c0_27, %c0_28] : memref<80x1xf32, #tpu.memory_space<vmem>>, vector<80x1xf32>
    %cst_29 = arith.constant 5.000000e-01 : f32
    %56 = vector.broadcast %cst_29 : f32 to vector<80x1xf32>
    %57 = arith.cmpf ogt, %55, %56 : vector<80x1xf32>
    %cst_30 = arith.constant 0.000000e+00 : f32
    %58 = vector.shape_cast %57 : vector<80x1xi1> to vector<80x1xi1>
    %59 = vector.broadcast %58 : vector<80x1xi1> to vector<80x32xi1>
    %60 = vector.broadcast %cst_30 : f32 to vector<80x32xf32>
    %61 = arith.select %59, %54, %60 : vector<80x32xi1>, vector<80x32xf32>
    %c0_31 = arith.constant 0 : index
    %c0_32 = arith.constant 0 : index
    %c0_33 = arith.constant 0 : index
    %62 = vector.load %arg12[%c0_31, %c0_32, %c0_33] : memref<1x80x32xf32, #tpu.memory_space<vmem>>, vector<1x80x32xf32>
    %63 = vector.shape_cast %62 : vector<1x80x32xf32> to vector<80x32xf32>
    %64 = vector.shape_cast %61 : vector<80x32xf32> to vector<1x80x32xf32>
    tpu.vector_store %arg12[%c0_31, %c0_32, %c0_33], %64 {strides = array<i32>} : memref<1x80x32xf32, #tpu.memory_space<vmem>>, vector<1x80x32xf32>,
    return
  }
  func.func @transform_0(%arg0: i32, %arg1: i32) -> (i32, i32, i32) {
    %c0_i32 = arith.constant 0 : i32
    %c0_i32_0 = arith.constant 0 : i32
    return %arg0, %arg1, %c0_i32 : i32, i32, i32
  }
  func.func @transform_1(%arg0: i32, %arg1: i32) -> (i32, i32, i32) {
    %c1_i32 = arith.constant 1 : i32
    %0 = arith.addi %arg1, %c1_i32 : i32
    %c2_i32 = arith.constant 2 : i32
    %1 = arith.muli %0, %c2_i32 : i32
    %c0_i32 = arith.constant 0 : i32
    %c0_i32_0 = arith.constant 0 : i32
    return %arg0, %1, %c0_i32 : i32, i32, i32
  }
  func.func @transform_2(%arg0: i32, %arg1: i32) -> (i32, i32, i32) {
    %c0_i32 = arith.constant 0 : i32
    %c0_i32_0 = arith.constant 0 : i32
    return %arg0, %arg1, %c0_i32 : i32, i32, i32
  }
  func.func @transform_3(%arg0: i32, %arg1: i32) -> (i32, i32) {
    %c0_i32 = arith.constant 0 : i32
    %c0_i32_0 = arith.constant 0 : i32
    %c0_i32_1 = arith.constant 0 : i32
    return %c0_i32, %c0_i32_0 : i32, i32
  }
  func.func @transform_4(%arg0: i32, %arg1: i32) -> (i32, i32) {
    %c0_i32 = arith.constant 0 : i32
    %c0_i32_0 = arith.constant 0 : i32
    %c0_i32_1 = arith.constant 0 : i32
    return %c0_i32, %c0_i32_0 : i32, i32
  }
  func.func @transform_5(%arg0: i32, %arg1: i32) -> (i32, i32) {
    %c0_i32 = arith.constant 0 : i32
    %c0_i32_0 = arith.constant 0 : i32
    %c0_i32_1 = arith.constant 0 : i32
    return %c0_i32, %c0_i32_0 : i32, i32
  }
  func.func @transform_6(%arg0: i32, %arg1: i32) -> (i32, i32) {
    %c0_i32 = arith.constant 0 : i32
    %c0_i32_0 = arith.constant 0 : i32
    %c0_i32_1 = arith.constant 0 : i32
    return %c0_i32, %c0_i32_0 : i32, i32
  }
  func.func @transform_7(%arg0: i32, %arg1: i32) -> (i32, i32) {
    %c0_i32 = arith.constant 0 : i32
    %c0_i32_0 = arith.constant 0 : i32
    %c0_i32_1 = arith.constant 0 : i32
    return %c0_i32, %c0_i32_0 : i32, i32
  }
  func.func @transform_8(%arg0: i32, %arg1: i32) -> (i32, i32) {
    %c0_i32 = arith.constant 0 : i32
    %c0_i32_0 = arith.constant 0 : i32
    %c0_i32_1 = arith.constant 0 : i32
    return %c0_i32, %c0_i32_0 : i32, i32
  }
  func.func @transform_9(%arg0: i32, %arg1: i32) -> (i32, i32) {
    %c0_i32 = arith.constant 0 : i32
    %c0_i32_0 = arith.constant 0 : i32
    %c0_i32_1 = arith.constant 0 : i32
    return %c0_i32, %c0_i32_0 : i32, i32
  }
  func.func @transform_10(%arg0: i32, %arg1: i32) -> (i32, i32, i32) {
    %c0_i32 = arith.constant 0 : i32
    %c0_i32_0 = arith.constant 0 : i32
    return %arg0, %arg1, %c0_i32 : i32, i32, i32
  }
}

module attributes {stable_mosaic.version = 11 : i64} {
  func.func @_conv_band_kernel(%arg0: i32, %arg1: i32, %arg2: memref<1x80x32xf32, #tpu.memory_space<vmem>>, %arg3: memref<1x40x32xf32, #tpu.memory_space<vmem>>, %arg4: memref<288x144xbf16, #tpu.memory_space<vmem>>, %arg5: memref<1x144xf32, #tpu.memory_space<vmem>>, %arg6: memref<80x1xf32, #tpu.memory_space<vmem>>, %arg7: memref<1x80x144xf32, #tpu.memory_space<vmem>>) attributes {dimension_semantics = [#tpu.dimension_semantics<parallel>, #tpu.dimension_semantics<parallel>], iteration_bounds = array<i64: 2, 1>, scalar_prefetch = 0 : i64, scratch_operands = 0 : i64, tpu.core_type = #tpu.core_type<tc>, window_params = [{transform_indices = @transform_0, window_bounds = array<i64: 1, 80, 32>}, {transform_indices = @transform_1, window_bounds = array<i64: 1, 40, 32>}, {pipeline_mode = #tpu.pipeline_mode<synchronous>, transform_indices = @transform_2, window_bounds = array<i64: 288, 144>}, {pipeline_mode = #tpu.pipeline_mode<synchronous>, transform_indices = @transform_3, window_bounds = array<i64: 1, 144>}, {pipeline_mode = #tpu.pipeline_mode<synchronous>, transform_indices = @transform_4, window_bounds = array<i64: 80, 1>}, {transform_indices = @transform_5, window_bounds = array<i64: 1, 80, 144>}]} {
    %c0 = arith.constant 0 : index
    %c0_0 = arith.constant 0 : index
    %c0_1 = arith.constant 0 : index
    %0 = vector.load %arg2[%c0, %c0_0, %c0_1] : memref<1x80x32xf32, #tpu.memory_space<vmem>>, vector<1x80x32xf32>
    %1 = vector.shape_cast %0 : vector<1x80x32xf32> to vector<80x32xf32>
    %c0_2 = arith.constant 0 : index
    %c0_3 = arith.constant 0 : index
    %c0_4 = arith.constant 0 : index
    %2 = vector.load %arg3[%c0_2, %c0_3, %c0_4] : memref<1x40x32xf32, #tpu.memory_space<vmem>>, vector<1x40x32xf32>
    %3 = vector.shape_cast %2 : vector<1x40x32xf32> to vector<40x32xf32>
    %4 = tpu.concatenate %1, %3 in 0 : vector<80x32xf32>, vector<40x32xf32> -> vector<120x32xf32>
    %5 = vector.extract_strided_slice %4 {offsets = [9, 0], sizes = [80, 32], strides = [1, 1]} : vector<120x32xf32> to vector<80x32xf32>
    %6 = vector.extract_strided_slice %4 {offsets = [10, 0], sizes = [80, 32], strides = [1, 1]} : vector<120x32xf32> to vector<80x32xf32>
    %7 = vector.extract_strided_slice %4 {offsets = [11, 0], sizes = [80, 32], strides = [1, 1]} : vector<120x32xf32> to vector<80x32xf32>
    %8 = vector.extract_strided_slice %4 {offsets = [19, 0], sizes = [80, 32], strides = [1, 1]} : vector<120x32xf32> to vector<80x32xf32>
    %9 = vector.extract_strided_slice %4 {offsets = [20, 0], sizes = [80, 32], strides = [1, 1]} : vector<120x32xf32> to vector<80x32xf32>
    %10 = vector.extract_strided_slice %4 {offsets = [21, 0], sizes = [80, 32], strides = [1, 1]} : vector<120x32xf32> to vector<80x32xf32>
    %11 = vector.extract_strided_slice %4 {offsets = [29, 0], sizes = [80, 32], strides = [1, 1]} : vector<120x32xf32> to vector<80x32xf32>
    %12 = vector.extract_strided_slice %4 {offsets = [30, 0], sizes = [80, 32], strides = [1, 1]} : vector<120x32xf32> to vector<80x32xf32>
    %13 = vector.extract_strided_slice %4 {offsets = [31, 0], sizes = [80, 32], strides = [1, 1]} : vector<120x32xf32> to vector<80x32xf32>
    %14 = tpu.concatenate %5, %6, %7, %8, %9, %10, %11, %12, %13 in 1 : vector<80x32xf32>, vector<80x32xf32>, vector<80x32xf32>, vector<80x32xf32>, vector<80x32xf32>, vector<80x32xf32>, vector<80x32xf32>, vector<80x32xf32>, vector<80x32xf32> -> vector<80x288xf32>
    %15 = arith.truncf %14 : vector<80x288xf32> to vector<80x288xbf16>
    %c0_5 = arith.constant 0 : index
    %c0_6 = arith.constant 0 : index
    %16 = vector.load %arg4[%c0_5, %c0_6] : memref<288x144xbf16, #tpu.memory_space<vmem>>, vector<288x144xbf16>
    %cst = arith.constant dense<0.000000e+00> : vector<80x144xf32>
    %17 = tpu.matmul %15, %16, %cst {dimension_numbers = #tpu.dot_dimension_numbers<[1], [0], [0], [1], [0, 0, 1, 1], [], []>} : vector<80x288xbf16>, vector<288x144xbf16>, vector<80x144xf32> -> vector<80x144xf32>
    %c0_7 = arith.constant 0 : index
    %c0_8 = arith.constant 0 : index
    %18 = vector.load %arg5[%c0_7, %c0_8] : memref<1x144xf32, #tpu.memory_space<vmem>>, vector<1x144xf32>
    %19 = vector.broadcast %18 : vector<1x144xf32> to vector<80x144xf32>
    %20 = arith.addf %17, %19 : vector<80x144xf32>
    %c0_9 = arith.constant 0 : index
    %c0_10 = arith.constant 0 : index
    %21 = vector.load %arg6[%c0_9, %c0_10] : memref<80x1xf32, #tpu.memory_space<vmem>>, vector<80x1xf32>
    %cst_11 = arith.constant 5.000000e-01 : f32
    %22 = vector.broadcast %cst_11 : f32 to vector<80x1xf32>
    %23 = arith.cmpf ogt, %21, %22 : vector<80x1xf32>
    %cst_12 = arith.constant 0.000000e+00 : f32
    %24 = vector.shape_cast %23 : vector<80x1xi1> to vector<80x1xi1>
    %25 = vector.broadcast %24 : vector<80x1xi1> to vector<80x144xi1>
    %26 = vector.broadcast %cst_12 : f32 to vector<80x144xf32>
    %27 = arith.select %25, %20, %26 : vector<80x144xi1>, vector<80x144xf32>
    %c0_13 = arith.constant 0 : index
    %c0_14 = arith.constant 0 : index
    %c0_15 = arith.constant 0 : index
    %28 = vector.load %arg7[%c0_13, %c0_14, %c0_15] : memref<1x80x144xf32, #tpu.memory_space<vmem>>, vector<1x80x144xf32>
    %29 = vector.shape_cast %28 : vector<1x80x144xf32> to vector<80x144xf32>
    %30 = vector.shape_cast %27 : vector<80x144xf32> to vector<1x80x144xf32>
    tpu.vector_store %arg7[%c0_13, %c0_14, %c0_15], %30 {strides = array<i32>} : memref<1x80x144xf32, #tpu.memory_space<vmem>>, vector<1x80x144xf32>,
    return
  }
  func.func @transform_0(%arg0: i32, %arg1: i32) -> (i32, i32, i32) {
    %c0_i32 = arith.constant 0 : i32
    %c0_i32_0 = arith.constant 0 : i32
    return %arg0, %arg1, %c0_i32 : i32, i32, i32
  }
  func.func @transform_1(%arg0: i32, %arg1: i32) -> (i32, i32, i32) {
    %c1_i32 = arith.constant 1 : i32
    %0 = arith.addi %arg1, %c1_i32 : i32
    %c2_i32 = arith.constant 2 : i32
    %1 = arith.muli %0, %c2_i32 : i32
    %c0_i32 = arith.constant 0 : i32
    %c0_i32_0 = arith.constant 0 : i32
    return %arg0, %1, %c0_i32 : i32, i32, i32
  }
  func.func @transform_2(%arg0: i32, %arg1: i32) -> (i32, i32) {
    %c0_i32 = arith.constant 0 : i32
    %c0_i32_0 = arith.constant 0 : i32
    %c0_i32_1 = arith.constant 0 : i32
    return %c0_i32, %c0_i32_0 : i32, i32
  }
  func.func @transform_3(%arg0: i32, %arg1: i32) -> (i32, i32) {
    %c0_i32 = arith.constant 0 : i32
    %c0_i32_0 = arith.constant 0 : i32
    %c0_i32_1 = arith.constant 0 : i32
    return %c0_i32, %c0_i32_0 : i32, i32
  }
  func.func @transform_4(%arg0: i32, %arg1: i32) -> (i32, i32) {
    %c0_i32 = arith.constant 0 : i32
    %c0_i32_0 = arith.constant 0 : i32
    %c0_i32_1 = arith.constant 0 : i32
    return %c0_i32, %c0_i32_0 : i32, i32
  }
  func.func @transform_5(%arg0: i32, %arg1: i32) -> (i32, i32, i32) {
    %c0_i32 = arith.constant 0 : i32
    %c0_i32_0 = arith.constant 0 : i32
    return %arg0, %arg1, %c0_i32 : i32, i32, i32
  }
}

module attributes {stable_mosaic.version = 11 : i64} {
  func.func @_wsum_kernel(%arg0: i32, %arg1: i32, %arg2: memref<1x9x32x32xf32, #tpu.memory_space<vmem>>, %arg3: memref<1x9x32x32xf32, #tpu.memory_space<vmem>>, %arg4: memref<1x32x32xf32, #tpu.memory_space<vmem>>) attributes {dimension_semantics = [#tpu.dimension_semantics<parallel>, #tpu.dimension_semantics<parallel>], iteration_bounds = array<i64: 2, 1>, scalar_prefetch = 0 : i64, scratch_operands = 0 : i64, tpu.core_type = #tpu.core_type<tc>, window_params = [{transform_indices = @transform_0, window_bounds = array<i64: 1, 9, 32, 32>}, {transform_indices = @transform_1, window_bounds = array<i64: 1, 9, 32, 32>}, {transform_indices = @transform_2, window_bounds = array<i64: 1, 32, 32>}]} {
    %c0 = arith.constant 0 : index
    %c0_0 = arith.constant 0 : index
    %c0_1 = arith.constant 0 : index
    %c0_2 = arith.constant 0 : index
    %0 = vector.load %arg2[%c0, %c0_0, %c0_1, %c0_2] : memref<1x9x32x32xf32, #tpu.memory_space<vmem>>, vector<1x1x32x32xf32>
    %1 = vector.shape_cast %0 : vector<1x1x32x32xf32> to vector<32x32xf32>
    %c0_3 = arith.constant 0 : index
    %c0_4 = arith.constant 0 : index
    %c0_5 = arith.constant 0 : index
    %c0_6 = arith.constant 0 : index
    %2 = vector.load %arg3[%c0_3, %c0_4, %c0_5, %c0_6] : memref<1x9x32x32xf32, #tpu.memory_space<vmem>>, vector<1x1x32x32xf32>
    %3 = vector.shape_cast %2 : vector<1x1x32x32xf32> to vector<32x32xf32>
    %4 = arith.mulf %1, %3 : vector<32x32xf32>
    %c0_7 = arith.constant 0 : index
    %c1 = arith.constant 1 : index
    %c0_8 = arith.constant 0 : index
    %c0_9 = arith.constant 0 : index
    %5 = vector.load %arg2[%c0_7, %c1, %c0_8, %c0_9] : memref<1x9x32x32xf32, #tpu.memory_space<vmem>>, vector<1x1x32x32xf32>
    %6 = vector.shape_cast %5 : vector<1x1x32x32xf32> to vector<32x32xf32>
    %c0_10 = arith.constant 0 : index
    %c1_11 = arith.constant 1 : index
    %c0_12 = arith.constant 0 : index
    %c0_13 = arith.constant 0 : index
    %7 = vector.load %arg3[%c0_10, %c1_11, %c0_12, %c0_13] : memref<1x9x32x32xf32, #tpu.memory_space<vmem>>, vector<1x1x32x32xf32>
    %8 = vector.shape_cast %7 : vector<1x1x32x32xf32> to vector<32x32xf32>
    %9 = arith.mulf %6, %8 : vector<32x32xf32>
    %10 = arith.addf %4, %9 : vector<32x32xf32>
    %c0_14 = arith.constant 0 : index
    %c2 = arith.constant 2 : index
    %c0_15 = arith.constant 0 : index
    %c0_16 = arith.constant 0 : index
    %11 = vector.load %arg2[%c0_14, %c2, %c0_15, %c0_16] : memref<1x9x32x32xf32, #tpu.memory_space<vmem>>, vector<1x1x32x32xf32>
    %12 = vector.shape_cast %11 : vector<1x1x32x32xf32> to vector<32x32xf32>
    %c0_17 = arith.constant 0 : index
    %c2_18 = arith.constant 2 : index
    %c0_19 = arith.constant 0 : index
    %c0_20 = arith.constant 0 : index
    %13 = vector.load %arg3[%c0_17, %c2_18, %c0_19, %c0_20] : memref<1x9x32x32xf32, #tpu.memory_space<vmem>>, vector<1x1x32x32xf32>
    %14 = vector.shape_cast %13 : vector<1x1x32x32xf32> to vector<32x32xf32>
    %15 = arith.mulf %12, %14 : vector<32x32xf32>
    %16 = arith.addf %10, %15 : vector<32x32xf32>
    %c0_21 = arith.constant 0 : index
    %c3 = arith.constant 3 : index
    %c0_22 = arith.constant 0 : index
    %c0_23 = arith.constant 0 : index
    %17 = vector.load %arg2[%c0_21, %c3, %c0_22, %c0_23] : memref<1x9x32x32xf32, #tpu.memory_space<vmem>>, vector<1x1x32x32xf32>
    %18 = vector.shape_cast %17 : vector<1x1x32x32xf32> to vector<32x32xf32>
    %c0_24 = arith.constant 0 : index
    %c3_25 = arith.constant 3 : index
    %c0_26 = arith.constant 0 : index
    %c0_27 = arith.constant 0 : index
    %19 = vector.load %arg3[%c0_24, %c3_25, %c0_26, %c0_27] : memref<1x9x32x32xf32, #tpu.memory_space<vmem>>, vector<1x1x32x32xf32>
    %20 = vector.shape_cast %19 : vector<1x1x32x32xf32> to vector<32x32xf32>
    %21 = arith.mulf %18, %20 : vector<32x32xf32>
    %22 = arith.addf %16, %21 : vector<32x32xf32>
    %c0_28 = arith.constant 0 : index
    %c4 = arith.constant 4 : index
    %c0_29 = arith.constant 0 : index
    %c0_30 = arith.constant 0 : index
    %23 = vector.load %arg2[%c0_28, %c4, %c0_29, %c0_30] : memref<1x9x32x32xf32, #tpu.memory_space<vmem>>, vector<1x1x32x32xf32>
    %24 = vector.shape_cast %23 : vector<1x1x32x32xf32> to vector<32x32xf32>
    %c0_31 = arith.constant 0 : index
    %c4_32 = arith.constant 4 : index
    %c0_33 = arith.constant 0 : index
    %c0_34 = arith.constant 0 : index
    %25 = vector.load %arg3[%c0_31, %c4_32, %c0_33, %c0_34] : memref<1x9x32x32xf32, #tpu.memory_space<vmem>>, vector<1x1x32x32xf32>
    %26 = vector.shape_cast %25 : vector<1x1x32x32xf32> to vector<32x32xf32>
    %27 = arith.mulf %24, %26 : vector<32x32xf32>
    %28 = arith.addf %22, %27 : vector<32x32xf32>
    %c0_35 = arith.constant 0 : index
    %c5 = arith.constant 5 : index
    %c0_36 = arith.constant 0 : index
    %c0_37 = arith.constant 0 : index
    %29 = vector.load %arg2[%c0_35, %c5, %c0_36, %c0_37] : memref<1x9x32x32xf32, #tpu.memory_space<vmem>>, vector<1x1x32x32xf32>
    %30 = vector.shape_cast %29 : vector<1x1x32x32xf32> to vector<32x32xf32>
    %c0_38 = arith.constant 0 : index
    %c5_39 = arith.constant 5 : index
    %c0_40 = arith.constant 0 : index
    %c0_41 = arith.constant 0 : index
    %31 = vector.load %arg3[%c0_38, %c5_39, %c0_40, %c0_41] : memref<1x9x32x32xf32, #tpu.memory_space<vmem>>, vector<1x1x32x32xf32>
    %32 = vector.shape_cast %31 : vector<1x1x32x32xf32> to vector<32x32xf32>
    %33 = arith.mulf %30, %32 : vector<32x32xf32>
    %34 = arith.addf %28, %33 : vector<32x32xf32>
    %c0_42 = arith.constant 0 : index
    %c6 = arith.constant 6 : index
    %c0_43 = arith.constant 0 : index
    %c0_44 = arith.constant 0 : index
    %35 = vector.load %arg2[%c0_42, %c6, %c0_43, %c0_44] : memref<1x9x32x32xf32, #tpu.memory_space<vmem>>, vector<1x1x32x32xf32>
    %36 = vector.shape_cast %35 : vector<1x1x32x32xf32> to vector<32x32xf32>
    %c0_45 = arith.constant 0 : index
    %c6_46 = arith.constant 6 : index
    %c0_47 = arith.constant 0 : index
    %c0_48 = arith.constant 0 : index
    %37 = vector.load %arg3[%c0_45, %c6_46, %c0_47, %c0_48] : memref<1x9x32x32xf32, #tpu.memory_space<vmem>>, vector<1x1x32x32xf32>
    %38 = vector.shape_cast %37 : vector<1x1x32x32xf32> to vector<32x32xf32>
    %39 = arith.mulf %36, %38 : vector<32x32xf32>
    %40 = arith.addf %34, %39 : vector<32x32xf32>
    %c0_49 = arith.constant 0 : index
    %c7 = arith.constant 7 : index
    %c0_50 = arith.constant 0 : index
    %c0_51 = arith.constant 0 : index
    %41 = vector.load %arg2[%c0_49, %c7, %c0_50, %c0_51] : memref<1x9x32x32xf32, #tpu.memory_space<vmem>>, vector<1x1x32x32xf32>
    %42 = vector.shape_cast %41 : vector<1x1x32x32xf32> to vector<32x32xf32>
    %c0_52 = arith.constant 0 : index
    %c7_53 = arith.constant 7 : index
    %c0_54 = arith.constant 0 : index
    %c0_55 = arith.constant 0 : index
    %43 = vector.load %arg3[%c0_52, %c7_53, %c0_54, %c0_55] : memref<1x9x32x32xf32, #tpu.memory_space<vmem>>, vector<1x1x32x32xf32>
    %44 = vector.shape_cast %43 : vector<1x1x32x32xf32> to vector<32x32xf32>
    %45 = arith.mulf %42, %44 : vector<32x32xf32>
    %46 = arith.addf %40, %45 : vector<32x32xf32>
    %c0_56 = arith.constant 0 : index
    %c8 = arith.constant 8 : index
    %c0_57 = arith.constant 0 : index
    %c0_58 = arith.constant 0 : index
    %47 = vector.load %arg2[%c0_56, %c8, %c0_57, %c0_58] : memref<1x9x32x32xf32, #tpu.memory_space<vmem>>, vector<1x1x32x32xf32>
    %48 = vector.shape_cast %47 : vector<1x1x32x32xf32> to vector<32x32xf32>
    %c0_59 = arith.constant 0 : index
    %c8_60 = arith.constant 8 : index
    %c0_61 = arith.constant 0 : index
    %c0_62 = arith.constant 0 : index
    %49 = vector.load %arg3[%c0_59, %c8_60, %c0_61, %c0_62] : memref<1x9x32x32xf32, #tpu.memory_space<vmem>>, vector<1x1x32x32xf32>
    %50 = vector.shape_cast %49 : vector<1x1x32x32xf32> to vector<32x32xf32>
    %51 = arith.mulf %48, %50 : vector<32x32xf32>
    %52 = arith.addf %46, %51 : vector<32x32xf32>
    %c0_63 = arith.constant 0 : index
    %c0_64 = arith.constant 0 : index
    %c0_65 = arith.constant 0 : index
    %53 = vector.load %arg4[%c0_63, %c0_64, %c0_65] : memref<1x32x32xf32, #tpu.memory_space<vmem>>, vector<1x32x32xf32>
    %54 = vector.shape_cast %53 : vector<1x32x32xf32> to vector<32x32xf32>
    %55 = vector.shape_cast %52 : vector<32x32xf32> to vector<1x32x32xf32>
    tpu.vector_store %arg4[%c0_63, %c0_64, %c0_65], %55 {strides = array<i32>} : memref<1x32x32xf32, #tpu.memory_space<vmem>>, vector<1x32x32xf32>,
    return
  }
  func.func @transform_0(%arg0: i32, %arg1: i32) -> (i32, i32, i32, i32) {
    %c0_i32 = arith.constant 0 : i32
    %c0_i32_0 = arith.constant 0 : i32
    %c0_i32_1 = arith.constant 0 : i32
    return %arg0, %c0_i32, %arg1, %c0_i32_0 : i32, i32, i32, i32
  }
  func.func @transform_1(%arg0: i32, %arg1: i32) -> (i32, i32, i32, i32) {
    %c0_i32 = arith.constant 0 : i32
    %c0_i32_0 = arith.constant 0 : i32
    %c0_i32_1 = arith.constant 0 : i32
    return %arg0, %c0_i32, %arg1, %c0_i32_0 : i32, i32, i32, i32
  }
  func.func @transform_2(%arg0: i32, %arg1: i32) -> (i32, i32, i32) {
    %c0_i32 = arith.constant 0 : i32
    %c0_i32_0 = arith.constant 0 : i32
    return %arg0, %arg1, %c0_i32 : i32, i32, i32
  }
}

</mosaic_0001>

<llo_original>
// kernel: sr_context_upsample_forward.8
$region0: #{sr_context_upsample_forward.8}
  #allocation0 [shape = 'u32[]', space=smem, size = 0x4, offset = 0x4, fixed_abs, tag = 'smem constant byte address 0x4 - core index']
  #allocation1 [shape = 'u32[144,128]{1,0:T(1,128)}', space=vmem, size = 0x12000, scoped, tag = 'internal scratch']
  %s0 = inlined_call_operand.vmem [shape: f32[2,120,9], index: 0, kind: input, shape index: {}, may-alias: {0,1}]
  %s1 = inlined_call_operand.vmem [shape: f32[2,120,9], index: 1, kind: input, shape index: {}, may-alias: {0,1}]
  %s2 = inlined_call_operand.vmem [shape: bf16[81,32], index: 2, kind: input, shape index: {}]
  %s3 = inlined_call_operand.vmem [shape: f32[1,32], index: 3, kind: input, shape index: {}]
  %s4 = inlined_call_operand.vmem [shape: f32[80,1], index: 4, kind: input, shape index: {}]
  %s5 = inlined_call_operand.vmem [shape: f32[2,80,32], index: 5, kind: output, shape index: {}]
  %s6 = sld [smem:[#allocation0]]
  $region53: #{sr_context_upsample_forward.8} parent=0
    _
  %s8 = ssub.s32 1, %s6
  %s9 = scalar_select 0, %s8, %s6
  loop: start=0, step=1, limit=4
  $region2: #{sr_context_upsample_forward.8} parent=0 // loop_pre_header
    _
  $region3: #{sr_context_upsample_forward.8} parent=0 // loop_header
    %s11 = sphi 0, %s15
    %p12 = scmp.ge.s32.totalorder %s11, 4
    %s18 = sphi 0, %s30
    %s19 = sphi 0, %s26
    %s20 = sphi 0, %s18
    %s21 = sphi 0, %s19
    %s22 = sphi 0, %s20
    %s23 = sphi 0, %s21
    %s35 = sphi 0, %s37
    %s38 = sphi 0, %s35
    %s39 = sphi 0, %s38
    %s55 = sphi 0, %s39
    %s67 = sphi 0, %s69
    %s70 = sphi 0, %s67
    %s71 = sphi 0, %s70
    %s87 = sphi 0, %s71
    %s91 = sphi 0, %s91
    %s93 = sphi 0, %s91
    %s94 = sphi 0, %s93
    %s108 = sphi 0, %s94
    %s112 = sphi 0, %s112
    %s114 = sphi 0, %s112
    %s115 = sphi 0, %s114
    %s129 = sphi 0, %s115
    %s133 = sphi 0, %s133
    %s135 = sphi 0, %s133
    %s136 = sphi 0, %s135
    %s150 = sphi 0, %s136
    %s158 = sphi 0, %s160
    %s161 = sphi 0, %s158
    %s162 = sphi 0, %s161
    %s178 = sphi 0, %s162
  $region4: #{sr_context_upsample_forward.8} parent=0 // loop_header_branch
    %14 = sbr.rel (%p12) target = $region8
  $region5: #{sr_context_upsample_forward.8} parent=0 // loop_body
    %s16 = ssub.s32 %s11, 1
    %s17 = ssub.s32 %s11, 2
    %s24 = sadd.s32 1, %s19
    %p25 = scmp.ge.s32.totalorder %s24, 1
    %s26 = scalar_select %p25, 0, %s24
    %s27 = sadd.s32 1, %s18
    %s28 = scalar_select %p25, %s27, %s18
    %p29 = scmp.ge.s32.totalorder %s28, 2
    %s30 = scalar_select %p29, 0, %s28
    %s31 = ssub.s32 %s18, %s30
    %s32 = ssub.s32 %s19, %s26
    %s33 = sor.u32 %s31, %s32
    %p34 = scmp.eq.s32.totalorder %s33, 0
    %s36 = sadd.s32 %s35, 1
    %s37 = scalar_select %p34, %s35, %s36
    %p40 = pneg %p34
    %p41 = scmp.eq.s32.totalorder %s11, 1
    %p42 = por %p40, %p41
    %p43 = scmp.ne.s32.totalorder %s35, %s38
    %p44 = scmp.eq.s32.totalorder %s11, 0
    %p45 = por %p43, %p44
    %p46 = scmp.ne.s32.totalorder %s35, %s38
    %p47 = scmp.eq.s32.totalorder %s16, 1
    %p48 = por %p46, %p47
    %p49 = scmp.ne.s32.totalorder %s38, %s39
    %p50 = scmp.eq.s32.totalorder %s16, 0
    %p51 = por %p49, %p50
    %p52 = scmp.ne.s32.totalorder %s38, %s39
    %p53 = scmp.eq.s32.totalorder %s17, 1
    %p54 = por %p52, %p53
    %p56 = scmp.ne.s32.totalorder %s39, %s55
    %p57 = scmp.eq.s32.totalorder %s17, 0
    %p58 = por %p56, %p57
    %s59 = sadd.s32 %s19, 1
    %s60 = smul.u32 %s59, 2
    %s61 = sadd.s32 %s26, 1
    %s62 = smul.u32 %s61, 2
    %s63 = ssub.s32 %s18, %s30
    %s64 = ssub.s32 %s60, %s62
    %s65 = sor.u32 %s63, %s64
    %p66 = scmp.eq.s32.totalorder %s65, 0
    %s68 = sadd.s32 %s67, 1
    %s69 = scalar_select %p66, %s67, %s68
    %p72 = pneg %p66
    %p73 = scmp.eq.s32.totalorder %s11, 1
    %p74 = por %p72, %p73
    %p75 = scmp.ne.s32.totalorder %s67, %s70
    %p76 = scmp.eq.s32.totalorder %s11, 0
    %p77 = por %p75, %p76
    %p78 = scmp.ne.s32.totalorder %s67, %s70
    %p79 = scmp.eq.s32.totalorder %s16, 1
    %p80 = por %p78, %p79
    %p81 = scmp.ne.s32.totalorder %s70, %s71
    %p82 = scmp.eq.s32.totalorder %s16, 0
    %p83 = por %p81, %p82
    %p84 = scmp.ne.s32.totalorder %s70, %s71
    %p85 = scmp.eq.s32.totalorder %s17, 1
    %p86 = por %p84, %p85
    %p88 = scmp.ne.s32.totalorder %s71, %s87
    %p89 = scmp.eq.s32.totalorder %s17, 0
    %p90 = por %p88, %p89
    %s92 = sadd.s32 %s91, 1
    %p95 = scmp.eq.s32.totalorder %s11, 1
    %p96 = scmp.ne.s32.totalorder %s91, %s93
    %p97 = scmp.eq.s32.totalorder %s11, 0
    %p98 = por %p96, %p97
    %p99 = scmp.ne.s32.totalorder %s91, %s93
    %p100 = scmp.eq.s32.totalorder %s16, 1
    %p101 = por %p99, %p100
    %p102 = scmp.ne.s32.totalorder %s93, %s94
    %p103 = scmp.eq.s32.totalorder %s16, 0
    %p104 = por %p102, %p103
    %p105 = scmp.ne.s32.totalorder %s93, %s94
    %p106 = scmp.eq.s32.totalorder %s17, 1
    %p107 = por %p105, %p106
    %p109 = scmp.ne.s32.totalorder %s94, %s108
    %p110 = scmp.eq.s32.totalorder %s17, 0
    %p111 = por %p109, %p110
    %s113 = sadd.s32 %s112, 1
    %p116 = scmp.eq.s32.totalorder %s11, 1
    %p117 = scmp.ne.s32.totalorder %s112, %s114
    %p118 = scmp.eq.s32.totalorder %s11, 0
    %p119 = por %p117, %p118
    %p120 = scmp.ne.s32.totalorder %s112, %s114
    %p121 = scmp.eq.s32.totalorder %s16, 1
    %p122 = por %p120, %p121
    %p123 = scmp.ne.s32.totalorder %s114, %s115
    %p124 = scmp.eq.s32.totalorder %s16, 0
    %p125 = por %p123, %p124
    %p126 = scmp.ne.s32.totalorder %s114, %s115
    %p127 = scmp.eq.s32.totalorder %s17, 1
    %p128 = por %p126, %p127
    %p130 = scmp.ne.s32.totalorder %s115, %s129
    %p131 = scmp.eq.s32.totalorder %s17, 0
    %p132 = por %p130, %p131
    %s134 = sadd.s32 %s133, 1
    %p137 = scmp.eq.s32.totalorder %s11, 1
    %p138 = scmp.ne.s32.totalorder %s133, %s135
    %p139 = scmp.eq.s32.totalorder %s11, 0
    %p140 = por %p138, %p139
    %p141 = scmp.ne.s32.totalorder %s133, %s135
    %p142 = scmp.eq.s32.totalorder %s16, 1
    %p143 = por %p141, %p142
    %p144 = scmp.ne.s32.totalorder %s135, %s136
    %p145 = scmp.eq.s32.totalorder %s16, 0
    %p146 = por %p144, %p145
    %p147 = scmp.ne.s32.totalorder %s135, %s136
    %p148 = scmp.eq.s32.totalorder %s17, 1
    %p149 = por %p147, %p148
    %p151 = scmp.ne.s32.totalorder %s136, %s150
    %p152 = scmp.eq.s32.totalorder %s17, 0
    %p153 = por %p151, %p152
    %s154 = ssub.s32 %s18, %s30
    %s155 = ssub.s32 %s19, %s26
    %s156 = sor.u32 %s154, %s155
    %p157 = scmp.eq.s32.totalorder %s156, 0
    %s159 = sadd.s32 %s158, 1
    %s160 = scalar_select %p157, %s158, %s159
    %p163 = pneg %p157
    %p164 = scmp.eq.s32.totalorder %s11, 1
    %p165 = por %p163, %p164
    %p166 = scmp.ne.s32.totalorder %s158, %s161
    %p167 = scmp.eq.s32.totalorder %s11, 0
    %p168 = por %p166, %p167
    %p169 = scmp.ne.s32.totalorder %s158, %s161
    %p170 = scmp.eq.s32.totalorder %s16, 1
    %p171 = por %p169, %p170
    %p172 = scmp.ne.s32.totalorder %s161, %s162
    %p173 = scmp.eq.s32.totalorder %s16, 0
    %p174 = por %p172, %p173
    %p175 = scmp.ne.s32.totalorder %s161, %s162
    %p176 = scmp.eq.s32.totalorder %s17, 1
    %p177 = por %p175, %p176
    %p179 = scmp.ne.s32.totalorder %s162, %s178
    %p180 = scmp.eq.s32.totalorder %s17, 0
    %p181 = por %p179, %p180
    %p182 = scmp.le.s32.totalorder 1, %s11
    %p183 = scmp.lt.s32.totalorder %s11, 3
    %p184 = pnand %p182, %p183
    %p185 = pneg %p184
    // Predicated region
    $region9: #{sr_context_upsample_forward.8} parent=5 // pred_check
      _
    $region10: #{sr_context_upsample_forward.8} parent=5 // pred_check_branch
      %187 = sbr.rel (%p184) target = $region12
    $region11: #{sr_context_upsample_forward.8} parent=5 // pred_region
      %s188 = ssub.s32 %s11, 1
      // Predicated region
      $region13: #{sr_context_upsample_forward.8} parent=11 // pred_check
        %p189 = pneg %p104
      $region14: #{sr_context_upsample_forward.8} parent=11 // pred_check_branch
        %191 = sbr.rel (%p189) target = $region16
      $region15: #{sr_context_upsample_forward.8} parent=11 // pred_region
        _
      $region16: #{sr_context_upsample_forward.8} parent=11 // pred_fallthru
        _
      // Predicated region
      $region17: #{sr_context_upsample_forward.8} parent=11 // pred_check
        %p192 = pneg %p125
      $region18: #{sr_context_upsample_forward.8} parent=11 // pred_check_branch
        %194 = sbr.rel (%p192) target = $region20
      $region19: #{sr_context_upsample_forward.8} parent=11 // pred_region
        _
      $region20: #{sr_context_upsample_forward.8} parent=11 // pred_fallthru
        _
      // Predicated region
      $region21: #{sr_context_upsample_forward.8} parent=11 // pred_check
        %p195 = pneg %p146
      $region22: #{sr_context_upsample_forward.8} parent=11 // pred_check_branch
        %197 = sbr.rel (%p195) target = $region24
      $region23: #{sr_context_upsample_forward.8} parent=11 // pred_region
        _
      $region24: #{sr_context_upsample_forward.8} parent=11 // pred_fallthru
        _
    $region12: #{sr_context_upsample_forward.8} parent=5 // pred_fallthru
      _
    %p198 = scmp.lt.s32.totalorder %s11, 2
    // Predicated region
    $region25: #{sr_context_upsample_forward.8} parent=5 // pred_check
      %p199 = pneg %p198
    $region26: #{sr_context_upsample_forward.8} parent=5 // pred_check_branch
      %201 = sbr.rel (%p199) target = $region28
    $region27: #{sr_context_upsample_forward.8} parent=5 // pred_region
      // Predicated region
      $region29: #{sr_context_upsample_forward.8} parent=27 // pred_check
        %p202 = pneg %p45
      $region30: #{sr_context_upsample_forward.8} parent=27 // pred_check_branch
        %204 = sbr.rel (%p202) target = $region32
      $region31: #{sr_context_upsample_forward.8} parent=27 // pred_region
        %s205 = smul.u32 10, %s19
        %s206 = ssub.s32 15, %s205
        %p207 = scmp.lt.s32.totalorder %s206, 10
        %s208 = scalar_select %p207, %s206, 10
        %s209 = smul.u32 128, %s208
        %p210 = scmp.lt.s32.totalorder %s18, 1
        %s211 = scalar_select %p210, %s18, 1
        %p212 = scmp.lt.s32.totalorder %s205, 14
        %s213 = scalar_select %p212, %s205, 14
        %s214 = smul.addr %s211, 15
        %s215 = sadd.s32 %s213, %s214
        %s216 = smul.addr %s215, 8
        %s217 = scalar_lea.vmem %s0, %s216
        %s218 = smul.u32 10, %s19
        %s219 = ssub.s32 15, %s218
        %p220 = scmp.lt.s32.totalorder %s219, 10
        %s221 = scalar_select %p220, %s219, 10
        %s222 = smul.u32 128, %s221
      $region32: #{sr_context_upsample_forward.8} parent=27 // pred_fallthru
        _
      // Predicated region
      $region33: #{sr_context_upsample_forward.8} parent=27 // pred_check
        %p223 = pneg %p77
      $region34: #{sr_context_upsample_forward.8} parent=27 // pred_check_branch
        %225 = sbr.rel (%p223) target = $region36
      $region35: #{sr_context_upsample_forward.8} parent=27 // pred_region
        %s226 = sadd.s32 %s19, 1
        %s227 = smul.u32 %s226, 2
        %s228 = smul.u32 5, %s227
        %p229 = scmp.lt.s32.totalorder %s18, 1
        %s230 = scalar_select %p229, %s18, 1
        %p231 = scmp.lt.s32.totalorder %s228, 14
        %s232 = scalar_select %p231, %s228, 14
        %s233 = smul.addr %s230, 15
        %s234 = sadd.s32 %s232, %s233
        %s235 = smul.addr %s234, 8
        %s236 = scalar_lea.vmem %s1, %s235
        %s237 = sadd.s32 %s19, 1
        %s238 = smul.u32 %s237, 2
        %s239 = smul.u32 5, %s238
      $region36: #{sr_context_upsample_forward.8} parent=27 // pred_fallthru
        _
    $region28: #{sr_context_upsample_forward.8} parent=5 // pred_fallthru
      _
    %p240 = scmp.le.s32.totalorder 1, %s11
    %p241 = scmp.lt.s32.totalorder %s11, 3
    %p242 = pnand %p240, %p241
    %p243 = pneg %p242
    // Predicated region
    $region37: #{sr_context_upsample_forward.8} parent=5 // pred_check
      _
    $region38: #{sr_context_upsample_forward.8} parent=5 // pred_check_branch
      %245 = sbr.rel (%p242) target = $region40
    $region39: #{sr_context_upsample_forward.8} parent=5 // pred_region
      %s246 = ssub.s32 %s11, 1
      %s247 = smul.u32 10, %s21
      %s248 = ssub.s32 15, %s247
      %p249 = scmp.lt.s32.totalorder %s248, 10
      %s250 = scalar_select %p249, %s248, 10
      %s251 = smul.u32 128, %s250
      %p252 = scmp.lt.s32.totalorder %s20, 1
      %s253 = scalar_select %p252, %s20, 1
      %p254 = scmp.lt.s32.totalorder %s247, 14
      %s255 = scalar_select %p254, %s247, 14
      %s256 = smul.addr %s253, 15
      %s257 = sadd.s32 %s255, %s256
      %s258 = smul.addr %s257, 8
      %s259 = scalar_lea.vmem %s0, %s258
      %p260 = pneg %p51
      %p261 = pneg %p48
      %s262 = sadd.s32 %s21, 1
      %s263 = smul.u32 %s262, 2
      %s264 = smul.u32 5, %s263
      %p265 = scmp.lt.s32.totalorder %s20, 1
      %s266 = scalar_select %p265, %s20, 1
      %p267 = scmp.lt.s32.totalorder %s264, 14
      %s268 = scalar_select %p267, %s264, 14
      %s269 = smul.addr %s266, 15
      %s270 = sadd.s32 %s268, %s269
      %s271 = smul.addr %s270, 8
      %s272 = scalar_lea.vmem %s1, %s271
      %p273 = pneg %p83
      %p274 = pneg %p80
      %p275 = pneg %p104
      %p276 = pneg %p101
      %p277 = pneg %p125
      %p278 = pneg %p122
      %p279 = pneg %p146
      %p280 = pneg %p143
      %p281 = pneg %p174
      %p282 = pneg %p171
      %s283 = smul.u32 10, %s21
      %p284 = scmp.lt.s32.totalorder %s20, 1
      %s285 = scalar_select %p284, %s20, 1
      %p286 = scmp.lt.s32.totalorder %s283, 9
      %s287 = scalar_select %p286, %s283, 9
      %s288 = smul.addr %s285, 10
      %s289 = sadd.s32 %s287, %s288
      %s290 = smul.addr %s289, 8
      %s291 = scalar_lea.vmem %s5, %s290
      %s292 = smul.u32 10, %s21
      %s293 = ssub.s32 15, %s292
      %p294 = scmp.lt.s32.totalorder %s293, 10
      %s295 = scalar_select %p294, %s293, 10
      %s296 = smul.u32 128, %s295
      %p297 = scmp.lt.s32.totalorder %s20, 1
      %s298 = scalar_select %p297, %s20, 1
      %p299 = scmp.lt.s32.totalorder %s292, 14
      %s300 = scalar_select %p299, %s292, 14
      %s301 = smul.addr %s298, 15
      %s302 = sadd.s32 %s300, %s301
      %s303 = smul.addr %s302, 8
      %s304 = scalar_lea.vmem %s0, %s303
      %s305 = smul.u32 10, %s21
      %s306 = ssub.s32 15, %s305
      %p307 = scmp.lt.s32.totalorder %s306, 10
      %s308 = scalar_select %p307, %s306, 10
      %s309 = smul.u32 128, %s308
      %s310 = sadd.s32 %s21, 1
      %s311 = smul.u32 %s310, 2
      %s312 = smul.u32 5, %s311
      %p313 = scmp.lt.s32.totalorder %s20, 1
      %s314 = scalar_select %p313, %s20, 1
      %p315 = scmp.lt.s32.totalorder %s312, 14
      %s316 = scalar_select %p315, %s312, 14
      %s317 = smul.addr %s314, 15
      %s318 = sadd.s32 %s316, %s317
      %s319 = smul.addr %s318, 8
      %s320 = scalar_lea.vmem %s1, %s319
      %s321 = sadd.s32 %s21, 1
      %s322 = smul.u32 %s321, 2
      %s323 = smul.u32 5, %s322
      %s324 = smul.u32 10, %s21
      %p325 = scmp.lt.s32.totalorder %s20, 1
      %s326 = scalar_select %p325, %s20, 1
      %p327 = scmp.lt.s32.totalorder %s324, 9
      %s328 = scalar_select %p327, %s324, 9
      %s329 = smul.addr %s326, 10
      %s330 = sadd.s32 %s328, %s329
      %s331 = smul.addr %s330, 8
      %s332 = scalar_lea.vmem %s5, %s331
      %s333 = smul.u32 10, %s21
      %v335 = vld [vmem:[%s304 + $0x8] sm:$0xff]
      %v336 = vld [vmem:[%s304 + $0x10] sm:$0xff]
      %v337 = vld [vmem:[%s304 + $0x18] sm:$0xff]
      %v338 = vld [vmem:[%s304 + $0x20] sm:$0xff]
      %v339 = vld [vmem:[%s304 + $0x28] sm:$0xff]
      %v340 = vld [vmem:[%s304 + $0x30] sm:$0xff]
      %v341 = vld [vmem:[%s304 + $0x38] sm:$0xff]
      %v342 = vld [vmem:[%s304 + $0x40] sm:$0xff]
      %v343 = vld [vmem:[%s304 + $0x48] sm:$0xff]
      %v344 = vld [vmem:[%s320] sm:$0xff]
      %v345 = vld [vmem:[%s320 + $0x8] sm:$0xff]
      %v346 = vld [vmem:[%s320 + $0x10] sm:$0xff]
      %v347 = vld [vmem:[%s320 + $0x18] sm:$0xff]
      %vm359 = vcmask 1046528
      %v360 = vrot.slane %v335, 1
      %v361 = vrot.slane %v336, 1
      %v362 = vsel %vm359, %v360, %v361
      %v363 = vrot.slane %v337, 1
      %v364 = vsel %vm359, %v361, %v363
      %v365 = vrot.slane %v338, 1
      %v366 = vsel %vm359, %v363, %v365
      %v367 = vrot.slane %v339, 1
      %v368 = vsel %vm359, %v365, %v367
      %v369 = vrot.slane %v340, 1
      %v370 = vsel %vm359, %v367, %v369
      %v371 = vrot.slane %v341, 1
      %v372 = vsel %vm359, %v369, %v371
      %v373 = vrot.slane %v342, 1
      %v374 = vsel %vm359, %v371, %v373
      %v375 = vrot.slane %v343, 1
      %v376 = vsel %vm359, %v373, %v375
      %v377 = vrot.slane %v344, 1
      %v378 = vsel %vm359, %v375, %v377
      %v379 = vrot.slane %v345, 1
      %v380 = vsel %vm359, %v377, %v379
      %381 = vrot.lane.b32.xlu0 %v362, 9
      %v382 = vpop.permute.xlu0 %381
      %383 = vrot.lane.b32.xlu0 %v364, 9
      %v384 = vpop.permute.xlu0 %383
      %385 = vrot.lane.b32.xlu0 %v366, 9
      %v386 = vpop.permute.xlu0 %385
      %387 = vrot.lane.b32.xlu0 %v368, 9
      %v388 = vpop.permute.xlu0 %387
      %389 = vrot.lane.b32.xlu0 %v370, 9
      %v390 = vpop.permute.xlu0 %389
      %391 = vrot.lane.b32.xlu0 %v372, 9
      %v392 = vpop.permute.xlu0 %391
      %393 = vrot.lane.b32.xlu0 %v374, 9
      %v394 = vpop.permute.xlu0 %393
      %395 = vrot.lane.b32.xlu0 %v376, 9
      %v396 = vpop.permute.xlu0 %395
      %397 = vrot.lane.b32.xlu0 %v378, 9
      %v398 = vpop.permute.xlu0 %397
      %399 = vrot.lane.b32.xlu0 %v380, 9
      %v400 = vpop.permute.xlu0 %399
      %401 = vrot.lane.b32.xlu0 %v379, 9
      %v402 = vpop.permute.xlu0 %401
      %vm414 = vcmask 1045504
      %v415 = vrot.slane %v335, 2
      %v416 = vrot.slane %v336, 2
      %v417 = vsel %vm414, %v415, %v416
      %v418 = vrot.slane %v337, 2
      %v419 = vsel %vm414, %v416, %v418
      %v420 = vrot.slane %v338, 2
      %v421 = vsel %vm414, %v418, %v420
      %v422 = vrot.slane %v339, 2
      %v423 = vsel %vm414, %v420, %v422
      %v424 = vrot.slane %v340, 2
      %v425 = vsel %vm414, %v422, %v424
      %v426 = vrot.slane %v341, 2
      %v427 = vsel %vm414, %v424, %v426
      %v428 = vrot.slane %v342, 2
      %v429 = vsel %vm414, %v426, %v428
      %v430 = vrot.slane %v343, 2
      %v431 = vsel %vm414, %v428, %v430
      %v432 = vrot.slane %v344, 2
      %v433 = vsel %vm414, %v430, %v432
      %v434 = vrot.slane %v345, 2
      %v435 = vsel %vm414, %v432, %v434
      %436 = vrot.lane.b32.xlu0 %v417, 18
      %v437 = vpop.permute.xlu0 %436
      %438 = vrot.lane.b32.xlu0 %v419, 18
      %v439 = vpop.permute.xlu0 %438
      %440 = vrot.lane.b32.xlu0 %v421, 18
      %v441 = vpop.permute.xlu0 %440
      %442 = vrot.lane.b32.xlu0 %v423, 18
      %v443 = vpop.permute.xlu0 %442
      %444 = vrot.lane.b32.xlu0 %v425, 18
      %v445 = vpop.permute.xlu0 %444
      %446 = vrot.lane.b32.xlu0 %v427, 18
      %v447 = vpop.permute.xlu0 %446
      %448 = vrot.lane.b32.xlu0 %v429, 18
      %v449 = vpop.permute.xlu0 %448
      %450 = vrot.lane.b32.xlu0 %v431, 18
      %v451 = vpop.permute.xlu0 %450
      %452 = vrot.lane.b32.xlu0 %v433, 18
      %v453 = vpop.permute.xlu0 %452
      %454 = vrot.lane.b32.xlu0 %v435, 18
      %v455 = vpop.permute.xlu0 %454
      %456 = vrot.lane.b32.xlu0 %v434, 18
      %v457 = vpop.permute.xlu0 %456
      %v470 = vrot.slane %v346, 2
      %v471 = vsel %vm414, %v434, %v470
      %472 = vrot.lane.b32.xlu0 %v419, 27
      %v473 = vpop.permute.xlu0 %472
      %474 = vrot.lane.b32.xlu0 %v421, 27
      %v475 = vpop.permute.xlu0 %474
      %476 = vrot.lane.b32.xlu0 %v423, 27
      %v477 = vpop.permute.xlu0 %476
      %478 = vrot.lane.b32.xlu0 %v425, 27
      %v479 = vpop.permute.xlu0 %478
      %480 = vrot.lane.b32.xlu0 %v427, 27
      %v481 = vpop.permute.xlu0 %480
      %482 = vrot.lane.b32.xlu0 %v429, 27
      %v483 = vpop.permute.xlu0 %482
      %484 = vrot.lane.b32.xlu0 %v431, 27
      %v485 = vpop.permute.xlu0 %484
      %486 = vrot.lane.b32.xlu0 %v433, 27
      %v487 = vpop.permute.xlu0 %486
      %488 = vrot.lane.b32.xlu0 %v435, 27
      %v489 = vpop.permute.xlu0 %488
      %490 = vrot.lane.b32.xlu0 %v471, 27
      %v491 = vpop.permute.xlu0 %490
      %492 = vrot.lane.b32.xlu0 %v470, 27
      %v493 = vpop.permute.xlu0 %492
      %vm505 = vcmask 1044480
      %v506 = vrot.slane %v336, 3
      %v507 = vrot.slane %v337, 3
      %v508 = vsel %vm505, %v506, %v507
      %v509 = vrot.slane %v338, 3
      %v510 = vsel %vm505, %v507, %v509
      %v511 = vrot.slane %v339, 3
      %v512 = vsel %vm505, %v509, %v511
      %v513 = vrot.slane %v340, 3
      %v514 = vsel %vm505, %v511, %v513
      %v515 = vrot.slane %v341, 3
      %v516 = vsel %vm505, %v513, %v515
      %v517 = vrot.slane %v342, 3
      %v518 = vsel %vm505, %v515, %v517
      %v519 = vrot.slane %v343, 3
      %v520 = vsel %vm505, %v517, %v519
      %v521 = vrot.slane %v344, 3
      %v522 = vsel %vm505, %v519, %v521
      %v523 = vrot.slane %v345, 3
      %v524 = vsel %vm505, %v521, %v523
      %v525 = vrot.slane %v346, 3
      %v526 = vsel %vm505, %v523, %v525
      %527 = vrot.lane.b32.xlu0 %v508, 36
      %v528 = vpop.permute.xlu0 %527
      %529 = vrot.lane.b32.xlu0 %v510, 36
      %v530 = vpop.permute.xlu0 %529
      %531 = vrot.lane.b32.xlu0 %v512, 36
      %v532 = vpop.permute.xlu0 %531
      %533 = vrot.lane.b32.xlu0 %v514, 36
      %v534 = vpop.permute.xlu0 %533
      %535 = vrot.lane.b32.xlu0 %v516, 36
      %v536 = vpop.permute.xlu0 %535
      %537 = vrot.lane.b32.xlu0 %v518, 36
      %v538 = vpop.permute.xlu0 %537
      %539 = vrot.lane.b32.xlu0 %v520, 36
      %v540 = vpop.permute.xlu0 %539
      %541 = vrot.lane.b32.xlu0 %v522, 36
      %v542 = vpop.permute.xlu0 %541
      %543 = vrot.lane.b32.xlu0 %v524, 36
      %v544 = vpop.permute.xlu0 %543
      %545 = vrot.lane.b32.xlu0 %v526, 36
      %v546 = vpop.permute.xlu0 %545
      %547 = vrot.lane.b32.xlu0 %v525, 36
      %v548 = vpop.permute.xlu0 %547
      %vm560 = vcmask 1043456
      %v561 = vrot.slane %v336, 4
      %v562 = vrot.slane %v337, 4
      %v563 = vsel %vm560, %v561, %v562
      %v564 = vrot.slane %v338, 4
      %v565 = vsel %vm560, %v562, %v564
      %v566 = vrot.slane %v339, 4
      %v567 = vsel %vm560, %v564, %v566
      %v568 = vrot.slane %v340, 4
      %v569 = vsel %vm560, %v566, %v568
      %v570 = vrot.slane %v341, 4
      %v571 = vsel %vm560, %v568, %v570
      %v572 = vrot.slane %v342, 4
      %v573 = vsel %vm560, %v570, %v572
      %v574 = vrot.slane %v343, 4
      %v575 = vsel %vm560, %v572, %v574
      %v576 = vrot.slane %v344, 4
      %v577 = vsel %vm560, %v574, %v576
      %v578 = vrot.slane %v345, 4
      %v579 = vsel %vm560, %v576, %v578
      %v580 = vrot.slane %v346, 4
      %v581 = vsel %vm560, %v578, %v580
      %582 = vrot.lane.b32.xlu0 %v563, 45
      %v583 = vpop.permute.xlu0 %582
      %584 = vrot.lane.b32.xlu0 %v565, 45
      %v585 = vpop.permute.xlu0 %584
      %586 = vrot.lane.b32.xlu0 %v567, 45
      %v587 = vpop.permute.xlu0 %586
      %588 = vrot.lane.b32.xlu0 %v569, 45
      %v589 = vpop.permute.xlu0 %588
      %590 = vrot.lane.b32.xlu0 %v571, 45
      %v591 = vpop.permute.xlu0 %590
      %592 = vrot.lane.b32.xlu0 %v573, 45
      %v593 = vpop.permute.xlu0 %592
      %594 = vrot.lane.b32.xlu0 %v575, 45
      %v595 = vpop.permute.xlu0 %594
      %596 = vrot.lane.b32.xlu0 %v577, 45
      %v597 = vpop.permute.xlu0 %596
      %598 = vrot.lane.b32.xlu0 %v579, 45
      %v599 = vpop.permute.xlu0 %598
      %600 = vrot.lane.b32.xlu0 %v581, 45
      %v601 = vpop.permute.xlu0 %600
      %602 = vrot.lane.b32.xlu0 %v580, 45
      %v603 = vpop.permute.xlu0 %602
      %v616 = vrot.slane %v347, 4
      %v617 = vsel %vm560, %v580, %v616
      %618 = vrot.lane.b32.xlu0 %v565, 54
      %v619 = vpop.permute.xlu0 %618
      %620 = vrot.lane.b32.xlu0 %v567, 54
      %v621 = vpop.permute.xlu0 %620
      %622 = vrot.lane.b32.xlu0 %v569, 54
      %v623 = vpop.permute.xlu0 %622
      %624 = vrot.lane.b32.xlu0 %v571, 54
      %v625 = vpop.permute.xlu0 %624
      %626 = vrot.lane.b32.xlu0 %v573, 54
      %v627 = vpop.permute.xlu0 %626
      %628 = vrot.lane.b32.xlu0 %v575, 54
      %v629 = vpop.permute.xlu0 %628
      %630 = vrot.lane.b32.xlu0 %v577, 54
      %v631 = vpop.permute.xlu0 %630
      %632 = vrot.lane.b32.xlu0 %v579, 54
      %v633 = vpop.permute.xlu0 %632
      %634 = vrot.lane.b32.xlu0 %v581, 54
      %v635 = vpop.permute.xlu0 %634
      %636 = vrot.lane.b32.xlu0 %v617, 54
      %v637 = vpop.permute.xlu0 %636
      %638 = vrot.lane.b32.xlu0 %v616, 54
      %v639 = vpop.permute.xlu0 %638
      %vm651 = vcmask 1042432
      %v652 = vrot.slane %v337, 5
      %v653 = vrot.slane %v338, 5
      %v654 = vsel %vm651, %v652, %v653
      %v655 = vrot.slane %v339, 5
      %v656 = vsel %vm651, %v653, %v655
      %v657 = vrot.slane %v340, 5
      %v658 = vsel %vm651, %v655, %v657
      %v659 = vrot.slane %v341, 5
      %v660 = vsel %vm651, %v657, %v659
      %v661 = vrot.slane %v342, 5
      %v662 = vsel %vm651, %v659, %v661
      %v663 = vrot.slane %v343, 5
      %v664 = vsel %vm651, %v661, %v663
      %v665 = vrot.slane %v344, 5
      %v666 = vsel %vm651, %v663, %v665
      %v667 = vrot.slane %v345, 5
      %v668 = vsel %vm651, %v665, %v667
      %v669 = vrot.slane %v346, 5
      %v670 = vsel %vm651, %v667, %v669
      %v671 = vrot.slane %v347, 5
      %v672 = vsel %vm651, %v669, %v671
      %673 = vrot.lane.b32.xlu0 %v654, 63
      %v674 = vpop.permute.xlu0 %673
      %675 = vrot.lane.b32.xlu0 %v656, 63
      %v676 = vpop.permute.xlu0 %675
      %677 = vrot.lane.b32.xlu0 %v658, 63
      %v678 = vpop.permute.xlu0 %677
      %679 = vrot.lane.b32.xlu0 %v660, 63
      %v680 = vpop.permute.xlu0 %679
      %681 = vrot.lane.b32.xlu0 %v662, 63
      %v682 = vpop.permute.xlu0 %681
      %683 = vrot.lane.b32.xlu0 %v664, 63
      %v684 = vpop.permute.xlu0 %683
      %685 = vrot.lane.b32.xlu0 %v666, 63
      %v686 = vpop.permute.xlu0 %685
      %687 = vrot.lane.b32.xlu0 %v668, 63
      %v688 = vpop.permute.xlu0 %687
      %689 = vrot.lane.b32.xlu0 %v670, 63
      %v690 = vpop.permute.xlu0 %689
      %691 = vrot.lane.b32.xlu0 %v672, 63
      %v692 = vpop.permute.xlu0 %691
      %693 = vrot.lane.b32.xlu0 %v671, 63
      %v694 = vpop.permute.xlu0 %693
      %vm706 = vcmask 1041408
      %v707 = vrot.slane %v337, 6
      %v708 = vrot.slane %v338, 6
      %v709 = vsel %vm706, %v707, %v708
      %v710 = vrot.slane %v339, 6
      %v711 = vsel %vm706, %v708, %v710
      %v712 = vrot.slane %v340, 6
      %v713 = vsel %vm706, %v710, %v712
      %v714 = vrot.slane %v341, 6
      %v715 = vsel %vm706, %v712, %v714
      %v716 = vrot.slane %v342, 6
      %v717 = vsel %vm706, %v714, %v716
      %v718 = vrot.slane %v343, 6
      %v719 = vsel %vm706, %v716, %v718
      %v720 = vrot.slane %v344, 6
      %v721 = vsel %vm706, %v718, %v720
      %v722 = vrot.slane %v345, 6
      %v723 = vsel %vm706, %v720, %v722
      %v724 = vrot.slane %v346, 6
      %v725 = vsel %vm706, %v722, %v724
      %v726 = vrot.slane %v347, 6
      %v727 = vsel %vm706, %v724, %v726
      %728 = vrot.lane.b32.xlu0 %v709, 72
      %v729 = vpop.permute.xlu0 %728
      %730 = vrot.lane.b32.xlu0 %v711, 72
      %v731 = vpop.permute.xlu0 %730
      %732 = vrot.lane.b32.xlu0 %v713, 72
      %v733 = vpop.permute.xlu0 %732
      %734 = vrot.lane.b32.xlu0 %v715, 72
      %v735 = vpop.permute.xlu0 %734
      %736 = vrot.lane.b32.xlu0 %v717, 72
      %v737 = vpop.permute.xlu0 %736
      %738 = vrot.lane.b32.xlu0 %v719, 72
      %v739 = vpop.permute.xlu0 %738
      %740 = vrot.lane.b32.xlu0 %v721, 72
      %v741 = vpop.permute.xlu0 %740
      %742 = vrot.lane.b32.xlu0 %v723, 72
      %v743 = vpop.permute.xlu0 %742
      %744 = vrot.lane.b32.xlu0 %v725, 72
      %v745 = vpop.permute.xlu0 %744
      %746 = vrot.lane.b32.xlu0 %v727, 72
      %v747 = vpop.permute.xlu0 %746
      %748 = vrot.lane.b32.xlu0 %v726, 72
      %v749 = vpop.permute.xlu0 %748
      %vm761 = vcmask 72704
      %v762 = vsel %vm761, %v335, %v382
      %v763 = vsel %vm761, %v336, %v384
      %v764 = vsel %vm761, %v337, %v386
      %v765 = vsel %vm761, %v338, %v388
      %v766 = vsel %vm761, %v339, %v390
      %v767 = vsel %vm761, %v340, %v392
      %v768 = vsel %vm761, %v341, %v394
      %v769 = vsel %vm761, %v342, %v396
      %v770 = vsel %vm761, %v343, %v398
      %v771 = vsel %vm761, %v344, %v400
      %v772 = vsel %vm761, %v345, %v402
      %vm773 = vcmask 146432
      %v774 = vsel %vm773, %v762, %v437
      %v775 = vsel %vm773, %v763, %v439
      %v776 = vsel %vm773, %v764, %v441
      %v777 = vsel %vm773, %v765, %v443
      %v778 = vsel %vm773, %v766, %v445
      %v779 = vsel %vm773, %v767, %v447
      %v780 = vsel %vm773, %v768, %v449
      %v781 = vsel %vm773, %v769, %v451
      %v782 = vsel %vm773, %v770, %v453
      %v783 = vsel %vm773, %v771, %v455
      %v784 = vsel %vm773, %v772, %v457
      %vm785 = vcmask 220160
      %v786 = vsel %vm785, %v774, %v473
      %v787 = vsel %vm785, %v775, %v475
      %v788 = vsel %vm785, %v776, %v477
      %v789 = vsel %vm785, %v777, %v479
      %v790 = vsel %vm785, %v778, %v481
      %v791 = vsel %vm785, %v779, %v483
      %v792 = vsel %vm785, %v780, %v485
      %v793 = vsel %vm785, %v781, %v487
      %v794 = vsel %vm785, %v782, %v489
      %v795 = vsel %vm785, %v783, %v491
      %v796 = vsel %vm785, %v784, %v493
      %vm797 = vcmask 293888
      %v798 = vsel %vm797, %v786, %v528
      %v799 = vsel %vm797, %v787, %v530
      %v800 = vsel %vm797, %v788, %v532
      %v801 = vsel %vm797, %v789, %v534
      %v802 = vsel %vm797, %v790, %v536
      %v803 = vsel %vm797, %v791, %v538
      %v804 = vsel %vm797, %v792, %v540
      %v805 = vsel %vm797, %v793, %v542
      %v806 = vsel %vm797, %v794, %v544
      %v807 = vsel %vm797, %v795, %v546
      %v808 = vsel %vm797, %v796, %v548
      %vm809 = vcmask 367616
      %v810 = vsel %vm809, %v798, %v583
      %v811 = vsel %vm809, %v799, %v585
      %v812 = vsel %vm809, %v800, %v587
      %v813 = vsel %vm809, %v801, %v589
      %v814 = vsel %vm809, %v802, %v591
      %v815 = vsel %vm809, %v803, %v593
      %v816 = vsel %vm809, %v804, %v595
      %v817 = vsel %vm809, %v805, %v597
      %v818 = vsel %vm809, %v806, %v599
      %v819 = vsel %vm809, %v807, %v601
      %v820 = vsel %vm809, %v808, %v603
      %vm821 = vcmask 441344
      %v822 = vsel %vm821, %v810, %v619
      %v823 = vsel %vm821, %v811, %v621
      %v824 = vsel %vm821, %v812, %v623
      %v825 = vsel %vm821, %v813, %v625
      %v826 = vsel %vm821, %v814, %v627
      %v827 = vsel %vm821, %v815, %v629
      %v828 = vsel %vm821, %v816, %v631
      %v829 = vsel %vm821, %v817, %v633
      %v830 = vsel %vm821, %v818, %v635
      %v831 = vsel %vm821, %v819, %v637
      %v832 = vsel %vm821, %v820, %v639
      %vm833 = vcmask 515072
      %v834 = vsel %vm833, %v822, %v674
      %v835 = vsel %vm833, %v823, %v676
      %v836 = vsel %vm833, %v824, %v678
      %v837 = vsel %vm833, %v825, %v680
      %v838 = vsel %vm833, %v826, %v682
      %v839 = vsel %vm833, %v827, %v684
      %v840 = vsel %vm833, %v828, %v686
      %v841 = vsel %vm833, %v829, %v688
      %v842 = vsel %vm833, %v830, %v690
      %v843 = vsel %vm833, %v831, %v692
      %v844 = vsel %vm833, %v832, %v694
      %vm845 = vcmask 588800
      %v846 = vsel %vm845, %v834, %v729
      %v847 = vsel %vm845, %v835, %v731
      %v848 = vsel %vm845, %v836, %v733
      %v849 = vsel %vm845, %v837, %v735
      %v850 = vsel %vm845, %v838, %v737
      %v851 = vsel %vm845, %v839, %v739
      %v852 = vsel %vm845, %v840, %v741
      %v853 = vsel %vm845, %v841, %v743
      %v854 = vsel %vm845, %v842, %v745
      %v855 = vsel %vm845, %v843, %v747
      %v856 = vsel %vm845, %v844, %v749
      %v857 = vpack.c.bf16 %v847, %v846
      %v858 = vpack.c.bf16 %v849, %v848
      %v859 = vpack.c.bf16 %v851, %v850
      %v860 = vpack.c.bf16 %v853, %v852
      %v861 = vpack.c.bf16 %v855, %v854
      %v862 = vpack.c.bf16 %v856, %v856
      %v863 = vld [vmem:[%s2] sm:$0xf]
      %v864 = vld [vmem:[%s2 + $0x4] sm:$0xf]
      %v865 = vld [vmem:[%s2 + $0x8] sm:$0xf]
      %v866 = vld [vmem:[%s2 + $0xc] sm:$0xf]
      %v867 = vld [vmem:[%s2 + $0x10] sm:$0xf]
      %v868 = vld [vmem:[%s2 + $0x14] sm:$0xf]
      %v869 = vld [vmem:[%s2 + $0x18] sm:$0xf]
      %v870 = vld [vmem:[%s2 + $0x1c] sm:$0xf]
      %v871 = vld [vmem:[%s2 + $0x20] sm:$0xf]
      %v872 = vld [vmem:[%s2 + $0x24] sm:$0xf]
      %v873 = vld [vmem:[%s2 + $0x28] sm:$0x1]
      %v874 = vld [vmem:[%s3] sm:$0x1]
      %v876 = vlaneseq
      %v877 = vshrl.u32 %v876, 7
      %v878 = vsub.s32 0, %v877
      %v879 = vrot.slane %v874, %v878
      %vm881 = vsmask.f32 7424
      %v883 = vshrl.u32 %v857, 16
      %v885 = vshll.u32 %v857, 16
      %v887 = vrot.slane %v885, 1
      %v888 = vor.u32 %v883, %v887
      %v890 = vshll.u32 %v858, 16
      %v892 = vrot.slane %v890, 1
      %v893 = vsel %vm881, %v888, %v892
      %v894 = vshrl.u32 %v858, 16
      %v896 = vor.u32 %v894, %v892
      %v898 = vshll.u32 %v859, 16
      %v900 = vrot.slane %v898, 1
      %v901 = vsel %vm881, %v896, %v900
      %v902 = vshrl.u32 %v859, 16
      %v904 = vor.u32 %v902, %v900
      %v906 = vshll.u32 %v860, 16
      %v908 = vrot.slane %v906, 1
      %v909 = vsel %vm881, %v904, %v908
      %v910 = vshrl.u32 %v860, 16
      %v912 = vor.u32 %v910, %v908
      %v914 = vshll.u32 %v861, 16
      %v916 = vrot.slane %v914, 1
      %v917 = vsel %vm881, %v912, %v916
      %v918 = vshrl.u32 %v861, 16
      %v920 = vor.u32 %v918, %v916
      %v922 = vshll.u32 %v862, 16
      %v924 = vrot.slane %v922, 1
      %v925 = vsel %vm881, %v920, %v924
      %v937 = vunpack.c.l.b16 %v863
      %v938 = vunpack.c.l.b16 %v864
      %v939 = vunpack.c.l.b16 %v865
      %v940 = vunpack.c.l.b16 %v866
      %v941 = vunpack.c.l.b16 %v867
      %v942 = vunpack.c.l.b16 %v868
      %v943 = vunpack.c.l.b16 %v869
      %v944 = vunpack.c.l.b16 %v870
      %v945 = vunpack.c.l.b16 %v871
      %v946 = vunpack.c.l.b16 %v872
      %v947 = vunpack.c.l.b16 %v873
      %v948 = vpack.c.b16 %v938, %v937
      %v949 = vpack.c.b16 %v940, %v939
      %v950 = vpack.c.b16 %v942, %v941
      %v951 = vpack.c.b16 %v944, %v943
      %v952 = vpack.c.b16 %v946, %v945
      %v953 = vpack.c.b16 %v947, %v947
      %vm959 = vcmask 662528
      %v961 = vsel %vm959, %v893, 0
      %v964 = vsel %vm959, %v901, 0
      %v967 = vsel %vm959, %v909, 0
      %v970 = vsel %vm959, %v917, 0
      %v973 = vsel %vm959, %v925, 0
      %vm975 = vcmask 1040384
      %v976 = vsel 0, 4294967295, 65535
      %v977 = vsel %vm975, %v976, 0
      %v979 = vand.u32 %v953, %v977
      %981 = vmatprep.subr.bf16.mxu0 0
      %982 = vmatpush1.bf16.msra.mxu0 %v948
      %983 = vmatprep.subr.bf16.mxu0 0
      %984 = vmatpush1.bf16.msra.mxu0 %v949
      %985 = vmatprep.subr.bf16.mxu0 0
      %986 = vmatpush1.bf16.msra.mxu0 %v950
      %987 = vmatprep.subr.bf16.mxu0 0
      %988 = vmatpush1.bf16.msra.mxu0 %v951
      %989 = vmatprep.subr.bf16.mxu0 0
      %990 = vmatpush1.bf16.msra.mxu0 %v952
      %991 = vmatprep.subr.bf16.mxu0 0
      %992 = vmatpush1.bf16.msra.mxu0 %v979
      %993 = vmatprep.subr.bf16.mxu0 0
      %994 = vmatpush1.bf16.msra.mxu0 0
      %995 = vmatprep.subr.bf16.mxu0 0
      %996 = vmatpush1.bf16.msra.mxu0 0
      %997 = vmatprep.subr.bf16.mxu0 0
      %998 = vmatpush1.bf16.msra.mxu0 0
      %999 = vmatprep.subr.bf16.mxu0 0
      %1000 = vmatpush1.bf16.msra.mxu0 0
      %1001 = vmatprep.subr.bf16.mxu0 0
      %1002 = vmatpush1.bf16.msra.mxu0 0
      %1003 = vmatprep.subr.bf16.mxu0 0
      %1004 = vmatpush1.bf16.msra.mxu0 0
      %1005 = vmatprep.subr.bf16.mxu0 0
      %1006 = vmatpush1.bf16.msra.mxu0 0
      %1007 = vmatprep.subr.bf16.mxu0 0
      %1008 = vmatpush1.bf16.msra.mxu0 0
      %1009 = vmatprep.subr.bf16.mxu0 0
      %1010 = vmatpush1.bf16.msra.mxu0 0
      %1011 = vmatprep.subr.bf16.mxu0 0
      %1012 = vmatpush1.bf16.msra.mxu0 0
      %1013 = vmatprep.mubr.bf16.mxu0 0
      %1014 = vmatmul.mubr.bf16.gmra.mrb[0].mxu0 %v961
      %v1015 = vpop.f32.mrb[0].mxu0
      %v1016 = vadd.f32 %v879, %v1015
      %v1017 = vpop.f32.mrb[0].mxu0
      %v1018 = vpop.f32.mrb[0].mxu0
      %v1019 = vadd.f32 %v879, %v1018
      %v1020 = vpop.f32.mrb[0].mxu0
      %1021 = vmatprep.mubr.bf16.mxu0 0
      %1022 = vmatmul.mubr.bf16.gmra.mrb[0].mxu0 %v964
      %v1023 = vpop.f32.mrb[0].mxu0
      %v1024 = vadd.f32 %v879, %v1023
      %v1025 = vpop.f32.mrb[0].mxu0
      %v1026 = vpop.f32.mrb[0].mxu0
      %v1027 = vadd.f32 %v879, %v1026
      %v1028 = vpop.f32.mrb[0].mxu0
      %1029 = vmatprep.mubr.bf16.mxu0 0
      %1030 = vmatmul.mubr.bf16.gmra.mrb[0].mxu0 %v967
      %v1031 = vpop.f32.mrb[0].mxu0
      %v1032 = vadd.f32 %v879, %v1031
      %v1033 = vpop.f32.mrb[0].mxu0
      %v1034 = vpop.f32.mrb[0].mxu0
      %v1035 = vadd.f32 %v879, %v1034
      %v1036 = vpop.f32.mrb[0].mxu0
      %1037 = vmatprep.mubr.bf16.mxu0 0
      %1038 = vmatmul.mubr.bf16.gmra.mrb[0].mxu0 %v970
      %v1039 = vpop.f32.mrb[0].mxu0
      %v1040 = vadd.f32 %v879, %v1039
      %v1041 = vpop.f32.mrb[0].mxu0
      %v1042 = vpop.f32.mrb[0].mxu0
      %v1043 = vadd.f32 %v879, %v1042
      %v1044 = vpop.f32.mrb[0].mxu0
      %1045 = vmatprep.mubr.bf16.mxu0 0
      %1046 = vmatmul.mubr.bf16.gmra.mrb[0].mxu0 %v973
      %v1047 = vpop.f32.mrb[0].mxu0
      %v1048 = vadd.f32 %v879, %v1047
      %v1049 = vpop.f32.mrb[0].mxu0
      %v1050 = vpop.f32.mrb[0].mxu0
      %v1051 = vadd.f32 %v879, %v1050
      %v1052 = vpop.f32.mrb[0].mxu0
      %1053 = vdwg.mxu0
      %v1054 = vld [vmem:[%s4] sm:$0xff]
      %v1055 = vld [vmem:[%s4 + $0x8] sm:$0xff]
      %v1056 = vld [vmem:[%s4 + $0x10] sm:$0xff]
      %v1057 = vld [vmem:[%s4 + $0x18] sm:$0xff]
      %v1058 = vld [vmem:[%s4 + $0x20] sm:$0xff]
      %v1059 = vld [vmem:[%s4 + $0x28] sm:$0xff]
      %v1060 = vld [vmem:[%s4 + $0x30] sm:$0xff]
      %v1061 = vld [vmem:[%s4 + $0x38] sm:$0xff]
      %v1062 = vld [vmem:[%s4 + $0x40] sm:$0xff]
      %v1063 = vld [vmem:[%s4 + $0x48] sm:$0xff]
      %vm1064 = vcmp.gt.f32.partialorder %v1054, 0.5
      %vm1065 = vcmp.gt.f32.partialorder %v1055, 0.5
      %vm1066 = vcmp.gt.f32.partialorder %v1056, 0.5
      %vm1067 = vcmp.gt.f32.partialorder %v1057, 0.5
      %vm1068 = vcmp.gt.f32.partialorder %v1058, 0.5
      %vm1069 = vcmp.gt.f32.partialorder %v1059, 0.5
      %vm1070 = vcmp.gt.f32.partialorder %v1060, 0.5
      %vm1071 = vcmp.gt.f32.partialorder %v1061, 0.5
      %vm1072 = vcmp.gt.f32.partialorder %v1062, 0.5
      %vm1073 = vcmp.gt.f32.partialorder %v1063, 0.5
      %v1074 = vsel %vm1064, 1, 0
      %v1075 = vsel %vm1065, 1, 0
      %v1076 = vsel %vm1066, 1, 0
      %v1077 = vsel %vm1067, 1, 0
      %v1078 = vsel %vm1068, 1, 0
      %v1079 = vsel %vm1069, 1, 0
      %v1080 = vsel %vm1070, 1, 0
      %v1081 = vsel %vm1071, 1, 0
      %v1082 = vsel %vm1072, 1, 0
      %v1083 = vsel %vm1073, 1, 0
      %1084 = vset.pattern.permute.xlu0 0
      %1085 = vperm.xlu0 %1084, %v1074
      %v1086 = vpop.permute.xlu0 %1085
      %1087 = vset.pattern.permute.xlu0 0
      %1088 = vperm.xlu0 %1087, %v1075
      %v1089 = vpop.permute.xlu0 %1088
      %1090 = vset.pattern.permute.xlu0 0
      %1091 = vperm.xlu0 %1090, %v1076
      %v1092 = vpop.permute.xlu0 %1091
      %1093 = vset.pattern.permute.xlu0 0
      %1094 = vperm.xlu0 %1093, %v1077
      %v1095 = vpop.permute.xlu0 %1094
      %1096 = vset.pattern.permute.xlu0 0
      %1097 = vperm.xlu0 %1096, %v1078
      %v1098 = vpop.permute.xlu0 %1097
      %1099 = vset.pattern.permute.xlu0 0
      %1100 = vperm.xlu0 %1099, %v1079
      %v1101 = vpop.permute.xlu0 %1100
      %1102 = vset.pattern.permute.xlu0 0
      %1103 = vperm.xlu0 %1102, %v1080
      %v1104 = vpop.permute.xlu0 %1103
      %1105 = vset.pattern.permute.xlu0 0
      %1106 = vperm.xlu0 %1105, %v1081
      %v1107 = vpop.permute.xlu0 %1106
      %1108 = vset.pattern.permute.xlu0 0
      %1109 = vperm.xlu0 %1108, %v1082
      %v1110 = vpop.permute.xlu0 %1109
      %1111 = vset.pattern.permute.xlu0 0
      %1112 = vperm.xlu0 %1111, %v1083
      %v1113 = vpop.permute.xlu0 %1112
      %vm1114 = vcmp.eq.s32.totalorder %v1086, 1
      %vm1115 = vcmp.eq.s32.totalorder %v1089, 1
      %vm1116 = vcmp.eq.s32.totalorder %v1092, 1
      %vm1117 = vcmp.eq.s32.totalorder %v1095, 1
      %vm1118 = vcmp.eq.s32.totalorder %v1098, 1
      %vm1119 = vcmp.eq.s32.totalorder %v1101, 1
      %vm1120 = vcmp.eq.s32.totalorder %v1104, 1
      %vm1121 = vcmp.eq.s32.totalorder %v1107, 1
      %vm1122 = vcmp.eq.s32.totalorder %v1110, 1
      %vm1123 = vcmp.eq.s32.totalorder %v1113, 1
      %v1124 = vsel %vm1114, %v1016, 0.0
      %v1125 = vsel %vm1115, %v1019, 0.0
      %v1126 = vsel %vm1116, %v1024, 0.0
      %v1127 = vsel %vm1117, %v1027, 0.0
      %v1128 = vsel %vm1118, %v1032, 0.0
      %v1129 = vsel %vm1119, %v1035, 0.0
      %v1130 = vsel %vm1120, %v1040, 0.0
      %v1131 = vsel %vm1121, %v1043, 0.0
      %v1132 = vsel %vm1122, %v1048, 0.0
      %v1133 = vsel %vm1123, %v1051, 0.0
      %vm1134 = vcmask 261120
      %1135 = vst.msk [vmem:[%s332] sm:$0xff] %vm1134, %v1124
      %1136 = vst.msk [vmem:[%s332 + $0x8] sm:$0xff] %vm1134, %v1125
      %1137 = vst.msk [vmem:[%s332 + $0x10] sm:$0xff] %vm1134, %v1126
      %1138 = vst.msk [vmem:[%s332 + $0x18] sm:$0xff] %vm1134, %v1127
      %1139 = vst.msk [vmem:[%s332 + $0x20] sm:$0xff] %vm1134, %v1128
      %1140 = vst.msk [vmem:[%s332 + $0x28] sm:$0xff] %vm1134, %v1129
      %1141 = vst.msk [vmem:[%s332 + $0x30] sm:$0xff] %vm1134, %v1130
      %1142 = vst.msk [vmem:[%s332 + $0x38] sm:$0xff] %vm1134, %v1131
      %1143 = vst.msk [vmem:[%s332 + $0x40] sm:$0xff] %vm1134, %v1132
      %1144 = vst.msk [vmem:[%s332 + $0x48] sm:$0xff] %vm1134, %v1133
      %s1145 = smul.u32 10, %s21
      %p1146 = scmp.lt.s32.totalorder %s20, 1
      %s1147 = scalar_select %p1146, %s20, 1
      %p1148 = scmp.lt.s32.totalorder %s1145, 9
      %s1149 = scalar_select %p1148, %s1145, 9
      %s1150 = smul.addr %s1147, 10
      %s1151 = sadd.s32 %s1149, %s1150
      %s1152 = smul.addr %s1151, 8
      %s1153 = scalar_lea.vmem %s5, %s1152
      // Predicated region
      $region41: #{sr_context_upsample_forward.8} parent=39 // pred_check
        %p1154 = pneg %p171
      $region42: #{sr_context_upsample_forward.8} parent=39 // pred_check_branch
        %1156 = sbr.rel (%p1154) target = $region44
      $region43: #{sr_context_upsample_forward.8} parent=39 // pred_region
        %s1157 = smul.u32 10, %s21
      $region44: #{sr_context_upsample_forward.8} parent=39 // pred_fallthru
        _
    $region40: #{sr_context_upsample_forward.8} parent=5 // pred_fallthru
      _
    %p1158 = scmp.le.s32.totalorder 2, %s11
    // Predicated region
    $region45: #{sr_context_upsample_forward.8} parent=5 // pred_check
      %p1159 = pneg %p1158
    $region46: #{sr_context_upsample_forward.8} parent=5 // pred_check_branch
      %1161 = sbr.rel (%p1159) target = $region48
    $region47: #{sr_context_upsample_forward.8} parent=5 // pred_region
      %s1162 = ssub.s32 %s11, 2
      // Predicated region
      $region49: #{sr_context_upsample_forward.8} parent=47 // pred_check
        %p1163 = pneg %p177
      $region50: #{sr_context_upsample_forward.8} parent=47 // pred_check_branch
        %1165 = sbr.rel (%p1163) target = $region52
      $region51: #{sr_context_upsample_forward.8} parent=47 // pred_region
        %s1166 = smul.u32 10, %s23
        %p1167 = scmp.lt.s32.totalorder %s22, 1
        %s1168 = scalar_select %p1167, %s22, 1
        %p1169 = scmp.lt.s32.totalorder %s1166, 9
        %s1170 = scalar_select %p1169, %s1166, 9
        %s1171 = smul.addr %s1168, 10
        %s1172 = sadd.s32 %s1170, %s1171
        %s1173 = smul.addr %s1172, 8
        %s1174 = scalar_lea.vmem %s5, %s1173
      $region52: #{sr_context_upsample_forward.8} parent=47 // pred_fallthru
        _
    $region48: #{sr_context_upsample_forward.8} parent=5 // pred_fallthru
      _
  $region6: #{sr_context_upsample_forward.8} parent=0 // loop_footer
    %s15 = sadd.s32 1, %s11
  $region7: #{sr_context_upsample_forward.8} parent=0 // loop_footer_branch
    %10 = sbr.rel target = $region3
  $region8: #{sr_context_upsample_forward.8} parent=0 // loop_exit
    _

// kernel: sr_context_upsample_forward.9
$region0: #{sr_context_upsample_forward.9}
  #allocation0 [shape = 'u32[]', space=smem, size = 0x4, offset = 0x4, fixed_abs, tag = 'smem constant byte address 0x4 - core index']
  #allocation1 [shape = 'u32[144,128]{1,0:T(1,128)}', space=vmem, size = 0x12000, scoped, tag = 'internal scratch']
  %s0 = inlined_call_operand.vmem [shape: f32[2,120,32], index: 0, kind: input, shape index: {}, may-alias: {0,1}]
  %s1 = inlined_call_operand.vmem [shape: f32[2,120,32], index: 1, kind: input, shape index: {}, may-alias: {0,1}]
  %s2 = inlined_call_operand.vmem [shape: bf16[288,32], index: 2, kind: input, shape index: {}]
  %s3 = inlined_call_operand.vmem [shape: f32[1,32], index: 3, kind: input, shape index: {}]
  %s4 = inlined_call_operand.vmem [shape: f32[80,1], index: 4, kind: input, shape index: {}]
  %s5 = inlined_call_operand.vmem [shape: f32[2,80,32], index: 5, kind: output, shape index: {}]
  %s6 = sld [smem:[#allocation0]]
  $region53: #{sr_context_upsample_forward.9} parent=0
    _
  %s8 = ssub.s32 1, %s6
  %s9 = scalar_select 0, %s8, %s6
  loop: start=0, step=1, limit=4
  $region2: #{sr_context_upsample_forward.9} parent=0 // loop_pre_header
    _
  $region3: #{sr_context_upsample_forward.9} parent=0 // loop_header
    %s11 = sphi 0, %s15
    %p12 = scmp.ge.s32.totalorder %s11, 4
    %s18 = sphi 0, %s30
    %s19 = sphi 0, %s26
    %s20 = sphi 0, %s18
    %s21 = sphi 0, %s19
    %s22 = sphi 0, %s20
    %s23 = sphi 0, %s21
    %s35 = sphi 0, %s37
    %s38 = sphi 0, %s35
    %s39 = sphi 0, %s38
    %s55 = sphi 0, %s39
    %s67 = sphi 0, %s69
    %s70 = sphi 0, %s67
    %s71 = sphi 0, %s70
    %s87 = sphi 0, %s71
    %s91 = sphi 0, %s91
    %s93 = sphi 0, %s91
    %s94 = sphi 0, %s93
    %s108 = sphi 0, %s94
    %s112 = sphi 0, %s112
    %s114 = sphi 0, %s112
    %s115 = sphi 0, %s114
    %s129 = sphi 0, %s115
    %s133 = sphi 0, %s133
    %s135 = sphi 0, %s133
    %s136 = sphi 0, %s135
    %s150 = sphi 0, %s136
    %s158 = sphi 0, %s160
    %s161 = sphi 0, %s158
    %s162 = sphi 0, %s161
    %s178 = sphi 0, %s162
  $region4: #{sr_context_upsample_forward.9} parent=0 // loop_header_branch
    %14 = sbr.rel (%p12) target = $region8
  $region5: #{sr_context_upsample_forward.9} parent=0 // loop_body
    %s16 = ssub.s32 %s11, 1
    %s17 = ssub.s32 %s11, 2
    %s24 = sadd.s32 1, %s19
    %p25 = scmp.ge.s32.totalorder %s24, 1
    %s26 = scalar_select %p25, 0, %s24
    %s27 = sadd.s32 1, %s18
    %s28 = scalar_select %p25, %s27, %s18
    %p29 = scmp.ge.s32.totalorder %s28, 2
    %s30 = scalar_select %p29, 0, %s28
    %s31 = ssub.s32 %s18, %s30
    %s32 = ssub.s32 %s19, %s26
    %s33 = sor.u32 %s31, %s32
    %p34 = scmp.eq.s32.totalorder %s33, 0
    %s36 = sadd.s32 %s35, 1
    %s37 = scalar_select %p34, %s35, %s36
    %p40 = pneg %p34
    %p41 = scmp.eq.s32.totalorder %s11, 1
    %p42 = por %p40, %p41
    %p43 = scmp.ne.s32.totalorder %s35, %s38
    %p44 = scmp.eq.s32.totalorder %s11, 0
    %p45 = por %p43, %p44
    %p46 = scmp.ne.s32.totalorder %s35, %s38
    %p47 = scmp.eq.s32.totalorder %s16, 1
    %p48 = por %p46, %p47
    %p49 = scmp.ne.s32.totalorder %s38, %s39
    %p50 = scmp.eq.s32.totalorder %s16, 0
    %p51 = por %p49, %p50
    %p52 = scmp.ne.s32.totalorder %s38, %s39
    %p53 = scmp.eq.s32.totalorder %s17, 1
    %p54 = por %p52, %p53
    %p56 = scmp.ne.s32.totalorder %s39, %s55
    %p57 = scmp.eq.s32.totalorder %s17, 0
    %p58 = por %p56, %p57
    %s59 = sadd.s32 %s19, 1
    %s60 = smul.u32 %s59, 2
    %s61 = sadd.s32 %s26, 1
    %s62 = smul.u32 %s61, 2
    %s63 = ssub.s32 %s18, %s30
    %s64 = ssub.s32 %s60, %s62
    %s65 = sor.u32 %s63, %s64
    %p66 = scmp.eq.s32.totalorder %s65, 0
    %s68 = sadd.s32 %s67, 1
    %s69 = scalar_select %p66, %s67, %s68
    %p72 = pneg %p66
    %p73 = scmp.eq.s32.totalorder %s11, 1
    %p74 = por %p72, %p73
    %p75 = scmp.ne.s32.totalorder %s67, %s70
    %p76 = scmp.eq.s32.totalorder %s11, 0
    %p77 = por %p75, %p76
    %p78 = scmp.ne.s32.totalorder %s67, %s70
    %p79 = scmp.eq.s32.totalorder %s16, 1
    %p80 = por %p78, %p79
    %p81 = scmp.ne.s32.totalorder %s70, %s71
    %p82 = scmp.eq.s32.totalorder %s16, 0
    %p83 = por %p81, %p82
    %p84 = scmp.ne.s32.totalorder %s70, %s71
    %p85 = scmp.eq.s32.totalorder %s17, 1
    %p86 = por %p84, %p85
    %p88 = scmp.ne.s32.totalorder %s71, %s87
    %p89 = scmp.eq.s32.totalorder %s17, 0
    %p90 = por %p88, %p89
    %s92 = sadd.s32 %s91, 1
    %p95 = scmp.eq.s32.totalorder %s11, 1
    %p96 = scmp.ne.s32.totalorder %s91, %s93
    %p97 = scmp.eq.s32.totalorder %s11, 0
    %p98 = por %p96, %p97
    %p99 = scmp.ne.s32.totalorder %s91, %s93
    %p100 = scmp.eq.s32.totalorder %s16, 1
    %p101 = por %p99, %p100
    %p102 = scmp.ne.s32.totalorder %s93, %s94
    %p103 = scmp.eq.s32.totalorder %s16, 0
    %p104 = por %p102, %p103
    %p105 = scmp.ne.s32.totalorder %s93, %s94
    %p106 = scmp.eq.s32.totalorder %s17, 1
    %p107 = por %p105, %p106
    %p109 = scmp.ne.s32.totalorder %s94, %s108
    %p110 = scmp.eq.s32.totalorder %s17, 0
    %p111 = por %p109, %p110
    %s113 = sadd.s32 %s112, 1
    %p116 = scmp.eq.s32.totalorder %s11, 1
    %p117 = scmp.ne.s32.totalorder %s112, %s114
    %p118 = scmp.eq.s32.totalorder %s11, 0
    %p119 = por %p117, %p118
    %p120 = scmp.ne.s32.totalorder %s112, %s114
    %p121 = scmp.eq.s32.totalorder %s16, 1
    %p122 = por %p120, %p121
    %p123 = scmp.ne.s32.totalorder %s114, %s115
    %p124 = scmp.eq.s32.totalorder %s16, 0
    %p125 = por %p123, %p124
    %p126 = scmp.ne.s32.totalorder %s114, %s115
    %p127 = scmp.eq.s32.totalorder %s17, 1
    %p128 = por %p126, %p127
    %p130 = scmp.ne.s32.totalorder %s115, %s129
    %p131 = scmp.eq.s32.totalorder %s17, 0
    %p132 = por %p130, %p131
    %s134 = sadd.s32 %s133, 1
    %p137 = scmp.eq.s32.totalorder %s11, 1
    %p138 = scmp.ne.s32.totalorder %s133, %s135
    %p139 = scmp.eq.s32.totalorder %s11, 0
    %p140 = por %p138, %p139
    %p141 = scmp.ne.s32.totalorder %s133, %s135
    %p142 = scmp.eq.s32.totalorder %s16, 1
    %p143 = por %p141, %p142
    %p144 = scmp.ne.s32.totalorder %s135, %s136
    %p145 = scmp.eq.s32.totalorder %s16, 0
    %p146 = por %p144, %p145
    %p147 = scmp.ne.s32.totalorder %s135, %s136
    %p148 = scmp.eq.s32.totalorder %s17, 1
    %p149 = por %p147, %p148
    %p151 = scmp.ne.s32.totalorder %s136, %s150
    %p152 = scmp.eq.s32.totalorder %s17, 0
    %p153 = por %p151, %p152
    %s154 = ssub.s32 %s18, %s30
    %s155 = ssub.s32 %s19, %s26
    %s156 = sor.u32 %s154, %s155
    %p157 = scmp.eq.s32.totalorder %s156, 0
    %s159 = sadd.s32 %s158, 1
    %s160 = scalar_select %p157, %s158, %s159
    %p163 = pneg %p157
    %p164 = scmp.eq.s32.totalorder %s11, 1
    %p165 = por %p163, %p164
    %p166 = scmp.ne.s32.totalorder %s158, %s161
    %p167 = scmp.eq.s32.totalorder %s11, 0
    %p168 = por %p166, %p167
    %p169 = scmp.ne.s32.totalorder %s158, %s161
    %p170 = scmp.eq.s32.totalorder %s16, 1
    %p171 = por %p169, %p170
    %p172 = scmp.ne.s32.totalorder %s161, %s162
    %p173 = scmp.eq.s32.totalorder %s16, 0
    %p174 = por %p172, %p173
    %p175 = scmp.ne.s32.totalorder %s161, %s162
    %p176 = scmp.eq.s32.totalorder %s17, 1
    %p177 = por %p175, %p176
    %p179 = scmp.ne.s32.totalorder %s162, %s178
    %p180 = scmp.eq.s32.totalorder %s17, 0
    %p181 = por %p179, %p180
    %p182 = scmp.le.s32.totalorder 1, %s11
    %p183 = scmp.lt.s32.totalorder %s11, 3
    %p184 = pnand %p182, %p183
    %p185 = pneg %p184
    // Predicated region
    $region9: #{sr_context_upsample_forward.9} parent=5 // pred_check
      _
    $region10: #{sr_context_upsample_forward.9} parent=5 // pred_check_branch
      %187 = sbr.rel (%p184) target = $region12
    $region11: #{sr_context_upsample_forward.9} parent=5 // pred_region
      %s188 = ssub.s32 %s11, 1
      // Predicated region
      $region13: #{sr_context_upsample_forward.9} parent=11 // pred_check
        %p189 = pneg %p104
      $region14: #{sr_context_upsample_forward.9} parent=11 // pred_check_branch
        %191 = sbr.rel (%p189) target = $region16
      $region15: #{sr_context_upsample_forward.9} parent=11 // pred_region
        _
      $region16: #{sr_context_upsample_forward.9} parent=11 // pred_fallthru
        _
      // Predicated region
      $region17: #{sr_context_upsample_forward.9} parent=11 // pred_check
        %p192 = pneg %p125
      $region18: #{sr_context_upsample_forward.9} parent=11 // pred_check_branch
        %194 = sbr.rel (%p192) target = $region20
      $region19: #{sr_context_upsample_forward.9} parent=11 // pred_region
        _
      $region20: #{sr_context_upsample_forward.9} parent=11 // pred_fallthru
        _
      // Predicated region
      $region21: #{sr_context_upsample_forward.9} parent=11 // pred_check
        %p195 = pneg %p146
      $region22: #{sr_context_upsample_forward.9} parent=11 // pred_check_branch
        %197 = sbr.rel (%p195) target = $region24
      $region23: #{sr_context_upsample_forward.9} parent=11 // pred_region
        _
      $region24: #{sr_context_upsample_forward.9} parent=11 // pred_fallthru
        _
    $region12: #{sr_context_upsample_forward.9} parent=5 // pred_fallthru
      _
    %p198 = scmp.lt.s32.totalorder %s11, 2
    // Predicated region
    $region25: #{sr_context_upsample_forward.9} parent=5 // pred_check
      %p199 = pneg %p198
    $region26: #{sr_context_upsample_forward.9} parent=5 // pred_check_branch
      %201 = sbr.rel (%p199) target = $region28
    $region27: #{sr_context_upsample_forward.9} parent=5 // pred_region
      // Predicated region
      $region29: #{sr_context_upsample_forward.9} parent=27 // pred_check
        %p202 = pneg %p45
      $region30: #{sr_context_upsample_forward.9} parent=27 // pred_check_branch
        %204 = sbr.rel (%p202) target = $region32
      $region31: #{sr_context_upsample_forward.9} parent=27 // pred_region
        %s205 = smul.u32 10, %s19
        %s206 = ssub.s32 15, %s205
        %p207 = scmp.lt.s32.totalorder %s206, 10
        %s208 = scalar_select %p207, %s206, 10
        %s209 = smul.u32 128, %s208
        %p210 = scmp.lt.s32.totalorder %s18, 1
        %s211 = scalar_select %p210, %s18, 1
        %p212 = scmp.lt.s32.totalorder %s205, 14
        %s213 = scalar_select %p212, %s205, 14
        %s214 = smul.addr %s211, 15
        %s215 = sadd.s32 %s213, %s214
        %s216 = smul.addr %s215, 8
        %s217 = scalar_lea.vmem %s0, %s216
        %s218 = smul.u32 10, %s19
        %s219 = ssub.s32 15, %s218
        %p220 = scmp.lt.s32.totalorder %s219, 10
        %s221 = scalar_select %p220, %s219, 10
        %s222 = smul.u32 128, %s221
      $region32: #{sr_context_upsample_forward.9} parent=27 // pred_fallthru
        _
      // Predicated region
      $region33: #{sr_context_upsample_forward.9} parent=27 // pred_check
        %p223 = pneg %p77
      $region34: #{sr_context_upsample_forward.9} parent=27 // pred_check_branch
        %225 = sbr.rel (%p223) target = $region36
      $region35: #{sr_context_upsample_forward.9} parent=27 // pred_region
        %s226 = sadd.s32 %s19, 1
        %s227 = smul.u32 %s226, 2
        %s228 = smul.u32 5, %s227
        %p229 = scmp.lt.s32.totalorder %s18, 1
        %s230 = scalar_select %p229, %s18, 1
        %p231 = scmp.lt.s32.totalorder %s228, 14
        %s232 = scalar_select %p231, %s228, 14
        %s233 = smul.addr %s230, 15
        %s234 = sadd.s32 %s232, %s233
        %s235 = smul.addr %s234, 8
        %s236 = scalar_lea.vmem %s1, %s235
        %s237 = sadd.s32 %s19, 1
        %s238 = smul.u32 %s237, 2
        %s239 = smul.u32 5, %s238
      $region36: #{sr_context_upsample_forward.9} parent=27 // pred_fallthru
        _
    $region28: #{sr_context_upsample_forward.9} parent=5 // pred_fallthru
      _
    %p240 = scmp.le.s32.totalorder 1, %s11
    %p241 = scmp.lt.s32.totalorder %s11, 3
    %p242 = pnand %p240, %p241
    %p243 = pneg %p242
    // Predicated region
    $region37: #{sr_context_upsample_forward.9} parent=5 // pred_check
      _
    $region38: #{sr_context_upsample_forward.9} parent=5 // pred_check_branch
      %245 = sbr.rel (%p242) target = $region40
    $region39: #{sr_context_upsample_forward.9} parent=5 // pred_region
      %s246 = ssub.s32 %s11, 1
      %s247 = smul.u32 10, %s21
      %s248 = ssub.s32 15, %s247
      %p249 = scmp.lt.s32.totalorder %s248, 10
      %s250 = scalar_select %p249, %s248, 10
      %s251 = smul.u32 128, %s250
      %p252 = scmp.lt.s32.totalorder %s20, 1
      %s253 = scalar_select %p252, %s20, 1
      %p254 = scmp.lt.s32.totalorder %s247, 14
      %s255 = scalar_select %p254, %s247, 14
      %s256 = smul.addr %s253, 15
      %s257 = sadd.s32 %s255, %s256
      %s258 = smul.addr %s257, 8
      %s259 = scalar_lea.vmem %s0, %s258
      %p260 = pneg %p51
      %p261 = pneg %p48
      %s262 = sadd.s32 %s21, 1
      %s263 = smul.u32 %s262, 2
      %s264 = smul.u32 5, %s263
      %p265 = scmp.lt.s32.totalorder %s20, 1
      %s266 = scalar_select %p265, %s20, 1
      %p267 = scmp.lt.s32.totalorder %s264, 14
      %s268 = scalar_select %p267, %s264, 14
      %s269 = smul.addr %s266, 15
      %s270 = sadd.s32 %s268, %s269
      %s271 = smul.addr %s270, 8
      %s272 = scalar_lea.vmem %s1, %s271
      %p273 = pneg %p83
      %p274 = pneg %p80
      %p275 = pneg %p104
      %p276 = pneg %p101
      %p277 = pneg %p125
      %p278 = pneg %p122
      %p279 = pneg %p146
      %p280 = pneg %p143
      %p281 = pneg %p174
      %p282 = pneg %p171
      %s283 = smul.u32 10, %s21
      %p284 = scmp.lt.s32.totalorder %s20, 1
      %s285 = scalar_select %p284, %s20, 1
      %p286 = scmp.lt.s32.totalorder %s283, 9
      %s287 = scalar_select %p286, %s283, 9
      %s288 = smul.addr %s285, 10
      %s289 = sadd.s32 %s287, %s288
      %s290 = smul.addr %s289, 8
      %s291 = scalar_lea.vmem %s5, %s290
      %s292 = smul.u32 10, %s21
      %s293 = ssub.s32 15, %s292
      %p294 = scmp.lt.s32.totalorder %s293, 10
      %s295 = scalar_select %p294, %s293, 10
      %s296 = smul.u32 128, %s295
      %p297 = scmp.lt.s32.totalorder %s20, 1
      %s298 = scalar_select %p297, %s20, 1
      %p299 = scmp.lt.s32.totalorder %s292, 14
      %s300 = scalar_select %p299, %s292, 14
      %s301 = smul.addr %s298, 15
      %s302 = sadd.s32 %s300, %s301
      %s303 = smul.addr %s302, 8
      %s304 = scalar_lea.vmem %s0, %s303
      %s305 = smul.u32 10, %s21
      %s306 = ssub.s32 15, %s305
      %p307 = scmp.lt.s32.totalorder %s306, 10
      %s308 = scalar_select %p307, %s306, 10
      %s309 = smul.u32 128, %s308
      %s310 = sadd.s32 %s21, 1
      %s311 = smul.u32 %s310, 2
      %s312 = smul.u32 5, %s311
      %p313 = scmp.lt.s32.totalorder %s20, 1
      %s314 = scalar_select %p313, %s20, 1
      %p315 = scmp.lt.s32.totalorder %s312, 14
      %s316 = scalar_select %p315, %s312, 14
      %s317 = smul.addr %s314, 15
      %s318 = sadd.s32 %s316, %s317
      %s319 = smul.addr %s318, 8
      %s320 = scalar_lea.vmem %s1, %s319
      %s321 = sadd.s32 %s21, 1
      %s322 = smul.u32 %s321, 2
      %s323 = smul.u32 5, %s322
      %s324 = smul.u32 10, %s21
      %p325 = scmp.lt.s32.totalorder %s20, 1
      %s326 = scalar_select %p325, %s20, 1
      %p327 = scmp.lt.s32.totalorder %s324, 9
      %s328 = scalar_select %p327, %s324, 9
      %s329 = smul.addr %s326, 10
      %s330 = sadd.s32 %s328, %s329
      %s331 = smul.addr %s330, 8
      %s332 = scalar_lea.vmem %s5, %s331
      %s333 = smul.u32 10, %s21
      %v335 = vld [vmem:[%s304 + $0x8] sm:$0xff]
      %v336 = vld [vmem:[%s304 + $0x10] sm:$0xff]
      %v337 = vld [vmem:[%s304 + $0x18] sm:$0xff]
      %v338 = vld [vmem:[%s304 + $0x20] sm:$0xff]
      %v339 = vld [vmem:[%s304 + $0x28] sm:$0xff]
      %v340 = vld [vmem:[%s304 + $0x30] sm:$0xff]
      %v341 = vld [vmem:[%s304 + $0x38] sm:$0xff]
      %v342 = vld [vmem:[%s304 + $0x40] sm:$0xff]
      %v343 = vld [vmem:[%s304 + $0x48] sm:$0xff]
      %v344 = vld [vmem:[%s320] sm:$0xff]
      %v345 = vld [vmem:[%s320 + $0x8] sm:$0xff]
      %v346 = vld [vmem:[%s320 + $0x10] sm:$0xff]
      %v347 = vld [vmem:[%s320 + $0x18] sm:$0xff]
      %vm359 = vcmask 1046528
      %v360 = vrot.slane %v335, 1
      %v361 = vrot.slane %v336, 1
      %v362 = vsel %vm359, %v360, %v361
      %v363 = vrot.slane %v337, 1
      %v364 = vsel %vm359, %v361, %v363
      %v365 = vrot.slane %v338, 1
      %v366 = vsel %vm359, %v363, %v365
      %v367 = vrot.slane %v339, 1
      %v368 = vsel %vm359, %v365, %v367
      %v369 = vrot.slane %v340, 1
      %v370 = vsel %vm359, %v367, %v369
      %v371 = vrot.slane %v341, 1
      %v372 = vsel %vm359, %v369, %v371
      %v373 = vrot.slane %v342, 1
      %v374 = vsel %vm359, %v371, %v373
      %v375 = vrot.slane %v343, 1
      %v376 = vsel %vm359, %v373, %v375
      %v377 = vrot.slane %v344, 1
      %v378 = vsel %vm359, %v375, %v377
      %v379 = vrot.slane %v345, 1
      %v380 = vsel %vm359, %v377, %v379
      %381 = vrot.lane.b32.xlu0 %v362, 32
      %v382 = vpop.permute.xlu0 %381
      %383 = vrot.lane.b32.xlu0 %v364, 32
      %v384 = vpop.permute.xlu0 %383
      %385 = vrot.lane.b32.xlu0 %v366, 32
      %v386 = vpop.permute.xlu0 %385
      %387 = vrot.lane.b32.xlu0 %v368, 32
      %v388 = vpop.permute.xlu0 %387
      %389 = vrot.lane.b32.xlu0 %v370, 32
      %v390 = vpop.permute.xlu0 %389
      %391 = vrot.lane.b32.xlu0 %v372, 32
      %v392 = vpop.permute.xlu0 %391
      %393 = vrot.lane.b32.xlu0 %v374, 32
      %v394 = vpop.permute.xlu0 %393
      %395 = vrot.lane.b32.xlu0 %v376, 32
      %v396 = vpop.permute.xlu0 %395
      %397 = vrot.lane.b32.xlu0 %v378, 32
      %v398 = vpop.permute.xlu0 %397
      %399 = vrot.lane.b32.xlu0 %v380, 32
      %v400 = vpop.permute.xlu0 %399
      %401 = vrot.lane.b32.xlu0 %v379, 32
      %v402 = vpop.permute.xlu0 %401
      %vm414 = vcmask 1045504
      %v415 = vrot.slane %v335, 2
      %v416 = vrot.slane %v336, 2
      %v417 = vsel %vm414, %v415, %v416
      %v418 = vrot.slane %v337, 2
      %v419 = vsel %vm414, %v416, %v418
      %v420 = vrot.slane %v338, 2
      %v421 = vsel %vm414, %v418, %v420
      %v422 = vrot.slane %v339, 2
      %v423 = vsel %vm414, %v420, %v422
      %v424 = vrot.slane %v340, 2
      %v425 = vsel %vm414, %v422, %v424
      %v426 = vrot.slane %v341, 2
      %v427 = vsel %vm414, %v424, %v426
      %v428 = vrot.slane %v342, 2
      %v429 = vsel %vm414, %v426, %v428
      %v430 = vrot.slane %v343, 2
      %v431 = vsel %vm414, %v428, %v430
      %v432 = vrot.slane %v344, 2
      %v433 = vsel %vm414, %v430, %v432
      %v434 = vrot.slane %v345, 2
      %v435 = vsel %vm414, %v432, %v434
      %436 = vrot.lane.b32.xlu0 %v417, 64
      %v437 = vpop.permute.xlu0 %436
      %438 = vrot.lane.b32.xlu0 %v419, 64
      %v439 = vpop.permute.xlu0 %438
      %440 = vrot.lane.b32.xlu0 %v421, 64
      %v441 = vpop.permute.xlu0 %440
      %442 = vrot.lane.b32.xlu0 %v423, 64
      %v443 = vpop.permute.xlu0 %442
      %444 = vrot.lane.b32.xlu0 %v425, 64
      %v445 = vpop.permute.xlu0 %444
      %446 = vrot.lane.b32.xlu0 %v427, 64
      %v447 = vpop.permute.xlu0 %446
      %448 = vrot.lane.b32.xlu0 %v429, 64
      %v449 = vpop.permute.xlu0 %448
      %450 = vrot.lane.b32.xlu0 %v431, 64
      %v451 = vpop.permute.xlu0 %450
      %452 = vrot.lane.b32.xlu0 %v433, 64
      %v453 = vpop.permute.xlu0 %452
      %454 = vrot.lane.b32.xlu0 %v435, 64
      %v455 = vpop.permute.xlu0 %454
      %456 = vrot.lane.b32.xlu0 %v434, 64
      %v457 = vpop.permute.xlu0 %456
      %v470 = vrot.slane %v346, 2
      %v471 = vsel %vm414, %v434, %v470
      %472 = vrot.lane.b32.xlu0 %v419, 96
      %v473 = vpop.permute.xlu0 %472
      %474 = vrot.lane.b32.xlu0 %v421, 96
      %v475 = vpop.permute.xlu0 %474
      %476 = vrot.lane.b32.xlu0 %v423, 96
      %v477 = vpop.permute.xlu0 %476
      %478 = vrot.lane.b32.xlu0 %v425, 96
      %v479 = vpop.permute.xlu0 %478
      %480 = vrot.lane.b32.xlu0 %v427, 96
      %v481 = vpop.permute.xlu0 %480
      %482 = vrot.lane.b32.xlu0 %v429, 96
      %v483 = vpop.permute.xlu0 %482
      %484 = vrot.lane.b32.xlu0 %v431, 96
      %v485 = vpop.permute.xlu0 %484
      %486 = vrot.lane.b32.xlu0 %v433, 96
      %v487 = vpop.permute.xlu0 %486
      %488 = vrot.lane.b32.xlu0 %v435, 96
      %v489 = vpop.permute.xlu0 %488
      %490 = vrot.lane.b32.xlu0 %v471, 96
      %v491 = vpop.permute.xlu0 %490
      %492 = vrot.lane.b32.xlu0 %v470, 96
      %v493 = vpop.permute.xlu0 %492
      %vm505 = vcmask 1044480
      %v506 = vrot.slane %v336, 3
      %v507 = vrot.slane %v337, 3
      %v508 = vsel %vm505, %v506, %v507
      %v509 = vrot.slane %v338, 3
      %v510 = vsel %vm505, %v507, %v509
      %v511 = vrot.slane %v339, 3
      %v512 = vsel %vm505, %v509, %v511
      %v513 = vrot.slane %v340, 3
      %v514 = vsel %vm505, %v511, %v513
      %v515 = vrot.slane %v341, 3
      %v516 = vsel %vm505, %v513, %v515
      %v517 = vrot.slane %v342, 3
      %v518 = vsel %vm505, %v515, %v517
      %v519 = vrot.slane %v343, 3
      %v520 = vsel %vm505, %v517, %v519
      %v521 = vrot.slane %v344, 3
      %v522 = vsel %vm505, %v519, %v521
      %v523 = vrot.slane %v345, 3
      %v524 = vsel %vm505, %v521, %v523
      %v525 = vrot.slane %v346, 3
      %v526 = vsel %vm505, %v523, %v525
      %vm538 = vcmask 1043456
      %v539 = vrot.slane %v336, 4
      %v540 = vrot.slane %v337, 4
      %v541 = vsel %vm538, %v539, %v540
      %v542 = vrot.slane %v338, 4
      %v543 = vsel %vm538, %v540, %v542
      %v544 = vrot.slane %v339, 4
      %v545 = vsel %vm538, %v542, %v544
      %v546 = vrot.slane %v340, 4
      %v547 = vsel %vm538, %v544, %v546
      %v548 = vrot.slane %v341, 4
      %v549 = vsel %vm538, %v546, %v548
      %v550 = vrot.slane %v342, 4
      %v551 = vsel %vm538, %v548, %v550
      %v552 = vrot.slane %v343, 4
      %v553 = vsel %vm538, %v550, %v552
      %v554 = vrot.slane %v344, 4
      %v555 = vsel %vm538, %v552, %v554
      %v556 = vrot.slane %v345, 4
      %v557 = vsel %vm538, %v554, %v556
      %v558 = vrot.slane %v346, 4
      %v559 = vsel %vm538, %v556, %v558
      %560 = vrot.lane.b32.xlu0 %v541, 32
      %v561 = vpop.permute.xlu0 %560
      %562 = vrot.lane.b32.xlu0 %v543, 32
      %v563 = vpop.permute.xlu0 %562
      %564 = vrot.lane.b32.xlu0 %v545, 32
      %v565 = vpop.permute.xlu0 %564
      %566 = vrot.lane.b32.xlu0 %v547, 32
      %v567 = vpop.permute.xlu0 %566
      %568 = vrot.lane.b32.xlu0 %v549, 32
      %v569 = vpop.permute.xlu0 %568
      %570 = vrot.lane.b32.xlu0 %v551, 32
      %v571 = vpop.permute.xlu0 %570
      %572 = vrot.lane.b32.xlu0 %v553, 32
      %v573 = vpop.permute.xlu0 %572
      %574 = vrot.lane.b32.xlu0 %v555, 32
      %v575 = vpop.permute.xlu0 %574
      %576 = vrot.lane.b32.xlu0 %v557, 32
      %v577 = vpop.permute.xlu0 %576
      %578 = vrot.lane.b32.xlu0 %v559, 32
      %v579 = vpop.permute.xlu0 %578
      %580 = vrot.lane.b32.xlu0 %v558, 32
      %v581 = vpop.permute.xlu0 %580
      %v594 = vrot.slane %v347, 4
      %v595 = vsel %vm538, %v558, %v594
      %596 = vrot.lane.b32.xlu0 %v543, 64
      %v597 = vpop.permute.xlu0 %596
      %598 = vrot.lane.b32.xlu0 %v545, 64
      %v599 = vpop.permute.xlu0 %598
      %600 = vrot.lane.b32.xlu0 %v547, 64
      %v601 = vpop.permute.xlu0 %600
      %602 = vrot.lane.b32.xlu0 %v549, 64
      %v603 = vpop.permute.xlu0 %602
      %604 = vrot.lane.b32.xlu0 %v551, 64
      %v605 = vpop.permute.xlu0 %604
      %606 = vrot.lane.b32.xlu0 %v553, 64
      %v607 = vpop.permute.xlu0 %606
      %608 = vrot.lane.b32.xlu0 %v555, 64
      %v609 = vpop.permute.xlu0 %608
      %610 = vrot.lane.b32.xlu0 %v557, 64
      %v611 = vpop.permute.xlu0 %610
      %612 = vrot.lane.b32.xlu0 %v559, 64
      %v613 = vpop.permute.xlu0 %612
      %614 = vrot.lane.b32.xlu0 %v595, 64
      %v615 = vpop.permute.xlu0 %614
      %616 = vrot.lane.b32.xlu0 %v594, 64
      %v617 = vpop.permute.xlu0 %616
      %vm629 = vcmask 1042432
      %v630 = vrot.slane %v337, 5
      %v631 = vrot.slane %v338, 5
      %v632 = vsel %vm629, %v630, %v631
      %v633 = vrot.slane %v339, 5
      %v634 = vsel %vm629, %v631, %v633
      %v635 = vrot.slane %v340, 5
      %v636 = vsel %vm629, %v633, %v635
      %v637 = vrot.slane %v341, 5
      %v638 = vsel %vm629, %v635, %v637
      %v639 = vrot.slane %v342, 5
      %v640 = vsel %vm629, %v637, %v639
      %v641 = vrot.slane %v343, 5
      %v642 = vsel %vm629, %v639, %v641
      %v643 = vrot.slane %v344, 5
      %v644 = vsel %vm629, %v641, %v643
      %v645 = vrot.slane %v345, 5
      %v646 = vsel %vm629, %v643, %v645
      %v647 = vrot.slane %v346, 5
      %v648 = vsel %vm629, %v645, %v647
      %v649 = vrot.slane %v347, 5
      %v650 = vsel %vm629, %v647, %v649
      %651 = vrot.lane.b32.xlu0 %v632, 96
      %v652 = vpop.permute.xlu0 %651
      %653 = vrot.lane.b32.xlu0 %v634, 96
      %v654 = vpop.permute.xlu0 %653
      %655 = vrot.lane.b32.xlu0 %v636, 96
      %v656 = vpop.permute.xlu0 %655
      %657 = vrot.lane.b32.xlu0 %v638, 96
      %v658 = vpop.permute.xlu0 %657
      %659 = vrot.lane.b32.xlu0 %v640, 96
      %v660 = vpop.permute.xlu0 %659
      %661 = vrot.lane.b32.xlu0 %v642, 96
      %v662 = vpop.permute.xlu0 %661
      %663 = vrot.lane.b32.xlu0 %v644, 96
      %v664 = vpop.permute.xlu0 %663
      %665 = vrot.lane.b32.xlu0 %v646, 96
      %v666 = vpop.permute.xlu0 %665
      %667 = vrot.lane.b32.xlu0 %v648, 96
      %v668 = vpop.permute.xlu0 %667
      %669 = vrot.lane.b32.xlu0 %v650, 96
      %v670 = vpop.permute.xlu0 %669
      %671 = vrot.lane.b32.xlu0 %v649, 96
      %v672 = vpop.permute.xlu0 %671
      %vm684 = vcmask 1041408
      %v685 = vrot.slane %v337, 6
      %v686 = vrot.slane %v338, 6
      %v687 = vsel %vm684, %v685, %v686
      %v688 = vrot.slane %v339, 6
      %v689 = vsel %vm684, %v686, %v688
      %v690 = vrot.slane %v340, 6
      %v691 = vsel %vm684, %v688, %v690
      %v692 = vrot.slane %v341, 6
      %v693 = vsel %vm684, %v690, %v692
      %v694 = vrot.slane %v342, 6
      %v695 = vsel %vm684, %v692, %v694
      %v696 = vrot.slane %v343, 6
      %v697 = vsel %vm684, %v694, %v696
      %v698 = vrot.slane %v344, 6
      %v699 = vsel %vm684, %v696, %v698
      %v700 = vrot.slane %v345, 6
      %v701 = vsel %vm684, %v698, %v700
      %v702 = vrot.slane %v346, 6
      %v703 = vsel %vm684, %v700, %v702
      %v704 = vrot.slane %v347, 6
      %v705 = vsel %vm684, %v702, %v704
      %vm717 = vcmask 261120
      %v718 = vsel %vm717, %v335, %v382
      %v719 = vsel %vm717, %v336, %v384
      %v720 = vsel %vm717, %v337, %v386
      %v721 = vsel %vm717, %v338, %v388
      %v722 = vsel %vm717, %v339, %v390
      %v723 = vsel %vm717, %v340, %v392
      %v724 = vsel %vm717, %v341, %v394
      %v725 = vsel %vm717, %v342, %v396
      %v726 = vsel %vm717, %v343, %v398
      %v727 = vsel %vm717, %v344, %v400
      %v728 = vsel %vm717, %v345, %v402
      %vm729 = vcmask 523264
      %v730 = vsel %vm729, %v718, %v437
      %v731 = vsel %vm729, %v719, %v439
      %v732 = vsel %vm729, %v720, %v441
      %v733 = vsel %vm729, %v721, %v443
      %v734 = vsel %vm729, %v722, %v445
      %v735 = vsel %vm729, %v723, %v447
      %v736 = vsel %vm729, %v724, %v449
      %v737 = vsel %vm729, %v725, %v451
      %v738 = vsel %vm729, %v726, %v453
      %v739 = vsel %vm729, %v727, %v455
      %v740 = vsel %vm729, %v728, %v457
      %vm741 = vcmask 785408
      %v742 = vsel %vm741, %v730, %v473
      %v743 = vsel %vm741, %v731, %v475
      %v744 = vsel %vm741, %v732, %v477
      %v745 = vsel %vm741, %v733, %v479
      %v746 = vsel %vm741, %v734, %v481
      %v747 = vsel %vm741, %v735, %v483
      %v748 = vsel %vm741, %v736, %v485
      %v749 = vsel %vm741, %v737, %v487
      %v750 = vsel %vm741, %v738, %v489
      %v751 = vsel %vm741, %v739, %v491
      %v752 = vsel %vm741, %v740, %v493
      %v753 = vsel %vm717, %v508, %v561
      %v754 = vsel %vm717, %v510, %v563
      %v755 = vsel %vm717, %v512, %v565
      %v756 = vsel %vm717, %v514, %v567
      %v757 = vsel %vm717, %v516, %v569
      %v758 = vsel %vm717, %v518, %v571
      %v759 = vsel %vm717, %v520, %v573
      %v760 = vsel %vm717, %v522, %v575
      %v761 = vsel %vm717, %v524, %v577
      %v762 = vsel %vm717, %v526, %v579
      %v763 = vsel %vm717, %v525, %v581
      %v764 = vsel %vm729, %v753, %v597
      %v765 = vsel %vm729, %v754, %v599
      %v766 = vsel %vm729, %v755, %v601
      %v767 = vsel %vm729, %v756, %v603
      %v768 = vsel %vm729, %v757, %v605
      %v769 = vsel %vm729, %v758, %v607
      %v770 = vsel %vm729, %v759, %v609
      %v771 = vsel %vm729, %v760, %v611
      %v772 = vsel %vm729, %v761, %v613
      %v773 = vsel %vm729, %v762, %v615
      %v774 = vsel %vm729, %v763, %v617
      %v775 = vsel %vm741, %v764, %v652
      %v776 = vsel %vm741, %v765, %v654
      %v777 = vsel %vm741, %v766, %v656
      %v778 = vsel %vm741, %v767, %v658
      %v779 = vsel %vm741, %v768, %v660
      %v780 = vsel %vm741, %v769, %v662
      %v781 = vsel %vm741, %v770, %v664
      %v782 = vsel %vm741, %v771, %v666
      %v783 = vsel %vm741, %v772, %v668
      %v784 = vsel %vm741, %v773, %v670
      %v785 = vsel %vm741, %v774, %v672
      %v786 = vpack.c.bf16 %v743, %v742
      %v787 = vpack.c.bf16 %v776, %v775
      %v788 = vpack.c.bf16 %v689, %v687
      %v789 = vpack.c.bf16 %v745, %v744
      %v790 = vpack.c.bf16 %v778, %v777
      %v791 = vpack.c.bf16 %v693, %v691
      %v792 = vpack.c.bf16 %v747, %v746
      %v793 = vpack.c.bf16 %v780, %v779
      %v794 = vpack.c.bf16 %v697, %v695
      %v795 = vpack.c.bf16 %v749, %v748
      %v796 = vpack.c.bf16 %v782, %v781
      %v797 = vpack.c.bf16 %v701, %v699
      %v798 = vpack.c.bf16 %v751, %v750
      %v799 = vpack.c.bf16 %v784, %v783
      %v800 = vpack.c.bf16 %v705, %v703
      %v801 = vpack.c.bf16 %v752, %v752
      %v802 = vpack.c.bf16 %v785, %v785
      %v803 = vpack.c.bf16 %v704, %v704
      %v804 = vld [vmem:[%s2] sm:$0xf]
      %v805 = vld [vmem:[%s2 + $0x4] sm:$0xf]
      %v806 = vld [vmem:[%s2 + $0x8] sm:$0xf]
      %v807 = vld [vmem:[%s2 + $0xc] sm:$0xf]
      %v808 = vld [vmem:[%s2 + $0x10] sm:$0xf]
      %v809 = vld [vmem:[%s2 + $0x14] sm:$0xf]
      %v810 = vld [vmem:[%s2 + $0x18] sm:$0xf]
      %v811 = vld [vmem:[%s2 + $0x1c] sm:$0xf]
      %v812 = vld [vmem:[%s2 + $0x20] sm:$0xf]
      %v813 = vld [vmem:[%s2 + $0x24] sm:$0xf]
      %v814 = vld [vmem:[%s2 + $0x28] sm:$0xf]
      %v815 = vld [vmem:[%s2 + $0x2c] sm:$0xf]
      %v816 = vld [vmem:[%s2 + $0x30] sm:$0xf]
      %v817 = vld [vmem:[%s2 + $0x34] sm:$0xf]
      %v818 = vld [vmem:[%s2 + $0x38] sm:$0xf]
      %v819 = vld [vmem:[%s2 + $0x3c] sm:$0xf]
      %v820 = vld [vmem:[%s2 + $0x40] sm:$0xf]
      %v821 = vld [vmem:[%s2 + $0x44] sm:$0xf]
      %v822 = vld [vmem:[%s2 + $0x48] sm:$0xf]
      %v823 = vld [vmem:[%s2 + $0x4c] sm:$0xf]
      %v824 = vld [vmem:[%s2 + $0x50] sm:$0xf]
      %v825 = vld [vmem:[%s2 + $0x54] sm:$0xf]
      %v826 = vld [vmem:[%s2 + $0x58] sm:$0xf]
      %v827 = vld [vmem:[%s2 + $0x5c] sm:$0xf]
      %v828 = vld [vmem:[%s2 + $0x60] sm:$0xf]
      %v829 = vld [vmem:[%s2 + $0x64] sm:$0xf]
      %v830 = vld [vmem:[%s2 + $0x68] sm:$0xf]
      %v831 = vld [vmem:[%s2 + $0x6c] sm:$0xf]
      %v832 = vld [vmem:[%s2 + $0x70] sm:$0xf]
      %v833 = vld [vmem:[%s2 + $0x74] sm:$0xf]
      %v834 = vld [vmem:[%s2 + $0x78] sm:$0xf]
      %v835 = vld [vmem:[%s2 + $0x7c] sm:$0xf]
      %v836 = vld [vmem:[%s2 + $0x80] sm:$0xf]
      %v837 = vld [vmem:[%s2 + $0x84] sm:$0xf]
      %v838 = vld [vmem:[%s2 + $0x88] sm:$0xf]
      %v839 = vld [vmem:[%s2 + $0x8c] sm:$0xf]
      %v840 = vld [vmem:[%s3] sm:$0x1]
      %v842 = vlaneseq
      %v843 = vshrl.u32 %v842, 7
      %v844 = vsub.s32 0, %v843
      %v845 = vrot.slane %v840, %v844
      %vm847 = vsmask.f32 7424
      %v849 = vshrl.u32 %v786, 16
      %v851 = vshll.u32 %v786, 16
      %v853 = vrot.slane %v851, 1
      %v854 = vor.u32 %v849, %v853
      %v856 = vshll.u32 %v789, 16
      %v858 = vrot.slane %v856, 1
      %v859 = vsel %vm847, %v854, %v858
      %v861 = vshrl.u32 %v787, 16
      %v863 = vshll.u32 %v787, 16
      %v865 = vrot.slane %v863, 1
      %v866 = vor.u32 %v861, %v865
      %v868 = vshll.u32 %v790, 16
      %v870 = vrot.slane %v868, 1
      %v871 = vsel %vm847, %v866, %v870
      %v873 = vshrl.u32 %v788, 16
      %v875 = vshll.u32 %v788, 16
      %v877 = vrot.slane %v875, 1
      %v878 = vor.u32 %v873, %v877
      %v880 = vshll.u32 %v791, 16
      %v882 = vrot.slane %v880, 1
      %v883 = vsel %vm847, %v878, %v882
      %v884 = vshrl.u32 %v789, 16
      %v886 = vor.u32 %v884, %v858
      %v888 = vshll.u32 %v792, 16
      %v890 = vrot.slane %v888, 1
      %v891 = vsel %vm847, %v886, %v890
      %v892 = vshrl.u32 %v790, 16
      %v894 = vor.u32 %v892, %v870
      %v896 = vshll.u32 %v793, 16
      %v898 = vrot.slane %v896, 1
      %v899 = vsel %vm847, %v894, %v898
      %v900 = vshrl.u32 %v791, 16
      %v902 = vor.u32 %v900, %v882
      %v904 = vshll.u32 %v794, 16
      %v906 = vrot.slane %v904, 1
      %v907 = vsel %vm847, %v902, %v906
      %v908 = vshrl.u32 %v792, 16
      %v910 = vor.u32 %v908, %v890
      %v912 = vshll.u32 %v795, 16
      %v914 = vrot.slane %v912, 1
      %v915 = vsel %vm847, %v910, %v914
      %v916 = vshrl.u32 %v793, 16
      %v918 = vor.u32 %v916, %v898
      %v920 = vshll.u32 %v796, 16
      %v922 = vrot.slane %v920, 1
      %v923 = vsel %vm847, %v918, %v922
      %v924 = vshrl.u32 %v794, 16
      %v926 = vor.u32 %v924, %v906
      %v928 = vshll.u32 %v797, 16
      %v930 = vrot.slane %v928, 1
      %v931 = vsel %vm847, %v926, %v930
      %v932 = vshrl.u32 %v795, 16
      %v934 = vor.u32 %v932, %v914
      %v936 = vshll.u32 %v798, 16
      %v938 = vrot.slane %v936, 1
      %v939 = vsel %vm847, %v934, %v938
      %v940 = vshrl.u32 %v796, 16
      %v942 = vor.u32 %v940, %v922
      %v944 = vshll.u32 %v799, 16
      %v946 = vrot.slane %v944, 1
      %v947 = vsel %vm847, %v942, %v946
      %v948 = vshrl.u32 %v797, 16
      %v950 = vor.u32 %v948, %v930
      %v952 = vshll.u32 %v800, 16
      %v954 = vrot.slane %v952, 1
      %v955 = vsel %vm847, %v950, %v954
      %v956 = vshrl.u32 %v798, 16
      %v958 = vor.u32 %v956, %v938
      %v960 = vshll.u32 %v801, 16
      %v962 = vrot.slane %v960, 1
      %v963 = vsel %vm847, %v958, %v962
      %v964 = vshrl.u32 %v799, 16
      %v966 = vor.u32 %v964, %v946
      %v968 = vshll.u32 %v802, 16
      %v970 = vrot.slane %v968, 1
      %v971 = vsel %vm847, %v966, %v970
      %v972 = vshrl.u32 %v800, 16
      %v974 = vor.u32 %v972, %v954
      %v976 = vshll.u32 %v803, 16
      %v978 = vrot.slane %v976, 1
      %v979 = vsel %vm847, %v974, %v978
      %v1026 = vunpack.c.l.b16 %v804
      %v1027 = vunpack.c.l.b16 %v805
      %v1028 = vunpack.c.l.b16 %v806
      %v1029 = vunpack.c.l.b16 %v807
      %v1030 = vunpack.c.l.b16 %v808
      %v1031 = vunpack.c.l.b16 %v809
      %v1032 = vunpack.c.l.b16 %v810
      %v1033 = vunpack.c.l.b16 %v811
      %v1034 = vunpack.c.l.b16 %v812
      %v1035 = vunpack.c.l.b16 %v813
      %v1036 = vunpack.c.l.b16 %v814
      %v1037 = vunpack.c.l.b16 %v815
      %v1038 = vunpack.c.l.b16 %v816
      %v1039 = vunpack.c.l.b16 %v817
      %v1040 = vunpack.c.l.b16 %v818
      %v1041 = vunpack.c.l.b16 %v819
      %v1042 = vunpack.c.l.b16 %v820
      %v1043 = vunpack.c.l.b16 %v821
      %v1044 = vunpack.c.l.b16 %v822
      %v1045 = vunpack.c.l.b16 %v823
      %v1046 = vunpack.c.l.b16 %v824
      %v1047 = vunpack.c.l.b16 %v825
      %v1048 = vunpack.c.l.b16 %v826
      %v1049 = vunpack.c.l.b16 %v827
      %v1050 = vunpack.c.l.b16 %v828
      %v1051 = vunpack.c.l.b16 %v829
      %v1052 = vunpack.c.l.b16 %v830
      %v1053 = vunpack.c.l.b16 %v831
      %v1054 = vunpack.c.l.b16 %v832
      %v1055 = vunpack.c.l.b16 %v833
      %v1056 = vunpack.c.l.b16 %v834
      %v1057 = vunpack.c.l.b16 %v835
      %v1058 = vunpack.c.l.b16 %v836
      %v1059 = vunpack.c.l.b16 %v837
      %v1060 = vunpack.c.l.b16 %v838
      %v1061 = vunpack.c.l.b16 %v839
      %v1062 = vpack.c.b16 %v1027, %v1026
      %v1063 = vpack.c.b16 %v1029, %v1028
      %v1064 = vpack.c.b16 %v1031, %v1030
      %v1065 = vpack.c.b16 %v1033, %v1032
      %v1066 = vpack.c.b16 %v1035, %v1034
      %v1067 = vpack.c.b16 %v1037, %v1036
      %v1068 = vpack.c.b16 %v1039, %v1038
      %v1069 = vpack.c.b16 %v1041, %v1040
      %v1070 = vpack.c.b16 %v1043, %v1042
      %v1071 = vpack.c.b16 %v1045, %v1044
      %v1072 = vpack.c.b16 %v1047, %v1046
      %v1073 = vpack.c.b16 %v1049, %v1048
      %v1074 = vpack.c.b16 %v1051, %v1050
      %v1075 = vpack.c.b16 %v1053, %v1052
      %v1076 = vpack.c.b16 %v1055, %v1054
      %v1077 = vpack.c.b16 %v1057, %v1056
      %v1078 = vpack.c.b16 %v1059, %v1058
      %v1079 = vpack.c.b16 %v1061, %v1060
      %v1099 = vsel %vm717, %v883, 0
      %v1102 = vsel %vm717, %v907, 0
      %v1105 = vsel %vm717, %v931, 0
      %v1108 = vsel %vm717, %v955, 0
      %v1111 = vsel %vm717, %v979, 0
      %1113 = vmatprep.subr.bf16.mxu0 0
      %1114 = vmatpush1.bf16.msra.mxu0 %v1062
      %1115 = vmatprep.subr.bf16.mxu0 0
      %1116 = vmatpush1.bf16.msra.mxu0 %v1063
      %1117 = vmatprep.subr.bf16.mxu0 0
      %1118 = vmatpush1.bf16.msra.mxu0 %v1064
      %1119 = vmatprep.subr.bf16.mxu0 0
      %1120 = vmatpush1.bf16.msra.mxu0 %v1065
      %1121 = vmatprep.subr.bf16.mxu0 0
      %1122 = vmatpush1.bf16.msra.mxu0 %v1066
      %1123 = vmatprep.subr.bf16.mxu0 0
      %1124 = vmatpush1.bf16.msra.mxu0 %v1067
      %1125 = vmatprep.subr.bf16.mxu0 0
      %1126 = vmatpush1.bf16.msra.mxu0 %v1068
      %1127 = vmatprep.subr.bf16.mxu0 0
      %1128 = vmatpush1.bf16.msra.mxu0 %v1069
      %1129 = vmatprep.subr.bf16.mxu0 0
      %1130 = vmatpush1.bf16.msra.mxu0 %v1070
      %1131 = vmatprep.subr.bf16.mxu0 0
      %1132 = vmatpush1.bf16.msra.mxu0 %v1071
      %1133 = vmatprep.subr.bf16.mxu0 0
      %1134 = vmatpush1.bf16.msra.mxu0 %v1072
      %1135 = vmatprep.subr.bf16.mxu0 0
      %1136 = vmatpush1.bf16.msra.mxu0 %v1073
      %1137 = vmatprep.subr.bf16.mxu0 0
      %1138 = vmatpush1.bf16.msra.mxu0 %v1074
      %1139 = vmatprep.subr.bf16.mxu0 0
      %1140 = vmatpush1.bf16.msra.mxu0 %v1075
      %1141 = vmatprep.subr.bf16.mxu0 0
      %1142 = vmatpush1.bf16.msra.mxu0 %v1076
      %1143 = vmatprep.subr.bf16.mxu0 0
      %1144 = vmatpush1.bf16.msra.mxu0 %v1077
      %1145 = vmatprep.mubr.bf16.mxu0 %v871
      %1146 = vmatmul.mubr.bf16.gmra.mrb[0].mxu0 %v859
      %v1147 = vpop.f32.mrb[0].mxu0
      %v1148 = vadd.f32 %v845, %v1147
      %v1149 = vpop.f32.mrb[0].mxu0
      %v1150 = vpop.f32.mrb[0].mxu0
      %v1151 = vadd.f32 %v845, %v1150
      %v1152 = vpop.f32.mrb[0].mxu0
      %1153 = vmatprep.mubr.bf16.mxu0 %v899
      %1154 = vmatmul.mubr.bf16.gmra.mrb[0].mxu0 %v891
      %v1155 = vpop.f32.mrb[0].mxu0
      %v1156 = vadd.f32 %v845, %v1155
      %v1157 = vpop.f32.mrb[0].mxu0
      %v1158 = vpop.f32.mrb[0].mxu0
      %v1159 = vadd.f32 %v845, %v1158
      %v1160 = vpop.f32.mrb[0].mxu0
      %1161 = vmatprep.mubr.bf16.mxu0 %v923
      %1162 = vmatmul.mubr.bf16.gmra.mrb[0].mxu0 %v915
      %v1163 = vpop.f32.mrb[0].mxu0
      %v1164 = vadd.f32 %v845, %v1163
      %v1165 = vpop.f32.mrb[0].mxu0
      %v1166 = vpop.f32.mrb[0].mxu0
      %v1167 = vadd.f32 %v845, %v1166
      %v1168 = vpop.f32.mrb[0].mxu0
      %1169 = vmatprep.mubr.bf16.mxu0 %v947
      %1170 = vmatmul.mubr.bf16.gmra.mrb[0].mxu0 %v939
      %v1171 = vpop.f32.mrb[0].mxu0
      %v1172 = vadd.f32 %v845, %v1171
      %v1173 = vpop.f32.mrb[0].mxu0
      %v1174 = vpop.f32.mrb[0].mxu0
      %v1175 = vadd.f32 %v845, %v1174
      %v1176 = vpop.f32.mrb[0].mxu0
      %1177 = vmatprep.mubr.bf16.mxu0 %v971
      %1178 = vmatmul.mubr.bf16.gmra.mrb[0].mxu0 %v963
      %v1179 = vpop.f32.mrb[0].mxu0
      %v1180 = vadd.f32 %v845, %v1179
      %v1181 = vpop.f32.mrb[0].mxu0
      %v1182 = vpop.f32.mrb[0].mxu0
      %v1183 = vadd.f32 %v845, %v1182
      %v1184 = vpop.f32.mrb[0].mxu0
      %1185 = vdwg.mxu0
      %1186 = vmatprep.subr.bf16.mxu0 0
      %1187 = vmatpush1.bf16.msra.mxu0 %v1078
      %1188 = vmatprep.subr.bf16.mxu0 0
      %1189 = vmatpush1.bf16.msra.mxu0 %v1079
      %1190 = vmatprep.subr.bf16.mxu0 0
      %1191 = vmatpush1.bf16.msra.mxu0 0
      %1192 = vmatprep.subr.bf16.mxu0 0
      %1193 = vmatpush1.bf16.msra.mxu0 0
      %1194 = vmatprep.subr.bf16.mxu0 0
      %1195 = vmatpush1.bf16.msra.mxu0 0
      %1196 = vmatprep.subr.bf16.mxu0 0
      %1197 = vmatpush1.bf16.msra.mxu0 0
      %1198 = vmatprep.subr.bf16.mxu0 0
      %1199 = vmatpush1.bf16.msra.mxu0 0
      %1200 = vmatprep.subr.bf16.mxu0 0
      %1201 = vmatpush1.bf16.msra.mxu0 0
      %1202 = vmatprep.subr.bf16.mxu0 0
      %1203 = vmatpush1.bf16.msra.mxu0 0
      %1204 = vmatprep.subr.bf16.mxu0 0
      %1205 = vmatpush1.bf16.msra.mxu0 0
      %1206 = vmatprep.subr.bf16.mxu0 0
      %1207 = vmatpush1.bf16.msra.mxu0 0
      %1208 = vmatprep.subr.bf16.mxu0 0
      %1209 = vmatpush1.bf16.msra.mxu0 0
      %1210 = vmatprep.subr.bf16.mxu0 0
      %1211 = vmatpush1.bf16.msra.mxu0 0
      %1212 = vmatprep.subr.bf16.mxu0 0
      %1213 = vmatpush1.bf16.msra.mxu0 0
      %1214 = vmatprep.subr.bf16.mxu0 0
      %1215 = vmatpush1.bf16.msra.mxu0 0
      %1216 = vmatprep.subr.bf16.mxu0 0
      %1217 = vmatpush1.bf16.msra.mxu0 0
      %1218 = vmatprep.mubr.bf16.mxu0 0
      %1219 = vmatmul.mubr.bf16.gmra.mrb[0].mxu0 %v1099
      %v1220 = vpop.f32.mrb[0].mxu0
      %v1221 = vadd.f32 %v1148, %v1220
      %v1222 = vpop.f32.mrb[0].mxu0
      %v1223 = vpop.f32.mrb[0].mxu0
      %v1224 = vadd.f32 %v1151, %v1223
      %v1225 = vpop.f32.mrb[0].mxu0
      %1226 = vmatprep.mubr.bf16.mxu0 0
      %1227 = vmatmul.mubr.bf16.gmra.mrb[0].mxu0 %v1102
      %v1228 = vpop.f32.mrb[0].mxu0
      %v1229 = vadd.f32 %v1156, %v1228
      %v1230 = vpop.f32.mrb[0].mxu0
      %v1231 = vpop.f32.mrb[0].mxu0
      %v1232 = vadd.f32 %v1159, %v1231
      %v1233 = vpop.f32.mrb[0].mxu0
      %1234 = vmatprep.mubr.bf16.mxu0 0
      %1235 = vmatmul.mubr.bf16.gmra.mrb[0].mxu0 %v1105
      %v1236 = vpop.f32.mrb[0].mxu0
      %v1237 = vadd.f32 %v1164, %v1236
      %v1238 = vpop.f32.mrb[0].mxu0
      %v1239 = vpop.f32.mrb[0].mxu0
      %v1240 = vadd.f32 %v1167, %v1239
      %v1241 = vpop.f32.mrb[0].mxu0
      %1242 = vmatprep.mubr.bf16.mxu0 0
      %1243 = vmatmul.mubr.bf16.gmra.mrb[0].mxu0 %v1108
      %v1244 = vpop.f32.mrb[0].mxu0
      %v1245 = vadd.f32 %v1172, %v1244
      %v1246 = vpop.f32.mrb[0].mxu0
      %v1247 = vpop.f32.mrb[0].mxu0
      %v1248 = vadd.f32 %v1175, %v1247
      %v1249 = vpop.f32.mrb[0].mxu0
      %1250 = vmatprep.mubr.bf16.mxu0 0
      %1251 = vmatmul.mubr.bf16.gmra.mrb[0].mxu0 %v1111
      %v1252 = vpop.f32.mrb[0].mxu0
      %v1253 = vadd.f32 %v1180, %v1252
      %v1254 = vpop.f32.mrb[0].mxu0
      %v1255 = vpop.f32.mrb[0].mxu0
      %v1256 = vadd.f32 %v1183, %v1255
      %v1257 = vpop.f32.mrb[0].mxu0
      %1258 = vdwg.mxu0
      %v1259 = vmul.f32 %v1221, %v1221
      %v1260 = vmul.f32 %v1224, %v1224
      %v1261 = vmul.f32 %v1229, %v1229
      %v1262 = vmul.f32 %v1232, %v1232
      %v1263 = vmul.f32 %v1237, %v1237
      %v1264 = vmul.f32 %v1240, %v1240
      %v1265 = vmul.f32 %v1245, %v1245
      %v1266 = vmul.f32 %v1248, %v1248
      %v1267 = vmul.f32 %v1253, %v1253
      %v1268 = vmul.f32 %v1256, %v1256
      %v1269 = vmul.f32 %v1221, %v1259
      %v1270 = vmul.f32 %v1224, %v1260
      %v1271 = vmul.f32 %v1229, %v1261
      %v1272 = vmul.f32 %v1232, %v1262
      %v1273 = vmul.f32 %v1237, %v1263
      %v1274 = vmul.f32 %v1240, %v1264
      %v1275 = vmul.f32 %v1245, %v1265
      %v1276 = vmul.f32 %v1248, %v1266
      %v1277 = vmul.f32 %v1253, %v1267
      %v1278 = vmul.f32 %v1256, %v1268
      %v1279 = vmul.f32 %v1269, 0.044715
      %v1280 = vmul.f32 %v1270, 0.044715
      %v1281 = vmul.f32 %v1271, 0.044715
      %v1282 = vmul.f32 %v1272, 0.044715
      %v1283 = vmul.f32 %v1273, 0.044715
      %v1284 = vmul.f32 %v1274, 0.044715
      %v1285 = vmul.f32 %v1275, 0.044715
      %v1286 = vmul.f32 %v1276, 0.044715
      %v1287 = vmul.f32 %v1277, 0.044715
      %v1288 = vmul.f32 %v1278, 0.044715
      %v1289 = vadd.f32 %v1221, %v1279
      %v1290 = vadd.f32 %v1224, %v1280
      %v1291 = vadd.f32 %v1229, %v1281
      %v1292 = vadd.f32 %v1232, %v1282
      %v1293 = vadd.f32 %v1237, %v1283
      %v1294 = vadd.f32 %v1240, %v1284
      %v1295 = vadd.f32 %v1245, %v1285
      %v1296 = vadd.f32 %v1248, %v1286
      %v1297 = vadd.f32 %v1253, %v1287
      %v1298 = vadd.f32 %v1256, %v1288
      %v1299 = vmul.f32 %v1289, 0.7978846
      %v1300 = vmul.f32 %v1290, 0.7978846
      %v1301 = vmul.f32 %v1291, 0.7978846
      %v1302 = vmul.f32 %v1292, 0.7978846
      %v1303 = vmul.f32 %v1293, 0.7978846
      %v1304 = vmul.f32 %v1294, 0.7978846
      %v1305 = vmul.f32 %v1295, 0.7978846
      %v1306 = vmul.f32 %v1296, 0.7978846
      %v1307 = vmul.f32 %v1297, 0.7978846
      %v1308 = vmul.f32 %v1298, 0.7978846
      %v1309 = vtanh.pop %v1299
      %v1310 = vtanh.pop %v1300
      %v1311 = vtanh.pop %v1301
      %v1312 = vtanh.pop %v1302
      %v1313 = vtanh.pop %v1303
      %v1314 = vtanh.pop %v1304
      %v1315 = vtanh.pop %v1305
      %v1316 = vtanh.pop %v1306
      %v1317 = vtanh.pop %v1307
      %v1318 = vtanh.pop %v1308
      %v1319 = vadd.f32 %v1309, 1.0
      %v1320 = vadd.f32 %v1310, 1.0
      %v1321 = vadd.f32 %v1311, 1.0
      %v1322 = vadd.f32 %v1312, 1.0
      %v1323 = vadd.f32 %v1313, 1.0
      %v1324 = vadd.f32 %v1314, 1.0
      %v1325 = vadd.f32 %v1315, 1.0
      %v1326 = vadd.f32 %v1316, 1.0
      %v1327 = vadd.f32 %v1317, 1.0
      %v1328 = vadd.f32 %v1318, 1.0
      %v1329 = vmul.f32 %v1319, 0.5
      %v1330 = vmul.f32 %v1320, 0.5
      %v1331 = vmul.f32 %v1321, 0.5
      %v1332 = vmul.f32 %v1322, 0.5
      %v1333 = vmul.f32 %v1323, 0.5
      %v1334 = vmul.f32 %v1324, 0.5
      %v1335 = vmul.f32 %v1325, 0.5
      %v1336 = vmul.f32 %v1326, 0.5
      %v1337 = vmul.f32 %v1327, 0.5
      %v1338 = vmul.f32 %v1328, 0.5
      %v1339 = vmul.f32 %v1221, %v1329
      %v1340 = vmul.f32 %v1224, %v1330
      %v1341 = vmul.f32 %v1229, %v1331
      %v1342 = vmul.f32 %v1232, %v1332
      %v1343 = vmul.f32 %v1237, %v1333
      %v1344 = vmul.f32 %v1240, %v1334
      %v1345 = vmul.f32 %v1245, %v1335
      %v1346 = vmul.f32 %v1248, %v1336
      %v1347 = vmul.f32 %v1253, %v1337
      %v1348 = vmul.f32 %v1256, %v1338
      %v1349 = vld [vmem:[%s4] sm:$0xff]
      %v1350 = vld [vmem:[%s4 + $0x8] sm:$0xff]
      %v1351 = vld [vmem:[%s4 + $0x10] sm:$0xff]
      %v1352 = vld [vmem:[%s4 + $0x18] sm:$0xff]
      %v1353 = vld [vmem:[%s4 + $0x20] sm:$0xff]
      %v1354 = vld [vmem:[%s4 + $0x28] sm:$0xff]
      %v1355 = vld [vmem:[%s4 + $0x30] sm:$0xff]
      %v1356 = vld [vmem:[%s4 + $0x38] sm:$0xff]
      %v1357 = vld [vmem:[%s4 + $0x40] sm:$0xff]
      %v1358 = vld [vmem:[%s4 + $0x48] sm:$0xff]
      %vm1359 = vcmp.gt.f32.partialorder %v1349, 0.5
      %vm1360 = vcmp.gt.f32.partialorder %v1350, 0.5
      %vm1361 = vcmp.gt.f32.partialorder %v1351, 0.5
      %vm1362 = vcmp.gt.f32.partialorder %v1352, 0.5
      %vm1363 = vcmp.gt.f32.partialorder %v1353, 0.5
      %vm1364 = vcmp.gt.f32.partialorder %v1354, 0.5
      %vm1365 = vcmp.gt.f32.partialorder %v1355, 0.5
      %vm1366 = vcmp.gt.f32.partialorder %v1356, 0.5
      %vm1367 = vcmp.gt.f32.partialorder %v1357, 0.5
      %vm1368 = vcmp.gt.f32.partialorder %v1358, 0.5
      %v1369 = vsel %vm1359, 1, 0
      %v1370 = vsel %vm1360, 1, 0
      %v1371 = vsel %vm1361, 1, 0
      %v1372 = vsel %vm1362, 1, 0
      %v1373 = vsel %vm1363, 1, 0
      %v1374 = vsel %vm1364, 1, 0
      %v1375 = vsel %vm1365, 1, 0
      %v1376 = vsel %vm1366, 1, 0
      %v1377 = vsel %vm1367, 1, 0
      %v1378 = vsel %vm1368, 1, 0
      %1379 = vset.pattern.permute.xlu0 0
      %1380 = vperm.xlu0 %1379, %v1369
      %v1381 = vpop.permute.xlu0 %1380
      %1382 = vset.pattern.permute.xlu0 0
      %1383 = vperm.xlu0 %1382, %v1370
      %v1384 = vpop.permute.xlu0 %1383
      %1385 = vset.pattern.permute.xlu0 0
      %1386 = vperm.xlu0 %1385, %v1371
      %v1387 = vpop.permute.xlu0 %1386
      %1388 = vset.pattern.permute.xlu0 0
      %1389 = vperm.xlu0 %1388, %v1372
      %v1390 = vpop.permute.xlu0 %1389
      %1391 = vset.pattern.permute.xlu0 0
      %1392 = vperm.xlu0 %1391, %v1373
      %v1393 = vpop.permute.xlu0 %1392
      %1394 = vset.pattern.permute.xlu0 0
      %1395 = vperm.xlu0 %1394, %v1374
      %v1396 = vpop.permute.xlu0 %1395
      %1397 = vset.pattern.permute.xlu0 0
      %1398 = vperm.xlu0 %1397, %v1375
      %v1399 = vpop.permute.xlu0 %1398
      %1400 = vset.pattern.permute.xlu0 0
      %1401 = vperm.xlu0 %1400, %v1376
      %v1402 = vpop.permute.xlu0 %1401
      %1403 = vset.pattern.permute.xlu0 0
      %1404 = vperm.xlu0 %1403, %v1377
      %v1405 = vpop.permute.xlu0 %1404
      %1406 = vset.pattern.permute.xlu0 0
      %1407 = vperm.xlu0 %1406, %v1378
      %v1408 = vpop.permute.xlu0 %1407
      %vm1409 = vcmp.eq.s32.totalorder %v1381, 1
      %vm1410 = vcmp.eq.s32.totalorder %v1384, 1
      %vm1411 = vcmp.eq.s32.totalorder %v1387, 1
      %vm1412 = vcmp.eq.s32.totalorder %v1390, 1
      %vm1413 = vcmp.eq.s32.totalorder %v1393, 1
      %vm1414 = vcmp.eq.s32.totalorder %v1396, 1
      %vm1415 = vcmp.eq.s32.totalorder %v1399, 1
      %vm1416 = vcmp.eq.s32.totalorder %v1402, 1
      %vm1417 = vcmp.eq.s32.totalorder %v1405, 1
      %vm1418 = vcmp.eq.s32.totalorder %v1408, 1
      %v1419 = vsel %vm1409, %v1339, 0.0
      %v1420 = vsel %vm1410, %v1340, 0.0
      %v1421 = vsel %vm1411, %v1341, 0.0
      %v1422 = vsel %vm1412, %v1342, 0.0
      %v1423 = vsel %vm1413, %v1343, 0.0
      %v1424 = vsel %vm1414, %v1344, 0.0
      %v1425 = vsel %vm1415, %v1345, 0.0
      %v1426 = vsel %vm1416, %v1346, 0.0
      %v1427 = vsel %vm1417, %v1347, 0.0
      %v1428 = vsel %vm1418, %v1348, 0.0
      %1429 = vst.msk [vmem:[%s332] sm:$0xff] %vm717, %v1419
      %1430 = vst.msk [vmem:[%s332 + $0x8] sm:$0xff] %vm717, %v1420
      %1431 = vst.msk [vmem:[%s332 + $0x10] sm:$0xff] %vm717, %v1421
      %1432 = vst.msk [vmem:[%s332 + $0x18] sm:$0xff] %vm717, %v1422
      %1433 = vst.msk [vmem:[%s332 + $0x20] sm:$0xff] %vm717, %v1423
      %1434 = vst.msk [vmem:[%s332 + $0x28] sm:$0xff] %vm717, %v1424
      %1435 = vst.msk [vmem:[%s332 + $0x30] sm:$0xff] %vm717, %v1425
      %1436 = vst.msk [vmem:[%s332 + $0x38] sm:$0xff] %vm717, %v1426
      %1437 = vst.msk [vmem:[%s332 + $0x40] sm:$0xff] %vm717, %v1427
      %1438 = vst.msk [vmem:[%s332 + $0x48] sm:$0xff] %vm717, %v1428
      %s1439 = smul.u32 10, %s21
      %p1440 = scmp.lt.s32.totalorder %s20, 1
      %s1441 = scalar_select %p1440, %s20, 1
      %p1442 = scmp.lt.s32.totalorder %s1439, 9
      %s1443 = scalar_select %p1442, %s1439, 9
      %s1444 = smul.addr %s1441, 10
      %s1445 = sadd.s32 %s1443, %s1444
      %s1446 = smul.addr %s1445, 8
      %s1447 = scalar_lea.vmem %s5, %s1446
      // Predicated region
      $region41: #{sr_context_upsample_forward.9} parent=39 // pred_check
        %p1448 = pneg %p171
      $region42: #{sr_context_upsample_forward.9} parent=39 // pred_check_branch
        %1450 = sbr.rel (%p1448) target = $region44
      $region43: #{sr_context_upsample_forward.9} parent=39 // pred_region
        %s1451 = smul.u32 10, %s21
      $region44: #{sr_context_upsample_forward.9} parent=39 // pred_fallthru
        _
    $region40: #{sr_context_upsample_forward.9} parent=5 // pred_fallthru
      _
    %p1452 = scmp.le.s32.totalorder 2, %s11
    // Predicated region
    $region45: #{sr_context_upsample_forward.9} parent=5 // pred_check
      %p1453 = pneg %p1452
    $region46: #{sr_context_upsample_forward.9} parent=5 // pred_check_branch
      %1455 = sbr.rel (%p1453) target = $region48
    $region47: #{sr_context_upsample_forward.9} parent=5 // pred_region
      %s1456 = ssub.s32 %s11, 2
      // Predicated region
      $region49: #{sr_context_upsample_forward.9} parent=47 // pred_check
        %p1457 = pneg %p177
      $region50: #{sr_context_upsample_forward.9} parent=47 // pred_check_branch
        %1459 = sbr.rel (%p1457) target = $region52
      $region51: #{sr_context_upsample_forward.9} parent=47 // pred_region
        %s1460 = smul.u32 10, %s23
        %p1461 = scmp.lt.s32.totalorder %s22, 1
        %s1462 = scalar_select %p1461, %s22, 1
        %p1463 = scmp.lt.s32.totalorder %s1460, 9
        %s1464 = scalar_select %p1463, %s1460, 9
        %s1465 = smul.addr %s1462, 10
        %s1466 = sadd.s32 %s1464, %s1465
        %s1467 = smul.addr %s1466, 8
        %s1468 = scalar_lea.vmem %s5, %s1467
      $region52: #{sr_context_upsample_forward.9} parent=47 // pred_fallthru
        _
    $region48: #{sr_context_upsample_forward.9} parent=5 // pred_fallthru
      _
  $region6: #{sr_context_upsample_forward.9} parent=0 // loop_footer
    %s15 = sadd.s32 1, %s11
  $region7: #{sr_context_upsample_forward.9} parent=0 // loop_footer_branch
    %10 = sbr.rel target = $region3
  $region8: #{sr_context_upsample_forward.9} parent=0 // loop_exit
    _

// kernel: sr_context_upsample_forward.13
$region0: #{sr_context_upsample_forward.13}
  #allocation0 [shape = 'u32[]', space=smem, size = 0x4, offset = 0x4, fixed_abs, tag = 'smem constant byte address 0x4 - core index']
  #allocation1 [shape = 'u32[144,128]{1,0:T(1,128)}', space=vmem, size = 0x12000, scoped, tag = 'internal scratch']
  %s0 = inlined_call_operand.vmem [shape: f32[2,120,32], index: 0, kind: input, shape index: {}, may-alias: {0,1}]
  %s1 = inlined_call_operand.vmem [shape: f32[2,120,32], index: 1, kind: input, shape index: {}, may-alias: {0,1}]
  %s2 = inlined_call_operand.vmem [shape: f32[2,80,32], index: 2, kind: input, shape index: {}]
  %s3 = inlined_call_operand.vmem [shape: bf16[288,32], index: 3, kind: input, shape index: {}]
  %s4 = inlined_call_operand.vmem [shape: f32[1,32], index: 4, kind: input, shape index: {}]
  %s5 = inlined_call_operand.vmem [shape: f32[80,1], index: 5, kind: input, shape index: {}]
  %s6 = inlined_call_operand.vmem [shape: f32[2,80,32], index: 6, kind: output, shape index: {}]
  %s7 = sld [smem:[#allocation0]]
  $region57: #{sr_context_upsample_forward.13} parent=0
    _
  %s9 = ssub.s32 1, %s7
  %s10 = scalar_select 0, %s9, %s7
  loop: start=0, step=1, limit=4
  $region2: #{sr_context_upsample_forward.13} parent=0 // loop_pre_header
    _
  $region3: #{sr_context_upsample_forward.13} parent=0 // loop_header
    %s12 = sphi 0, %s16
    %p13 = scmp.ge.s32.totalorder %s12, 4
    %s19 = sphi 0, %s31
    %s20 = sphi 0, %s27
    %s21 = sphi 0, %s19
    %s22 = sphi 0, %s20
    %s23 = sphi 0, %s21
    %s24 = sphi 0, %s22
    %s36 = sphi 0, %s38
    %s39 = sphi 0, %s36
    %s40 = sphi 0, %s39
    %s56 = sphi 0, %s40
    %s68 = sphi 0, %s70
    %s71 = sphi 0, %s68
    %s72 = sphi 0, %s71
    %s88 = sphi 0, %s72
    %s96 = sphi 0, %s98
    %s99 = sphi 0, %s96
    %s100 = sphi 0, %s99
    %s116 = sphi 0, %s100
    %s120 = sphi 0, %s120
    %s122 = sphi 0, %s120
    %s123 = sphi 0, %s122
    %s137 = sphi 0, %s123
    %s141 = sphi 0, %s141
    %s143 = sphi 0, %s141
    %s144 = sphi 0, %s143
    %s158 = sphi 0, %s144
    %s162 = sphi 0, %s162
    %s164 = sphi 0, %s162
    %s165 = sphi 0, %s164
    %s179 = sphi 0, %s165
    %s187 = sphi 0, %s189
    %s190 = sphi 0, %s187
    %s191 = sphi 0, %s190
    %s207 = sphi 0, %s191
  $region4: #{sr_context_upsample_forward.13} parent=0 // loop_header_branch
    %15 = sbr.rel (%p13) target = $region8
  $region5: #{sr_context_upsample_forward.13} parent=0 // loop_body
    %s17 = ssub.s32 %s12, 1
    %s18 = ssub.s32 %s12, 2
    %s25 = sadd.s32 1, %s20
    %p26 = scmp.ge.s32.totalorder %s25, 1
    %s27 = scalar_select %p26, 0, %s25
    %s28 = sadd.s32 1, %s19
    %s29 = scalar_select %p26, %s28, %s19
    %p30 = scmp.ge.s32.totalorder %s29, 2
    %s31 = scalar_select %p30, 0, %s29
    %s32 = ssub.s32 %s19, %s31
    %s33 = ssub.s32 %s20, %s27
    %s34 = sor.u32 %s32, %s33
    %p35 = scmp.eq.s32.totalorder %s34, 0
    %s37 = sadd.s32 %s36, 1
    %s38 = scalar_select %p35, %s36, %s37
    %p41 = pneg %p35
    %p42 = scmp.eq.s32.totalorder %s12, 1
    %p43 = por %p41, %p42
    %p44 = scmp.ne.s32.totalorder %s36, %s39
    %p45 = scmp.eq.s32.totalorder %s12, 0
    %p46 = por %p44, %p45
    %p47 = scmp.ne.s32.totalorder %s36, %s39
    %p48 = scmp.eq.s32.totalorder %s17, 1
    %p49 = por %p47, %p48
    %p50 = scmp.ne.s32.totalorder %s39, %s40
    %p51 = scmp.eq.s32.totalorder %s17, 0
    %p52 = por %p50, %p51
    %p53 = scmp.ne.s32.totalorder %s39, %s40
    %p54 = scmp.eq.s32.totalorder %s18, 1
    %p55 = por %p53, %p54
    %p57 = scmp.ne.s32.totalorder %s40, %s56
    %p58 = scmp.eq.s32.totalorder %s18, 0
    %p59 = por %p57, %p58
    %s60 = sadd.s32 %s20, 1
    %s61 = smul.u32 %s60, 2
    %s62 = sadd.s32 %s27, 1
    %s63 = smul.u32 %s62, 2
    %s64 = ssub.s32 %s19, %s31
    %s65 = ssub.s32 %s61, %s63
    %s66 = sor.u32 %s64, %s65
    %p67 = scmp.eq.s32.totalorder %s66, 0
    %s69 = sadd.s32 %s68, 1
    %s70 = scalar_select %p67, %s68, %s69
    %p73 = pneg %p67
    %p74 = scmp.eq.s32.totalorder %s12, 1
    %p75 = por %p73, %p74
    %p76 = scmp.ne.s32.totalorder %s68, %s71
    %p77 = scmp.eq.s32.totalorder %s12, 0
    %p78 = por %p76, %p77
    %p79 = scmp.ne.s32.totalorder %s68, %s71
    %p80 = scmp.eq.s32.totalorder %s17, 1
    %p81 = por %p79, %p80
    %p82 = scmp.ne.s32.totalorder %s71, %s72
    %p83 = scmp.eq.s32.totalorder %s17, 0
    %p84 = por %p82, %p83
    %p85 = scmp.ne.s32.totalorder %s71, %s72
    %p86 = scmp.eq.s32.totalorder %s18, 1
    %p87 = por %p85, %p86
    %p89 = scmp.ne.s32.totalorder %s72, %s88
    %p90 = scmp.eq.s32.totalorder %s18, 0
    %p91 = por %p89, %p90
    %s92 = ssub.s32 %s19, %s31
    %s93 = ssub.s32 %s20, %s27
    %s94 = sor.u32 %s92, %s93
    %p95 = scmp.eq.s32.totalorder %s94, 0
    %s97 = sadd.s32 %s96, 1
    %s98 = scalar_select %p95, %s96, %s97
    %p101 = pneg %p95
    %p102 = scmp.eq.s32.totalorder %s12, 1
    %p103 = por %p101, %p102
    %p104 = scmp.ne.s32.totalorder %s96, %s99
    %p105 = scmp.eq.s32.totalorder %s12, 0
    %p106 = por %p104, %p105
    %p107 = scmp.ne.s32.totalorder %s96, %s99
    %p108 = scmp.eq.s32.totalorder %s17, 1
    %p109 = por %p107, %p108
    %p110 = scmp.ne.s32.totalorder %s99, %s100
    %p111 = scmp.eq.s32.totalorder %s17, 0
    %p112 = por %p110, %p111
    %p113 = scmp.ne.s32.totalorder %s99, %s100
    %p114 = scmp.eq.s32.totalorder %s18, 1
    %p115 = por %p113, %p114
    %p117 = scmp.ne.s32.totalorder %s100, %s116
    %p118 = scmp.eq.s32.totalorder %s18, 0
    %p119 = por %p117, %p118
    %s121 = sadd.s32 %s120, 1
    %p124 = scmp.eq.s32.totalorder %s12, 1
    %p125 = scmp.ne.s32.totalorder %s120, %s122
    %p126 = scmp.eq.s32.totalorder %s12, 0
    %p127 = por %p125, %p126
    %p128 = scmp.ne.s32.totalorder %s120, %s122
    %p129 = scmp.eq.s32.totalorder %s17, 1
    %p130 = por %p128, %p129
    %p131 = scmp.ne.s32.totalorder %s122, %s123
    %p132 = scmp.eq.s32.totalorder %s17, 0
    %p133 = por %p131, %p132
    %p134 = scmp.ne.s32.totalorder %s122, %s123
    %p135 = scmp.eq.s32.totalorder %s18, 1
    %p136 = por %p134, %p135
    %p138 = scmp.ne.s32.totalorder %s123, %s137
    %p139 = scmp.eq.s32.totalorder %s18, 0
    %p140 = por %p138, %p139
    %s142 = sadd.s32 %s141, 1
    %p145 = scmp.eq.s32.totalorder %s12, 1
    %p146 = scmp.ne.s32.totalorder %s141, %s143
    %p147 = scmp.eq.s32.totalorder %s12, 0
    %p148 = por %p146, %p147
    %p149 = scmp.ne.s32.totalorder %s141, %s143
    %p150 = scmp.eq.s32.totalorder %s17, 1
    %p151 = por %p149, %p150
    %p152 = scmp.ne.s32.totalorder %s143, %s144
    %p153 = scmp.eq.s32.totalorder %s17, 0
    %p154 = por %p152, %p153
    %p155 = scmp.ne.s32.totalorder %s143, %s144
    %p156 = scmp.eq.s32.totalorder %s18, 1
    %p157 = por %p155, %p156
    %p159 = scmp.ne.s32.totalorder %s144, %s158
    %p160 = scmp.eq.s32.totalorder %s18, 0
    %p161 = por %p159, %p160
    %s163 = sadd.s32 %s162, 1
    %p166 = scmp.eq.s32.totalorder %s12, 1
    %p167 = scmp.ne.s32.totalorder %s162, %s164
    %p168 = scmp.eq.s32.totalorder %s12, 0
    %p169 = por %p167, %p168
    %p170 = scmp.ne.s32.totalorder %s162, %s164
    %p171 = scmp.eq.s32.totalorder %s17, 1
    %p172 = por %p170, %p171
    %p173 = scmp.ne.s32.totalorder %s164, %s165
    %p174 = scmp.eq.s32.totalorder %s17, 0
    %p175 = por %p173, %p174
    %p176 = scmp.ne.s32.totalorder %s164, %s165
    %p177 = scmp.eq.s32.totalorder %s18, 1
    %p178 = por %p176, %p177
    %p180 = scmp.ne.s32.totalorder %s165, %s179
    %p181 = scmp.eq.s32.totalorder %s18, 0
    %p182 = por %p180, %p181
    %s183 = ssub.s32 %s19, %s31
    %s184 = ssub.s32 %s20, %s27
    %s185 = sor.u32 %s183, %s184
    %p186 = scmp.eq.s32.totalorder %s185, 0
    %s188 = sadd.s32 %s187, 1
    %s189 = scalar_select %p186, %s187, %s188
    %p192 = pneg %p186
    %p193 = scmp.eq.s32.totalorder %s12, 1
    %p194 = por %p192, %p193
    %p195 = scmp.ne.s32.totalorder %s187, %s190
    %p196 = scmp.eq.s32.totalorder %s12, 0
    %p197 = por %p195, %p196
    %p198 = scmp.ne.s32.totalorder %s187, %s190
    %p199 = scmp.eq.s32.totalorder %s17, 1
    %p200 = por %p198, %p199
    %p201 = scmp.ne.s32.totalorder %s190, %s191
    %p202 = scmp.eq.s32.totalorder %s17, 0
    %p203 = por %p201, %p202
    %p204 = scmp.ne.s32.totalorder %s190, %s191
    %p205 = scmp.eq.s32.totalorder %s18, 1
    %p206 = por %p204, %p205
    %p208 = scmp.ne.s32.totalorder %s191, %s207
    %p209 = scmp.eq.s32.totalorder %s18, 0
    %p210 = por %p208, %p209
    %p211 = scmp.le.s32.totalorder 1, %s12
    %p212 = scmp.lt.s32.totalorder %s12, 3
    %p213 = pnand %p211, %p212
    %p214 = pneg %p213
    // Predicated region
    $region9: #{sr_context_upsample_forward.13} parent=5 // pred_check
      _
    $region10: #{sr_context_upsample_forward.13} parent=5 // pred_check_branch
      %216 = sbr.rel (%p213) target = $region12
    $region11: #{sr_context_upsample_forward.13} parent=5 // pred_region
      %s217 = ssub.s32 %s12, 1
      // Predicated region
      $region13: #{sr_context_upsample_forward.13} parent=11 // pred_check
        %p218 = pneg %p133
      $region14: #{sr_context_upsample_forward.13} parent=11 // pred_check_branch
        %220 = sbr.rel (%p218) target = $region16
      $region15: #{sr_context_upsample_forward.13} parent=11 // pred_region
        _
      $region16: #{sr_context_upsample_forward.13} parent=11 // pred_fallthru
        _
      // Predicated region
      $region17: #{sr_context_upsample_forward.13} parent=11 // pred_check
        %p221 = pneg %p154
      $region18: #{sr_context_upsample_forward.13} parent=11 // pred_check_branch
        %223 = sbr.rel (%p221) target = $region20
      $region19: #{sr_context_upsample_forward.13} parent=11 // pred_region
        _
      $region20: #{sr_context_upsample_forward.13} parent=11 // pred_fallthru
        _
      // Predicated region
      $region21: #{sr_context_upsample_forward.13} parent=11 // pred_check
        %p224 = pneg %p175
      $region22: #{sr_context_upsample_forward.13} parent=11 // pred_check_branch
        %226 = sbr.rel (%p224) target = $region24
      $region23: #{sr_context_upsample_forward.13} parent=11 // pred_region
        _
      $region24: #{sr_context_upsample_forward.13} parent=11 // pred_fallthru
        _
    $region12: #{sr_context_upsample_forward.13} parent=5 // pred_fallthru
      _
    %p227 = scmp.lt.s32.totalorder %s12, 2
    // Predicated region
    $region25: #{sr_context_upsample_forward.13} parent=5 // pred_check
      %p228 = pneg %p227
    $region26: #{sr_context_upsample_forward.13} parent=5 // pred_check_branch
      %230 = sbr.rel (%p228) target = $region28
    $region27: #{sr_context_upsample_forward.13} parent=5 // pred_region
      // Predicated region
      $region29: #{sr_context_upsample_forward.13} parent=27 // pred_check
        %p231 = pneg %p46
      $region30: #{sr_context_upsample_forward.13} parent=27 // pred_check_branch
        %233 = sbr.rel (%p231) target = $region32
      $region31: #{sr_context_upsample_forward.13} parent=27 // pred_region
        %s234 = smul.u32 10, %s20
        %s235 = ssub.s32 15, %s234
        %p236 = scmp.lt.s32.totalorder %s235, 10
        %s237 = scalar_select %p236, %s235, 10
        %s238 = smul.u32 128, %s237
        %p239 = scmp.lt.s32.totalorder %s19, 1
        %s240 = scalar_select %p239, %s19, 1
        %p241 = scmp.lt.s32.totalorder %s234, 14
        %s242 = scalar_select %p241, %s234, 14
        %s243 = smul.addr %s240, 15
        %s244 = sadd.s32 %s242, %s243
        %s245 = smul.addr %s244, 8
        %s246 = scalar_lea.vmem %s0, %s245
        %s247 = smul.u32 10, %s20
        %s248 = ssub.s32 15, %s247
        %p249 = scmp.lt.s32.totalorder %s248, 10
        %s250 = scalar_select %p249, %s248, 10
        %s251 = smul.u32 128, %s250
      $region32: #{sr_context_upsample_forward.13} parent=27 // pred_fallthru
        _
      // Predicated region
      $region33: #{sr_context_upsample_forward.13} parent=27 // pred_check
        %p252 = pneg %p78
      $region34: #{sr_context_upsample_forward.13} parent=27 // pred_check_branch
        %254 = sbr.rel (%p252) target = $region36
      $region35: #{sr_context_upsample_forward.13} parent=27 // pred_region
        %s255 = sadd.s32 %s20, 1
        %s256 = smul.u32 %s255, 2
        %s257 = smul.u32 5, %s256
        %p258 = scmp.lt.s32.totalorder %s19, 1
        %s259 = scalar_select %p258, %s19, 1
        %p260 = scmp.lt.s32.totalorder %s257, 14
        %s261 = scalar_select %p260, %s257, 14
        %s262 = smul.addr %s259, 15
        %s263 = sadd.s32 %s261, %s262
        %s264 = smul.addr %s263, 8
        %s265 = scalar_lea.vmem %s1, %s264
        %s266 = sadd.s32 %s20, 1
        %s267 = smul.u32 %s266, 2
        %s268 = smul.u32 5, %s267
      $region36: #{sr_context_upsample_forward.13} parent=27 // pred_fallthru
        _
      // Predicated region
      $region37: #{sr_context_upsample_forward.13} parent=27 // pred_check
        %p269 = pneg %p106
      $region38: #{sr_context_upsample_forward.13} parent=27 // pred_check_branch
        %271 = sbr.rel (%p269) target = $region40
      $region39: #{sr_context_upsample_forward.13} parent=27 // pred_region
        %s272 = smul.u32 10, %s20
        %p273 = scmp.lt.s32.totalorder %s19, 1
        %s274 = scalar_select %p273, %s19, 1
        %p275 = scmp.lt.s32.totalorder %s272, 9
        %s276 = scalar_select %p275, %s272, 9
        %s277 = smul.addr %s274, 10
        %s278 = sadd.s32 %s276, %s277
        %s279 = smul.addr %s278, 8
        %s280 = scalar_lea.vmem %s2, %s279
        %s281 = smul.u32 10, %s20
      $region40: #{sr_context_upsample_forward.13} parent=27 // pred_fallthru
        _
    $region28: #{sr_context_upsample_forward.13} parent=5 // pred_fallthru
      _
    %p282 = scmp.le.s32.totalorder 1, %s12
    %p283 = scmp.lt.s32.totalorder %s12, 3
    %p284 = pnand %p282, %p283
    %p285 = pneg %p284
    // Predicated region
    $region41: #{sr_context_upsample_forward.13} parent=5 // pred_check
      _
    $region42: #{sr_context_upsample_forward.13} parent=5 // pred_check_branch
      %287 = sbr.rel (%p284) target = $region44
    $region43: #{sr_context_upsample_forward.13} parent=5 // pred_region
      %s288 = ssub.s32 %s12, 1
      %s289 = smul.u32 10, %s22
      %s290 = ssub.s32 15, %s289
      %p291 = scmp.lt.s32.totalorder %s290, 10
      %s292 = scalar_select %p291, %s290, 10
      %s293 = smul.u32 128, %s292
      %p294 = scmp.lt.s32.totalorder %s21, 1
      %s295 = scalar_select %p294, %s21, 1
      %p296 = scmp.lt.s32.totalorder %s289, 14
      %s297 = scalar_select %p296, %s289, 14
      %s298 = smul.addr %s295, 15
      %s299 = sadd.s32 %s297, %s298
      %s300 = smul.addr %s299, 8
      %s301 = scalar_lea.vmem %s0, %s300
      %p302 = pneg %p52
      %p303 = pneg %p49
      %s304 = sadd.s32 %s22, 1
      %s305 = smul.u32 %s304, 2
      %s306 = smul.u32 5, %s305
      %p307 = scmp.lt.s32.totalorder %s21, 1
      %s308 = scalar_select %p307, %s21, 1
      %p309 = scmp.lt.s32.totalorder %s306, 14
      %s310 = scalar_select %p309, %s306, 14
      %s311 = smul.addr %s308, 15
      %s312 = sadd.s32 %s310, %s311
      %s313 = smul.addr %s312, 8
      %s314 = scalar_lea.vmem %s1, %s313
      %p315 = pneg %p84
      %p316 = pneg %p81
      %s317 = smul.u32 10, %s22
      %p318 = scmp.lt.s32.totalorder %s21, 1
      %s319 = scalar_select %p318, %s21, 1
      %p320 = scmp.lt.s32.totalorder %s317, 9
      %s321 = scalar_select %p320, %s317, 9
      %s322 = smul.addr %s319, 10
      %s323 = sadd.s32 %s321, %s322
      %s324 = smul.addr %s323, 8
      %s325 = scalar_lea.vmem %s2, %s324
      %p326 = pneg %p112
      %p327 = pneg %p109
      %p328 = pneg %p133
      %p329 = pneg %p130
      %p330 = pneg %p154
      %p331 = pneg %p151
      %p332 = pneg %p175
      %p333 = pneg %p172
      %p334 = pneg %p203
      %p335 = pneg %p200
      %s336 = smul.u32 10, %s22
      %p337 = scmp.lt.s32.totalorder %s21, 1
      %s338 = scalar_select %p337, %s21, 1
      %p339 = scmp.lt.s32.totalorder %s336, 9
      %s340 = scalar_select %p339, %s336, 9
      %s341 = smul.addr %s338, 10
      %s342 = sadd.s32 %s340, %s341
      %s343 = smul.addr %s342, 8
      %s344 = scalar_lea.vmem %s6, %s343
      %s345 = smul.u32 10, %s22
      %s346 = ssub.s32 15, %s345
      %p347 = scmp.lt.s32.totalorder %s346, 10
      %s348 = scalar_select %p347, %s346, 10
      %s349 = smul.u32 128, %s348
      %p350 = scmp.lt.s32.totalorder %s21, 1
      %s351 = scalar_select %p350, %s21, 1
      %p352 = scmp.lt.s32.totalorder %s345, 14
      %s353 = scalar_select %p352, %s345, 14
      %s354 = smul.addr %s351, 15
      %s355 = sadd.s32 %s353, %s354
      %s356 = smul.addr %s355, 8
      %s357 = scalar_lea.vmem %s0, %s356
      %s358 = smul.u32 10, %s22
      %s359 = ssub.s32 15, %s358
      %p360 = scmp.lt.s32.totalorder %s359, 10
      %s361 = scalar_select %p360, %s359, 10
      %s362 = smul.u32 128, %s361
      %s363 = sadd.s32 %s22, 1
      %s364 = smul.u32 %s363, 2
      %s365 = smul.u32 5, %s364
      %p366 = scmp.lt.s32.totalorder %s21, 1
      %s367 = scalar_select %p366, %s21, 1
      %p368 = scmp.lt.s32.totalorder %s365, 14
      %s369 = scalar_select %p368, %s365, 14
      %s370 = smul.addr %s367, 15
      %s371 = sadd.s32 %s369, %s370
      %s372 = smul.addr %s371, 8
      %s373 = scalar_lea.vmem %s1, %s372
      %s374 = sadd.s32 %s22, 1
      %s375 = smul.u32 %s374, 2
      %s376 = smul.u32 5, %s375
      %s377 = smul.u32 10, %s22
      %p378 = scmp.lt.s32.totalorder %s21, 1
      %s379 = scalar_select %p378, %s21, 1
      %p380 = scmp.lt.s32.totalorder %s377, 9
      %s381 = scalar_select %p380, %s377, 9
      %s382 = smul.addr %s379, 10
      %s383 = sadd.s32 %s381, %s382
      %s384 = smul.addr %s383, 8
      %s385 = scalar_lea.vmem %s2, %s384
      %s386 = smul.u32 10, %s22
      %s387 = smul.u32 10, %s22
      %p388 = scmp.lt.s32.totalorder %s21, 1
      %s389 = scalar_select %p388, %s21, 1
      %p390 = scmp.lt.s32.totalorder %s387, 9
      %s391 = scalar_select %p390, %s387, 9
      %s392 = smul.addr %s389, 10
      %s393 = sadd.s32 %s391, %s392
      %s394 = smul.addr %s393, 8
      %s395 = scalar_lea.vmem %s6, %s394
      %s396 = smul.u32 10, %s22
      %v398 = vld [vmem:[%s357 + $0x8] sm:$0xff]
      %v399 = vld [vmem:[%s357 + $0x10] sm:$0xff]
      %v400 = vld [vmem:[%s357 + $0x18] sm:$0xff]
      %v401 = vld [vmem:[%s357 + $0x20] sm:$0xff]
      %v402 = vld [vmem:[%s357 + $0x28] sm:$0xff]
      %v403 = vld [vmem:[%s357 + $0x30] sm:$0xff]
      %v404 = vld [vmem:[%s357 + $0x38] sm:$0xff]
      %v405 = vld [vmem:[%s357 + $0x40] sm:$0xff]
      %v406 = vld [vmem:[%s357 + $0x48] sm:$0xff]
      %v407 = vld [vmem:[%s373] sm:$0xff]
      %v408 = vld [vmem:[%s373 + $0x8] sm:$0xff]
      %v409 = vld [vmem:[%s373 + $0x10] sm:$0xff]
      %v410 = vld [vmem:[%s373 + $0x18] sm:$0xff]
      %vm422 = vcmask 1046528
      %v423 = vrot.slane %v398, 1
      %v424 = vrot.slane %v399, 1
      %v425 = vsel %vm422, %v423, %v424
      %v426 = vrot.slane %v400, 1
      %v427 = vsel %vm422, %v424, %v426
      %v428 = vrot.slane %v401, 1
      %v429 = vsel %vm422, %v426, %v428
      %v430 = vrot.slane %v402, 1
      %v431 = vsel %vm422, %v428, %v430
      %v432 = vrot.slane %v403, 1
      %v433 = vsel %vm422, %v430, %v432
      %v434 = vrot.slane %v404, 1
      %v435 = vsel %vm422, %v432, %v434
      %v436 = vrot.slane %v405, 1
      %v437 = vsel %vm422, %v434, %v436
      %v438 = vrot.slane %v406, 1
      %v439 = vsel %vm422, %v436, %v438
      %v440 = vrot.slane %v407, 1
      %v441 = vsel %vm422, %v438, %v440
      %v442 = vrot.slane %v408, 1
      %v443 = vsel %vm422, %v440, %v442
      %444 = vrot.lane.b32.xlu0 %v425, 32
      %v445 = vpop.permute.xlu0 %444
      %446 = vrot.lane.b32.xlu0 %v427, 32
      %v447 = vpop.permute.xlu0 %446
      %448 = vrot.lane.b32.xlu0 %v429, 32
      %v449 = vpop.permute.xlu0 %448
      %450 = vrot.lane.b32.xlu0 %v431, 32
      %v451 = vpop.permute.xlu0 %450
      %452 = vrot.lane.b32.xlu0 %v433, 32
      %v453 = vpop.permute.xlu0 %452
      %454 = vrot.lane.b32.xlu0 %v435, 32
      %v455 = vpop.permute.xlu0 %454
      %456 = vrot.lane.b32.xlu0 %v437, 32
      %v457 = vpop.permute.xlu0 %456
      %458 = vrot.lane.b32.xlu0 %v439, 32
      %v459 = vpop.permute.xlu0 %458
      %460 = vrot.lane.b32.xlu0 %v441, 32
      %v461 = vpop.permute.xlu0 %460
      %462 = vrot.lane.b32.xlu0 %v443, 32
      %v463 = vpop.permute.xlu0 %462
      %464 = vrot.lane.b32.xlu0 %v442, 32
      %v465 = vpop.permute.xlu0 %464
      %vm477 = vcmask 1045504
      %v478 = vrot.slane %v398, 2
      %v479 = vrot.slane %v399, 2
      %v480 = vsel %vm477, %v478, %v479
      %v481 = vrot.slane %v400, 2
      %v482 = vsel %vm477, %v479, %v481
      %v483 = vrot.slane %v401, 2
      %v484 = vsel %vm477, %v481, %v483
      %v485 = vrot.slane %v402, 2
      %v486 = vsel %vm477, %v483, %v485
      %v487 = vrot.slane %v403, 2
      %v488 = vsel %vm477, %v485, %v487
      %v489 = vrot.slane %v404, 2
      %v490 = vsel %vm477, %v487, %v489
      %v491 = vrot.slane %v405, 2
      %v492 = vsel %vm477, %v489, %v491
      %v493 = vrot.slane %v406, 2
      %v494 = vsel %vm477, %v491, %v493
      %v495 = vrot.slane %v407, 2
      %v496 = vsel %vm477, %v493, %v495
      %v497 = vrot.slane %v408, 2
      %v498 = vsel %vm477, %v495, %v497
      %499 = vrot.lane.b32.xlu0 %v480, 64
      %v500 = vpop.permute.xlu0 %499
      %501 = vrot.lane.b32.xlu0 %v482, 64
      %v502 = vpop.permute.xlu0 %501
      %503 = vrot.lane.b32.xlu0 %v484, 64
      %v504 = vpop.permute.xlu0 %503
      %505 = vrot.lane.b32.xlu0 %v486, 64
      %v506 = vpop.permute.xlu0 %505
      %507 = vrot.lane.b32.xlu0 %v488, 64
      %v508 = vpop.permute.xlu0 %507
      %509 = vrot.lane.b32.xlu0 %v490, 64
      %v510 = vpop.permute.xlu0 %509
      %511 = vrot.lane.b32.xlu0 %v492, 64
      %v512 = vpop.permute.xlu0 %511
      %513 = vrot.lane.b32.xlu0 %v494, 64
      %v514 = vpop.permute.xlu0 %513
      %515 = vrot.lane.b32.xlu0 %v496, 64
      %v516 = vpop.permute.xlu0 %515
      %517 = vrot.lane.b32.xlu0 %v498, 64
      %v518 = vpop.permute.xlu0 %517
      %519 = vrot.lane.b32.xlu0 %v497, 64
      %v520 = vpop.permute.xlu0 %519
      %v533 = vrot.slane %v409, 2
      %v534 = vsel %vm477, %v497, %v533
      %535 = vrot.lane.b32.xlu0 %v482, 96
      %v536 = vpop.permute.xlu0 %535
      %537 = vrot.lane.b32.xlu0 %v484, 96
      %v538 = vpop.permute.xlu0 %537
      %539 = vrot.lane.b32.xlu0 %v486, 96
      %v540 = vpop.permute.xlu0 %539
      %541 = vrot.lane.b32.xlu0 %v488, 96
      %v542 = vpop.permute.xlu0 %541
      %543 = vrot.lane.b32.xlu0 %v490, 96
      %v544 = vpop.permute.xlu0 %543
      %545 = vrot.lane.b32.xlu0 %v492, 96
      %v546 = vpop.permute.xlu0 %545
      %547 = vrot.lane.b32.xlu0 %v494, 96
      %v548 = vpop.permute.xlu0 %547
      %549 = vrot.lane.b32.xlu0 %v496, 96
      %v550 = vpop.permute.xlu0 %549
      %551 = vrot.lane.b32.xlu0 %v498, 96
      %v552 = vpop.permute.xlu0 %551
      %553 = vrot.lane.b32.xlu0 %v534, 96
      %v554 = vpop.permute.xlu0 %553
      %555 = vrot.lane.b32.xlu0 %v533, 96
      %v556 = vpop.permute.xlu0 %555
      %vm568 = vcmask 1044480
      %v569 = vrot.slane %v399, 3
      %v570 = vrot.slane %v400, 3
      %v571 = vsel %vm568, %v569, %v570
      %v572 = vrot.slane %v401, 3
      %v573 = vsel %vm568, %v570, %v572
      %v574 = vrot.slane %v402, 3
      %v575 = vsel %vm568, %v572, %v574
      %v576 = vrot.slane %v403, 3
      %v577 = vsel %vm568, %v574, %v576
      %v578 = vrot.slane %v404, 3
      %v579 = vsel %vm568, %v576, %v578
      %v580 = vrot.slane %v405, 3
      %v581 = vsel %vm568, %v578, %v580
      %v582 = vrot.slane %v406, 3
      %v583 = vsel %vm568, %v580, %v582
      %v584 = vrot.slane %v407, 3
      %v585 = vsel %vm568, %v582, %v584
      %v586 = vrot.slane %v408, 3
      %v587 = vsel %vm568, %v584, %v586
      %v588 = vrot.slane %v409, 3
      %v589 = vsel %vm568, %v586, %v588
      %vm601 = vcmask 1043456
      %v602 = vrot.slane %v399, 4
      %v603 = vrot.slane %v400, 4
      %v604 = vsel %vm601, %v602, %v603
      %v605 = vrot.slane %v401, 4
      %v606 = vsel %vm601, %v603, %v605
      %v607 = vrot.slane %v402, 4
      %v608 = vsel %vm601, %v605, %v607
      %v609 = vrot.slane %v403, 4
      %v610 = vsel %vm601, %v607, %v609
      %v611 = vrot.slane %v404, 4
      %v612 = vsel %vm601, %v609, %v611
      %v613 = vrot.slane %v405, 4
      %v614 = vsel %vm601, %v611, %v613
      %v615 = vrot.slane %v406, 4
      %v616 = vsel %vm601, %v613, %v615
      %v617 = vrot.slane %v407, 4
      %v618 = vsel %vm601, %v615, %v617
      %v619 = vrot.slane %v408, 4
      %v620 = vsel %vm601, %v617, %v619
      %v621 = vrot.slane %v409, 4
      %v622 = vsel %vm601, %v619, %v621
      %623 = vrot.lane.b32.xlu0 %v604, 32
      %v624 = vpop.permute.xlu0 %623
      %625 = vrot.lane.b32.xlu0 %v606, 32
      %v626 = vpop.permute.xlu0 %625
      %627 = vrot.lane.b32.xlu0 %v608, 32
      %v628 = vpop.permute.xlu0 %627
      %629 = vrot.lane.b32.xlu0 %v610, 32
      %v630 = vpop.permute.xlu0 %629
      %631 = vrot.lane.b32.xlu0 %v612, 32
      %v632 = vpop.permute.xlu0 %631
      %633 = vrot.lane.b32.xlu0 %v614, 32
      %v634 = vpop.permute.xlu0 %633
      %635 = vrot.lane.b32.xlu0 %v616, 32
      %v636 = vpop.permute.xlu0 %635
      %637 = vrot.lane.b32.xlu0 %v618, 32
      %v638 = vpop.permute.xlu0 %637
      %639 = vrot.lane.b32.xlu0 %v620, 32
      %v640 = vpop.permute.xlu0 %639
      %641 = vrot.lane.b32.xlu0 %v622, 32
      %v642 = vpop.permute.xlu0 %641
      %643 = vrot.lane.b32.xlu0 %v621, 32
      %v644 = vpop.permute.xlu0 %643
      %v657 = vrot.slane %v410, 4
      %v658 = vsel %vm601, %v621, %v657
      %659 = vrot.lane.b32.xlu0 %v606, 64
      %v660 = vpop.permute.xlu0 %659
      %661 = vrot.lane.b32.xlu0 %v608, 64
      %v662 = vpop.permute.xlu0 %661
      %663 = vrot.lane.b32.xlu0 %v610, 64
      %v664 = vpop.permute.xlu0 %663
      %665 = vrot.lane.b32.xlu0 %v612, 64
      %v666 = vpop.permute.xlu0 %665
      %667 = vrot.lane.b32.xlu0 %v614, 64
      %v668 = vpop.permute.xlu0 %667
      %669 = vrot.lane.b32.xlu0 %v616, 64
      %v670 = vpop.permute.xlu0 %669
      %671 = vrot.lane.b32.xlu0 %v618, 64
      %v672 = vpop.permute.xlu0 %671
      %673 = vrot.lane.b32.xlu0 %v620, 64
      %v674 = vpop.permute.xlu0 %673
      %675 = vrot.lane.b32.xlu0 %v622, 64
      %v676 = vpop.permute.xlu0 %675
      %677 = vrot.lane.b32.xlu0 %v658, 64
      %v678 = vpop.permute.xlu0 %677
      %679 = vrot.lane.b32.xlu0 %v657, 64
      %v680 = vpop.permute.xlu0 %679
      %vm692 = vcmask 1042432
      %v693 = vrot.slane %v400, 5
      %v694 = vrot.slane %v401, 5
      %v695 = vsel %vm692, %v693, %v694
      %v696 = vrot.slane %v402, 5
      %v697 = vsel %vm692, %v694, %v696
      %v698 = vrot.slane %v403, 5
      %v699 = vsel %vm692, %v696, %v698
      %v700 = vrot.slane %v404, 5
      %v701 = vsel %vm692, %v698, %v700
      %v702 = vrot.slane %v405, 5
      %v703 = vsel %vm692, %v700, %v702
      %v704 = vrot.slane %v406, 5
      %v705 = vsel %vm692, %v702, %v704
      %v706 = vrot.slane %v407, 5
      %v707 = vsel %vm692, %v704, %v706
      %v708 = vrot.slane %v408, 5
      %v709 = vsel %vm692, %v706, %v708
      %v710 = vrot.slane %v409, 5
      %v711 = vsel %vm692, %v708, %v710
      %v712 = vrot.slane %v410, 5
      %v713 = vsel %vm692, %v710, %v712
      %714 = vrot.lane.b32.xlu0 %v695, 96
      %v715 = vpop.permute.xlu0 %714
      %716 = vrot.lane.b32.xlu0 %v697, 96
      %v717 = vpop.permute.xlu0 %716
      %718 = vrot.lane.b32.xlu0 %v699, 96
      %v719 = vpop.permute.xlu0 %718
      %720 = vrot.lane.b32.xlu0 %v701, 96
      %v721 = vpop.permute.xlu0 %720
      %722 = vrot.lane.b32.xlu0 %v703, 96
      %v723 = vpop.permute.xlu0 %722
      %724 = vrot.lane.b32.xlu0 %v705, 96
      %v725 = vpop.permute.xlu0 %724
      %726 = vrot.lane.b32.xlu0 %v707, 96
      %v727 = vpop.permute.xlu0 %726
      %728 = vrot.lane.b32.xlu0 %v709, 96
      %v729 = vpop.permute.xlu0 %728
      %730 = vrot.lane.b32.xlu0 %v711, 96
      %v731 = vpop.permute.xlu0 %730
      %732 = vrot.lane.b32.xlu0 %v713, 96
      %v733 = vpop.permute.xlu0 %732
      %734 = vrot.lane.b32.xlu0 %v712, 96
      %v735 = vpop.permute.xlu0 %734
      %vm747 = vcmask 1041408
      %v748 = vrot.slane %v400, 6
      %v749 = vrot.slane %v401, 6
      %v750 = vsel %vm747, %v748, %v749
      %v751 = vrot.slane %v402, 6
      %v752 = vsel %vm747, %v749, %v751
      %v753 = vrot.slane %v403, 6
      %v754 = vsel %vm747, %v751, %v753
      %v755 = vrot.slane %v404, 6
      %v756 = vsel %vm747, %v753, %v755
      %v757 = vrot.slane %v405, 6
      %v758 = vsel %vm747, %v755, %v757
      %v759 = vrot.slane %v406, 6
      %v760 = vsel %vm747, %v757, %v759
      %v761 = vrot.slane %v407, 6
      %v762 = vsel %vm747, %v759, %v761
      %v763 = vrot.slane %v408, 6
      %v764 = vsel %vm747, %v761, %v763
      %v765 = vrot.slane %v409, 6
      %v766 = vsel %vm747, %v763, %v765
      %v767 = vrot.slane %v410, 6
      %v768 = vsel %vm747, %v765, %v767
      %vm780 = vcmask 261120
      %v781 = vsel %vm780, %v398, %v445
      %v782 = vsel %vm780, %v399, %v447
      %v783 = vsel %vm780, %v400, %v449
      %v784 = vsel %vm780, %v401, %v451
      %v785 = vsel %vm780, %v402, %v453
      %v786 = vsel %vm780, %v403, %v455
      %v787 = vsel %vm780, %v404, %v457
      %v788 = vsel %vm780, %v405, %v459
      %v789 = vsel %vm780, %v406, %v461
      %v790 = vsel %vm780, %v407, %v463
      %v791 = vsel %vm780, %v408, %v465
      %vm792 = vcmask 523264
      %v793 = vsel %vm792, %v781, %v500
      %v794 = vsel %vm792, %v782, %v502
      %v795 = vsel %vm792, %v783, %v504
      %v796 = vsel %vm792, %v784, %v506
      %v797 = vsel %vm792, %v785, %v508
      %v798 = vsel %vm792, %v786, %v510
      %v799 = vsel %vm792, %v787, %v512
      %v800 = vsel %vm792, %v788, %v514
      %v801 = vsel %vm792, %v789, %v516
      %v802 = vsel %vm792, %v790, %v518
      %v803 = vsel %vm792, %v791, %v520
      %vm804 = vcmask 785408
      %v805 = vsel %vm804, %v793, %v536
      %v806 = vsel %vm804, %v794, %v538
      %v807 = vsel %vm804, %v795, %v540
      %v808 = vsel %vm804, %v796, %v542
      %v809 = vsel %vm804, %v797, %v544
      %v810 = vsel %vm804, %v798, %v546
      %v811 = vsel %vm804, %v799, %v548
      %v812 = vsel %vm804, %v800, %v550
      %v813 = vsel %vm804, %v801, %v552
      %v814 = vsel %vm804, %v802, %v554
      %v815 = vsel %vm804, %v803, %v556
      %v816 = vsel %vm780, %v571, %v624
      %v817 = vsel %vm780, %v573, %v626
      %v818 = vsel %vm780, %v575, %v628
      %v819 = vsel %vm780, %v577, %v630
      %v820 = vsel %vm780, %v579, %v632
      %v821 = vsel %vm780, %v581, %v634
      %v822 = vsel %vm780, %v583, %v636
      %v823 = vsel %vm780, %v585, %v638
      %v824 = vsel %vm780, %v587, %v640
      %v825 = vsel %vm780, %v589, %v642
      %v826 = vsel %vm780, %v588, %v644
      %v827 = vsel %vm792, %v816, %v660
      %v828 = vsel %vm792, %v817, %v662
      %v829 = vsel %vm792, %v818, %v664
      %v830 = vsel %vm792, %v819, %v666
      %v831 = vsel %vm792, %v820, %v668
      %v832 = vsel %vm792, %v821, %v670
      %v833 = vsel %vm792, %v822, %v672
      %v834 = vsel %vm792, %v823, %v674
      %v835 = vsel %vm792, %v824, %v676
      %v836 = vsel %vm792, %v825, %v678
      %v837 = vsel %vm792, %v826, %v680
      %v838 = vsel %vm804, %v827, %v715
      %v839 = vsel %vm804, %v828, %v717
      %v840 = vsel %vm804, %v829, %v719
      %v841 = vsel %vm804, %v830, %v721
      %v842 = vsel %vm804, %v831, %v723
      %v843 = vsel %vm804, %v832, %v725
      %v844 = vsel %vm804, %v833, %v727
      %v845 = vsel %vm804, %v834, %v729
      %v846 = vsel %vm804, %v835, %v731
      %v847 = vsel %vm804, %v836, %v733
      %v848 = vsel %vm804, %v837, %v735
      %v849 = vpack.c.bf16 %v806, %v805
      %v850 = vpack.c.bf16 %v839, %v838
      %v851 = vpack.c.bf16 %v752, %v750
      %v852 = vpack.c.bf16 %v808, %v807
      %v853 = vpack.c.bf16 %v841, %v840
      %v854 = vpack.c.bf16 %v756, %v754
      %v855 = vpack.c.bf16 %v810, %v809
      %v856 = vpack.c.bf16 %v843, %v842
      %v857 = vpack.c.bf16 %v760, %v758
      %v858 = vpack.c.bf16 %v812, %v811
      %v859 = vpack.c.bf16 %v845, %v844
      %v860 = vpack.c.bf16 %v764, %v762
      %v861 = vpack.c.bf16 %v814, %v813
      %v862 = vpack.c.bf16 %v847, %v846
      %v863 = vpack.c.bf16 %v768, %v766
      %v864 = vpack.c.bf16 %v815, %v815
      %v865 = vpack.c.bf16 %v848, %v848
      %v866 = vpack.c.bf16 %v767, %v767
      %v867 = vld [vmem:[%s3] sm:$0xf]
      %v868 = vld [vmem:[%s3 + $0x4] sm:$0xf]
      %v869 = vld [vmem:[%s3 + $0x8] sm:$0xf]
      %v870 = vld [vmem:[%s3 + $0xc] sm:$0xf]
      %v871 = vld [vmem:[%s3 + $0x10] sm:$0xf]
      %v872 = vld [vmem:[%s3 + $0x14] sm:$0xf]
      %v873 = vld [vmem:[%s3 + $0x18] sm:$0xf]
      %v874 = vld [vmem:[%s3 + $0x1c] sm:$0xf]
      %v875 = vld [vmem:[%s3 + $0x20] sm:$0xf]
      %v876 = vld [vmem:[%s3 + $0x24] sm:$0xf]
      %v877 = vld [vmem:[%s3 + $0x28] sm:$0xf]
      %v878 = vld [vmem:[%s3 + $0x2c] sm:$0xf]
      %v879 = vld [vmem:[%s3 + $0x30] sm:$0xf]
      %v880 = vld [vmem:[%s3 + $0x34] sm:$0xf]
      %v881 = vld [vmem:[%s3 + $0x38] sm:$0xf]
      %v882 = vld [vmem:[%s3 + $0x3c] sm:$0xf]
      %v883 = vld [vmem:[%s3 + $0x40] sm:$0xf]
      %v884 = vld [vmem:[%s3 + $0x44] sm:$0xf]
      %v885 = vld [vmem:[%s3 + $0x48] sm:$0xf]
      %v886 = vld [vmem:[%s3 + $0x4c] sm:$0xf]
      %v887 = vld [vmem:[%s3 + $0x50] sm:$0xf]
      %v888 = vld [vmem:[%s3 + $0x54] sm:$0xf]
      %v889 = vld [vmem:[%s3 + $0x58] sm:$0xf]
      %v890 = vld [vmem:[%s3 + $0x5c] sm:$0xf]
      %v891 = vld [vmem:[%s3 + $0x60] sm:$0xf]
      %v892 = vld [vmem:[%s3 + $0x64] sm:$0xf]
      %v893 = vld [vmem:[%s3 + $0x68] sm:$0xf]
      %v894 = vld [vmem:[%s3 + $0x6c] sm:$0xf]
      %v895 = vld [vmem:[%s3 + $0x70] sm:$0xf]
      %v896 = vld [vmem:[%s3 + $0x74] sm:$0xf]
      %v897 = vld [vmem:[%s3 + $0x78] sm:$0xf]
      %v898 = vld [vmem:[%s3 + $0x7c] sm:$0xf]
      %v899 = vld [vmem:[%s3 + $0x80] sm:$0xf]
      %v900 = vld [vmem:[%s3 + $0x84] sm:$0xf]
      %v901 = vld [vmem:[%s3 + $0x88] sm:$0xf]
      %v902 = vld [vmem:[%s3 + $0x8c] sm:$0xf]
      %v903 = vld [vmem:[%s4] sm:$0x1]
      %v905 = vlaneseq
      %v906 = vshrl.u32 %v905, 7
      %v907 = vsub.s32 0, %v906
      %v908 = vrot.slane %v903, %v907
      %vm910 = vsmask.f32 7424
      %v912 = vshrl.u32 %v849, 16
      %v914 = vshll.u32 %v849, 16
      %v916 = vrot.slane %v914, 1
      %v917 = vor.u32 %v912, %v916
      %v919 = vshll.u32 %v852, 16
      %v921 = vrot.slane %v919, 1
      %v922 = vsel %vm910, %v917, %v921
      %v924 = vshrl.u32 %v850, 16
      %v926 = vshll.u32 %v850, 16
      %v928 = vrot.slane %v926, 1
      %v929 = vor.u32 %v924, %v928
      %v931 = vshll.u32 %v853, 16
      %v933 = vrot.slane %v931, 1
      %v934 = vsel %vm910, %v929, %v933
      %v936 = vshrl.u32 %v851, 16
      %v938 = vshll.u32 %v851, 16
      %v940 = vrot.slane %v938, 1
      %v941 = vor.u32 %v936, %v940
      %v943 = vshll.u32 %v854, 16
      %v945 = vrot.slane %v943, 1
      %v946 = vsel %vm910, %v941, %v945
      %v947 = vshrl.u32 %v852, 16
      %v949 = vor.u32 %v947, %v921
      %v951 = vshll.u32 %v855, 16
      %v953 = vrot.slane %v951, 1
      %v954 = vsel %vm910, %v949, %v953
      %v955 = vshrl.u32 %v853, 16
      %v957 = vor.u32 %v955, %v933
      %v959 = vshll.u32 %v856, 16
      %v961 = vrot.slane %v959, 1
      %v962 = vsel %vm910, %v957, %v961
      %v963 = vshrl.u32 %v854, 16
      %v965 = vor.u32 %v963, %v945
      %v967 = vshll.u32 %v857, 16
      %v969 = vrot.slane %v967, 1
      %v970 = vsel %vm910, %v965, %v969
      %v971 = vshrl.u32 %v855, 16
      %v973 = vor.u32 %v971, %v953
      %v975 = vshll.u32 %v858, 16
      %v977 = vrot.slane %v975, 1
      %v978 = vsel %vm910, %v973, %v977
      %v979 = vshrl.u32 %v856, 16
      %v981 = vor.u32 %v979, %v961
      %v983 = vshll.u32 %v859, 16
      %v985 = vrot.slane %v983, 1
      %v986 = vsel %vm910, %v981, %v985
      %v987 = vshrl.u32 %v857, 16
      %v989 = vor.u32 %v987, %v969
      %v991 = vshll.u32 %v860, 16
      %v993 = vrot.slane %v991, 1
      %v994 = vsel %vm910, %v989, %v993
      %v995 = vshrl.u32 %v858, 16
      %v997 = vor.u32 %v995, %v977
      %v999 = vshll.u32 %v861, 16
      %v1001 = vrot.slane %v999, 1
      %v1002 = vsel %vm910, %v997, %v1001
      %v1003 = vshrl.u32 %v859, 16
      %v1005 = vor.u32 %v1003, %v985
      %v1007 = vshll.u32 %v862, 16
      %v1009 = vrot.slane %v1007, 1
      %v1010 = vsel %vm910, %v1005, %v1009
      %v1011 = vshrl.u32 %v860, 16
      %v1013 = vor.u32 %v1011, %v993
      %v1015 = vshll.u32 %v863, 16
      %v1017 = vrot.slane %v1015, 1
      %v1018 = vsel %vm910, %v1013, %v1017
      %v1019 = vshrl.u32 %v861, 16
      %v1021 = vor.u32 %v1019, %v1001
      %v1023 = vshll.u32 %v864, 16
      %v1025 = vrot.slane %v1023, 1
      %v1026 = vsel %vm910, %v1021, %v1025
      %v1027 = vshrl.u32 %v862, 16
      %v1029 = vor.u32 %v1027, %v1009
      %v1031 = vshll.u32 %v865, 16
      %v1033 = vrot.slane %v1031, 1
      %v1034 = vsel %vm910, %v1029, %v1033
      %v1035 = vshrl.u32 %v863, 16
      %v1037 = vor.u32 %v1035, %v1017
      %v1039 = vshll.u32 %v866, 16
      %v1041 = vrot.slane %v1039, 1
      %v1042 = vsel %vm910, %v1037, %v1041
      %v1089 = vunpack.c.l.b16 %v867
      %v1090 = vunpack.c.l.b16 %v868
      %v1091 = vunpack.c.l.b16 %v869
      %v1092 = vunpack.c.l.b16 %v870
      %v1093 = vunpack.c.l.b16 %v871
      %v1094 = vunpack.c.l.b16 %v872
      %v1095 = vunpack.c.l.b16 %v873
      %v1096 = vunpack.c.l.b16 %v874
      %v1097 = vunpack.c.l.b16 %v875
      %v1098 = vunpack.c.l.b16 %v876
      %v1099 = vunpack.c.l.b16 %v877
      %v1100 = vunpack.c.l.b16 %v878
      %v1101 = vunpack.c.l.b16 %v879
      %v1102 = vunpack.c.l.b16 %v880
      %v1103 = vunpack.c.l.b16 %v881
      %v1104 = vunpack.c.l.b16 %v882
      %v1105 = vunpack.c.l.b16 %v883
      %v1106 = vunpack.c.l.b16 %v884
      %v1107 = vunpack.c.l.b16 %v885
      %v1108 = vunpack.c.l.b16 %v886
      %v1109 = vunpack.c.l.b16 %v887
      %v1110 = vunpack.c.l.b16 %v888
      %v1111 = vunpack.c.l.b16 %v889
      %v1112 = vunpack.c.l.b16 %v890
      %v1113 = vunpack.c.l.b16 %v891
      %v1114 = vunpack.c.l.b16 %v892
      %v1115 = vunpack.c.l.b16 %v893
      %v1116 = vunpack.c.l.b16 %v894
      %v1117 = vunpack.c.l.b16 %v895
      %v1118 = vunpack.c.l.b16 %v896
      %v1119 = vunpack.c.l.b16 %v897
      %v1120 = vunpack.c.l.b16 %v898
      %v1121 = vunpack.c.l.b16 %v899
      %v1122 = vunpack.c.l.b16 %v900
      %v1123 = vunpack.c.l.b16 %v901
      %v1124 = vunpack.c.l.b16 %v902
      %v1125 = vpack.c.b16 %v1090, %v1089
      %v1126 = vpack.c.b16 %v1092, %v1091
      %v1127 = vpack.c.b16 %v1094, %v1093
      %v1128 = vpack.c.b16 %v1096, %v1095
      %v1129 = vpack.c.b16 %v1098, %v1097
      %v1130 = vpack.c.b16 %v1100, %v1099
      %v1131 = vpack.c.b16 %v1102, %v1101
      %v1132 = vpack.c.b16 %v1104, %v1103
      %v1133 = vpack.c.b16 %v1106, %v1105
      %v1134 = vpack.c.b16 %v1108, %v1107
      %v1135 = vpack.c.b16 %v1110, %v1109
      %v1136 = vpack.c.b16 %v1112, %v1111
      %v1137 = vpack.c.b16 %v1114, %v1113
      %v1138 = vpack.c.b16 %v1116, %v1115
      %v1139 = vpack.c.b16 %v1118, %v1117
      %v1140 = vpack.c.b16 %v1120, %v1119
      %v1141 = vpack.c.b16 %v1122, %v1121
      %v1142 = vpack.c.b16 %v1124, %v1123
      %v1162 = vsel %vm780, %v946, 0
      %v1165 = vsel %vm780, %v970, 0
      %v1168 = vsel %vm780, %v994, 0
      %v1171 = vsel %vm780, %v1018, 0
      %v1174 = vsel %vm780, %v1042, 0
      %1176 = vmatprep.subr.bf16.mxu0 0
      %1177 = vmatpush1.bf16.msra.mxu0 %v1125
      %1178 = vmatprep.subr.bf16.mxu0 0
      %1179 = vmatpush1.bf16.msra.mxu0 %v1126
      %1180 = vmatprep.subr.bf16.mxu0 0
      %1181 = vmatpush1.bf16.msra.mxu0 %v1127
      %1182 = vmatprep.subr.bf16.mxu0 0
      %1183 = vmatpush1.bf16.msra.mxu0 %v1128
      %1184 = vmatprep.subr.bf16.mxu0 0
      %1185 = vmatpush1.bf16.msra.mxu0 %v1129
      %1186 = vmatprep.subr.bf16.mxu0 0
      %1187 = vmatpush1.bf16.msra.mxu0 %v1130
      %1188 = vmatprep.subr.bf16.mxu0 0
      %1189 = vmatpush1.bf16.msra.mxu0 %v1131
      %1190 = vmatprep.subr.bf16.mxu0 0
      %1191 = vmatpush1.bf16.msra.mxu0 %v1132
      %1192 = vmatprep.subr.bf16.mxu0 0
      %1193 = vmatpush1.bf16.msra.mxu0 %v1133
      %1194 = vmatprep.subr.bf16.mxu0 0
      %1195 = vmatpush1.bf16.msra.mxu0 %v1134
      %1196 = vmatprep.subr.bf16.mxu0 0
      %1197 = vmatpush1.bf16.msra.mxu0 %v1135
      %1198 = vmatprep.subr.bf16.mxu0 0
      %1199 = vmatpush1.bf16.msra.mxu0 %v1136
      %1200 = vmatprep.subr.bf16.mxu0 0
      %1201 = vmatpush1.bf16.msra.mxu0 %v1137
      %1202 = vmatprep.subr.bf16.mxu0 0
      %1203 = vmatpush1.bf16.msra.mxu0 %v1138
      %1204 = vmatprep.subr.bf16.mxu0 0
      %1205 = vmatpush1.bf16.msra.mxu0 %v1139
      %1206 = vmatprep.subr.bf16.mxu0 0
      %1207 = vmatpush1.bf16.msra.mxu0 %v1140
      %1208 = vmatprep.mubr.bf16.mxu0 %v934
      %1209 = vmatmul.mubr.bf16.gmra.mrb[0].mxu0 %v922
      %v1210 = vpop.f32.mrb[0].mxu0
      %v1211 = vadd.f32 %v908, %v1210
      %v1212 = vpop.f32.mrb[0].mxu0
      %v1213 = vpop.f32.mrb[0].mxu0
      %v1214 = vadd.f32 %v908, %v1213
      %v1215 = vpop.f32.mrb[0].mxu0
      %1216 = vmatprep.mubr.bf16.mxu0 %v962
      %1217 = vmatmul.mubr.bf16.gmra.mrb[0].mxu0 %v954
      %v1218 = vpop.f32.mrb[0].mxu0
      %v1219 = vadd.f32 %v908, %v1218
      %v1220 = vpop.f32.mrb[0].mxu0
      %v1221 = vpop.f32.mrb[0].mxu0
      %v1222 = vadd.f32 %v908, %v1221
      %v1223 = vpop.f32.mrb[0].mxu0
      %1224 = vmatprep.mubr.bf16.mxu0 %v986
      %1225 = vmatmul.mubr.bf16.gmra.mrb[0].mxu0 %v978
      %v1226 = vpop.f32.mrb[0].mxu0
      %v1227 = vadd.f32 %v908, %v1226
      %v1228 = vpop.f32.mrb[0].mxu0
      %v1229 = vpop.f32.mrb[0].mxu0
      %v1230 = vadd.f32 %v908, %v1229
      %v1231 = vpop.f32.mrb[0].mxu0
      %1232 = vmatprep.mubr.bf16.mxu0 %v1010
      %1233 = vmatmul.mubr.bf16.gmra.mrb[0].mxu0 %v1002
      %v1234 = vpop.f32.mrb[0].mxu0
      %v1235 = vadd.f32 %v908, %v1234
      %v1236 = vpop.f32.mrb[0].mxu0
      %v1237 = vpop.f32.mrb[0].mxu0
      %v1238 = vadd.f32 %v908, %v1237
      %v1239 = vpop.f32.mrb[0].mxu0
      %1240 = vmatprep.mubr.bf16.mxu0 %v1034
      %1241 = vmatmul.mubr.bf16.gmra.mrb[0].mxu0 %v1026
      %v1242 = vpop.f32.mrb[0].mxu0
      %v1243 = vadd.f32 %v908, %v1242
      %v1244 = vpop.f32.mrb[0].mxu0
      %v1245 = vpop.f32.mrb[0].mxu0
      %v1246 = vadd.f32 %v908, %v1245
      %v1247 = vpop.f32.mrb[0].mxu0
      %1248 = vdwg.mxu0
      %1249 = vmatprep.subr.bf16.mxu0 0
      %1250 = vmatpush1.bf16.msra.mxu0 %v1141
      %1251 = vmatprep.subr.bf16.mxu0 0
      %1252 = vmatpush1.bf16.msra.mxu0 %v1142
      %1253 = vmatprep.subr.bf16.mxu0 0
      %1254 = vmatpush1.bf16.msra.mxu0 0
      %1255 = vmatprep.subr.bf16.mxu0 0
      %1256 = vmatpush1.bf16.msra.mxu0 0
      %1257 = vmatprep.subr.bf16.mxu0 0
      %1258 = vmatpush1.bf16.msra.mxu0 0
      %1259 = vmatprep.subr.bf16.mxu0 0
      %1260 = vmatpush1.bf16.msra.mxu0 0
      %1261 = vmatprep.subr.bf16.mxu0 0
      %1262 = vmatpush1.bf16.msra.mxu0 0
      %1263 = vmatprep.subr.bf16.mxu0 0
      %1264 = vmatpush1.bf16.msra.mxu0 0
      %1265 = vmatprep.subr.bf16.mxu0 0
      %1266 = vmatpush1.bf16.msra.mxu0 0
      %1267 = vmatprep.subr.bf16.mxu0 0
      %1268 = vmatpush1.bf16.msra.mxu0 0
      %1269 = vmatprep.subr.bf16.mxu0 0
      %1270 = vmatpush1.bf16.msra.mxu0 0
      %1271 = vmatprep.subr.bf16.mxu0 0
      %1272 = vmatpush1.bf16.msra.mxu0 0
      %1273 = vmatprep.subr.bf16.mxu0 0
      %1274 = vmatpush1.bf16.msra.mxu0 0
      %1275 = vmatprep.subr.bf16.mxu0 0
      %1276 = vmatpush1.bf16.msra.mxu0 0
      %1277 = vmatprep.subr.bf16.mxu0 0
      %1278 = vmatpush1.bf16.msra.mxu0 0
      %1279 = vmatprep.subr.bf16.mxu0 0
      %1280 = vmatpush1.bf16.msra.mxu0 0
      %1281 = vmatprep.mubr.bf16.mxu0 0
      %1282 = vmatmul.mubr.bf16.gmra.mrb[0].mxu0 %v1162
      %v1283 = vpop.f32.mrb[0].mxu0
      %v1284 = vadd.f32 %v1211, %v1283
      %v1285 = vpop.f32.mrb[0].mxu0
      %v1286 = vpop.f32.mrb[0].mxu0
      %v1287 = vadd.f32 %v1214, %v1286
      %v1288 = vpop.f32.mrb[0].mxu0
      %1289 = vmatprep.mubr.bf16.mxu0 0
      %1290 = vmatmul.mubr.bf16.gmra.mrb[0].mxu0 %v1165
      %v1291 = vpop.f32.mrb[0].mxu0
      %v1292 = vadd.f32 %v1219, %v1291
      %v1293 = vpop.f32.mrb[0].mxu0
      %v1294 = vpop.f32.mrb[0].mxu0
      %v1295 = vadd.f32 %v1222, %v1294
      %v1296 = vpop.f32.mrb[0].mxu0
      %1297 = vmatprep.mubr.bf16.mxu0 0
      %1298 = vmatmul.mubr.bf16.gmra.mrb[0].mxu0 %v1168
      %v1299 = vpop.f32.mrb[0].mxu0
      %v1300 = vadd.f32 %v1227, %v1299
      %v1301 = vpop.f32.mrb[0].mxu0
      %v1302 = vpop.f32.mrb[0].mxu0
      %v1303 = vadd.f32 %v1230, %v1302
      %v1304 = vpop.f32.mrb[0].mxu0
      %1305 = vmatprep.mubr.bf16.mxu0 0
      %1306 = vmatmul.mubr.bf16.gmra.mrb[0].mxu0 %v1171
      %v1307 = vpop.f32.mrb[0].mxu0
      %v1308 = vadd.f32 %v1235, %v1307
      %v1309 = vpop.f32.mrb[0].mxu0
      %v1310 = vpop.f32.mrb[0].mxu0
      %v1311 = vadd.f32 %v1238, %v1310
      %v1312 = vpop.f32.mrb[0].mxu0
      %1313 = vmatprep.mubr.bf16.mxu0 0
      %1314 = vmatmul.mubr.bf16.gmra.mrb[0].mxu0 %v1174
      %v1315 = vpop.f32.mrb[0].mxu0
      %v1316 = vadd.f32 %v1243, %v1315
      %v1317 = vpop.f32.mrb[0].mxu0
      %v1318 = vpop.f32.mrb[0].mxu0
      %v1319 = vadd.f32 %v1246, %v1318
      %v1320 = vpop.f32.mrb[0].mxu0
      %1321 = vdwg.mxu0
      %v1322 = vld [vmem:[%s385] sm:$0xff]
      %v1323 = vld [vmem:[%s385 + $0x8] sm:$0xff]
      %v1324 = vld [vmem:[%s385 + $0x10] sm:$0xff]
      %v1325 = vld [vmem:[%s385 + $0x18] sm:$0xff]
      %v1326 = vld [vmem:[%s385 + $0x20] sm:$0xff]
      %v1327 = vld [vmem:[%s385 + $0x28] sm:$0xff]
      %v1328 = vld [vmem:[%s385 + $0x30] sm:$0xff]
      %v1329 = vld [vmem:[%s385 + $0x38] sm:$0xff]
      %v1330 = vld [vmem:[%s385 + $0x40] sm:$0xff]
      %v1331 = vld [vmem:[%s385 + $0x48] sm:$0xff]
      %v1332 = vadd.f32 %v1284, %v1322
      %v1333 = vadd.f32 %v1287, %v1323
      %v1334 = vadd.f32 %v1292, %v1324
      %v1335 = vadd.f32 %v1295, %v1325
      %v1336 = vadd.f32 %v1300, %v1326
      %v1337 = vadd.f32 %v1303, %v1327
      %v1338 = vadd.f32 %v1308, %v1328
      %v1339 = vadd.f32 %v1311, %v1329
      %v1340 = vadd.f32 %v1316, %v1330
      %v1341 = vadd.f32 %v1319, %v1331
      %v1342 = vld [vmem:[%s5] sm:$0xff]
      %v1343 = vld [vmem:[%s5 + $0x8] sm:$0xff]
      %v1344 = vld [vmem:[%s5 + $0x10] sm:$0xff]
      %v1345 = vld [vmem:[%s5 + $0x18] sm:$0xff]
      %v1346 = vld [vmem:[%s5 + $0x20] sm:$0xff]
      %v1347 = vld [vmem:[%s5 + $0x28] sm:$0xff]
      %v1348 = vld [vmem:[%s5 + $0x30] sm:$0xff]
      %v1349 = vld [vmem:[%s5 + $0x38] sm:$0xff]
      %v1350 = vld [vmem:[%s5 + $0x40] sm:$0xff]
      %v1351 = vld [vmem:[%s5 + $0x48] sm:$0xff]
      %vm1352 = vcmp.gt.f32.partialorder %v1342, 0.5
      %vm1353 = vcmp.gt.f32.partialorder %v1343, 0.5
      %vm1354 = vcmp.gt.f32.partialorder %v1344, 0.5
      %vm1355 = vcmp.gt.f32.partialorder %v1345, 0.5
      %vm1356 = vcmp.gt.f32.partialorder %v1346, 0.5
      %vm1357 = vcmp.gt.f32.partialorder %v1347, 0.5
      %vm1358 = vcmp.gt.f32.partialorder %v1348, 0.5
      %vm1359 = vcmp.gt.f32.partialorder %v1349, 0.5
      %vm1360 = vcmp.gt.f32.partialorder %v1350, 0.5
      %vm1361 = vcmp.gt.f32.partialorder %v1351, 0.5
      %v1362 = vsel %vm1352, 1, 0
      %v1363 = vsel %vm1353, 1, 0
      %v1364 = vsel %vm1354, 1, 0
      %v1365 = vsel %vm1355, 1, 0
      %v1366 = vsel %vm1356, 1, 0
      %v1367 = vsel %vm1357, 1, 0
      %v1368 = vsel %vm1358, 1, 0
      %v1369 = vsel %vm1359, 1, 0
      %v1370 = vsel %vm1360, 1, 0
      %v1371 = vsel %vm1361, 1, 0
      %1372 = vset.pattern.permute.xlu0 0
      %1373 = vperm.xlu0 %1372, %v1362
      %v1374 = vpop.permute.xlu0 %1373
      %1375 = vset.pattern.permute.xlu0 0
      %1376 = vperm.xlu0 %1375, %v1363
      %v1377 = vpop.permute.xlu0 %1376
      %1378 = vset.pattern.permute.xlu0 0
      %1379 = vperm.xlu0 %1378, %v1364
      %v1380 = vpop.permute.xlu0 %1379
      %1381 = vset.pattern.permute.xlu0 0
      %1382 = vperm.xlu0 %1381, %v1365
      %v1383 = vpop.permute.xlu0 %1382
      %1384 = vset.pattern.permute.xlu0 0
      %1385 = vperm.xlu0 %1384, %v1366
      %v1386 = vpop.permute.xlu0 %1385
      %1387 = vset.pattern.permute.xlu0 0
      %1388 = vperm.xlu0 %1387, %v1367
      %v1389 = vpop.permute.xlu0 %1388
      %1390 = vset.pattern.permute.xlu0 0
      %1391 = vperm.xlu0 %1390, %v1368
      %v1392 = vpop.permute.xlu0 %1391
      %1393 = vset.pattern.permute.xlu0 0
      %1394 = vperm.xlu0 %1393, %v1369
      %v1395 = vpop.permute.xlu0 %1394
      %1396 = vset.pattern.permute.xlu0 0
      %1397 = vperm.xlu0 %1396, %v1370
      %v1398 = vpop.permute.xlu0 %1397
      %1399 = vset.pattern.permute.xlu0 0
      %1400 = vperm.xlu0 %1399, %v1371
      %v1401 = vpop.permute.xlu0 %1400
      %vm1402 = vcmp.eq.s32.totalorder %v1374, 1
      %vm1403 = vcmp.eq.s32.totalorder %v1377, 1
      %vm1404 = vcmp.eq.s32.totalorder %v1380, 1
      %vm1405 = vcmp.eq.s32.totalorder %v1383, 1
      %vm1406 = vcmp.eq.s32.totalorder %v1386, 1
      %vm1407 = vcmp.eq.s32.totalorder %v1389, 1
      %vm1408 = vcmp.eq.s32.totalorder %v1392, 1
      %vm1409 = vcmp.eq.s32.totalorder %v1395, 1
      %vm1410 = vcmp.eq.s32.totalorder %v1398, 1
      %vm1411 = vcmp.eq.s32.totalorder %v1401, 1
      %v1412 = vsel %vm1402, %v1332, 0.0
      %v1413 = vsel %vm1403, %v1333, 0.0
      %v1414 = vsel %vm1404, %v1334, 0.0
      %v1415 = vsel %vm1405, %v1335, 0.0
      %v1416 = vsel %vm1406, %v1336, 0.0
      %v1417 = vsel %vm1407, %v1337, 0.0
      %v1418 = vsel %vm1408, %v1338, 0.0
      %v1419 = vsel %vm1409, %v1339, 0.0
      %v1420 = vsel %vm1410, %v1340, 0.0
      %v1421 = vsel %vm1411, %v1341, 0.0
      %1422 = vst.msk [vmem:[%s395] sm:$0xff] %vm780, %v1412
      %1423 = vst.msk [vmem:[%s395 + $0x8] sm:$0xff] %vm780, %v1413
      %1424 = vst.msk [vmem:[%s395 + $0x10] sm:$0xff] %vm780, %v1414
      %1425 = vst.msk [vmem:[%s395 + $0x18] sm:$0xff] %vm780, %v1415
      %1426 = vst.msk [vmem:[%s395 + $0x20] sm:$0xff] %vm780, %v1416
      %1427 = vst.msk [vmem:[%s395 + $0x28] sm:$0xff] %vm780, %v1417
      %1428 = vst.msk [vmem:[%s395 + $0x30] sm:$0xff] %vm780, %v1418
      %1429 = vst.msk [vmem:[%s395 + $0x38] sm:$0xff] %vm780, %v1419
      %1430 = vst.msk [vmem:[%s395 + $0x40] sm:$0xff] %vm780, %v1420
      %1431 = vst.msk [vmem:[%s395 + $0x48] sm:$0xff] %vm780, %v1421
      %s1432 = smul.u32 10, %s22
      %p1433 = scmp.lt.s32.totalorder %s21, 1
      %s1434 = scalar_select %p1433, %s21, 1
      %p1435 = scmp.lt.s32.totalorder %s1432, 9
      %s1436 = scalar_select %p1435, %s1432, 9
      %s1437 = smul.addr %s1434, 10
      %s1438 = sadd.s32 %s1436, %s1437
      %s1439 = smul.addr %s1438, 8
      %s1440 = scalar_lea.vmem %s6, %s1439
      // Predicated region
      $region45: #{sr_context_upsample_forward.13} parent=43 // pred_check
        %p1441 = pneg %p200
      $region46: #{sr_context_upsample_forward.13} parent=43 // pred_check_branch
        %1443 = sbr.rel (%p1441) target = $region48
      $region47: #{sr_context_upsample_forward.13} parent=43 // pred_region
        %s1444 = smul.u32 10, %s22
      $region48: #{sr_context_upsample_forward.13} parent=43 // pred_fallthru
        _
    $region44: #{sr_context_upsample_forward.13} parent=5 // pred_fallthru
      _
    %p1445 = scmp.le.s32.totalorder 2, %s12
    // Predicated region
    $region49: #{sr_context_upsample_forward.13} parent=5 // pred_check
      %p1446 = pneg %p1445
    $region50: #{sr_context_upsample_forward.13} parent=5 // pred_check_branch
      %1448 = sbr.rel (%p1446) target = $region52
    $region51: #{sr_context_upsample_forward.13} parent=5 // pred_region
      %s1449 = ssub.s32 %s12, 2
      // Predicated region
      $region53: #{sr_context_upsample_forward.13} parent=51 // pred_check
        %p1450 = pneg %p206
      $region54: #{sr_context_upsample_forward.13} parent=51 // pred_check_branch
        %1452 = sbr.rel (%p1450) target = $region56
      $region55: #{sr_context_upsample_forward.13} parent=51 // pred_region
        %s1453 = smul.u32 10, %s24
        %p1454 = scmp.lt.s32.totalorder %s23, 1
        %s1455 = scalar_select %p1454, %s23, 1
        %p1456 = scmp.lt.s32.totalorder %s1453, 9
        %s1457 = scalar_select %p1456, %s1453, 9
        %s1458 = smul.addr %s1455, 10
        %s1459 = sadd.s32 %s1457, %s1458
        %s1460 = smul.addr %s1459, 8
        %s1461 = scalar_lea.vmem %s6, %s1460
      $region56: #{sr_context_upsample_forward.13} parent=51 // pred_fallthru
        _
    $region52: #{sr_context_upsample_forward.13} parent=5 // pred_fallthru
      _
  $region6: #{sr_context_upsample_forward.13} parent=0 // loop_footer
    %s16 = sadd.s32 1, %s12
  $region7: #{sr_context_upsample_forward.13} parent=0 // loop_footer_branch
    %11 = sbr.rel target = $region3
  $region8: #{sr_context_upsample_forward.13} parent=0 // loop_exit
    _

// kernel: sr_context_upsample_forward.10
$region0: #{sr_context_upsample_forward.10}
  #allocation0 [shape = 'u32[]', space=smem, size = 0x4, offset = 0x4, fixed_abs, tag = 'smem constant byte address 0x4 - core index']
  #allocation1 [shape = 'u32[144,128]{1,0:T(1,128)}', space=vmem, size = 0x12000, scoped, tag = 'internal scratch']
  %s0 = inlined_call_operand.vmem [shape: f32[2,120,32], index: 0, kind: input, shape index: {}, may-alias: {0,1}]
  %s1 = inlined_call_operand.vmem [shape: f32[2,120,32], index: 1, kind: input, shape index: {}, may-alias: {0,1}]
  %s2 = inlined_call_operand.vmem [shape: f32[2,80,32], index: 2, kind: input, shape index: {}]
  %s3 = inlined_call_operand.vmem [shape: bf16[288,32], index: 3, kind: input, shape index: {}]
  %s4 = inlined_call_operand.vmem [shape: f32[1,32], index: 4, kind: input, shape index: {}]
  %s5 = inlined_call_operand.vmem [shape: bf16[32,64], index: 5, kind: input, shape index: {}]
  %s6 = inlined_call_operand.vmem [shape: f32[1,64], index: 6, kind: input, shape index: {}]
  %s7 = inlined_call_operand.vmem [shape: bf16[64,32], index: 7, kind: input, shape index: {}]
  %s8 = inlined_call_operand.vmem [shape: f32[1,32], index: 8, kind: input, shape index: {}]
  %s9 = inlined_call_operand.vmem [shape: f32[80,1], index: 9, kind: input, shape index: {}]
  %s10 = inlined_call_operand.vmem [shape: f32[2,80,32], index: 10, kind: output, shape index: {}]
  %s11 = sld [smem:[#allocation0]]
  $region73: #{sr_context_upsample_forward.10} parent=0
    _
  %s13 = ssub.s32 1, %s11
  %s14 = scalar_select 0, %s13, %s11
  loop: start=0, step=1, limit=4
  $region2: #{sr_context_upsample_forward.10} parent=0 // loop_pre_header
    _
  $region3: #{sr_context_upsample_forward.10} parent=0 // loop_header
    %s16 = sphi 0, %s20
    %p17 = scmp.ge.s32.totalorder %s16, 4
    %s23 = sphi 0, %s35
    %s24 = sphi 0, %s31
    %s25 = sphi 0, %s23
    %s26 = sphi 0, %s24
    %s27 = sphi 0, %s25
    %s28 = sphi 0, %s26
    %s40 = sphi 0, %s42
    %s43 = sphi 0, %s40
    %s44 = sphi 0, %s43
    %s60 = sphi 0, %s44
    %s72 = sphi 0, %s74
    %s75 = sphi 0, %s72
    %s76 = sphi 0, %s75
    %s92 = sphi 0, %s76
    %s100 = sphi 0, %s102
    %s103 = sphi 0, %s100
    %s104 = sphi 0, %s103
    %s120 = sphi 0, %s104
    %s124 = sphi 0, %s124
    %s126 = sphi 0, %s124
    %s127 = sphi 0, %s126
    %s141 = sphi 0, %s127
    %s145 = sphi 0, %s145
    %s147 = sphi 0, %s145
    %s148 = sphi 0, %s147
    %s162 = sphi 0, %s148
    %s166 = sphi 0, %s166
    %s168 = sphi 0, %s166
    %s169 = sphi 0, %s168
    %s183 = sphi 0, %s169
    %s187 = sphi 0, %s187
    %s189 = sphi 0, %s187
    %s190 = sphi 0, %s189
    %s204 = sphi 0, %s190
    %s208 = sphi 0, %s208
    %s210 = sphi 0, %s208
    %s211 = sphi 0, %s210
    %s225 = sphi 0, %s211
    %s229 = sphi 0, %s229
    %s231 = sphi 0, %s229
    %s232 = sphi 0, %s231
    %s246 = sphi 0, %s232
    %s250 = sphi 0, %s250
    %s252 = sphi 0, %s250
    %s253 = sphi 0, %s252
    %s267 = sphi 0, %s253
    %s275 = sphi 0, %s277
    %s278 = sphi 0, %s275
    %s279 = sphi 0, %s278
    %s295 = sphi 0, %s279
  $region4: #{sr_context_upsample_forward.10} parent=0 // loop_header_branch
    %19 = sbr.rel (%p17) target = $region8
  $region5: #{sr_context_upsample_forward.10} parent=0 // loop_body
    %s21 = ssub.s32 %s16, 1
    %s22 = ssub.s32 %s16, 2
    %s29 = sadd.s32 1, %s24
    %p30 = scmp.ge.s32.totalorder %s29, 1
    %s31 = scalar_select %p30, 0, %s29
    %s32 = sadd.s32 1, %s23
    %s33 = scalar_select %p30, %s32, %s23
    %p34 = scmp.ge.s32.totalorder %s33, 2
    %s35 = scalar_select %p34, 0, %s33
    %s36 = ssub.s32 %s23, %s35
    %s37 = ssub.s32 %s24, %s31
    %s38 = sor.u32 %s36, %s37
    %p39 = scmp.eq.s32.totalorder %s38, 0
    %s41 = sadd.s32 %s40, 1
    %s42 = scalar_select %p39, %s40, %s41
    %p45 = pneg %p39
    %p46 = scmp.eq.s32.totalorder %s16, 1
    %p47 = por %p45, %p46
    %p48 = scmp.ne.s32.totalorder %s40, %s43
    %p49 = scmp.eq.s32.totalorder %s16, 0
    %p50 = por %p48, %p49
    %p51 = scmp.ne.s32.totalorder %s40, %s43
    %p52 = scmp.eq.s32.totalorder %s21, 1
    %p53 = por %p51, %p52
    %p54 = scmp.ne.s32.totalorder %s43, %s44
    %p55 = scmp.eq.s32.totalorder %s21, 0
    %p56 = por %p54, %p55
    %p57 = scmp.ne.s32.totalorder %s43, %s44
    %p58 = scmp.eq.s32.totalorder %s22, 1
    %p59 = por %p57, %p58
    %p61 = scmp.ne.s32.totalorder %s44, %s60
    %p62 = scmp.eq.s32.totalorder %s22, 0
    %p63 = por %p61, %p62
    %s64 = sadd.s32 %s24, 1
    %s65 = smul.u32 %s64, 2
    %s66 = sadd.s32 %s31, 1
    %s67 = smul.u32 %s66, 2
    %s68 = ssub.s32 %s23, %s35
    %s69 = ssub.s32 %s65, %s67
    %s70 = sor.u32 %s68, %s69
    %p71 = scmp.eq.s32.totalorder %s70, 0
    %s73 = sadd.s32 %s72, 1
    %s74 = scalar_select %p71, %s72, %s73
    %p77 = pneg %p71
    %p78 = scmp.eq.s32.totalorder %s16, 1
    %p79 = por %p77, %p78
    %p80 = scmp.ne.s32.totalorder %s72, %s75
    %p81 = scmp.eq.s32.totalorder %s16, 0
    %p82 = por %p80, %p81
    %p83 = scmp.ne.s32.totalorder %s72, %s75
    %p84 = scmp.eq.s32.totalorder %s21, 1
    %p85 = por %p83, %p84
    %p86 = scmp.ne.s32.totalorder %s75, %s76
    %p87 = scmp.eq.s32.totalorder %s21, 0
    %p88 = por %p86, %p87
    %p89 = scmp.ne.s32.totalorder %s75, %s76
    %p90 = scmp.eq.s32.totalorder %s22, 1
    %p91 = por %p89, %p90
    %p93 = scmp.ne.s32.totalorder %s76, %s92
    %p94 = scmp.eq.s32.totalorder %s22, 0
    %p95 = por %p93, %p94
    %s96 = ssub.s32 %s23, %s35
    %s97 = ssub.s32 %s24, %s31
    %s98 = sor.u32 %s96, %s97
    %p99 = scmp.eq.s32.totalorder %s98, 0
    %s101 = sadd.s32 %s100, 1
    %s102 = scalar_select %p99, %s100, %s101
    %p105 = pneg %p99
    %p106 = scmp.eq.s32.totalorder %s16, 1
    %p107 = por %p105, %p106
    %p108 = scmp.ne.s32.totalorder %s100, %s103
    %p109 = scmp.eq.s32.totalorder %s16, 0
    %p110 = por %p108, %p109
    %p111 = scmp.ne.s32.totalorder %s100, %s103
    %p112 = scmp.eq.s32.totalorder %s21, 1
    %p113 = por %p111, %p112
    %p114 = scmp.ne.s32.totalorder %s103, %s104
    %p115 = scmp.eq.s32.totalorder %s21, 0
    %p116 = por %p114, %p115
    %p117 = scmp.ne.s32.totalorder %s103, %s104
    %p118 = scmp.eq.s32.totalorder %s22, 1
    %p119 = por %p117, %p118
    %p121 = scmp.ne.s32.totalorder %s104, %s120
    %p122 = scmp.eq.s32.totalorder %s22, 0
    %p123 = por %p121, %p122
    %s125 = sadd.s32 %s124, 1
    %p128 = scmp.eq.s32.totalorder %s16, 1
    %p129 = scmp.ne.s32.totalorder %s124, %s126
    %p130 = scmp.eq.s32.totalorder %s16, 0
    %p131 = por %p129, %p130
    %p132 = scmp.ne.s32.totalorder %s124, %s126
    %p133 = scmp.eq.s32.totalorder %s21, 1
    %p134 = por %p132, %p133
    %p135 = scmp.ne.s32.totalorder %s126, %s127
    %p136 = scmp.eq.s32.totalorder %s21, 0
    %p137 = por %p135, %p136
    %p138 = scmp.ne.s32.totalorder %s126, %s127
    %p139 = scmp.eq.s32.totalorder %s22, 1
    %p140 = por %p138, %p139
    %p142 = scmp.ne.s32.totalorder %s127, %s141
    %p143 = scmp.eq.s32.totalorder %s22, 0
    %p144 = por %p142, %p143
    %s146 = sadd.s32 %s145, 1
    %p149 = scmp.eq.s32.totalorder %s16, 1
    %p150 = scmp.ne.s32.totalorder %s145, %s147
    %p151 = scmp.eq.s32.totalorder %s16, 0
    %p152 = por %p150, %p151
    %p153 = scmp.ne.s32.totalorder %s145, %s147
    %p154 = scmp.eq.s32.totalorder %s21, 1
    %p155 = por %p153, %p154
    %p156 = scmp.ne.s32.totalorder %s147, %s148
    %p157 = scmp.eq.s32.totalorder %s21, 0
    %p158 = por %p156, %p157
    %p159 = scmp.ne.s32.totalorder %s147, %s148
    %p160 = scmp.eq.s32.totalorder %s22, 1
    %p161 = por %p159, %p160
    %p163 = scmp.ne.s32.totalorder %s148, %s162
    %p164 = scmp.eq.s32.totalorder %s22, 0
    %p165 = por %p163, %p164
    %s167 = sadd.s32 %s166, 1
    %p170 = scmp.eq.s32.totalorder %s16, 1
    %p171 = scmp.ne.s32.totalorder %s166, %s168
    %p172 = scmp.eq.s32.totalorder %s16, 0
    %p173 = por %p171, %p172
    %p174 = scmp.ne.s32.totalorder %s166, %s168
    %p175 = scmp.eq.s32.totalorder %s21, 1
    %p176 = por %p174, %p175
    %p177 = scmp.ne.s32.totalorder %s168, %s169
    %p178 = scmp.eq.s32.totalorder %s21, 0
    %p179 = por %p177, %p178
    %p180 = scmp.ne.s32.totalorder %s168, %s169
    %p181 = scmp.eq.s32.totalorder %s22, 1
    %p182 = por %p180, %p181
    %p184 = scmp.ne.s32.totalorder %s169, %s183
    %p185 = scmp.eq.s32.totalorder %s22, 0
    %p186 = por %p184, %p185
    %s188 = sadd.s32 %s187, 1
    %p191 = scmp.eq.s32.totalorder %s16, 1
    %p192 = scmp.ne.s32.totalorder %s187, %s189
    %p193 = scmp.eq.s32.totalorder %s16, 0
    %p194 = por %p192, %p193
    %p195 = scmp.ne.s32.totalorder %s187, %s189
    %p196 = scmp.eq.s32.totalorder %s21, 1
    %p197 = por %p195, %p196
    %p198 = scmp.ne.s32.totalorder %s189, %s190
    %p199 = scmp.eq.s32.totalorder %s21, 0
    %p200 = por %p198, %p199
    %p201 = scmp.ne.s32.totalorder %s189, %s190
    %p202 = scmp.eq.s32.totalorder %s22, 1
    %p203 = por %p201, %p202
    %p205 = scmp.ne.s32.totalorder %s190, %s204
    %p206 = scmp.eq.s32.totalorder %s22, 0
    %p207 = por %p205, %p206
    %s209 = sadd.s32 %s208, 1
    %p212 = scmp.eq.s32.totalorder %s16, 1
    %p213 = scmp.ne.s32.totalorder %s208, %s210
    %p214 = scmp.eq.s32.totalorder %s16, 0
    %p215 = por %p213, %p214
    %p216 = scmp.ne.s32.totalorder %s208, %s210
    %p217 = scmp.eq.s32.totalorder %s21, 1
    %p218 = por %p216, %p217
    %p219 = scmp.ne.s32.totalorder %s210, %s211
    %p220 = scmp.eq.s32.totalorder %s21, 0
    %p221 = por %p219, %p220
    %p222 = scmp.ne.s32.totalorder %s210, %s211
    %p223 = scmp.eq.s32.totalorder %s22, 1
    %p224 = por %p222, %p223
    %p226 = scmp.ne.s32.totalorder %s211, %s225
    %p227 = scmp.eq.s32.totalorder %s22, 0
    %p228 = por %p226, %p227
    %s230 = sadd.s32 %s229, 1
    %p233 = scmp.eq.s32.totalorder %s16, 1
    %p234 = scmp.ne.s32.totalorder %s229, %s231
    %p235 = scmp.eq.s32.totalorder %s16, 0
    %p236 = por %p234, %p235
    %p237 = scmp.ne.s32.totalorder %s229, %s231
    %p238 = scmp.eq.s32.totalorder %s21, 1
    %p239 = por %p237, %p238
    %p240 = scmp.ne.s32.totalorder %s231, %s232
    %p241 = scmp.eq.s32.totalorder %s21, 0
    %p242 = por %p240, %p241
    %p243 = scmp.ne.s32.totalorder %s231, %s232
    %p244 = scmp.eq.s32.totalorder %s22, 1
    %p245 = por %p243, %p244
    %p247 = scmp.ne.s32.totalorder %s232, %s246
    %p248 = scmp.eq.s32.totalorder %s22, 0
    %p249 = por %p247, %p248
    %s251 = sadd.s32 %s250, 1
    %p254 = scmp.eq.s32.totalorder %s16, 1
    %p255 = scmp.ne.s32.totalorder %s250, %s252
    %p256 = scmp.eq.s32.totalorder %s16, 0
    %p257 = por %p255, %p256
    %p258 = scmp.ne.s32.totalorder %s250, %s252
    %p259 = scmp.eq.s32.totalorder %s21, 1
    %p260 = por %p258, %p259
    %p261 = scmp.ne.s32.totalorder %s252, %s253
    %p262 = scmp.eq.s32.totalorder %s21, 0
    %p263 = por %p261, %p262
    %p264 = scmp.ne.s32.totalorder %s252, %s253
    %p265 = scmp.eq.s32.totalorder %s22, 1
    %p266 = por %p264, %p265
    %p268 = scmp.ne.s32.totalorder %s253, %s267
    %p269 = scmp.eq.s32.totalorder %s22, 0
    %p270 = por %p268, %p269
    %s271 = ssub.s32 %s23, %s35
    %s272 = ssub.s32 %s24, %s31
    %s273 = sor.u32 %s271, %s272
    %p274 = scmp.eq.s32.totalorder %s273, 0
    %s276 = sadd.s32 %s275, 1
    %s277 = scalar_select %p274, %s275, %s276
    %p280 = pneg %p274
    %p281 = scmp.eq.s32.totalorder %s16, 1
    %p282 = por %p280, %p281
    %p283 = scmp.ne.s32.totalorder %s275, %s278
    %p284 = scmp.eq.s32.totalorder %s16, 0
    %p285 = por %p283, %p284
    %p286 = scmp.ne.s32.totalorder %s275, %s278
    %p287 = scmp.eq.s32.totalorder %s21, 1
    %p288 = por %p286, %p287
    %p289 = scmp.ne.s32.totalorder %s278, %s279
    %p290 = scmp.eq.s32.totalorder %s21, 0
    %p291 = por %p289, %p290
    %p292 = scmp.ne.s32.totalorder %s278, %s279
    %p293 = scmp.eq.s32.totalorder %s22, 1
    %p294 = por %p292, %p293
    %p296 = scmp.ne.s32.totalorder %s279, %s295
    %p297 = scmp.eq.s32.totalorder %s22, 0
    %p298 = por %p296, %p297
    %p299 = scmp.le.s32.totalorder 1, %s16
    %p300 = scmp.lt.s32.totalorder %s16, 3
    %p301 = pnand %p299, %p300
    %p302 = pneg %p301
    // Predicated region
    $region9: #{sr_context_upsample_forward.10} parent=5 // pred_check
      _
    $region10: #{sr_context_upsample_forward.10} parent=5 // pred_check_branch
      %304 = sbr.rel (%p301) target = $region12
    $region11: #{sr_context_upsample_forward.10} parent=5 // pred_region
      %s305 = ssub.s32 %s16, 1
      // Predicated region
      $region13: #{sr_context_upsample_forward.10} parent=11 // pred_check
        %p306 = pneg %p137
      $region14: #{sr_context_upsample_forward.10} parent=11 // pred_check_branch
        %308 = sbr.rel (%p306) target = $region16
      $region15: #{sr_context_upsample_forward.10} parent=11 // pred_region
        _
      $region16: #{sr_context_upsample_forward.10} parent=11 // pred_fallthru
        _
      // Predicated region
      $region17: #{sr_context_upsample_forward.10} parent=11 // pred_check
        %p309 = pneg %p158
      $region18: #{sr_context_upsample_forward.10} parent=11 // pred_check_branch
        %311 = sbr.rel (%p309) target = $region20
      $region19: #{sr_context_upsample_forward.10} parent=11 // pred_region
        _
      $region20: #{sr_context_upsample_forward.10} parent=11 // pred_fallthru
        _
      // Predicated region
      $region21: #{sr_context_upsample_forward.10} parent=11 // pred_check
        %p312 = pneg %p179
      $region22: #{sr_context_upsample_forward.10} parent=11 // pred_check_branch
        %314 = sbr.rel (%p312) target = $region24
      $region23: #{sr_context_upsample_forward.10} parent=11 // pred_region
        _
      $region24: #{sr_context_upsample_forward.10} parent=11 // pred_fallthru
        _
      // Predicated region
      $region25: #{sr_context_upsample_forward.10} parent=11 // pred_check
        %p315 = pneg %p200
      $region26: #{sr_context_upsample_forward.10} parent=11 // pred_check_branch
        %317 = sbr.rel (%p315) target = $region28
      $region27: #{sr_context_upsample_forward.10} parent=11 // pred_region
        _
      $region28: #{sr_context_upsample_forward.10} parent=11 // pred_fallthru
        _
      // Predicated region
      $region29: #{sr_context_upsample_forward.10} parent=11 // pred_check
        %p318 = pneg %p221
      $region30: #{sr_context_upsample_forward.10} parent=11 // pred_check_branch
        %320 = sbr.rel (%p318) target = $region32
      $region31: #{sr_context_upsample_forward.10} parent=11 // pred_region
        _
      $region32: #{sr_context_upsample_forward.10} parent=11 // pred_fallthru
        _
      // Predicated region
      $region33: #{sr_context_upsample_forward.10} parent=11 // pred_check
        %p321 = pneg %p242
      $region34: #{sr_context_upsample_forward.10} parent=11 // pred_check_branch
        %323 = sbr.rel (%p321) target = $region36
      $region35: #{sr_context_upsample_forward.10} parent=11 // pred_region
        _
      $region36: #{sr_context_upsample_forward.10} parent=11 // pred_fallthru
        _
      // Predicated region
      $region37: #{sr_context_upsample_forward.10} parent=11 // pred_check
        %p324 = pneg %p263
      $region38: #{sr_context_upsample_forward.10} parent=11 // pred_check_branch
        %326 = sbr.rel (%p324) target = $region40
      $region39: #{sr_context_upsample_forward.10} parent=11 // pred_region
        _
      $region40: #{sr_context_upsample_forward.10} parent=11 // pred_fallthru
        _
    $region12: #{sr_context_upsample_forward.10} parent=5 // pred_fallthru
      _
    %p327 = scmp.lt.s32.totalorder %s16, 2
    // Predicated region
    $region41: #{sr_context_upsample_forward.10} parent=5 // pred_check
      %p328 = pneg %p327
    $region42: #{sr_context_upsample_forward.10} parent=5 // pred_check_branch
      %330 = sbr.rel (%p328) target = $region44
    $region43: #{sr_context_upsample_forward.10} parent=5 // pred_region
      // Predicated region
      $region45: #{sr_context_upsample_forward.10} parent=43 // pred_check
        %p331 = pneg %p50
      $region46: #{sr_context_upsample_forward.10} parent=43 // pred_check_branch
        %333 = sbr.rel (%p331) target = $region48
      $region47: #{sr_context_upsample_forward.10} parent=43 // pred_region
        %s334 = smul.u32 10, %s24
        %s335 = ssub.s32 15, %s334
        %p336 = scmp.lt.s32.totalorder %s335, 10
        %s337 = scalar_select %p336, %s335, 10
        %s338 = smul.u32 128, %s337
        %p339 = scmp.lt.s32.totalorder %s23, 1
        %s340 = scalar_select %p339, %s23, 1
        %p341 = scmp.lt.s32.totalorder %s334, 14
        %s342 = scalar_select %p341, %s334, 14
        %s343 = smul.addr %s340, 15
        %s344 = sadd.s32 %s342, %s343
        %s345 = smul.addr %s344, 8
        %s346 = scalar_lea.vmem %s0, %s345
        %s347 = smul.u32 10, %s24
        %s348 = ssub.s32 15, %s347
        %p349 = scmp.lt.s32.totalorder %s348, 10
        %s350 = scalar_select %p349, %s348, 10
        %s351 = smul.u32 128, %s350
      $region48: #{sr_context_upsample_forward.10} parent=43 // pred_fallthru
        _
      // Predicated region
      $region49: #{sr_context_upsample_forward.10} parent=43 // pred_check
        %p352 = pneg %p82
      $region50: #{sr_context_upsample_forward.10} parent=43 // pred_check_branch
        %354 = sbr.rel (%p352) target = $region52
      $region51: #{sr_context_upsample_forward.10} parent=43 // pred_region
        %s355 = sadd.s32 %s24, 1
        %s356 = smul.u32 %s355, 2
        %s357 = smul.u32 5, %s356
        %p358 = scmp.lt.s32.totalorder %s23, 1
        %s359 = scalar_select %p358, %s23, 1
        %p360 = scmp.lt.s32.totalorder %s357, 14
        %s361 = scalar_select %p360, %s357, 14
        %s362 = smul.addr %s359, 15
        %s363 = sadd.s32 %s361, %s362
        %s364 = smul.addr %s363, 8
        %s365 = scalar_lea.vmem %s1, %s364
        %s366 = sadd.s32 %s24, 1
        %s367 = smul.u32 %s366, 2
        %s368 = smul.u32 5, %s367
      $region52: #{sr_context_upsample_forward.10} parent=43 // pred_fallthru
        _
      // Predicated region
      $region53: #{sr_context_upsample_forward.10} parent=43 // pred_check
        %p369 = pneg %p110
      $region54: #{sr_context_upsample_forward.10} parent=43 // pred_check_branch
        %371 = sbr.rel (%p369) target = $region56
      $region55: #{sr_context_upsample_forward.10} parent=43 // pred_region
        %s372 = smul.u32 10, %s24
        %p373 = scmp.lt.s32.totalorder %s23, 1
        %s374 = scalar_select %p373, %s23, 1
        %p375 = scmp.lt.s32.totalorder %s372, 9
        %s376 = scalar_select %p375, %s372, 9
        %s377 = smul.addr %s374, 10
        %s378 = sadd.s32 %s376, %s377
        %s379 = smul.addr %s378, 8
        %s380 = scalar_lea.vmem %s2, %s379
        %s381 = smul.u32 10, %s24
      $region56: #{sr_context_upsample_forward.10} parent=43 // pred_fallthru
        _
    $region44: #{sr_context_upsample_forward.10} parent=5 // pred_fallthru
      _
    %p382 = scmp.le.s32.totalorder 1, %s16
    %p383 = scmp.lt.s32.totalorder %s16, 3
    %p384 = pnand %p382, %p383
    %p385 = pneg %p384
    // Predicated region
    $region57: #{sr_context_upsample_forward.10} parent=5 // pred_check
      _
    $region58: #{sr_context_upsample_forward.10} parent=5 // pred_check_branch
      %387 = sbr.rel (%p384) target = $region60
    $region59: #{sr_context_upsample_forward.10} parent=5 // pred_region
      %s388 = ssub.s32 %s16, 1
      %s389 = smul.u32 10, %s26
      %s390 = ssub.s32 15, %s389
      %p391 = scmp.lt.s32.totalorder %s390, 10
      %s392 = scalar_select %p391, %s390, 10
      %s393 = smul.u32 128, %s392
      %p394 = scmp.lt.s32.totalorder %s25, 1
      %s395 = scalar_select %p394, %s25, 1
      %p396 = scmp.lt.s32.totalorder %s389, 14
      %s397 = scalar_select %p396, %s389, 14
      %s398 = smul.addr %s395, 15
      %s399 = sadd.s32 %s397, %s398
      %s400 = smul.addr %s399, 8
      %s401 = scalar_lea.vmem %s0, %s400
      %p402 = pneg %p56
      %p403 = pneg %p53
      %s404 = sadd.s32 %s26, 1
      %s405 = smul.u32 %s404, 2
      %s406 = smul.u32 5, %s405
      %p407 = scmp.lt.s32.totalorder %s25, 1
      %s408 = scalar_select %p407, %s25, 1
      %p409 = scmp.lt.s32.totalorder %s406, 14
      %s410 = scalar_select %p409, %s406, 14
      %s411 = smul.addr %s408, 15
      %s412 = sadd.s32 %s410, %s411
      %s413 = smul.addr %s412, 8
      %s414 = scalar_lea.vmem %s1, %s413
      %p415 = pneg %p88
      %p416 = pneg %p85
      %s417 = smul.u32 10, %s26
      %p418 = scmp.lt.s32.totalorder %s25, 1
      %s419 = scalar_select %p418, %s25, 1
      %p420 = scmp.lt.s32.totalorder %s417, 9
      %s421 = scalar_select %p420, %s417, 9
      %s422 = smul.addr %s419, 10
      %s423 = sadd.s32 %s421, %s422
      %s424 = smul.addr %s423, 8
      %s425 = scalar_lea.vmem %s2, %s424
      %p426 = pneg %p116
      %p427 = pneg %p113
      %p428 = pneg %p137
      %p429 = pneg %p134
      %p430 = pneg %p158
      %p431 = pneg %p155
      %p432 = pneg %p179
      %p433 = pneg %p176
      %p434 = pneg %p200
      %p435 = pneg %p197
      %p436 = pneg %p221
      %p437 = pneg %p218
      %p438 = pneg %p242
      %p439 = pneg %p239
      %p440 = pneg %p263
      %p441 = pneg %p260
      %p442 = pneg %p291
      %p443 = pneg %p288
      %s444 = smul.u32 10, %s26
      %p445 = scmp.lt.s32.totalorder %s25, 1
      %s446 = scalar_select %p445, %s25, 1
      %p447 = scmp.lt.s32.totalorder %s444, 9
      %s448 = scalar_select %p447, %s444, 9
      %s449 = smul.addr %s446, 10
      %s450 = sadd.s32 %s448, %s449
      %s451 = smul.addr %s450, 8
      %s452 = scalar_lea.vmem %s10, %s451
      %s453 = smul.u32 10, %s26
      %s454 = ssub.s32 15, %s453
      %p455 = scmp.lt.s32.totalorder %s454, 10
      %s456 = scalar_select %p455, %s454, 10
      %s457 = smul.u32 128, %s456
      %p458 = scmp.lt.s32.totalorder %s25, 1
      %s459 = scalar_select %p458, %s25, 1
      %p460 = scmp.lt.s32.totalorder %s453, 14
      %s461 = scalar_select %p460, %s453, 14
      %s462 = smul.addr %s459, 15
      %s463 = sadd.s32 %s461, %s462
      %s464 = smul.addr %s463, 8
      %s465 = scalar_lea.vmem %s0, %s464
      %s466 = smul.u32 10, %s26
      %s467 = ssub.s32 15, %s466
      %p468 = scmp.lt.s32.totalorder %s467, 10
      %s469 = scalar_select %p468, %s467, 10
      %s470 = smul.u32 128, %s469
      %s471 = sadd.s32 %s26, 1
      %s472 = smul.u32 %s471, 2
      %s473 = smul.u32 5, %s472
      %p474 = scmp.lt.s32.totalorder %s25, 1
      %s475 = scalar_select %p474, %s25, 1
      %p476 = scmp.lt.s32.totalorder %s473, 14
      %s477 = scalar_select %p476, %s473, 14
      %s478 = smul.addr %s475, 15
      %s479 = sadd.s32 %s477, %s478
      %s480 = smul.addr %s479, 8
      %s481 = scalar_lea.vmem %s1, %s480
      %s482 = sadd.s32 %s26, 1
      %s483 = smul.u32 %s482, 2
      %s484 = smul.u32 5, %s483
      %s485 = smul.u32 10, %s26
      %p486 = scmp.lt.s32.totalorder %s25, 1
      %s487 = scalar_select %p486, %s25, 1
      %p488 = scmp.lt.s32.totalorder %s485, 9
      %s489 = scalar_select %p488, %s485, 9
      %s490 = smul.addr %s487, 10
      %s491 = sadd.s32 %s489, %s490
      %s492 = smul.addr %s491, 8
      %s493 = scalar_lea.vmem %s2, %s492
      %s494 = smul.u32 10, %s26
      %s495 = smul.u32 10, %s26
      %p496 = scmp.lt.s32.totalorder %s25, 1
      %s497 = scalar_select %p496, %s25, 1
      %p498 = scmp.lt.s32.totalorder %s495, 9
      %s499 = scalar_select %p498, %s495, 9
      %s500 = smul.addr %s497, 10
      %s501 = sadd.s32 %s499, %s500
      %s502 = smul.addr %s501, 8
      %s503 = scalar_lea.vmem %s10, %s502
      %s504 = smul.u32 10, %s26
      %v506 = vld [vmem:[%s465 + $0x8] sm:$0xff]
      %v507 = vld [vmem:[%s465 + $0x10] sm:$0xff]
      %v508 = vld [vmem:[%s465 + $0x18] sm:$0xff]
      %v509 = vld [vmem:[%s465 + $0x20] sm:$0xff]
      %v510 = vld [vmem:[%s465 + $0x28] sm:$0xff]
      %v511 = vld [vmem:[%s465 + $0x30] sm:$0xff]
      %v512 = vld [vmem:[%s465 + $0x38] sm:$0xff]
      %v513 = vld [vmem:[%s465 + $0x40] sm:$0xff]
      %v514 = vld [vmem:[%s465 + $0x48] sm:$0xff]
      %v515 = vld [vmem:[%s481] sm:$0xff]
      %v516 = vld [vmem:[%s481 + $0x8] sm:$0xff]
      %v517 = vld [vmem:[%s481 + $0x10] sm:$0xff]
      %v518 = vld [vmem:[%s481 + $0x18] sm:$0xff]
      %vm530 = vcmask 1046528
      %v531 = vrot.slane %v506, 1
      %v532 = vrot.slane %v507, 1
      %v533 = vsel %vm530, %v531, %v532
      %v534 = vrot.slane %v508, 1
      %v535 = vsel %vm530, %v532, %v534
      %v536 = vrot.slane %v509, 1
      %v537 = vsel %vm530, %v534, %v536
      %v538 = vrot.slane %v510, 1
      %v539 = vsel %vm530, %v536, %v538
      %v540 = vrot.slane %v511, 1
      %v541 = vsel %vm530, %v538, %v540
      %v542 = vrot.slane %v512, 1
      %v543 = vsel %vm530, %v540, %v542
      %v544 = vrot.slane %v513, 1
      %v545 = vsel %vm530, %v542, %v544
      %v546 = vrot.slane %v514, 1
      %v547 = vsel %vm530, %v544, %v546
      %v548 = vrot.slane %v515, 1
      %v549 = vsel %vm530, %v546, %v548
      %v550 = vrot.slane %v516, 1
      %v551 = vsel %vm530, %v548, %v550
      %552 = vrot.lane.b32.xlu0 %v533, 32
      %v553 = vpop.permute.xlu0 %552
      %554 = vrot.lane.b32.xlu0 %v535, 32
      %v555 = vpop.permute.xlu0 %554
      %556 = vrot.lane.b32.xlu0 %v537, 32
      %v557 = vpop.permute.xlu0 %556
      %558 = vrot.lane.b32.xlu0 %v539, 32
      %v559 = vpop.permute.xlu0 %558
      %560 = vrot.lane.b32.xlu0 %v541, 32
      %v561 = vpop.permute.xlu0 %560
      %562 = vrot.lane.b32.xlu0 %v543, 32
      %v563 = vpop.permute.xlu0 %562
      %564 = vrot.lane.b32.xlu0 %v545, 32
      %v565 = vpop.permute.xlu0 %564
      %566 = vrot.lane.b32.xlu0 %v547, 32
      %v567 = vpop.permute.xlu0 %566
      %568 = vrot.lane.b32.xlu0 %v549, 32
      %v569 = vpop.permute.xlu0 %568
      %570 = vrot.lane.b32.xlu0 %v551, 32
      %v571 = vpop.permute.xlu0 %570
      %572 = vrot.lane.b32.xlu0 %v550, 32
      %v573 = vpop.permute.xlu0 %572
      %vm585 = vcmask 1045504
      %v586 = vrot.slane %v506, 2
      %v587 = vrot.slane %v507, 2
      %v588 = vsel %vm585, %v586, %v587
      %v589 = vrot.slane %v508, 2
      %v590 = vsel %vm585, %v587, %v589
      %v591 = vrot.slane %v509, 2
      %v592 = vsel %vm585, %v589, %v591
      %v593 = vrot.slane %v510, 2
      %v594 = vsel %vm585, %v591, %v593
      %v595 = vrot.slane %v511, 2
      %v596 = vsel %vm585, %v593, %v595
      %v597 = vrot.slane %v512, 2
      %v598 = vsel %vm585, %v595, %v597
      %v599 = vrot.slane %v513, 2
      %v600 = vsel %vm585, %v597, %v599
      %v601 = vrot.slane %v514, 2
      %v602 = vsel %vm585, %v599, %v601
      %v603 = vrot.slane %v515, 2
      %v604 = vsel %vm585, %v601, %v603
      %v605 = vrot.slane %v516, 2
      %v606 = vsel %vm585, %v603, %v605
      %607 = vrot.lane.b32.xlu0 %v588, 64
      %v608 = vpop.permute.xlu0 %607
      %609 = vrot.lane.b32.xlu0 %v590, 64
      %v610 = vpop.permute.xlu0 %609
      %611 = vrot.lane.b32.xlu0 %v592, 64
      %v612 = vpop.permute.xlu0 %611
      %613 = vrot.lane.b32.xlu0 %v594, 64
      %v614 = vpop.permute.xlu0 %613
      %615 = vrot.lane.b32.xlu0 %v596, 64
      %v616 = vpop.permute.xlu0 %615
      %617 = vrot.lane.b32.xlu0 %v598, 64
      %v618 = vpop.permute.xlu0 %617
      %619 = vrot.lane.b32.xlu0 %v600, 64
      %v620 = vpop.permute.xlu0 %619
      %621 = vrot.lane.b32.xlu0 %v602, 64
      %v622 = vpop.permute.xlu0 %621
      %623 = vrot.lane.b32.xlu0 %v604, 64
      %v624 = vpop.permute.xlu0 %623
      %625 = vrot.lane.b32.xlu0 %v606, 64
      %v626 = vpop.permute.xlu0 %625
      %627 = vrot.lane.b32.xlu0 %v605, 64
      %v628 = vpop.permute.xlu0 %627
      %v641 = vrot.slane %v517, 2
      %v642 = vsel %vm585, %v605, %v641
      %643 = vrot.lane.b32.xlu0 %v590, 96
      %v644 = vpop.permute.xlu0 %643
      %645 = vrot.lane.b32.xlu0 %v592, 96
      %v646 = vpop.permute.xlu0 %645
      %647 = vrot.lane.b32.xlu0 %v594, 96
      %v648 = vpop.permute.xlu0 %647
      %649 = vrot.lane.b32.xlu0 %v596, 96
      %v650 = vpop.permute.xlu0 %649
      %651 = vrot.lane.b32.xlu0 %v598, 96
      %v652 = vpop.permute.xlu0 %651
      %653 = vrot.lane.b32.xlu0 %v600, 96
      %v654 = vpop.permute.xlu0 %653
      %655 = vrot.lane.b32.xlu0 %v602, 96
      %v656 = vpop.permute.xlu0 %655
      %657 = vrot.lane.b32.xlu0 %v604, 96
      %v658 = vpop.permute.xlu0 %657
      %659 = vrot.lane.b32.xlu0 %v606, 96
      %v660 = vpop.permute.xlu0 %659
      %661 = vrot.lane.b32.xlu0 %v642, 96
      %v662 = vpop.permute.xlu0 %661
      %663 = vrot.lane.b32.xlu0 %v641, 96
      %v664 = vpop.permute.xlu0 %663
      %vm676 = vcmask 1044480
      %v677 = vrot.slane %v507, 3
      %v678 = vrot.slane %v508, 3
      %v679 = vsel %vm676, %v677, %v678
      %v680 = vrot.slane %v509, 3
      %v681 = vsel %vm676, %v678, %v680
      %v682 = vrot.slane %v510, 3
      %v683 = vsel %vm676, %v680, %v682
      %v684 = vrot.slane %v511, 3
      %v685 = vsel %vm676, %v682, %v684
      %v686 = vrot.slane %v512, 3
      %v687 = vsel %vm676, %v684, %v686
      %v688 = vrot.slane %v513, 3
      %v689 = vsel %vm676, %v686, %v688
      %v690 = vrot.slane %v514, 3
      %v691 = vsel %vm676, %v688, %v690
      %v692 = vrot.slane %v515, 3
      %v693 = vsel %vm676, %v690, %v692
      %v694 = vrot.slane %v516, 3
      %v695 = vsel %vm676, %v692, %v694
      %v696 = vrot.slane %v517, 3
      %v697 = vsel %vm676, %v694, %v696
      %vm709 = vcmask 1043456
      %v710 = vrot.slane %v507, 4
      %v711 = vrot.slane %v508, 4
      %v712 = vsel %vm709, %v710, %v711
      %v713 = vrot.slane %v509, 4
      %v714 = vsel %vm709, %v711, %v713
      %v715 = vrot.slane %v510, 4
      %v716 = vsel %vm709, %v713, %v715
      %v717 = vrot.slane %v511, 4
      %v718 = vsel %vm709, %v715, %v717
      %v719 = vrot.slane %v512, 4
      %v720 = vsel %vm709, %v717, %v719
      %v721 = vrot.slane %v513, 4
      %v722 = vsel %vm709, %v719, %v721
      %v723 = vrot.slane %v514, 4
      %v724 = vsel %vm709, %v721, %v723
      %v725 = vrot.slane %v515, 4
      %v726 = vsel %vm709, %v723, %v725
      %v727 = vrot.slane %v516, 4
      %v728 = vsel %vm709, %v725, %v727
      %v729 = vrot.slane %v517, 4
      %v730 = vsel %vm709, %v727, %v729
      %731 = vrot.lane.b32.xlu0 %v712, 32
      %v732 = vpop.permute.xlu0 %731
      %733 = vrot.lane.b32.xlu0 %v714, 32
      %v734 = vpop.permute.xlu0 %733
      %735 = vrot.lane.b32.xlu0 %v716, 32
      %v736 = vpop.permute.xlu0 %735
      %737 = vrot.lane.b32.xlu0 %v718, 32
      %v738 = vpop.permute.xlu0 %737
      %739 = vrot.lane.b32.xlu0 %v720, 32
      %v740 = vpop.permute.xlu0 %739
      %741 = vrot.lane.b32.xlu0 %v722, 32
      %v742 = vpop.permute.xlu0 %741
      %743 = vrot.lane.b32.xlu0 %v724, 32
      %v744 = vpop.permute.xlu0 %743
      %745 = vrot.lane.b32.xlu0 %v726, 32
      %v746 = vpop.permute.xlu0 %745
      %747 = vrot.lane.b32.xlu0 %v728, 32
      %v748 = vpop.permute.xlu0 %747
      %749 = vrot.lane.b32.xlu0 %v730, 32
      %v750 = vpop.permute.xlu0 %749
      %751 = vrot.lane.b32.xlu0 %v729, 32
      %v752 = vpop.permute.xlu0 %751
      %v765 = vrot.slane %v518, 4
      %v766 = vsel %vm709, %v729, %v765
      %767 = vrot.lane.b32.xlu0 %v714, 64
      %v768 = vpop.permute.xlu0 %767
      %769 = vrot.lane.b32.xlu0 %v716, 64
      %v770 = vpop.permute.xlu0 %769
      %771 = vrot.lane.b32.xlu0 %v718, 64
      %v772 = vpop.permute.xlu0 %771
      %773 = vrot.lane.b32.xlu0 %v720, 64
      %v774 = vpop.permute.xlu0 %773
      %775 = vrot.lane.b32.xlu0 %v722, 64
      %v776 = vpop.permute.xlu0 %775
      %777 = vrot.lane.b32.xlu0 %v724, 64
      %v778 = vpop.permute.xlu0 %777
      %779 = vrot.lane.b32.xlu0 %v726, 64
      %v780 = vpop.permute.xlu0 %779
      %781 = vrot.lane.b32.xlu0 %v728, 64
      %v782 = vpop.permute.xlu0 %781
      %783 = vrot.lane.b32.xlu0 %v730, 64
      %v784 = vpop.permute.xlu0 %783
      %785 = vrot.lane.b32.xlu0 %v766, 64
      %v786 = vpop.permute.xlu0 %785
      %787 = vrot.lane.b32.xlu0 %v765, 64
      %v788 = vpop.permute.xlu0 %787
      %vm800 = vcmask 1042432
      %v801 = vrot.slane %v508, 5
      %v802 = vrot.slane %v509, 5
      %v803 = vsel %vm800, %v801, %v802
      %v804 = vrot.slane %v510, 5
      %v805 = vsel %vm800, %v802, %v804
      %v806 = vrot.slane %v511, 5
      %v807 = vsel %vm800, %v804, %v806
      %v808 = vrot.slane %v512, 5
      %v809 = vsel %vm800, %v806, %v808
      %v810 = vrot.slane %v513, 5
      %v811 = vsel %vm800, %v808, %v810
      %v812 = vrot.slane %v514, 5
      %v813 = vsel %vm800, %v810, %v812
      %v814 = vrot.slane %v515, 5
      %v815 = vsel %vm800, %v812, %v814
      %v816 = vrot.slane %v516, 5
      %v817 = vsel %vm800, %v814, %v816
      %v818 = vrot.slane %v517, 5
      %v819 = vsel %vm800, %v816, %v818
      %v820 = vrot.slane %v518, 5
      %v821 = vsel %vm800, %v818, %v820
      %822 = vrot.lane.b32.xlu0 %v803, 96
      %v823 = vpop.permute.xlu0 %822
      %824 = vrot.lane.b32.xlu0 %v805, 96
      %v825 = vpop.permute.xlu0 %824
      %826 = vrot.lane.b32.xlu0 %v807, 96
      %v827 = vpop.permute.xlu0 %826
      %828 = vrot.lane.b32.xlu0 %v809, 96
      %v829 = vpop.permute.xlu0 %828
      %830 = vrot.lane.b32.xlu0 %v811, 96
      %v831 = vpop.permute.xlu0 %830
      %832 = vrot.lane.b32.xlu0 %v813, 96
      %v833 = vpop.permute.xlu0 %832
      %834 = vrot.lane.b32.xlu0 %v815, 96
      %v835 = vpop.permute.xlu0 %834
      %836 = vrot.lane.b32.xlu0 %v817, 96
      %v837 = vpop.permute.xlu0 %836
      %838 = vrot.lane.b32.xlu0 %v819, 96
      %v839 = vpop.permute.xlu0 %838
      %840 = vrot.lane.b32.xlu0 %v821, 96
      %v841 = vpop.permute.xlu0 %840
      %842 = vrot.lane.b32.xlu0 %v820, 96
      %v843 = vpop.permute.xlu0 %842
      %vm855 = vcmask 1041408
      %v856 = vrot.slane %v508, 6
      %v857 = vrot.slane %v509, 6
      %v858 = vsel %vm855, %v856, %v857
      %v859 = vrot.slane %v510, 6
      %v860 = vsel %vm855, %v857, %v859
      %v861 = vrot.slane %v511, 6
      %v862 = vsel %vm855, %v859, %v861
      %v863 = vrot.slane %v512, 6
      %v864 = vsel %vm855, %v861, %v863
      %v865 = vrot.slane %v513, 6
      %v866 = vsel %vm855, %v863, %v865
      %v867 = vrot.slane %v514, 6
      %v868 = vsel %vm855, %v865, %v867
      %v869 = vrot.slane %v515, 6
      %v870 = vsel %vm855, %v867, %v869
      %v871 = vrot.slane %v516, 6
      %v872 = vsel %vm855, %v869, %v871
      %v873 = vrot.slane %v517, 6
      %v874 = vsel %vm855, %v871, %v873
      %v875 = vrot.slane %v518, 6
      %v876 = vsel %vm855, %v873, %v875
      %vm888 = vcmask 261120
      %v889 = vsel %vm888, %v506, %v553
      %v890 = vsel %vm888, %v507, %v555
      %v891 = vsel %vm888, %v508, %v557
      %v892 = vsel %vm888, %v509, %v559
      %v893 = vsel %vm888, %v510, %v561
      %v894 = vsel %vm888, %v511, %v563
      %v895 = vsel %vm888, %v512, %v565
      %v896 = vsel %vm888, %v513, %v567
      %v897 = vsel %vm888, %v514, %v569
      %v898 = vsel %vm888, %v515, %v571
      %v899 = vsel %vm888, %v516, %v573
      %vm900 = vcmask 523264
      %v901 = vsel %vm900, %v889, %v608
      %v902 = vsel %vm900, %v890, %v610
      %v903 = vsel %vm900, %v891, %v612
      %v904 = vsel %vm900, %v892, %v614
      %v905 = vsel %vm900, %v893, %v616
      %v906 = vsel %vm900, %v894, %v618
      %v907 = vsel %vm900, %v895, %v620
      %v908 = vsel %vm900, %v896, %v622
      %v909 = vsel %vm900, %v897, %v624
      %v910 = vsel %vm900, %v898, %v626
      %v911 = vsel %vm900, %v899, %v628
      %vm912 = vcmask 785408
      %v913 = vsel %vm912, %v901, %v644
      %v914 = vsel %vm912, %v902, %v646
      %v915 = vsel %vm912, %v903, %v648
      %v916 = vsel %vm912, %v904, %v650
      %v917 = vsel %vm912, %v905, %v652
      %v918 = vsel %vm912, %v906, %v654
      %v919 = vsel %vm912, %v907, %v656
      %v920 = vsel %vm912, %v908, %v658
      %v921 = vsel %vm912, %v909, %v660
      %v922 = vsel %vm912, %v910, %v662
      %v923 = vsel %vm912, %v911, %v664
      %v924 = vsel %vm888, %v679, %v732
      %v925 = vsel %vm888, %v681, %v734
      %v926 = vsel %vm888, %v683, %v736
      %v927 = vsel %vm888, %v685, %v738
      %v928 = vsel %vm888, %v687, %v740
      %v929 = vsel %vm888, %v689, %v742
      %v930 = vsel %vm888, %v691, %v744
      %v931 = vsel %vm888, %v693, %v746
      %v932 = vsel %vm888, %v695, %v748
      %v933 = vsel %vm888, %v697, %v750
      %v934 = vsel %vm888, %v696, %v752
      %v935 = vsel %vm900, %v924, %v768
      %v936 = vsel %vm900, %v925, %v770
      %v937 = vsel %vm900, %v926, %v772
      %v938 = vsel %vm900, %v927, %v774
      %v939 = vsel %vm900, %v928, %v776
      %v940 = vsel %vm900, %v929, %v778
      %v941 = vsel %vm900, %v930, %v780
      %v942 = vsel %vm900, %v931, %v782
      %v943 = vsel %vm900, %v932, %v784
      %v944 = vsel %vm900, %v933, %v786
      %v945 = vsel %vm900, %v934, %v788
      %v946 = vsel %vm912, %v935, %v823
      %v947 = vsel %vm912, %v936, %v825
      %v948 = vsel %vm912, %v937, %v827
      %v949 = vsel %vm912, %v938, %v829
      %v950 = vsel %vm912, %v939, %v831
      %v951 = vsel %vm912, %v940, %v833
      %v952 = vsel %vm912, %v941, %v835
      %v953 = vsel %vm912, %v942, %v837
      %v954 = vsel %vm912, %v943, %v839
      %v955 = vsel %vm912, %v944, %v841
      %v956 = vsel %vm912, %v945, %v843
      %v957 = vpack.c.bf16 %v914, %v913
      %v958 = vpack.c.bf16 %v947, %v946
      %v959 = vpack.c.bf16 %v860, %v858
      %v960 = vpack.c.bf16 %v916, %v915
      %v961 = vpack.c.bf16 %v949, %v948
      %v962 = vpack.c.bf16 %v864, %v862
      %v963 = vpack.c.bf16 %v918, %v917
      %v964 = vpack.c.bf16 %v951, %v950
      %v965 = vpack.c.bf16 %v868, %v866
      %v966 = vpack.c.bf16 %v920, %v919
      %v967 = vpack.c.bf16 %v953, %v952
      %v968 = vpack.c.bf16 %v872, %v870
      %v969 = vpack.c.bf16 %v922, %v921
      %v970 = vpack.c.bf16 %v955, %v954
      %v971 = vpack.c.bf16 %v876, %v874
      %v972 = vpack.c.bf16 %v923, %v923
      %v973 = vpack.c.bf16 %v956, %v956
      %v974 = vpack.c.bf16 %v875, %v875
      %v975 = vld [vmem:[%s3] sm:$0xf]
      %v976 = vld [vmem:[%s3 + $0x4] sm:$0xf]
      %v977 = vld [vmem:[%s3 + $0x8] sm:$0xf]
      %v978 = vld [vmem:[%s3 + $0xc] sm:$0xf]
      %v979 = vld [vmem:[%s3 + $0x10] sm:$0xf]
      %v980 = vld [vmem:[%s3 + $0x14] sm:$0xf]
      %v981 = vld [vmem:[%s3 + $0x18] sm:$0xf]
      %v982 = vld [vmem:[%s3 + $0x1c] sm:$0xf]
      %v983 = vld [vmem:[%s3 + $0x20] sm:$0xf]
      %v984 = vld [vmem:[%s3 + $0x24] sm:$0xf]
      %v985 = vld [vmem:[%s3 + $0x28] sm:$0xf]
      %v986 = vld [vmem:[%s3 + $0x2c] sm:$0xf]
      %v987 = vld [vmem:[%s3 + $0x30] sm:$0xf]
      %v988 = vld [vmem:[%s3 + $0x34] sm:$0xf]
      %v989 = vld [vmem:[%s3 + $0x38] sm:$0xf]
      %v990 = vld [vmem:[%s3 + $0x3c] sm:$0xf]
      %v991 = vld [vmem:[%s3 + $0x40] sm:$0xf]
      %v992 = vld [vmem:[%s3 + $0x44] sm:$0xf]
      %v993 = vld [vmem:[%s3 + $0x48] sm:$0xf]
      %v994 = vld [vmem:[%s3 + $0x4c] sm:$0xf]
      %v995 = vld [vmem:[%s3 + $0x50] sm:$0xf]
      %v996 = vld [vmem:[%s3 + $0x54] sm:$0xf]
      %v997 = vld [vmem:[%s3 + $0x58] sm:$0xf]
      %v998 = vld [vmem:[%s3 + $0x5c] sm:$0xf]
      %v999 = vld [vmem:[%s3 + $0x60] sm:$0xf]
      %v1000 = vld [vmem:[%s3 + $0x64] sm:$0xf]
      %v1001 = vld [vmem:[%s3 + $0x68] sm:$0xf]
      %v1002 = vld [vmem:[%s3 + $0x6c] sm:$0xf]
      %v1003 = vld [vmem:[%s3 + $0x70] sm:$0xf]
      %v1004 = vld [vmem:[%s3 + $0x74] sm:$0xf]
      %v1005 = vld [vmem:[%s3 + $0x78] sm:$0xf]
      %v1006 = vld [vmem:[%s3 + $0x7c] sm:$0xf]
      %v1007 = vld [vmem:[%s3 + $0x80] sm:$0xf]
      %v1008 = vld [vmem:[%s3 + $0x84] sm:$0xf]
      %v1009 = vld [vmem:[%s3 + $0x88] sm:$0xf]
      %v1010 = vld [vmem:[%s3 + $0x8c] sm:$0xf]
      %v1011 = vld [vmem:[%s4] sm:$0x1]
      %v1013 = vlaneseq
      %v1014 = vshrl.u32 %v1013, 7
      %v1015 = vsub.s32 0, %v1014
      %v1016 = vrot.slane %v1011, %v1015
      %vm1018 = vsmask.f32 7424
      %v1020 = vshrl.u32 %v957, 16
      %v1022 = vshll.u32 %v957, 16
      %v1024 = vrot.slane %v1022, 1
      %v1025 = vor.u32 %v1020, %v1024
      %v1027 = vshll.u32 %v960, 16
      %v1029 = vrot.slane %v1027, 1
      %v1030 = vsel %vm1018, %v1025, %v1029
      %v1032 = vshrl.u32 %v958, 16
      %v1034 = vshll.u32 %v958, 16
      %v1036 = vrot.slane %v1034, 1
      %v1037 = vor.u32 %v1032, %v1036
      %v1039 = vshll.u32 %v961, 16
      %v1041 = vrot.slane %v1039, 1
      %v1042 = vsel %vm1018, %v1037, %v1041
      %v1044 = vshrl.u32 %v959, 16
      %v1046 = vshll.u32 %v959, 16
      %v1048 = vrot.slane %v1046, 1
      %v1049 = vor.u32 %v1044, %v1048
      %v1051 = vshll.u32 %v962, 16
      %v1053 = vrot.slane %v1051, 1
      %v1054 = vsel %vm1018, %v1049, %v1053
      %v1055 = vshrl.u32 %v960, 16
      %v1057 = vor.u32 %v1055, %v1029
      %v1059 = vshll.u32 %v963, 16
      %v1061 = vrot.slane %v1059, 1
      %v1062 = vsel %vm1018, %v1057, %v1061
      %v1063 = vshrl.u32 %v961, 16
      %v1065 = vor.u32 %v1063, %v1041
      %v1067 = vshll.u32 %v964, 16
      %v1069 = vrot.slane %v1067, 1
      %v1070 = vsel %vm1018, %v1065, %v1069
      %v1071 = vshrl.u32 %v962, 16
      %v1073 = vor.u32 %v1071, %v1053
      %v1075 = vshll.u32 %v965, 16
      %v1077 = vrot.slane %v1075, 1
      %v1078 = vsel %vm1018, %v1073, %v1077
      %v1079 = vshrl.u32 %v963, 16
      %v1081 = vor.u32 %v1079, %v1061
      %v1083 = vshll.u32 %v966, 16
      %v1085 = vrot.slane %v1083, 1
      %v1086 = vsel %vm1018, %v1081, %v1085
      %v1087 = vshrl.u32 %v964, 16
      %v1089 = vor.u32 %v1087, %v1069
      %v1091 = vshll.u32 %v967, 16
      %v1093 = vrot.slane %v1091, 1
      %v1094 = vsel %vm1018, %v1089, %v1093
      %v1095 = vshrl.u32 %v965, 16
      %v1097 = vor.u32 %v1095, %v1077
      %v1099 = vshll.u32 %v968, 16
      %v1101 = vrot.slane %v1099, 1
      %v1102 = vsel %vm1018, %v1097, %v1101
      %v1103 = vshrl.u32 %v966, 16
      %v1105 = vor.u32 %v1103, %v1085
      %v1107 = vshll.u32 %v969, 16
      %v1109 = vrot.slane %v1107, 1
      %v1110 = vsel %vm1018, %v1105, %v1109
      %v1111 = vshrl.u32 %v967, 16
      %v1113 = vor.u32 %v1111, %v1093
      %v1115 = vshll.u32 %v970, 16
      %v1117 = vrot.slane %v1115, 1
      %v1118 = vsel %vm1018, %v1113, %v1117
      %v1119 = vshrl.u32 %v968, 16
      %v1121 = vor.u32 %v1119, %v1101
      %v1123 = vshll.u32 %v971, 16
      %v1125 = vrot.slane %v1123, 1
      %v1126 = vsel %vm1018, %v1121, %v1125
      %v1127 = vshrl.u32 %v969, 16
      %v1129 = vor.u32 %v1127, %v1109
      %v1131 = vshll.u32 %v972, 16
      %v1133 = vrot.slane %v1131, 1
      %v1134 = vsel %vm1018, %v1129, %v1133
      %v1135 = vshrl.u32 %v970, 16
      %v1137 = vor.u32 %v1135, %v1117
      %v1139 = vshll.u32 %v973, 16
      %v1141 = vrot.slane %v1139, 1
      %v1142 = vsel %vm1018, %v1137, %v1141
      %v1143 = vshrl.u32 %v971, 16
      %v1145 = vor.u32 %v1143, %v1125
      %v1147 = vshll.u32 %v974, 16
      %v1149 = vrot.slane %v1147, 1
      %v1150 = vsel %vm1018, %v1145, %v1149
      %v1197 = vunpack.c.l.b16 %v975
      %v1198 = vunpack.c.l.b16 %v976
      %v1199 = vunpack.c.l.b16 %v977
      %v1200 = vunpack.c.l.b16 %v978
      %v1201 = vunpack.c.l.b16 %v979
      %v1202 = vunpack.c.l.b16 %v980
      %v1203 = vunpack.c.l.b16 %v981
      %v1204 = vunpack.c.l.b16 %v982
      %v1205 = vunpack.c.l.b16 %v983
      %v1206 = vunpack.c.l.b16 %v984
      %v1207 = vunpack.c.l.b16 %v985
      %v1208 = vunpack.c.l.b16 %v986
      %v1209 = vunpack.c.l.b16 %v987
      %v1210 = vunpack.c.l.b16 %v988
      %v1211 = vunpack.c.l.b16 %v989
      %v1212 = vunpack.c.l.b16 %v990
      %v1213 = vunpack.c.l.b16 %v991
      %v1214 = vunpack.c.l.b16 %v992
      %v1215 = vunpack.c.l.b16 %v993
      %v1216 = vunpack.c.l.b16 %v994
      %v1217 = vunpack.c.l.b16 %v995
      %v1218 = vunpack.c.l.b16 %v996
      %v1219 = vunpack.c.l.b16 %v997
      %v1220 = vunpack.c.l.b16 %v998
      %v1221 = vunpack.c.l.b16 %v999
      %v1222 = vunpack.c.l.b16 %v1000
      %v1223 = vunpack.c.l.b16 %v1001
      %v1224 = vunpack.c.l.b16 %v1002
      %v1225 = vunpack.c.l.b16 %v1003
      %v1226 = vunpack.c.l.b16 %v1004
      %v1227 = vunpack.c.l.b16 %v1005
      %v1228 = vunpack.c.l.b16 %v1006
      %v1229 = vunpack.c.l.b16 %v1007
      %v1230 = vunpack.c.l.b16 %v1008
      %v1231 = vunpack.c.l.b16 %v1009
      %v1232 = vunpack.c.l.b16 %v1010
      %v1233 = vpack.c.b16 %v1198, %v1197
      %v1234 = vpack.c.b16 %v1200, %v1199
      %v1235 = vpack.c.b16 %v1202, %v1201
      %v1236 = vpack.c.b16 %v1204, %v1203
      %v1237 = vpack.c.b16 %v1206, %v1205
      %v1238 = vpack.c.b16 %v1208, %v1207
      %v1239 = vpack.c.b16 %v1210, %v1209
      %v1240 = vpack.c.b16 %v1212, %v1211
      %v1241 = vpack.c.b16 %v1214, %v1213
      %v1242 = vpack.c.b16 %v1216, %v1215
      %v1243 = vpack.c.b16 %v1218, %v1217
      %v1244 = vpack.c.b16 %v1220, %v1219
      %v1245 = vpack.c.b16 %v1222, %v1221
      %v1246 = vpack.c.b16 %v1224, %v1223
      %v1247 = vpack.c.b16 %v1226, %v1225
      %v1248 = vpack.c.b16 %v1228, %v1227
      %v1249 = vpack.c.b16 %v1230, %v1229
      %v1250 = vpack.c.b16 %v1232, %v1231
      %v1270 = vsel %vm888, %v1054, 0
      %v1273 = vsel %vm888, %v1078, 0
      %v1276 = vsel %vm888, %v1102, 0
      %v1279 = vsel %vm888, %v1126, 0
      %v1282 = vsel %vm888, %v1150, 0
      %1284 = vmatprep.subr.bf16.mxu0 0
      %1285 = vmatpush1.bf16.msra.mxu0 %v1233
      %1286 = vmatprep.subr.bf16.mxu0 0
      %1287 = vmatpush1.bf16.msra.mxu0 %v1234
      %1288 = vmatprep.subr.bf16.mxu0 0
      %1289 = vmatpush1.bf16.msra.mxu0 %v1235
      %1290 = vmatprep.subr.bf16.mxu0 0
      %1291 = vmatpush1.bf16.msra.mxu0 %v1236
      %1292 = vmatprep.subr.bf16.mxu0 0
      %1293 = vmatpush1.bf16.msra.mxu0 %v1237
      %1294 = vmatprep.subr.bf16.mxu0 0
      %1295 = vmatpush1.bf16.msra.mxu0 %v1238
      %1296 = vmatprep.subr.bf16.mxu0 0
      %1297 = vmatpush1.bf16.msra.mxu0 %v1239
      %1298 = vmatprep.subr.bf16.mxu0 0
      %1299 = vmatpush1.bf16.msra.mxu0 %v1240
      %1300 = vmatprep.subr.bf16.mxu0 0
      %1301 = vmatpush1.bf16.msra.mxu0 %v1241
      %1302 = vmatprep.subr.bf16.mxu0 0
      %1303 = vmatpush1.bf16.msra.mxu0 %v1242
      %1304 = vmatprep.subr.bf16.mxu0 0
      %1305 = vmatpush1.bf16.msra.mxu0 %v1243
      %1306 = vmatprep.subr.bf16.mxu0 0
      %1307 = vmatpush1.bf16.msra.mxu0 %v1244
      %1308 = vmatprep.subr.bf16.mxu0 0
      %1309 = vmatpush1.bf16.msra.mxu0 %v1245
      %1310 = vmatprep.subr.bf16.mxu0 0
      %1311 = vmatpush1.bf16.msra.mxu0 %v1246
      %1312 = vmatprep.subr.bf16.mxu0 0
      %1313 = vmatpush1.bf16.msra.mxu0 %v1247
      %1314 = vmatprep.subr.bf16.mxu0 0
      %1315 = vmatpush1.bf16.msra.mxu0 %v1248
      %1316 = vmatprep.mubr.bf16.mxu0 %v1042
      %1317 = vmatmul.mubr.bf16.gmra.mrb[0].mxu0 %v1030
      %v1318 = vpop.f32.mrb[0].mxu0
      %v1319 = vadd.f32 %v1016, %v1318
      %v1320 = vpop.f32.mrb[0].mxu0
      %v1321 = vpop.f32.mrb[0].mxu0
      %v1322 = vadd.f32 %v1016, %v1321
      %v1323 = vpop.f32.mrb[0].mxu0
      %1324 = vmatprep.mubr.bf16.mxu0 %v1070
      %1325 = vmatmul.mubr.bf16.gmra.mrb[0].mxu0 %v1062
      %v1326 = vpop.f32.mrb[0].mxu0
      %v1327 = vadd.f32 %v1016, %v1326
      %v1328 = vpop.f32.mrb[0].mxu0
      %v1329 = vpop.f32.mrb[0].mxu0
      %v1330 = vadd.f32 %v1016, %v1329
      %v1331 = vpop.f32.mrb[0].mxu0
      %1332 = vmatprep.mubr.bf16.mxu0 %v1094
      %1333 = vmatmul.mubr.bf16.gmra.mrb[0].mxu0 %v1086
      %v1334 = vpop.f32.mrb[0].mxu0
      %v1335 = vadd.f32 %v1016, %v1334
      %v1336 = vpop.f32.mrb[0].mxu0
      %v1337 = vpop.f32.mrb[0].mxu0
      %v1338 = vadd.f32 %v1016, %v1337
      %v1339 = vpop.f32.mrb[0].mxu0
      %1340 = vmatprep.mubr.bf16.mxu0 %v1118
      %1341 = vmatmul.mubr.bf16.gmra.mrb[0].mxu0 %v1110
      %v1342 = vpop.f32.mrb[0].mxu0
      %v1343 = vadd.f32 %v1016, %v1342
      %v1344 = vpop.f32.mrb[0].mxu0
      %v1345 = vpop.f32.mrb[0].mxu0
      %v1346 = vadd.f32 %v1016, %v1345
      %v1347 = vpop.f32.mrb[0].mxu0
      %1348 = vmatprep.mubr.bf16.mxu0 %v1142
      %1349 = vmatmul.mubr.bf16.gmra.mrb[0].mxu0 %v1134
      %v1350 = vpop.f32.mrb[0].mxu0
      %v1351 = vadd.f32 %v1016, %v1350
      %v1352 = vpop.f32.mrb[0].mxu0
      %v1353 = vpop.f32.mrb[0].mxu0
      %v1354 = vadd.f32 %v1016, %v1353
      %v1355 = vpop.f32.mrb[0].mxu0
      %1356 = vdwg.mxu0
      %1357 = vmatprep.subr.bf16.mxu0 0
      %1358 = vmatpush1.bf16.msra.mxu0 %v1249
      %1359 = vmatprep.subr.bf16.mxu0 0
      %1360 = vmatpush1.bf16.msra.mxu0 %v1250
      %1361 = vmatprep.subr.bf16.mxu0 0
      %1362 = vmatpush1.bf16.msra.mxu0 0
      %1363 = vmatprep.subr.bf16.mxu0 0
      %1364 = vmatpush1.bf16.msra.mxu0 0
      %1365 = vmatprep.subr.bf16.mxu0 0
      %1366 = vmatpush1.bf16.msra.mxu0 0
      %1367 = vmatprep.subr.bf16.mxu0 0
      %1368 = vmatpush1.bf16.msra.mxu0 0
      %1369 = vmatprep.subr.bf16.mxu0 0
      %1370 = vmatpush1.bf16.msra.mxu0 0
      %1371 = vmatprep.subr.bf16.mxu0 0
      %1372 = vmatpush1.bf16.msra.mxu0 0
      %1373 = vmatprep.subr.bf16.mxu0 0
      %1374 = vmatpush1.bf16.msra.mxu0 0
      %1375 = vmatprep.subr.bf16.mxu0 0
      %1376 = vmatpush1.bf16.msra.mxu0 0
      %1377 = vmatprep.subr.bf16.mxu0 0
      %1378 = vmatpush1.bf16.msra.mxu0 0
      %1379 = vmatprep.subr.bf16.mxu0 0
      %1380 = vmatpush1.bf16.msra.mxu0 0
      %1381 = vmatprep.subr.bf16.mxu0 0
      %1382 = vmatpush1.bf16.msra.mxu0 0
      %1383 = vmatprep.subr.bf16.mxu0 0
      %1384 = vmatpush1.bf16.msra.mxu0 0
      %1385 = vmatprep.subr.bf16.mxu0 0
      %1386 = vmatpush1.bf16.msra.mxu0 0
      %1387 = vmatprep.subr.bf16.mxu0 0
      %1388 = vmatpush1.bf16.msra.mxu0 0
      %1389 = vmatprep.mubr.bf16.mxu0 0
      %1390 = vmatmul.mubr.bf16.gmra.mrb[0].mxu0 %v1270
      %v1391 = vpop.f32.mrb[0].mxu0
      %v1392 = vadd.f32 %v1319, %v1391
      %v1393 = vpop.f32.mrb[0].mxu0
      %v1394 = vpop.f32.mrb[0].mxu0
      %v1395 = vadd.f32 %v1322, %v1394
      %v1396 = vpop.f32.mrb[0].mxu0
      %1397 = vmatprep.mubr.bf16.mxu0 0
      %1398 = vmatmul.mubr.bf16.gmra.mrb[0].mxu0 %v1273
      %v1399 = vpop.f32.mrb[0].mxu0
      %v1400 = vadd.f32 %v1327, %v1399
      %v1401 = vpop.f32.mrb[0].mxu0
      %v1402 = vpop.f32.mrb[0].mxu0
      %v1403 = vadd.f32 %v1330, %v1402
      %v1404 = vpop.f32.mrb[0].mxu0
      %1405 = vmatprep.mubr.bf16.mxu0 0
      %1406 = vmatmul.mubr.bf16.gmra.mrb[0].mxu0 %v1276
      %v1407 = vpop.f32.mrb[0].mxu0
      %v1408 = vadd.f32 %v1335, %v1407
      %v1409 = vpop.f32.mrb[0].mxu0
      %v1410 = vpop.f32.mrb[0].mxu0
      %v1411 = vadd.f32 %v1338, %v1410
      %v1412 = vpop.f32.mrb[0].mxu0
      %1413 = vmatprep.mubr.bf16.mxu0 0
      %1414 = vmatmul.mubr.bf16.gmra.mrb[0].mxu0 %v1279
      %v1415 = vpop.f32.mrb[0].mxu0
      %v1416 = vadd.f32 %v1343, %v1415
      %v1417 = vpop.f32.mrb[0].mxu0
      %v1418 = vpop.f32.mrb[0].mxu0
      %v1419 = vadd.f32 %v1346, %v1418
      %v1420 = vpop.f32.mrb[0].mxu0
      %1421 = vmatprep.mubr.bf16.mxu0 0
      %1422 = vmatmul.mubr.bf16.gmra.mrb[0].mxu0 %v1282
      %v1423 = vpop.f32.mrb[0].mxu0
      %v1424 = vadd.f32 %v1351, %v1423
      %v1425 = vpop.f32.mrb[0].mxu0
      %v1426 = vpop.f32.mrb[0].mxu0
      %v1427 = vadd.f32 %v1354, %v1426
      %v1428 = vpop.f32.mrb[0].mxu0
      %1429 = vdwg.mxu0
      %v1430 = vld [vmem:[%s493] sm:$0xff]
      %v1431 = vld [vmem:[%s493 + $0x8] sm:$0xff]
      %v1432 = vld [vmem:[%s493 + $0x10] sm:$0xff]
      %v1433 = vld [vmem:[%s493 + $0x18] sm:$0xff]
      %v1434 = vld [vmem:[%s493 + $0x20] sm:$0xff]
      %v1435 = vld [vmem:[%s493 + $0x28] sm:$0xff]
      %v1436 = vld [vmem:[%s493 + $0x30] sm:$0xff]
      %v1437 = vld [vmem:[%s493 + $0x38] sm:$0xff]
      %v1438 = vld [vmem:[%s493 + $0x40] sm:$0xff]
      %v1439 = vld [vmem:[%s493 + $0x48] sm:$0xff]
      %v1440 = vpack.c.bf16 %v1395, %v1392
      %v1441 = vpack.c.bf16 %v1403, %v1400
      %v1442 = vpack.c.bf16 %v1411, %v1408
      %v1443 = vpack.c.bf16 %v1419, %v1416
      %v1444 = vpack.c.bf16 %v1427, %v1424
      %v1445 = vld [vmem:[%s5] sm:$0xf]
      %v1446 = vld [vmem:[%s5 + $0x4] sm:$0xf]
      %v1447 = vld [vmem:[%s5 + $0x8] sm:$0xf]
      %v1448 = vld [vmem:[%s5 + $0xc] sm:$0xf]
      %v1449 = vld [vmem:[%s6] sm:$0x1]
      %v1451 = vlaneseq
      %v1452 = vshrl.u32 %v1451, 7
      %v1453 = vsub.s32 0, %v1452
      %v1454 = vrot.slane %v1449, %v1453
      %v1460 = vunpack.c.l.b16 %v1445
      %v1461 = vunpack.c.l.b16 %v1446
      %v1462 = vunpack.c.l.b16 %v1447
      %v1463 = vunpack.c.l.b16 %v1448
      %v1464 = vpack.c.b16 %v1461, %v1460
      %v1465 = vpack.c.b16 %v1463, %v1462
      %v1469 = vsel %vm888, %v1440, 0
      %v1472 = vsel %vm888, %v1441, 0
      %v1475 = vsel %vm888, %v1442, 0
      %v1478 = vsel %vm888, %v1443, 0
      %v1481 = vsel %vm888, %v1444, 0
      %1483 = vmatprep.subr.bf16.mxu0 0
      %1484 = vmatpush1.bf16.msra.mxu0 %v1464
      %1485 = vmatprep.subr.bf16.mxu0 0
      %1486 = vmatpush1.bf16.msra.mxu0 %v1465
      %1487 = vmatprep.subr.bf16.mxu0 0
      %1488 = vmatpush1.bf16.msra.mxu0 0
      %1489 = vmatprep.subr.bf16.mxu0 0
      %1490 = vmatpush1.bf16.msra.mxu0 0
      %1491 = vmatprep.subr.bf16.mxu0 0
      %1492 = vmatpush1.bf16.msra.mxu0 0
      %1493 = vmatprep.subr.bf16.mxu0 0
      %1494 = vmatpush1.bf16.msra.mxu0 0
      %1495 = vmatprep.subr.bf16.mxu0 0
      %1496 = vmatpush1.bf16.msra.mxu0 0
      %1497 = vmatprep.subr.bf16.mxu0 0
      %1498 = vmatpush1.bf16.msra.mxu0 0
      %1499 = vmatprep.subr.bf16.mxu0 0
      %1500 = vmatpush1.bf16.msra.mxu0 0
      %1501 = vmatprep.subr.bf16.mxu0 0
      %1502 = vmatpush1.bf16.msra.mxu0 0
      %1503 = vmatprep.subr.bf16.mxu0 0
      %1504 = vmatpush1.bf16.msra.mxu0 0
      %1505 = vmatprep.subr.bf16.mxu0 0
      %1506 = vmatpush1.bf16.msra.mxu0 0
      %1507 = vmatprep.subr.bf16.mxu0 0
      %1508 = vmatpush1.bf16.msra.mxu0 0
      %1509 = vmatprep.subr.bf16.mxu0 0
      %1510 = vmatpush1.bf16.msra.mxu0 0
      %1511 = vmatprep.subr.bf16.mxu0 0
      %1512 = vmatpush1.bf16.msra.mxu0 0
      %1513 = vmatprep.subr.bf16.mxu0 0
      %1514 = vmatpush1.bf16.msra.mxu0 0
      %1515 = vmatprep.mubr.bf16.mxu0 0
      %1516 = vmatmul.mubr.bf16.gmra.mrb[0].mxu0 %v1469
      %v1517 = vpop.f32.mrb[0].mxu0
      %v1518 = vadd.f32 %v1454, %v1517
      %v1519 = vpop.f32.mrb[0].mxu0
      %v1520 = vpop.f32.mrb[0].mxu0
      %v1521 = vadd.f32 %v1454, %v1520
      %v1522 = vpop.f32.mrb[0].mxu0
      %1523 = vmatprep.mubr.bf16.mxu0 0
      %1524 = vmatmul.mubr.bf16.gmra.mrb[0].mxu0 %v1472
      %v1525 = vpop.f32.mrb[0].mxu0
      %v1526 = vadd.f32 %v1454, %v1525
      %v1527 = vpop.f32.mrb[0].mxu0
      %v1528 = vpop.f32.mrb[0].mxu0
      %v1529 = vadd.f32 %v1454, %v1528
      %v1530 = vpop.f32.mrb[0].mxu0
      %1531 = vmatprep.mubr.bf16.mxu0 0
      %1532 = vmatmul.mubr.bf16.gmra.mrb[0].mxu0 %v1475
      %v1533 = vpop.f32.mrb[0].mxu0
      %v1534 = vadd.f32 %v1454, %v1533
      %v1535 = vpop.f32.mrb[0].mxu0
      %v1536 = vpop.f32.mrb[0].mxu0
      %v1537 = vadd.f32 %v1454, %v1536
      %v1538 = vpop.f32.mrb[0].mxu0
      %1539 = vmatprep.mubr.bf16.mxu0 0
      %1540 = vmatmul.mubr.bf16.gmra.mrb[0].mxu0 %v1478
      %v1541 = vpop.f32.mrb[0].mxu0
      %v1542 = vadd.f32 %v1454, %v1541
      %v1543 = vpop.f32.mrb[0].mxu0
      %v1544 = vpop.f32.mrb[0].mxu0
      %v1545 = vadd.f32 %v1454, %v1544
      %v1546 = vpop.f32.mrb[0].mxu0
      %1547 = vmatprep.mubr.bf16.mxu0 0
      %1548 = vmatmul.mubr.bf16.gmra.mrb[0].mxu0 %v1481
      %v1549 = vpop.f32.mrb[0].mxu0
      %v1550 = vadd.f32 %v1454, %v1549
      %v1551 = vpop.f32.mrb[0].mxu0
      %v1552 = vpop.f32.mrb[0].mxu0
      %v1553 = vadd.f32 %v1454, %v1552
      %v1554 = vpop.f32.mrb[0].mxu0
      %1555 = vdwg.mxu0
      %v1556 = vmul.f32 %v1518, %v1518
      %v1557 = vmul.f32 %v1521, %v1521
      %v1558 = vmul.f32 %v1526, %v1526
      %v1559 = vmul.f32 %v1529, %v1529
      %v1560 = vmul.f32 %v1534, %v1534
      %v1561 = vmul.f32 %v1537, %v1537
      %v1562 = vmul.f32 %v1542, %v1542
      %v1563 = vmul.f32 %v1545, %v1545
      %v1564 = vmul.f32 %v1550, %v1550
      %v1565 = vmul.f32 %v1553, %v1553
      %v1566 = vmul.f32 %v1518, %v1556
      %v1567 = vmul.f32 %v1521, %v1557
      %v1568 = vmul.f32 %v1526, %v1558
      %v1569 = vmul.f32 %v1529, %v1559
      %v1570 = vmul.f32 %v1534, %v1560
      %v1571 = vmul.f32 %v1537, %v1561
      %v1572 = vmul.f32 %v1542, %v1562
      %v1573 = vmul.f32 %v1545, %v1563
      %v1574 = vmul.f32 %v1550, %v1564
      %v1575 = vmul.f32 %v1553, %v1565
      %v1576 = vmul.f32 %v1566, 0.044715
      %v1577 = vmul.f32 %v1567, 0.044715
      %v1578 = vmul.f32 %v1568, 0.044715
      %v1579 = vmul.f32 %v1569, 0.044715
      %v1580 = vmul.f32 %v1570, 0.044715
      %v1581 = vmul.f32 %v1571, 0.044715
      %v1582 = vmul.f32 %v1572, 0.044715
      %v1583 = vmul.f32 %v1573, 0.044715
      %v1584 = vmul.f32 %v1574, 0.044715
      %v1585 = vmul.f32 %v1575, 0.044715
      %v1586 = vadd.f32 %v1518, %v1576
      %v1587 = vadd.f32 %v1521, %v1577
      %v1588 = vadd.f32 %v1526, %v1578
      %v1589 = vadd.f32 %v1529, %v1579
      %v1590 = vadd.f32 %v1534, %v1580
      %v1591 = vadd.f32 %v1537, %v1581
      %v1592 = vadd.f32 %v1542, %v1582
      %v1593 = vadd.f32 %v1545, %v1583
      %v1594 = vadd.f32 %v1550, %v1584
      %v1595 = vadd.f32 %v1553, %v1585
      %v1596 = vmul.f32 %v1586, 0.7978846
      %v1597 = vmul.f32 %v1587, 0.7978846
      %v1598 = vmul.f32 %v1588, 0.7978846
      %v1599 = vmul.f32 %v1589, 0.7978846
      %v1600 = vmul.f32 %v1590, 0.7978846
      %v1601 = vmul.f32 %v1591, 0.7978846
      %v1602 = vmul.f32 %v1592, 0.7978846
      %v1603 = vmul.f32 %v1593, 0.7978846
      %v1604 = vmul.f32 %v1594, 0.7978846
      %v1605 = vmul.f32 %v1595, 0.7978846
      %v1606 = vtanh.pop %v1596
      %v1607 = vtanh.pop %v1597
      %v1608 = vtanh.pop %v1598
      %v1609 = vtanh.pop %v1599
      %v1610 = vtanh.pop %v1600
      %v1611 = vtanh.pop %v1601
      %v1612 = vtanh.pop %v1602
      %v1613 = vtanh.pop %v1603
      %v1614 = vtanh.pop %v1604
      %v1615 = vtanh.pop %v1605
      %v1616 = vadd.f32 %v1606, 1.0
      %v1617 = vadd.f32 %v1607, 1.0
      %v1618 = vadd.f32 %v1608, 1.0
      %v1619 = vadd.f32 %v1609, 1.0
      %v1620 = vadd.f32 %v1610, 1.0
      %v1621 = vadd.f32 %v1611, 1.0
      %v1622 = vadd.f32 %v1612, 1.0
      %v1623 = vadd.f32 %v1613, 1.0
      %v1624 = vadd.f32 %v1614, 1.0
      %v1625 = vadd.f32 %v1615, 1.0
      %v1626 = vmul.f32 %v1616, 0.5
      %v1627 = vmul.f32 %v1617, 0.5
      %v1628 = vmul.f32 %v1618, 0.5
      %v1629 = vmul.f32 %v1619, 0.5
      %v1630 = vmul.f32 %v1620, 0.5
      %v1631 = vmul.f32 %v1621, 0.5
      %v1632 = vmul.f32 %v1622, 0.5
      %v1633 = vmul.f32 %v1623, 0.5
      %v1634 = vmul.f32 %v1624, 0.5
      %v1635 = vmul.f32 %v1625, 0.5
      %v1636 = vmul.f32 %v1518, %v1626
      %v1637 = vmul.f32 %v1521, %v1627
      %v1638 = vmul.f32 %v1526, %v1628
      %v1639 = vmul.f32 %v1529, %v1629
      %v1640 = vmul.f32 %v1534, %v1630
      %v1641 = vmul.f32 %v1537, %v1631
      %v1642 = vmul.f32 %v1542, %v1632
      %v1643 = vmul.f32 %v1545, %v1633
      %v1644 = vmul.f32 %v1550, %v1634
      %v1645 = vmul.f32 %v1553, %v1635
      %v1646 = vpack.c.bf16 %v1637, %v1636
      %v1647 = vpack.c.bf16 %v1639, %v1638
      %v1648 = vpack.c.bf16 %v1641, %v1640
      %v1649 = vpack.c.bf16 %v1643, %v1642
      %v1650 = vpack.c.bf16 %v1645, %v1644
      %v1651 = vld [vmem:[%s7] sm:$0xf]
      %v1652 = vld [vmem:[%s7 + $0x4] sm:$0xf]
      %v1653 = vld [vmem:[%s7 + $0x8] sm:$0xf]
      %v1654 = vld [vmem:[%s7 + $0xc] sm:$0xf]
      %v1655 = vld [vmem:[%s7 + $0x10] sm:$0xf]
      %v1656 = vld [vmem:[%s7 + $0x14] sm:$0xf]
      %v1657 = vld [vmem:[%s7 + $0x18] sm:$0xf]
      %v1658 = vld [vmem:[%s7 + $0x1c] sm:$0xf]
      %v1659 = vld [vmem:[%s8] sm:$0x1]
      %v1661 = vlaneseq
      %v1662 = vshrl.u32 %v1661, 7
      %v1663 = vsub.s32 0, %v1662
      %v1664 = vrot.slane %v1659, %v1663
      %v1674 = vunpack.c.l.b16 %v1651
      %v1675 = vunpack.c.l.b16 %v1652
      %v1676 = vunpack.c.l.b16 %v1653
      %v1677 = vunpack.c.l.b16 %v1654
      %v1678 = vunpack.c.l.b16 %v1655
      %v1679 = vunpack.c.l.b16 %v1656
      %v1680 = vunpack.c.l.b16 %v1657
      %v1681 = vunpack.c.l.b16 %v1658
      %v1682 = vpack.c.b16 %v1675, %v1674
      %v1683 = vpack.c.b16 %v1677, %v1676
      %v1684 = vpack.c.b16 %v1679, %v1678
      %v1685 = vpack.c.b16 %v1681, %v1680
      %v1691 = vsel %vm900, %v1646, 0
      %v1694 = vsel %vm900, %v1647, 0
      %v1697 = vsel %vm900, %v1648, 0
      %v1700 = vsel %vm900, %v1649, 0
      %v1703 = vsel %vm900, %v1650, 0
      %1705 = vmatprep.subr.bf16.mxu0 0
      %1706 = vmatpush1.bf16.msra.mxu0 %v1682
      %1707 = vmatprep.subr.bf16.mxu0 0
      %1708 = vmatpush1.bf16.msra.mxu0 %v1683
      %1709 = vmatprep.subr.bf16.mxu0 0
      %1710 = vmatpush1.bf16.msra.mxu0 %v1684
      %1711 = vmatprep.subr.bf16.mxu0 0
      %1712 = vmatpush1.bf16.msra.mxu0 %v1685
      %1713 = vmatprep.subr.bf16.mxu0 0
      %1714 = vmatpush1.bf16.msra.mxu0 0
      %1715 = vmatprep.subr.bf16.mxu0 0
      %1716 = vmatpush1.bf16.msra.mxu0 0
      %1717 = vmatprep.subr.bf16.mxu0 0
      %1718 = vmatpush1.bf16.msra.mxu0 0
      %1719 = vmatprep.subr.bf16.mxu0 0
      %1720 = vmatpush1.bf16.msra.mxu0 0
      %1721 = vmatprep.subr.bf16.mxu0 0
      %1722 = vmatpush1.bf16.msra.mxu0 0
      %1723 = vmatprep.subr.bf16.mxu0 0
      %1724 = vmatpush1.bf16.msra.mxu0 0
      %1725 = vmatprep.subr.bf16.mxu0 0
      %1726 = vmatpush1.bf16.msra.mxu0 0
      %1727 = vmatprep.subr.bf16.mxu0 0
      %1728 = vmatpush1.bf16.msra.mxu0 0
      %1729 = vmatprep.subr.bf16.mxu0 0
      %1730 = vmatpush1.bf16.msra.mxu0 0
      %1731 = vmatprep.subr.bf16.mxu0 0
      %1732 = vmatpush1.bf16.msra.mxu0 0
      %1733 = vmatprep.subr.bf16.mxu0 0
      %1734 = vmatpush1.bf16.msra.mxu0 0
      %1735 = vmatprep.subr.bf16.mxu0 0
      %1736 = vmatpush1.bf16.msra.mxu0 0
      %1737 = vmatprep.mubr.bf16.mxu0 0
      %1738 = vmatmul.mubr.bf16.gmra.mrb[0].mxu0 %v1691
      %v1739 = vpop.f32.mrb[0].mxu0
      %v1740 = vadd.f32 %v1664, %v1739
      %v1741 = vpop.f32.mrb[0].mxu0
      %v1742 = vpop.f32.mrb[0].mxu0
      %v1743 = vadd.f32 %v1664, %v1742
      %v1744 = vpop.f32.mrb[0].mxu0
      %1745 = vmatprep.mubr.bf16.mxu0 0
      %1746 = vmatmul.mubr.bf16.gmra.mrb[0].mxu0 %v1694
      %v1747 = vpop.f32.mrb[0].mxu0
      %v1748 = vadd.f32 %v1664, %v1747
      %v1749 = vpop.f32.mrb[0].mxu0
      %v1750 = vpop.f32.mrb[0].mxu0
      %v1751 = vadd.f32 %v1664, %v1750
      %v1752 = vpop.f32.mrb[0].mxu0
      %1753 = vmatprep.mubr.bf16.mxu0 0
      %1754 = vmatmul.mubr.bf16.gmra.mrb[0].mxu0 %v1697
      %v1755 = vpop.f32.mrb[0].mxu0
      %v1756 = vadd.f32 %v1664, %v1755
      %v1757 = vpop.f32.mrb[0].mxu0
      %v1758 = vpop.f32.mrb[0].mxu0
      %v1759 = vadd.f32 %v1664, %v1758
      %v1760 = vpop.f32.mrb[0].mxu0
      %1761 = vmatprep.mubr.bf16.mxu0 0
      %1762 = vmatmul.mubr.bf16.gmra.mrb[0].mxu0 %v1700
      %v1763 = vpop.f32.mrb[0].mxu0
      %v1764 = vadd.f32 %v1664, %v1763
      %v1765 = vpop.f32.mrb[0].mxu0
      %v1766 = vpop.f32.mrb[0].mxu0
      %v1767 = vadd.f32 %v1664, %v1766
      %v1768 = vpop.f32.mrb[0].mxu0
      %1769 = vmatprep.mubr.bf16.mxu0 0
      %1770 = vmatmul.mubr.bf16.gmra.mrb[0].mxu0 %v1703
      %v1771 = vpop.f32.mrb[0].mxu0
      %v1772 = vadd.f32 %v1664, %v1771
      %v1773 = vpop.f32.mrb[0].mxu0
      %v1774 = vpop.f32.mrb[0].mxu0
      %v1775 = vadd.f32 %v1664, %v1774
      %v1776 = vpop.f32.mrb[0].mxu0
      %1777 = vdwg.mxu0
      %v1778 = vxor.u32 %v1740, 2147483648
      %v1779 = vxor.u32 %v1743, 2147483648
      %v1780 = vxor.u32 %v1748, 2147483648
      %v1781 = vxor.u32 %v1751, 2147483648
      %v1782 = vxor.u32 %v1756, 2147483648
      %v1783 = vxor.u32 %v1759, 2147483648
      %v1784 = vxor.u32 %v1764, 2147483648
      %v1785 = vxor.u32 %v1767, 2147483648
      %v1786 = vxor.u32 %v1772, 2147483648
      %v1787 = vxor.u32 %v1775, 2147483648
      %v1788 = vmul.f32 %v1778, 1.442695
      %v1789 = vpow.pop %v1788
      %v1790 = vmul.f32 %v1779, 1.442695
      %v1791 = vpow.pop %v1790
      %v1792 = vmul.f32 %v1780, 1.442695
      %v1793 = vpow.pop %v1792
      %v1794 = vmul.f32 %v1781, 1.442695
      %v1795 = vpow.pop %v1794
      %v1796 = vmul.f32 %v1782, 1.442695
      %v1797 = vpow.pop %v1796
      %v1798 = vmul.f32 %v1783, 1.442695
      %v1799 = vpow.pop %v1798
      %v1800 = vmul.f32 %v1784, 1.442695
      %v1801 = vpow.pop %v1800
      %v1802 = vmul.f32 %v1785, 1.442695
      %v1803 = vpow.pop %v1802
      %v1804 = vmul.f32 %v1786, 1.442695
      %v1805 = vpow.pop %v1804
      %v1806 = vmul.f32 %v1787, 1.442695
      %v1807 = vpow.pop %v1806
      %v1808 = vadd.f32 %v1789, 1.0
      %v1809 = vadd.f32 %v1791, 1.0
      %v1810 = vadd.f32 %v1793, 1.0
      %v1811 = vadd.f32 %v1795, 1.0
      %v1812 = vadd.f32 %v1797, 1.0
      %v1813 = vadd.f32 %v1799, 1.0
      %v1814 = vadd.f32 %v1801, 1.0
      %v1815 = vadd.f32 %v1803, 1.0
      %v1816 = vadd.f32 %v1805, 1.0
      %v1817 = vadd.f32 %v1807, 1.0
      %v1818 = vrcp.pop %v1808
      %v1819 = vmul.f32 1.0, %v1818
      %v1820 = vrcp.pop %v1809
      %v1821 = vmul.f32 1.0, %v1820
      %v1822 = vrcp.pop %v1810
      %v1823 = vmul.f32 1.0, %v1822
      %v1824 = vrcp.pop %v1811
      %v1825 = vmul.f32 1.0, %v1824
      %v1826 = vrcp.pop %v1812
      %v1827 = vmul.f32 1.0, %v1826
      %v1828 = vrcp.pop %v1813
      %v1829 = vmul.f32 1.0, %v1828
      %v1830 = vrcp.pop %v1814
      %v1831 = vmul.f32 1.0, %v1830
      %v1832 = vrcp.pop %v1815
      %v1833 = vmul.f32 1.0, %v1832
      %v1834 = vrcp.pop %v1816
      %v1835 = vmul.f32 1.0, %v1834
      %v1836 = vrcp.pop %v1817
      %v1837 = vmul.f32 1.0, %v1836
      %v1838 = vmul.f32 %v1392, %v1819
      %v1839 = vmul.f32 %v1395, %v1821
      %v1840 = vmul.f32 %v1400, %v1823
      %v1841 = vmul.f32 %v1403, %v1825
      %v1842 = vmul.f32 %v1408, %v1827
      %v1843 = vmul.f32 %v1411, %v1829
      %v1844 = vmul.f32 %v1416, %v1831
      %v1845 = vmul.f32 %v1419, %v1833
      %v1846 = vmul.f32 %v1424, %v1835
      %v1847 = vmul.f32 %v1427, %v1837
      %v1848 = vadd.f32 %v1430, %v1838
      %v1849 = vadd.f32 %v1431, %v1839
      %v1850 = vadd.f32 %v1432, %v1840
      %v1851 = vadd.f32 %v1433, %v1841
      %v1852 = vadd.f32 %v1434, %v1842
      %v1853 = vadd.f32 %v1435, %v1843
      %v1854 = vadd.f32 %v1436, %v1844
      %v1855 = vadd.f32 %v1437, %v1845
      %v1856 = vadd.f32 %v1438, %v1846
      %v1857 = vadd.f32 %v1439, %v1847
      %v1858 = vld [vmem:[%s9] sm:$0xff]
      %v1859 = vld [vmem:[%s9 + $0x8] sm:$0xff]
      %v1860 = vld [vmem:[%s9 + $0x10] sm:$0xff]
      %v1861 = vld [vmem:[%s9 + $0x18] sm:$0xff]
      %v1862 = vld [vmem:[%s9 + $0x20] sm:$0xff]
      %v1863 = vld [vmem:[%s9 + $0x28] sm:$0xff]
      %v1864 = vld [vmem:[%s9 + $0x30] sm:$0xff]
      %v1865 = vld [vmem:[%s9 + $0x38] sm:$0xff]
      %v1866 = vld [vmem:[%s9 + $0x40] sm:$0xff]
      %v1867 = vld [vmem:[%s9 + $0x48] sm:$0xff]
      %vm1868 = vcmp.gt.f32.partialorder %v1858, 0.5
      %vm1869 = vcmp.gt.f32.partialorder %v1859, 0.5
      %vm1870 = vcmp.gt.f32.partialorder %v1860, 0.5
      %vm1871 = vcmp.gt.f32.partialorder %v1861, 0.5
      %vm1872 = vcmp.gt.f32.partialorder %v1862, 0.5
      %vm1873 = vcmp.gt.f32.partialorder %v1863, 0.5
      %vm1874 = vcmp.gt.f32.partialorder %v1864, 0.5
      %vm1875 = vcmp.gt.f32.partialorder %v1865, 0.5
      %vm1876 = vcmp.gt.f32.partialorder %v1866, 0.5
      %vm1877 = vcmp.gt.f32.partialorder %v1867, 0.5
      %v1878 = vsel %vm1868, 1, 0
      %v1879 = vsel %vm1869, 1, 0
      %v1880 = vsel %vm1870, 1, 0
      %v1881 = vsel %vm1871, 1, 0
      %v1882 = vsel %vm1872, 1, 0
      %v1883 = vsel %vm1873, 1, 0
      %v1884 = vsel %vm1874, 1, 0
      %v1885 = vsel %vm1875, 1, 0
      %v1886 = vsel %vm1876, 1, 0
      %v1887 = vsel %vm1877, 1, 0
      %1888 = vset.pattern.permute.xlu0 0
      %1889 = vperm.xlu0 %1888, %v1878
      %v1890 = vpop.permute.xlu0 %1889
      %1891 = vset.pattern.permute.xlu0 0
      %1892 = vperm.xlu0 %1891, %v1879
      %v1893 = vpop.permute.xlu0 %1892
      %1894 = vset.pattern.permute.xlu0 0
      %1895 = vperm.xlu0 %1894, %v1880
      %v1896 = vpop.permute.xlu0 %1895
      %1897 = vset.pattern.permute.xlu0 0
      %1898 = vperm.xlu0 %1897, %v1881
      %v1899 = vpop.permute.xlu0 %1898
      %1900 = vset.pattern.permute.xlu0 0
      %1901 = vperm.xlu0 %1900, %v1882
      %v1902 = vpop.permute.xlu0 %1901
      %1903 = vset.pattern.permute.xlu0 0
      %1904 = vperm.xlu0 %1903, %v1883
      %v1905 = vpop.permute.xlu0 %1904
      %1906 = vset.pattern.permute.xlu0 0
      %1907 = vperm.xlu0 %1906, %v1884
      %v1908 = vpop.permute.xlu0 %1907
      %1909 = vset.pattern.permute.xlu0 0
      %1910 = vperm.xlu0 %1909, %v1885
      %v1911 = vpop.permute.xlu0 %1910
      %1912 = vset.pattern.permute.xlu0 0
      %1913 = vperm.xlu0 %1912, %v1886
      %v1914 = vpop.permute.xlu0 %1913
      %1915 = vset.pattern.permute.xlu0 0
      %1916 = vperm.xlu0 %1915, %v1887
      %v1917 = vpop.permute.xlu0 %1916
      %vm1918 = vcmp.eq.s32.totalorder %v1890, 1
      %vm1919 = vcmp.eq.s32.totalorder %v1893, 1
      %vm1920 = vcmp.eq.s32.totalorder %v1896, 1
      %vm1921 = vcmp.eq.s32.totalorder %v1899, 1
      %vm1922 = vcmp.eq.s32.totalorder %v1902, 1
      %vm1923 = vcmp.eq.s32.totalorder %v1905, 1
      %vm1924 = vcmp.eq.s32.totalorder %v1908, 1
      %vm1925 = vcmp.eq.s32.totalorder %v1911, 1
      %vm1926 = vcmp.eq.s32.totalorder %v1914, 1
      %vm1927 = vcmp.eq.s32.totalorder %v1917, 1
      %v1928 = vsel %vm1918, %v1848, 0.0
      %v1929 = vsel %vm1919, %v1849, 0.0
      %v1930 = vsel %vm1920, %v1850, 0.0
      %v1931 = vsel %vm1921, %v1851, 0.0
      %v1932 = vsel %vm1922, %v1852, 0.0
      %v1933 = vsel %vm1923, %v1853, 0.0
      %v1934 = vsel %vm1924, %v1854, 0.0
      %v1935 = vsel %vm1925, %v1855, 0.0
      %v1936 = vsel %vm1926, %v1856, 0.0
      %v1937 = vsel %vm1927, %v1857, 0.0
      %1938 = vst.msk [vmem:[%s503] sm:$0xff] %vm888, %v1928
      %1939 = vst.msk [vmem:[%s503 + $0x8] sm:$0xff] %vm888, %v1929
      %1940 = vst.msk [vmem:[%s503 + $0x10] sm:$0xff] %vm888, %v1930
      %1941 = vst.msk [vmem:[%s503 + $0x18] sm:$0xff] %vm888, %v1931
      %1942 = vst.msk [vmem:[%s503 + $0x20] sm:$0xff] %vm888, %v1932
      %1943 = vst.msk [vmem:[%s503 + $0x28] sm:$0xff] %vm888, %v1933
      %1944 = vst.msk [vmem:[%s503 + $0x30] sm:$0xff] %vm888, %v1934
      %1945 = vst.msk [vmem:[%s503 + $0x38] sm:$0xff] %vm888, %v1935
      %1946 = vst.msk [vmem:[%s503 + $0x40] sm:$0xff] %vm888, %v1936
      %1947 = vst.msk [vmem:[%s503 + $0x48] sm:$0xff] %vm888, %v1937
      %s1948 = smul.u32 10, %s26
      %p1949 = scmp.lt.s32.totalorder %s25, 1
      %s1950 = scalar_select %p1949, %s25, 1
      %p1951 = scmp.lt.s32.totalorder %s1948, 9
      %s1952 = scalar_select %p1951, %s1948, 9
      %s1953 = smul.addr %s1950, 10
      %s1954 = sadd.s32 %s1952, %s1953
      %s1955 = smul.addr %s1954, 8
      %s1956 = scalar_lea.vmem %s10, %s1955
      // Predicated region
      $region61: #{sr_context_upsample_forward.10} parent=59 // pred_check
        %p1957 = pneg %p288
      $region62: #{sr_context_upsample_forward.10} parent=59 // pred_check_branch
        %1959 = sbr.rel (%p1957) target = $region64
      $region63: #{sr_context_upsample_forward.10} parent=59 // pred_region
        %s1960 = smul.u32 10, %s26
      $region64: #{sr_context_upsample_forward.10} parent=59 // pred_fallthru
        _
    $region60: #{sr_context_upsample_forward.10} parent=5 // pred_fallthru
      _
    %p1961 = scmp.le.s32.totalorder 2, %s16
    // Predicated region
    $region65: #{sr_context_upsample_forward.10} parent=5 // pred_check
      %p1962 = pneg %p1961
    $region66: #{sr_context_upsample_forward.10} parent=5 // pred_check_branch
      %1964 = sbr.rel (%p1962) target = $region68
    $region67: #{sr_context_upsample_forward.10} parent=5 // pred_region
      %s1965 = ssub.s32 %s16, 2
      // Predicated region
      $region69: #{sr_context_upsample_forward.10} parent=67 // pred_check
        %p1966 = pneg %p294
      $region70: #{sr_context_upsample_forward.10} parent=67 // pred_check_branch
        %1968 = sbr.rel (%p1966) target = $region72
      $region71: #{sr_context_upsample_forward.10} parent=67 // pred_region
        %s1969 = smul.u32 10, %s28
        %p1970 = scmp.lt.s32.totalorder %s27, 1
        %s1971 = scalar_select %p1970, %s27, 1
        %p1972 = scmp.lt.s32.totalorder %s1969, 9
        %s1973 = scalar_select %p1972, %s1969, 9
        %s1974 = smul.addr %s1971, 10
        %s1975 = sadd.s32 %s1973, %s1974
        %s1976 = smul.addr %s1975, 8
        %s1977 = scalar_lea.vmem %s10, %s1976
      $region72: #{sr_context_upsample_forward.10} parent=67 // pred_fallthru
        _
    $region68: #{sr_context_upsample_forward.10} parent=5 // pred_fallthru
      _
  $region6: #{sr_context_upsample_forward.10} parent=0 // loop_footer
    %s20 = sadd.s32 1, %s16
  $region7: #{sr_context_upsample_forward.10} parent=0 // loop_footer_branch
    %15 = sbr.rel target = $region3
  $region8: #{sr_context_upsample_forward.10} parent=0 // loop_exit
    _

// kernel: sr_context_upsample_forward.14
$region0: #{sr_context_upsample_forward.14}
  #allocation0 [shape = 'u32[]', space=smem, size = 0x4, offset = 0x4, fixed_abs, tag = 'smem constant byte address 0x4 - core index']
  #allocation1 [shape = 'u32[144,128]{1,0:T(1,128)}', space=vmem, size = 0x12000, scoped, tag = 'internal scratch']
  %s0 = inlined_call_operand.vmem [shape: f32[2,120,32], index: 0, kind: input, shape index: {}, may-alias: {0,1}]
  %s1 = inlined_call_operand.vmem [shape: f32[2,120,32], index: 1, kind: input, shape index: {}, may-alias: {0,1}]
  %s2 = inlined_call_operand.vmem [shape: bf16[288,144], index: 2, kind: input, shape index: {}]
  %s3 = inlined_call_operand.vmem [shape: f32[1,144], index: 3, kind: input, shape index: {}]
  %s4 = inlined_call_operand.vmem [shape: f32[80,1], index: 4, kind: input, shape index: {}]
  %s5 = inlined_call_operand.vmem [shape: f32[2,80,144], index: 5, kind: output, shape index: {}]
  %s6 = sld [smem:[#allocation0]]
  $region53: #{sr_context_upsample_forward.14} parent=0
    _
  %s8 = ssub.s32 1, %s6
  %s9 = scalar_select 0, %s8, %s6
  loop: start=0, step=1, limit=4
  $region2: #{sr_context_upsample_forward.14} parent=0 // loop_pre_header
    _
  $region3: #{sr_context_upsample_forward.14} parent=0 // loop_header
    %s11 = sphi 0, %s15
    %p12 = scmp.ge.s32.totalorder %s11, 4
    %s18 = sphi 0, %s30
    %s19 = sphi 0, %s26
    %s20 = sphi 0, %s18
    %s21 = sphi 0, %s19
    %s22 = sphi 0, %s20
    %s23 = sphi 0, %s21
    %s35 = sphi 0, %s37
    %s38 = sphi 0, %s35
    %s39 = sphi 0, %s38
    %s55 = sphi 0, %s39
    %s67 = sphi 0, %s69
    %s70 = sphi 0, %s67
    %s71 = sphi 0, %s70
    %s87 = sphi 0, %s71
    %s91 = sphi 0, %s91
    %s93 = sphi 0, %s91
    %s94 = sphi 0, %s93
    %s108 = sphi 0, %s94
    %s112 = sphi 0, %s112
    %s114 = sphi 0, %s112
    %s115 = sphi 0, %s114
    %s129 = sphi 0, %s115
    %s133 = sphi 0, %s133
    %s135 = sphi 0, %s133
    %s136 = sphi 0, %s135
    %s150 = sphi 0, %s136
    %s158 = sphi 0, %s160
    %s161 = sphi 0, %s158
    %s162 = sphi 0, %s161
    %s178 = sphi 0, %s162
  $region4: #{sr_context_upsample_forward.14} parent=0 // loop_header_branch
    %14 = sbr.rel (%p12) target = $region8
  $region5: #{sr_context_upsample_forward.14} parent=0 // loop_body
    %s16 = ssub.s32 %s11, 1
    %s17 = ssub.s32 %s11, 2
    %s24 = sadd.s32 1, %s19
    %p25 = scmp.ge.s32.totalorder %s24, 1
    %s26 = scalar_select %p25, 0, %s24
    %s27 = sadd.s32 1, %s18
    %s28 = scalar_select %p25, %s27, %s18
    %p29 = scmp.ge.s32.totalorder %s28, 2
    %s30 = scalar_select %p29, 0, %s28
    %s31 = ssub.s32 %s18, %s30
    %s32 = ssub.s32 %s19, %s26
    %s33 = sor.u32 %s31, %s32
    %p34 = scmp.eq.s32.totalorder %s33, 0
    %s36 = sadd.s32 %s35, 1
    %s37 = scalar_select %p34, %s35, %s36
    %p40 = pneg %p34
    %p41 = scmp.eq.s32.totalorder %s11, 1
    %p42 = por %p40, %p41
    %p43 = scmp.ne.s32.totalorder %s35, %s38
    %p44 = scmp.eq.s32.totalorder %s11, 0
    %p45 = por %p43, %p44
    %p46 = scmp.ne.s32.totalorder %s35, %s38
    %p47 = scmp.eq.s32.totalorder %s16, 1
    %p48 = por %p46, %p47
    %p49 = scmp.ne.s32.totalorder %s38, %s39
    %p50 = scmp.eq.s32.totalorder %s16, 0
    %p51 = por %p49, %p50
    %p52 = scmp.ne.s32.totalorder %s38, %s39
    %p53 = scmp.eq.s32.totalorder %s17, 1
    %p54 = por %p52, %p53
    %p56 = scmp.ne.s32.totalorder %s39, %s55
    %p57 = scmp.eq.s32.totalorder %s17, 0
    %p58 = por %p56, %p57
    %s59 = sadd.s32 %s19, 1
    %s60 = smul.u32 %s59, 2
    %s61 = sadd.s32 %s26, 1
    %s62 = smul.u32 %s61, 2
    %s63 = ssub.s32 %s18, %s30
    %s64 = ssub.s32 %s60, %s62
    %s65 = sor.u32 %s63, %s64
    %p66 = scmp.eq.s32.totalorder %s65, 0
    %s68 = sadd.s32 %s67, 1
    %s69 = scalar_select %p66, %s67, %s68
    %p72 = pneg %p66
    %p73 = scmp.eq.s32.totalorder %s11, 1
    %p74 = por %p72, %p73
    %p75 = scmp.ne.s32.totalorder %s67, %s70
    %p76 = scmp.eq.s32.totalorder %s11, 0
    %p77 = por %p75, %p76
    %p78 = scmp.ne.s32.totalorder %s67, %s70
    %p79 = scmp.eq.s32.totalorder %s16, 1
    %p80 = por %p78, %p79
    %p81 = scmp.ne.s32.totalorder %s70, %s71
    %p82 = scmp.eq.s32.totalorder %s16, 0
    %p83 = por %p81, %p82
    %p84 = scmp.ne.s32.totalorder %s70, %s71
    %p85 = scmp.eq.s32.totalorder %s17, 1
    %p86 = por %p84, %p85
    %p88 = scmp.ne.s32.totalorder %s71, %s87
    %p89 = scmp.eq.s32.totalorder %s17, 0
    %p90 = por %p88, %p89
    %s92 = sadd.s32 %s91, 1
    %p95 = scmp.eq.s32.totalorder %s11, 1
    %p96 = scmp.ne.s32.totalorder %s91, %s93
    %p97 = scmp.eq.s32.totalorder %s11, 0
    %p98 = por %p96, %p97
    %p99 = scmp.ne.s32.totalorder %s91, %s93
    %p100 = scmp.eq.s32.totalorder %s16, 1
    %p101 = por %p99, %p100
    %p102 = scmp.ne.s32.totalorder %s93, %s94
    %p103 = scmp.eq.s32.totalorder %s16, 0
    %p104 = por %p102, %p103
    %p105 = scmp.ne.s32.totalorder %s93, %s94
    %p106 = scmp.eq.s32.totalorder %s17, 1
    %p107 = por %p105, %p106
    %p109 = scmp.ne.s32.totalorder %s94, %s108
    %p110 = scmp.eq.s32.totalorder %s17, 0
    %p111 = por %p109, %p110
    %s113 = sadd.s32 %s112, 1
    %p116 = scmp.eq.s32.totalorder %s11, 1
    %p117 = scmp.ne.s32.totalorder %s112, %s114
    %p118 = scmp.eq.s32.totalorder %s11, 0
    %p119 = por %p117, %p118
    %p120 = scmp.ne.s32.totalorder %s112, %s114
    %p121 = scmp.eq.s32.totalorder %s16, 1
    %p122 = por %p120, %p121
    %p123 = scmp.ne.s32.totalorder %s114, %s115
    %p124 = scmp.eq.s32.totalorder %s16, 0
    %p125 = por %p123, %p124
    %p126 = scmp.ne.s32.totalorder %s114, %s115
    %p127 = scmp.eq.s32.totalorder %s17, 1
    %p128 = por %p126, %p127
    %p130 = scmp.ne.s32.totalorder %s115, %s129
    %p131 = scmp.eq.s32.totalorder %s17, 0
    %p132 = por %p130, %p131
    %s134 = sadd.s32 %s133, 1
    %p137 = scmp.eq.s32.totalorder %s11, 1
    %p138 = scmp.ne.s32.totalorder %s133, %s135
    %p139 = scmp.eq.s32.totalorder %s11, 0
    %p140 = por %p138, %p139
    %p141 = scmp.ne.s32.totalorder %s133, %s135
    %p142 = scmp.eq.s32.totalorder %s16, 1
    %p143 = por %p141, %p142
    %p144 = scmp.ne.s32.totalorder %s135, %s136
    %p145 = scmp.eq.s32.totalorder %s16, 0
    %p146 = por %p144, %p145
    %p147 = scmp.ne.s32.totalorder %s135, %s136
    %p148 = scmp.eq.s32.totalorder %s17, 1
    %p149 = por %p147, %p148
    %p151 = scmp.ne.s32.totalorder %s136, %s150
    %p152 = scmp.eq.s32.totalorder %s17, 0
    %p153 = por %p151, %p152
    %s154 = ssub.s32 %s18, %s30
    %s155 = ssub.s32 %s19, %s26
    %s156 = sor.u32 %s154, %s155
    %p157 = scmp.eq.s32.totalorder %s156, 0
    %s159 = sadd.s32 %s158, 1
    %s160 = scalar_select %p157, %s158, %s159
    %p163 = pneg %p157
    %p164 = scmp.eq.s32.totalorder %s11, 1
    %p165 = por %p163, %p164
    %p166 = scmp.ne.s32.totalorder %s158, %s161
    %p167 = scmp.eq.s32.totalorder %s11, 0
    %p168 = por %p166, %p167
    %p169 = scmp.ne.s32.totalorder %s158, %s161
    %p170 = scmp.eq.s32.totalorder %s16, 1
    %p171 = por %p169, %p170
    %p172 = scmp.ne.s32.totalorder %s161, %s162
    %p173 = scmp.eq.s32.totalorder %s16, 0
    %p174 = por %p172, %p173
    %p175 = scmp.ne.s32.totalorder %s161, %s162
    %p176 = scmp.eq.s32.totalorder %s17, 1
    %p177 = por %p175, %p176
    %p179 = scmp.ne.s32.totalorder %s162, %s178
    %p180 = scmp.eq.s32.totalorder %s17, 0
    %p181 = por %p179, %p180
    %p182 = scmp.le.s32.totalorder 1, %s11
    %p183 = scmp.lt.s32.totalorder %s11, 3
    %p184 = pnand %p182, %p183
    %p185 = pneg %p184
    // Predicated region
    $region9: #{sr_context_upsample_forward.14} parent=5 // pred_check
      _
    $region10: #{sr_context_upsample_forward.14} parent=5 // pred_check_branch
      %187 = sbr.rel (%p184) target = $region12
    $region11: #{sr_context_upsample_forward.14} parent=5 // pred_region
      %s188 = ssub.s32 %s11, 1
      // Predicated region
      $region13: #{sr_context_upsample_forward.14} parent=11 // pred_check
        %p189 = pneg %p104
      $region14: #{sr_context_upsample_forward.14} parent=11 // pred_check_branch
        %191 = sbr.rel (%p189) target = $region16
      $region15: #{sr_context_upsample_forward.14} parent=11 // pred_region
        _
      $region16: #{sr_context_upsample_forward.14} parent=11 // pred_fallthru
        _
      // Predicated region
      $region17: #{sr_context_upsample_forward.14} parent=11 // pred_check
        %p192 = pneg %p125
      $region18: #{sr_context_upsample_forward.14} parent=11 // pred_check_branch
        %194 = sbr.rel (%p192) target = $region20
      $region19: #{sr_context_upsample_forward.14} parent=11 // pred_region
        _
      $region20: #{sr_context_upsample_forward.14} parent=11 // pred_fallthru
        _
      // Predicated region
      $region21: #{sr_context_upsample_forward.14} parent=11 // pred_check
        %p195 = pneg %p146
      $region22: #{sr_context_upsample_forward.14} parent=11 // pred_check_branch
        %197 = sbr.rel (%p195) target = $region24
      $region23: #{sr_context_upsample_forward.14} parent=11 // pred_region
        _
      $region24: #{sr_context_upsample_forward.14} parent=11 // pred_fallthru
        _
    $region12: #{sr_context_upsample_forward.14} parent=5 // pred_fallthru
      _
    %p198 = scmp.lt.s32.totalorder %s11, 2
    // Predicated region
    $region25: #{sr_context_upsample_forward.14} parent=5 // pred_check
      %p199 = pneg %p198
    $region26: #{sr_context_upsample_forward.14} parent=5 // pred_check_branch
      %201 = sbr.rel (%p199) target = $region28
    $region27: #{sr_context_upsample_forward.14} parent=5 // pred_region
      // Predicated region
      $region29: #{sr_context_upsample_forward.14} parent=27 // pred_check
        %p202 = pneg %p45
      $region30: #{sr_context_upsample_forward.14} parent=27 // pred_check_branch
        %204 = sbr.rel (%p202) target = $region32
      $region31: #{sr_context_upsample_forward.14} parent=27 // pred_region
        %s205 = smul.u32 10, %s19
        %s206 = ssub.s32 15, %s205
        %p207 = scmp.lt.s32.totalorder %s206, 10
        %s208 = scalar_select %p207, %s206, 10
        %s209 = smul.u32 128, %s208
        %p210 = scmp.lt.s32.totalorder %s18, 1
        %s211 = scalar_select %p210, %s18, 1
        %p212 = scmp.lt.s32.totalorder %s205, 14
        %s213 = scalar_select %p212, %s205, 14
        %s214 = smul.addr %s211, 15
        %s215 = sadd.s32 %s213, %s214
        %s216 = smul.addr %s215, 8
        %s217 = scalar_lea.vmem %s0, %s216
        %s218 = smul.u32 10, %s19
        %s219 = ssub.s32 15, %s218
        %p220 = scmp.lt.s32.totalorder %s219, 10
        %s221 = scalar_select %p220, %s219, 10
        %s222 = smul.u32 128, %s221
      $region32: #{sr_context_upsample_forward.14} parent=27 // pred_fallthru
        _
      // Predicated region
      $region33: #{sr_context_upsample_forward.14} parent=27 // pred_check
        %p223 = pneg %p77
      $region34: #{sr_context_upsample_forward.14} parent=27 // pred_check_branch
        %225 = sbr.rel (%p223) target = $region36
      $region35: #{sr_context_upsample_forward.14} parent=27 // pred_region
        %s226 = sadd.s32 %s19, 1
        %s227 = smul.u32 %s226, 2
        %s228 = smul.u32 5, %s227
        %p229 = scmp.lt.s32.totalorder %s18, 1
        %s230 = scalar_select %p229, %s18, 1
        %p231 = scmp.lt.s32.totalorder %s228, 14
        %s232 = scalar_select %p231, %s228, 14
        %s233 = smul.addr %s230, 15
        %s234 = sadd.s32 %s232, %s233
        %s235 = smul.addr %s234, 8
        %s236 = scalar_lea.vmem %s1, %s235
        %s237 = sadd.s32 %s19, 1
        %s238 = smul.u32 %s237, 2
        %s239 = smul.u32 5, %s238
      $region36: #{sr_context_upsample_forward.14} parent=27 // pred_fallthru
        _
    $region28: #{sr_context_upsample_forward.14} parent=5 // pred_fallthru
      _
    %p240 = scmp.le.s32.totalorder 1, %s11
    %p241 = scmp.lt.s32.totalorder %s11, 3
    %p242 = pnand %p240, %p241
    %p243 = pneg %p242
    // Predicated region
    $region37: #{sr_context_upsample_forward.14} parent=5 // pred_check
      _
    $region38: #{sr_context_upsample_forward.14} parent=5 // pred_check_branch
      %245 = sbr.rel (%p242) target = $region40
    $region39: #{sr_context_upsample_forward.14} parent=5 // pred_region
      %s246 = ssub.s32 %s11, 1
      %s247 = smul.u32 10, %s21
      %s248 = ssub.s32 15, %s247
      %p249 = scmp.lt.s32.totalorder %s248, 10
      %s250 = scalar_select %p249, %s248, 10
      %s251 = smul.u32 128, %s250
      %p252 = scmp.lt.s32.totalorder %s20, 1
      %s253 = scalar_select %p252, %s20, 1
      %p254 = scmp.lt.s32.totalorder %s247, 14
      %s255 = scalar_select %p254, %s247, 14
      %s256 = smul.addr %s253, 15
      %s257 = sadd.s32 %s255, %s256
      %s258 = smul.addr %s257, 8
      %s259 = scalar_lea.vmem %s0, %s258
      %p260 = pneg %p51
      %p261 = pneg %p48
      %s262 = sadd.s32 %s21, 1
      %s263 = smul.u32 %s262, 2
      %s264 = smul.u32 5, %s263
      %p265 = scmp.lt.s32.totalorder %s20, 1
      %s266 = scalar_select %p265, %s20, 1
      %p267 = scmp.lt.s32.totalorder %s264, 14
      %s268 = scalar_select %p267, %s264, 14
      %s269 = smul.addr %s266, 15
      %s270 = sadd.s32 %s268, %s269
      %s271 = smul.addr %s270, 8
      %s272 = scalar_lea.vmem %s1, %s271
      %p273 = pneg %p83
      %p274 = pneg %p80
      %p275 = pneg %p104
      %p276 = pneg %p101
      %p277 = pneg %p125
      %p278 = pneg %p122
      %p279 = pneg %p146
      %p280 = pneg %p143
      %p281 = pneg %p174
      %p282 = pneg %p171
      %s283 = smul.u32 10, %s21
      %p284 = scmp.lt.s32.totalorder %s20, 1
      %s285 = scalar_select %p284, %s20, 1
      %p286 = scmp.lt.s32.totalorder %s283, 9
      %s287 = scalar_select %p286, %s283, 9
      %s288 = smul.addr %s287, 2
      %s289 = smul.addr %s285, 20
      %s290 = sadd.s32 %s288, %s289
      %s291 = smul.addr %s290, 8
      %s292 = scalar_lea.vmem %s5, %s291
      %s293 = smul.u32 10, %s21
      %s294 = ssub.s32 15, %s293
      %p295 = scmp.lt.s32.totalorder %s294, 10
      %s296 = scalar_select %p295, %s294, 10
      %s297 = smul.u32 128, %s296
      %p298 = scmp.lt.s32.totalorder %s20, 1
      %s299 = scalar_select %p298, %s20, 1
      %p300 = scmp.lt.s32.totalorder %s293, 14
      %s301 = scalar_select %p300, %s293, 14
      %s302 = smul.addr %s299, 15
      %s303 = sadd.s32 %s301, %s302
      %s304 = smul.addr %s303, 8
      %s305 = scalar_lea.vmem %s0, %s304
      %s306 = smul.u32 10, %s21
      %s307 = ssub.s32 15, %s306
      %p308 = scmp.lt.s32.totalorder %s307, 10
      %s309 = scalar_select %p308, %s307, 10
      %s310 = smul.u32 128, %s309
      %s311 = sadd.s32 %s21, 1
      %s312 = smul.u32 %s311, 2
      %s313 = smul.u32 5, %s312
      %p314 = scmp.lt.s32.totalorder %s20, 1
      %s315 = scalar_select %p314, %s20, 1
      %p316 = scmp.lt.s32.totalorder %s313, 14
      %s317 = scalar_select %p316, %s313, 14
      %s318 = smul.addr %s315, 15
      %s319 = sadd.s32 %s317, %s318
      %s320 = smul.addr %s319, 8
      %s321 = scalar_lea.vmem %s1, %s320
      %s322 = sadd.s32 %s21, 1
      %s323 = smul.u32 %s322, 2
      %s324 = smul.u32 5, %s323
      %s325 = smul.u32 10, %s21
      %p326 = scmp.lt.s32.totalorder %s20, 1
      %s327 = scalar_select %p326, %s20, 1
      %p328 = scmp.lt.s32.totalorder %s325, 9
      %s329 = scalar_select %p328, %s325, 9
      %s330 = smul.addr %s329, 2
      %s331 = smul.addr %s327, 20
      %s332 = sadd.s32 %s330, %s331
      %s333 = smul.addr %s332, 8
      %s334 = scalar_lea.vmem %s5, %s333
      %s335 = smul.u32 10, %s21
      %v337 = vld [vmem:[%s305 + $0x8] sm:$0xff]
      %v338 = vld [vmem:[%s305 + $0x10] sm:$0xff]
      %v339 = vld [vmem:[%s305 + $0x18] sm:$0xff]
      %v340 = vld [vmem:[%s305 + $0x20] sm:$0xff]
      %v341 = vld [vmem:[%s305 + $0x28] sm:$0xff]
      %v342 = vld [vmem:[%s305 + $0x30] sm:$0xff]
      %v343 = vld [vmem:[%s305 + $0x38] sm:$0xff]
      %v344 = vld [vmem:[%s305 + $0x40] sm:$0xff]
      %v345 = vld [vmem:[%s305 + $0x48] sm:$0xff]
      %v346 = vld [vmem:[%s321] sm:$0xff]
      %v347 = vld [vmem:[%s321 + $0x8] sm:$0xff]
      %v348 = vld [vmem:[%s321 + $0x10] sm:$0xff]
      %v349 = vld [vmem:[%s321 + $0x18] sm:$0xff]
      %vm361 = vcmask 1046528
      %v362 = vrot.slane %v337, 1
      %v363 = vrot.slane %v338, 1
      %v364 = vsel %vm361, %v362, %v363
      %v365 = vrot.slane %v339, 1
      %v366 = vsel %vm361, %v363, %v365
      %v367 = vrot.slane %v340, 1
      %v368 = vsel %vm361, %v365, %v367
      %v369 = vrot.slane %v341, 1
      %v370 = vsel %vm361, %v367, %v369
      %v371 = vrot.slane %v342, 1
      %v372 = vsel %vm361, %v369, %v371
      %v373 = vrot.slane %v343, 1
      %v374 = vsel %vm361, %v371, %v373
      %v375 = vrot.slane %v344, 1
      %v376 = vsel %vm361, %v373, %v375
      %v377 = vrot.slane %v345, 1
      %v378 = vsel %vm361, %v375, %v377
      %v379 = vrot.slane %v346, 1
      %v380 = vsel %vm361, %v377, %v379
      %v381 = vrot.slane %v347, 1
      %v382 = vsel %vm361, %v379, %v381
      %383 = vrot.lane.b32.xlu0 %v364, 32
      %v384 = vpop.permute.xlu0 %383
      %385 = vrot.lane.b32.xlu0 %v366, 32
      %v386 = vpop.permute.xlu0 %385
      %387 = vrot.lane.b32.xlu0 %v368, 32
      %v388 = vpop.permute.xlu0 %387
      %389 = vrot.lane.b32.xlu0 %v370, 32
      %v390 = vpop.permute.xlu0 %389
      %391 = vrot.lane.b32.xlu0 %v372, 32
      %v392 = vpop.permute.xlu0 %391
      %393 = vrot.lane.b32.xlu0 %v374, 32
      %v394 = vpop.permute.xlu0 %393
      %395 = vrot.lane.b32.xlu0 %v376, 32
      %v396 = vpop.permute.xlu0 %395
      %397 = vrot.lane.b32.xlu0 %v378, 32
      %v398 = vpop.permute.xlu0 %397
      %399 = vrot.lane.b32.xlu0 %v380, 32
      %v400 = vpop.permute.xlu0 %399
      %401 = vrot.lane.b32.xlu0 %v382, 32
      %v402 = vpop.permute.xlu0 %401
      %403 = vrot.lane.b32.xlu0 %v381, 32
      %v404 = vpop.permute.xlu0 %403
      %vm416 = vcmask 1045504
      %v417 = vrot.slane %v337, 2
      %v418 = vrot.slane %v338, 2
      %v419 = vsel %vm416, %v417, %v418
      %v420 = vrot.slane %v339, 2
      %v421 = vsel %vm416, %v418, %v420
      %v422 = vrot.slane %v340, 2
      %v423 = vsel %vm416, %v420, %v422
      %v424 = vrot.slane %v341, 2
      %v425 = vsel %vm416, %v422, %v424
      %v426 = vrot.slane %v342, 2
      %v427 = vsel %vm416, %v424, %v426
      %v428 = vrot.slane %v343, 2
      %v429 = vsel %vm416, %v426, %v428
      %v430 = vrot.slane %v344, 2
      %v431 = vsel %vm416, %v428, %v430
      %v432 = vrot.slane %v345, 2
      %v433 = vsel %vm416, %v430, %v432
      %v434 = vrot.slane %v346, 2
      %v435 = vsel %vm416, %v432, %v434
      %v436 = vrot.slane %v347, 2
      %v437 = vsel %vm416, %v434, %v436
      %438 = vrot.lane.b32.xlu0 %v419, 64
      %v439 = vpop.permute.xlu0 %438
      %440 = vrot.lane.b32.xlu0 %v421, 64
      %v441 = vpop.permute.xlu0 %440
      %442 = vrot.lane.b32.xlu0 %v423, 64
      %v443 = vpop.permute.xlu0 %442
      %444 = vrot.lane.b32.xlu0 %v425, 64
      %v445 = vpop.permute.xlu0 %444
      %446 = vrot.lane.b32.xlu0 %v427, 64
      %v447 = vpop.permute.xlu0 %446
      %448 = vrot.lane.b32.xlu0 %v429, 64
      %v449 = vpop.permute.xlu0 %448
      %450 = vrot.lane.b32.xlu0 %v431, 64
      %v451 = vpop.permute.xlu0 %450
      %452 = vrot.lane.b32.xlu0 %v433, 64
      %v453 = vpop.permute.xlu0 %452
      %454 = vrot.lane.b32.xlu0 %v435, 64
      %v455 = vpop.permute.xlu0 %454
      %456 = vrot.lane.b32.xlu0 %v437, 64
      %v457 = vpop.permute.xlu0 %456
      %458 = vrot.lane.b32.xlu0 %v436, 64
      %v459 = vpop.permute.xlu0 %458
      %v472 = vrot.slane %v348, 2
      %v473 = vsel %vm416, %v436, %v472
      %474 = vrot.lane.b32.xlu0 %v421, 96
      %v475 = vpop.permute.xlu0 %474
      %476 = vrot.lane.b32.xlu0 %v423, 96
      %v477 = vpop.permute.xlu0 %476
      %478 = vrot.lane.b32.xlu0 %v425, 96
      %v479 = vpop.permute.xlu0 %478
      %480 = vrot.lane.b32.xlu0 %v427, 96
      %v481 = vpop.permute.xlu0 %480
      %482 = vrot.lane.b32.xlu0 %v429, 96
      %v483 = vpop.permute.xlu0 %482
      %484 = vrot.lane.b32.xlu0 %v431, 96
      %v485 = vpop.permute.xlu0 %484
      %486 = vrot.lane.b32.xlu0 %v433, 96
      %v487 = vpop.permute.xlu0 %486
      %488 = vrot.lane.b32.xlu0 %v435, 96
      %v489 = vpop.permute.xlu0 %488
      %490 = vrot.lane.b32.xlu0 %v437, 96
      %v491 = vpop.permute.xlu0 %490
      %492 = vrot.lane.b32.xlu0 %v473, 96
      %v493 = vpop.permute.xlu0 %492
      %494 = vrot.lane.b32.xlu0 %v472, 96
      %v495 = vpop.permute.xlu0 %494
      %vm507 = vcmask 1044480
      %v508 = vrot.slane %v338, 3
      %v509 = vrot.slane %v339, 3
      %v510 = vsel %vm507, %v508, %v509
      %v511 = vrot.slane %v340, 3
      %v512 = vsel %vm507, %v509, %v511
      %v513 = vrot.slane %v341, 3
      %v514 = vsel %vm507, %v511, %v513
      %v515 = vrot.slane %v342, 3
      %v516 = vsel %vm507, %v513, %v515
      %v517 = vrot.slane %v343, 3
      %v518 = vsel %vm507, %v515, %v517
      %v519 = vrot.slane %v344, 3
      %v520 = vsel %vm507, %v517, %v519
      %v521 = vrot.slane %v345, 3
      %v522 = vsel %vm507, %v519, %v521
      %v523 = vrot.slane %v346, 3
      %v524 = vsel %vm507, %v521, %v523
      %v525 = vrot.slane %v347, 3
      %v526 = vsel %vm507, %v523, %v525
      %v527 = vrot.slane %v348, 3
      %v528 = vsel %vm507, %v525, %v527
      %vm540 = vcmask 1043456
      %v541 = vrot.slane %v338, 4
      %v542 = vrot.slane %v339, 4
      %v543 = vsel %vm540, %v541, %v542
      %v544 = vrot.slane %v340, 4
      %v545 = vsel %vm540, %v542, %v544
      %v546 = vrot.slane %v341, 4
      %v547 = vsel %vm540, %v544, %v546
      %v548 = vrot.slane %v342, 4
      %v549 = vsel %vm540, %v546, %v548
      %v550 = vrot.slane %v343, 4
      %v551 = vsel %vm540, %v548, %v550
      %v552 = vrot.slane %v344, 4
      %v553 = vsel %vm540, %v550, %v552
      %v554 = vrot.slane %v345, 4
      %v555 = vsel %vm540, %v552, %v554
      %v556 = vrot.slane %v346, 4
      %v557 = vsel %vm540, %v554, %v556
      %v558 = vrot.slane %v347, 4
      %v559 = vsel %vm540, %v556, %v558
      %v560 = vrot.slane %v348, 4
      %v561 = vsel %vm540, %v558, %v560
      %562 = vrot.lane.b32.xlu0 %v543, 32
      %v563 = vpop.permute.xlu0 %562
      %564 = vrot.lane.b32.xlu0 %v545, 32
      %v565 = vpop.permute.xlu0 %564
      %566 = vrot.lane.b32.xlu0 %v547, 32
      %v567 = vpop.permute.xlu0 %566
      %568 = vrot.lane.b32.xlu0 %v549, 32
      %v569 = vpop.permute.xlu0 %568
      %570 = vrot.lane.b32.xlu0 %v551, 32
      %v571 = vpop.permute.xlu0 %570
      %572 = vrot.lane.b32.xlu0 %v553, 32
      %v573 = vpop.permute.xlu0 %572
      %574 = vrot.lane.b32.xlu0 %v555, 32
      %v575 = vpop.permute.xlu0 %574
      %576 = vrot.lane.b32.xlu0 %v557, 32
      %v577 = vpop.permute.xlu0 %576
      %578 = vrot.lane.b32.xlu0 %v559, 32
      %v579 = vpop.permute.xlu0 %578
      %580 = vrot.lane.b32.xlu0 %v561, 32
      %v581 = vpop.permute.xlu0 %580
      %582 = vrot.lane.b32.xlu0 %v560, 32
      %v583 = vpop.permute.xlu0 %582
      %v596 = vrot.slane %v349, 4
      %v597 = vsel %vm540, %v560, %v596
      %598 = vrot.lane.b32.xlu0 %v545, 64
      %v599 = vpop.permute.xlu0 %598
      %600 = vrot.lane.b32.xlu0 %v547, 64
      %v601 = vpop.permute.xlu0 %600
      %602 = vrot.lane.b32.xlu0 %v549, 64
      %v603 = vpop.permute.xlu0 %602
      %604 = vrot.lane.b32.xlu0 %v551, 64
      %v605 = vpop.permute.xlu0 %604
      %606 = vrot.lane.b32.xlu0 %v553, 64
      %v607 = vpop.permute.xlu0 %606
      %608 = vrot.lane.b32.xlu0 %v555, 64
      %v609 = vpop.permute.xlu0 %608
      %610 = vrot.lane.b32.xlu0 %v557, 64
      %v611 = vpop.permute.xlu0 %610
      %612 = vrot.lane.b32.xlu0 %v559, 64
      %v613 = vpop.permute.xlu0 %612
      %614 = vrot.lane.b32.xlu0 %v561, 64
      %v615 = vpop.permute.xlu0 %614
      %616 = vrot.lane.b32.xlu0 %v597, 64
      %v617 = vpop.permute.xlu0 %616
      %618 = vrot.lane.b32.xlu0 %v596, 64
      %v619 = vpop.permute.xlu0 %618
      %vm631 = vcmask 1042432
      %v632 = vrot.slane %v339, 5
      %v633 = vrot.slane %v340, 5
      %v634 = vsel %vm631, %v632, %v633
      %v635 = vrot.slane %v341, 5
      %v636 = vsel %vm631, %v633, %v635
      %v637 = vrot.slane %v342, 5
      %v638 = vsel %vm631, %v635, %v637
      %v639 = vrot.slane %v343, 5
      %v640 = vsel %vm631, %v637, %v639
      %v641 = vrot.slane %v344, 5
      %v642 = vsel %vm631, %v639, %v641
      %v643 = vrot.slane %v345, 5
      %v644 = vsel %vm631, %v641, %v643
      %v645 = vrot.slane %v346, 5
      %v646 = vsel %vm631, %v643, %v645
      %v647 = vrot.slane %v347, 5
      %v648 = vsel %vm631, %v645, %v647
      %v649 = vrot.slane %v348, 5
      %v650 = vsel %vm631, %v647, %v649
      %v651 = vrot.slane %v349, 5
      %v652 = vsel %vm631, %v649, %v651
      %653 = vrot.lane.b32.xlu0 %v634, 96
      %v654 = vpop.permute.xlu0 %653
      %655 = vrot.lane.b32.xlu0 %v636, 96
      %v656 = vpop.permute.xlu0 %655
      %657 = vrot.lane.b32.xlu0 %v638, 96
      %v658 = vpop.permute.xlu0 %657
      %659 = vrot.lane.b32.xlu0 %v640, 96
      %v660 = vpop.permute.xlu0 %659
      %661 = vrot.lane.b32.xlu0 %v642, 96
      %v662 = vpop.permute.xlu0 %661
      %663 = vrot.lane.b32.xlu0 %v644, 96
      %v664 = vpop.permute.xlu0 %663
      %665 = vrot.lane.b32.xlu0 %v646, 96
      %v666 = vpop.permute.xlu0 %665
      %667 = vrot.lane.b32.xlu0 %v648, 96
      %v668 = vpop.permute.xlu0 %667
      %669 = vrot.lane.b32.xlu0 %v650, 96
      %v670 = vpop.permute.xlu0 %669
      %671 = vrot.lane.b32.xlu0 %v652, 96
      %v672 = vpop.permute.xlu0 %671
      %673 = vrot.lane.b32.xlu0 %v651, 96
      %v674 = vpop.permute.xlu0 %673
      %vm686 = vcmask 1041408
      %v687 = vrot.slane %v339, 6
      %v688 = vrot.slane %v340, 6
      %v689 = vsel %vm686, %v687, %v688
      %v690 = vrot.slane %v341, 6
      %v691 = vsel %vm686, %v688, %v690
      %v692 = vrot.slane %v342, 6
      %v693 = vsel %vm686, %v690, %v692
      %v694 = vrot.slane %v343, 6
      %v695 = vsel %vm686, %v692, %v694
      %v696 = vrot.slane %v344, 6
      %v697 = vsel %vm686, %v694, %v696
      %v698 = vrot.slane %v345, 6
      %v699 = vsel %vm686, %v696, %v698
      %v700 = vrot.slane %v346, 6
      %v701 = vsel %vm686, %v698, %v700
      %v702 = vrot.slane %v347, 6
      %v703 = vsel %vm686, %v700, %v702
      %v704 = vrot.slane %v348, 6
      %v705 = vsel %vm686, %v702, %v704
      %v706 = vrot.slane %v349, 6
      %v707 = vsel %vm686, %v704, %v706
      %vm719 = vcmask 261120
      %v720 = vsel %vm719, %v337, %v384
      %v721 = vsel %vm719, %v338, %v386
      %v722 = vsel %vm719, %v339, %v388
      %v723 = vsel %vm719, %v340, %v390
      %v724 = vsel %vm719, %v341, %v392
      %v725 = vsel %vm719, %v342, %v394
      %v726 = vsel %vm719, %v343, %v396
      %v727 = vsel %vm719, %v344, %v398
      %v728 = vsel %vm719, %v345, %v400
      %v729 = vsel %vm719, %v346, %v402
      %v730 = vsel %vm719, %v347, %v404
      %vm731 = vcmask 523264
      %v732 = vsel %vm731, %v720, %v439
      %v733 = vsel %vm731, %v721, %v441
      %v734 = vsel %vm731, %v722, %v443
      %v735 = vsel %vm731, %v723, %v445
      %v736 = vsel %vm731, %v724, %v447
      %v737 = vsel %vm731, %v725, %v449
      %v738 = vsel %vm731, %v726, %v451
      %v739 = vsel %vm731, %v727, %v453
      %v740 = vsel %vm731, %v728, %v455
      %v741 = vsel %vm731, %v729, %v457
      %v742 = vsel %vm731, %v730, %v459
      %vm743 = vcmask 785408
      %v744 = vsel %vm743, %v732, %v475
      %v745 = vsel %vm743, %v733, %v477
      %v746 = vsel %vm743, %v734, %v479
      %v747 = vsel %vm743, %v735, %v481
      %v748 = vsel %vm743, %v736, %v483
      %v749 = vsel %vm743, %v737, %v485
      %v750 = vsel %vm743, %v738, %v487
      %v751 = vsel %vm743, %v739, %v489
      %v752 = vsel %vm743, %v740, %v491
      %v753 = vsel %vm743, %v741, %v493
      %v754 = vsel %vm743, %v742, %v495
      %v755 = vsel %vm719, %v510, %v563
      %v756 = vsel %vm719, %v512, %v565
      %v757 = vsel %vm719, %v514, %v567
      %v758 = vsel %vm719, %v516, %v569
      %v759 = vsel %vm719, %v518, %v571
      %v760 = vsel %vm719, %v520, %v573
      %v761 = vsel %vm719, %v522, %v575
      %v762 = vsel %vm719, %v524, %v577
      %v763 = vsel %vm719, %v526, %v579
      %v764 = vsel %vm719, %v528, %v581
      %v765 = vsel %vm719, %v527, %v583
      %v766 = vsel %vm731, %v755, %v599
      %v767 = vsel %vm731, %v756, %v601
      %v768 = vsel %vm731, %v757, %v603
      %v769 = vsel %vm731, %v758, %v605
      %v770 = vsel %vm731, %v759, %v607
      %v771 = vsel %vm731, %v760, %v609
      %v772 = vsel %vm731, %v761, %v611
      %v773 = vsel %vm731, %v762, %v613
      %v774 = vsel %vm731, %v763, %v615
      %v775 = vsel %vm731, %v764, %v617
      %v776 = vsel %vm731, %v765, %v619
      %v777 = vsel %vm743, %v766, %v654
      %v778 = vsel %vm743, %v767, %v656
      %v779 = vsel %vm743, %v768, %v658
      %v780 = vsel %vm743, %v769, %v660
      %v781 = vsel %vm743, %v770, %v662
      %v782 = vsel %vm743, %v771, %v664
      %v783 = vsel %vm743, %v772, %v666
      %v784 = vsel %vm743, %v773, %v668
      %v785 = vsel %vm743, %v774, %v670
      %v786 = vsel %vm743, %v775, %v672
      %v787 = vsel %vm743, %v776, %v674
      %v788 = vpack.c.bf16 %v745, %v744
      %v789 = vpack.c.bf16 %v778, %v777
      %v790 = vpack.c.bf16 %v691, %v689
      %v791 = vpack.c.bf16 %v747, %v746
      %v792 = vpack.c.bf16 %v780, %v779
      %v793 = vpack.c.bf16 %v695, %v693
      %v794 = vpack.c.bf16 %v749, %v748
      %v795 = vpack.c.bf16 %v782, %v781
      %v796 = vpack.c.bf16 %v699, %v697
      %v797 = vpack.c.bf16 %v751, %v750
      %v798 = vpack.c.bf16 %v784, %v783
      %v799 = vpack.c.bf16 %v703, %v701
      %v800 = vpack.c.bf16 %v753, %v752
      %v801 = vpack.c.bf16 %v786, %v785
      %v802 = vpack.c.bf16 %v707, %v705
      %v803 = vpack.c.bf16 %v754, %v754
      %v804 = vpack.c.bf16 %v787, %v787
      %v805 = vpack.c.bf16 %v706, %v706
      %v806 = vld [vmem:[%s2] sm:$0xff]
      %v807 = vld [vmem:[%s2 + $0x8] sm:$0xff]
      %v808 = vld [vmem:[%s2 + $0x10] sm:$0xff]
      %v809 = vld [vmem:[%s2 + $0x18] sm:$0xff]
      %v810 = vld [vmem:[%s2 + $0x20] sm:$0xff]
      %v811 = vld [vmem:[%s2 + $0x28] sm:$0xff]
      %v812 = vld [vmem:[%s2 + $0x30] sm:$0xff]
      %v813 = vld [vmem:[%s2 + $0x38] sm:$0xff]
      %v814 = vld [vmem:[%s2 + $0x40] sm:$0xff]
      %v815 = vld [vmem:[%s2 + $0x48] sm:$0xff]
      %v816 = vld [vmem:[%s2 + $0x50] sm:$0xff]
      %v817 = vld [vmem:[%s2 + $0x58] sm:$0xff]
      %v818 = vld [vmem:[%s2 + $0x60] sm:$0xff]
      %v819 = vld [vmem:[%s2 + $0x68] sm:$0xff]
      %v820 = vld [vmem:[%s2 + $0x70] sm:$0xff]
      %v821 = vld [vmem:[%s2 + $0x78] sm:$0xff]
      %v822 = vld [vmem:[%s2 + $0x80] sm:$0xff]
      %v823 = vld [vmem:[%s2 + $0x88] sm:$0xff]
      %v824 = vld [vmem:[%s2 + $0x90] sm:$0xff]
      %v825 = vld [vmem:[%s2 + $0x98] sm:$0xff]
      %v826 = vld [vmem:[%s2 + $0xa0] sm:$0xff]
      %v827 = vld [vmem:[%s2 + $0xa8] sm:$0xff]
      %v828 = vld [vmem:[%s2 + $0xb0] sm:$0xff]
      %v829 = vld [vmem:[%s2 + $0xb8] sm:$0xff]
      %v830 = vld [vmem:[%s2 + $0xc0] sm:$0xff]
      %v831 = vld [vmem:[%s2 + $0xc8] sm:$0xff]
      %v832 = vld [vmem:[%s2 + $0xd0] sm:$0xff]
      %v833 = vld [vmem:[%s2 + $0xd8] sm:$0xff]
      %v834 = vld [vmem:[%s2 + $0xe0] sm:$0xff]
      %v835 = vld [vmem:[%s2 + $0xe8] sm:$0xff]
      %v836 = vld [vmem:[%s2 + $0xf0] sm:$0xff]
      %v837 = vld [vmem:[%s2 + $0xf8] sm:$0xff]
      %v838 = vld [vmem:[%s2 + $0x100] sm:$0xff]
      %v839 = vld [vmem:[%s2 + $0x108] sm:$0xff]
      %v840 = vld [vmem:[%s2 + $0x110] sm:$0xff]
      %v841 = vld [vmem:[%s2 + $0x118] sm:$0xff]
      %v842 = vld [vmem:[%s3] sm:$0x3]
      %v844 = vlaneseq
      %v845 = vshrl.u32 %v844, 7
      %v846 = vsub.s32 0, %v845
      %v847 = vrot.slane %v842, %v846
      %v848 = vlaneseq
      %v849 = vshrl.u32 %v848, 7
      %v850 = vsub.s32 1, %v849
      %v851 = vrot.slane %v842, %v850
      %vm854 = vsmask.f32 7424
      %v856 = vshrl.u32 %v788, 16
      %v858 = vshll.u32 %v788, 16
      %v860 = vrot.slane %v858, 1
      %v861 = vor.u32 %v856, %v860
      %v863 = vshll.u32 %v791, 16
      %v865 = vrot.slane %v863, 1
      %v866 = vsel %vm854, %v861, %v865
      %v868 = vshrl.u32 %v789, 16
      %v870 = vshll.u32 %v789, 16
      %v872 = vrot.slane %v870, 1
      %v873 = vor.u32 %v868, %v872
      %v875 = vshll.u32 %v792, 16
      %v877 = vrot.slane %v875, 1
      %v878 = vsel %vm854, %v873, %v877
      %v880 = vshrl.u32 %v790, 16
      %v882 = vshll.u32 %v790, 16
      %v884 = vrot.slane %v882, 1
      %v885 = vor.u32 %v880, %v884
      %v887 = vshll.u32 %v793, 16
      %v889 = vrot.slane %v887, 1
      %v890 = vsel %vm854, %v885, %v889
      %v891 = vshrl.u32 %v791, 16
      %v893 = vor.u32 %v891, %v865
      %v895 = vshll.u32 %v794, 16
      %v897 = vrot.slane %v895, 1
      %v898 = vsel %vm854, %v893, %v897
      %v899 = vshrl.u32 %v792, 16
      %v901 = vor.u32 %v899, %v877
      %v903 = vshll.u32 %v795, 16
      %v905 = vrot.slane %v903, 1
      %v906 = vsel %vm854, %v901, %v905
      %v907 = vshrl.u32 %v793, 16
      %v909 = vor.u32 %v907, %v889
      %v911 = vshll.u32 %v796, 16
      %v913 = vrot.slane %v911, 1
      %v914 = vsel %vm854, %v909, %v913
      %v915 = vshrl.u32 %v794, 16
      %v917 = vor.u32 %v915, %v897
      %v919 = vshll.u32 %v797, 16
      %v921 = vrot.slane %v919, 1
      %v922 = vsel %vm854, %v917, %v921
      %v923 = vshrl.u32 %v795, 16
      %v925 = vor.u32 %v923, %v905
      %v927 = vshll.u32 %v798, 16
      %v929 = vrot.slane %v927, 1
      %v930 = vsel %vm854, %v925, %v929
      %v931 = vshrl.u32 %v796, 16
      %v933 = vor.u32 %v931, %v913
      %v935 = vshll.u32 %v799, 16
      %v937 = vrot.slane %v935, 1
      %v938 = vsel %vm854, %v933, %v937
      %v939 = vshrl.u32 %v797, 16
      %v941 = vor.u32 %v939, %v921
      %v943 = vshll.u32 %v800, 16
      %v945 = vrot.slane %v943, 1
      %v946 = vsel %vm854, %v941, %v945
      %v947 = vshrl.u32 %v798, 16
      %v949 = vor.u32 %v947, %v929
      %v951 = vshll.u32 %v801, 16
      %v953 = vrot.slane %v951, 1
      %v954 = vsel %vm854, %v949, %v953
      %v955 = vshrl.u32 %v799, 16
      %v957 = vor.u32 %v955, %v937
      %v959 = vshll.u32 %v802, 16
      %v961 = vrot.slane %v959, 1
      %v962 = vsel %vm854, %v957, %v961
      %v963 = vshrl.u32 %v800, 16
      %v965 = vor.u32 %v963, %v945
      %v967 = vshll.u32 %v803, 16
      %v969 = vrot.slane %v967, 1
      %v970 = vsel %vm854, %v965, %v969
      %v971 = vshrl.u32 %v801, 16
      %v973 = vor.u32 %v971, %v953
      %v975 = vshll.u32 %v804, 16
      %v977 = vrot.slane %v975, 1
      %v978 = vsel %vm854, %v973, %v977
      %v979 = vshrl.u32 %v802, 16
      %v981 = vor.u32 %v979, %v961
      %v983 = vshll.u32 %v805, 16
      %v985 = vrot.slane %v983, 1
      %v986 = vsel %vm854, %v981, %v985
      %v1033 = vunpack.c.l.b16 %v806
      %v1034 = vunpack.c.h.b16 %v806
      %v1035 = vunpack.c.l.b16 %v807
      %v1036 = vunpack.c.h.b16 %v807
      %v1037 = vunpack.c.l.b16 %v808
      %v1038 = vunpack.c.h.b16 %v808
      %v1039 = vunpack.c.l.b16 %v809
      %v1040 = vunpack.c.h.b16 %v809
      %v1041 = vunpack.c.l.b16 %v810
      %v1042 = vunpack.c.h.b16 %v810
      %v1043 = vunpack.c.l.b16 %v811
      %v1044 = vunpack.c.h.b16 %v811
      %v1045 = vunpack.c.l.b16 %v812
      %v1046 = vunpack.c.h.b16 %v812
      %v1047 = vunpack.c.l.b16 %v813
      %v1048 = vunpack.c.h.b16 %v813
      %v1049 = vunpack.c.l.b16 %v814
      %v1050 = vunpack.c.h.b16 %v814
      %v1051 = vunpack.c.l.b16 %v815
      %v1052 = vunpack.c.h.b16 %v815
      %v1053 = vunpack.c.l.b16 %v816
      %v1054 = vunpack.c.h.b16 %v816
      %v1055 = vunpack.c.l.b16 %v817
      %v1056 = vunpack.c.h.b16 %v817
      %v1057 = vunpack.c.l.b16 %v818
      %v1058 = vunpack.c.h.b16 %v818
      %v1059 = vunpack.c.l.b16 %v819
      %v1060 = vunpack.c.h.b16 %v819
      %v1061 = vunpack.c.l.b16 %v820
      %v1062 = vunpack.c.h.b16 %v820
      %v1063 = vunpack.c.l.b16 %v821
      %v1064 = vunpack.c.h.b16 %v821
      %v1065 = vunpack.c.l.b16 %v822
      %v1066 = vunpack.c.h.b16 %v822
      %v1067 = vunpack.c.l.b16 %v823
      %v1068 = vunpack.c.h.b16 %v823
      %v1069 = vunpack.c.l.b16 %v824
      %v1070 = vunpack.c.h.b16 %v824
      %v1071 = vunpack.c.l.b16 %v825
      %v1072 = vunpack.c.h.b16 %v825
      %v1073 = vunpack.c.l.b16 %v826
      %v1074 = vunpack.c.h.b16 %v826
      %v1075 = vunpack.c.l.b16 %v827
      %v1076 = vunpack.c.h.b16 %v827
      %v1077 = vunpack.c.l.b16 %v828
      %v1078 = vunpack.c.h.b16 %v828
      %v1079 = vunpack.c.l.b16 %v829
      %v1080 = vunpack.c.h.b16 %v829
      %v1081 = vunpack.c.l.b16 %v830
      %v1082 = vunpack.c.h.b16 %v830
      %v1083 = vunpack.c.l.b16 %v831
      %v1084 = vunpack.c.h.b16 %v831
      %v1085 = vunpack.c.l.b16 %v832
      %v1086 = vunpack.c.h.b16 %v832
      %v1087 = vunpack.c.l.b16 %v833
      %v1088 = vunpack.c.h.b16 %v833
      %v1089 = vunpack.c.l.b16 %v834
      %v1090 = vunpack.c.h.b16 %v834
      %v1091 = vunpack.c.l.b16 %v835
      %v1092 = vunpack.c.h.b16 %v835
      %v1093 = vunpack.c.l.b16 %v836
      %v1094 = vunpack.c.h.b16 %v836
      %v1095 = vunpack.c.l.b16 %v837
      %v1096 = vunpack.c.h.b16 %v837
      %v1097 = vunpack.c.l.b16 %v838
      %v1098 = vunpack.c.h.b16 %v838
      %v1099 = vunpack.c.l.b16 %v839
      %v1100 = vunpack.c.h.b16 %v839
      %v1101 = vunpack.c.l.b16 %v840
      %v1102 = vunpack.c.h.b16 %v840
      %v1103 = vunpack.c.l.b16 %v841
      %v1104 = vunpack.c.h.b16 %v841
      %v1105 = vpack.c.b16 %v1035, %v1033
      %v1106 = vpack.c.b16 %v1036, %v1034
      %v1107 = vpack.c.b16 %v1039, %v1037
      %v1108 = vpack.c.b16 %v1040, %v1038
      %v1109 = vpack.c.b16 %v1043, %v1041
      %v1110 = vpack.c.b16 %v1044, %v1042
      %v1111 = vpack.c.b16 %v1047, %v1045
      %v1112 = vpack.c.b16 %v1048, %v1046
      %v1113 = vpack.c.b16 %v1051, %v1049
      %v1114 = vpack.c.b16 %v1052, %v1050
      %v1115 = vpack.c.b16 %v1055, %v1053
      %v1116 = vpack.c.b16 %v1056, %v1054
      %v1117 = vpack.c.b16 %v1059, %v1057
      %v1118 = vpack.c.b16 %v1060, %v1058
      %v1119 = vpack.c.b16 %v1063, %v1061
      %v1120 = vpack.c.b16 %v1064, %v1062
      %v1121 = vpack.c.b16 %v1067, %v1065
      %v1122 = vpack.c.b16 %v1068, %v1066
      %v1123 = vpack.c.b16 %v1071, %v1069
      %v1124 = vpack.c.b16 %v1072, %v1070
      %v1125 = vpack.c.b16 %v1075, %v1073
      %v1126 = vpack.c.b16 %v1076, %v1074
      %v1127 = vpack.c.b16 %v1079, %v1077
      %v1128 = vpack.c.b16 %v1080, %v1078
      %v1129 = vpack.c.b16 %v1083, %v1081
      %v1130 = vpack.c.b16 %v1084, %v1082
      %v1131 = vpack.c.b16 %v1087, %v1085
      %v1132 = vpack.c.b16 %v1088, %v1086
      %v1133 = vpack.c.b16 %v1091, %v1089
      %v1134 = vpack.c.b16 %v1092, %v1090
      %v1135 = vpack.c.b16 %v1095, %v1093
      %v1136 = vpack.c.b16 %v1096, %v1094
      %v1137 = vpack.c.b16 %v1099, %v1097
      %v1138 = vpack.c.b16 %v1100, %v1098
      %v1139 = vpack.c.b16 %v1103, %v1101
      %v1140 = vpack.c.b16 %v1104, %v1102
      %v1178 = vsel %vm719, %v890, 0
      %v1181 = vsel %vm719, %v914, 0
      %v1184 = vsel %vm719, %v938, 0
      %v1187 = vsel %vm719, %v962, 0
      %v1190 = vsel %vm719, %v986, 0
      %1192 = vmatprep.subr.bf16.mxu0 %v1106
      %1193 = vmatpush1.bf16.msra.mxu0 %v1105
      %1194 = vmatprep.subr.bf16.mxu0 %v1108
      %1195 = vmatpush1.bf16.msra.mxu0 %v1107
      %1196 = vmatprep.subr.bf16.mxu0 %v1110
      %1197 = vmatpush1.bf16.msra.mxu0 %v1109
      %1198 = vmatprep.subr.bf16.mxu0 %v1112
      %1199 = vmatpush1.bf16.msra.mxu0 %v1111
      %1200 = vmatprep.subr.bf16.mxu0 %v1114
      %1201 = vmatpush1.bf16.msra.mxu0 %v1113
      %1202 = vmatprep.subr.bf16.mxu0 %v1116
      %1203 = vmatpush1.bf16.msra.mxu0 %v1115
      %1204 = vmatprep.subr.bf16.mxu0 %v1118
      %1205 = vmatpush1.bf16.msra.mxu0 %v1117
      %1206 = vmatprep.subr.bf16.mxu0 %v1120
      %1207 = vmatpush1.bf16.msra.mxu0 %v1119
      %1208 = vmatprep.subr.bf16.mxu0 %v1122
      %1209 = vmatpush1.bf16.msra.mxu0 %v1121
      %1210 = vmatprep.subr.bf16.mxu0 %v1124
      %1211 = vmatpush1.bf16.msra.mxu0 %v1123
      %1212 = vmatprep.subr.bf16.mxu0 %v1126
      %1213 = vmatpush1.bf16.msra.mxu0 %v1125
      %1214 = vmatprep.subr.bf16.mxu0 %v1128
      %1215 = vmatpush1.bf16.msra.mxu0 %v1127
      %1216 = vmatprep.subr.bf16.mxu0 %v1130
      %1217 = vmatpush1.bf16.msra.mxu0 %v1129
      %1218 = vmatprep.subr.bf16.mxu0 %v1132
      %1219 = vmatpush1.bf16.msra.mxu0 %v1131
      %1220 = vmatprep.subr.bf16.mxu0 %v1134
      %1221 = vmatpush1.bf16.msra.mxu0 %v1133
      %1222 = vmatprep.subr.bf16.mxu0 %v1136
      %1223 = vmatpush1.bf16.msra.mxu0 %v1135
      %1224 = vmatprep.mubr.bf16.mxu0 %v878
      %1225 = vmatmul.mubr.bf16.gmra.mrb[0].mxu0 %v866
      %v1226 = vpop.f32.mrb[0].mxu0
      %v1227 = vadd.f32 %v847, %v1226
      %v1228 = vpop.f32.mrb[0].mxu0
      %v1229 = vadd.f32 %v851, %v1228
      %v1230 = vpop.f32.mrb[0].mxu0
      %v1231 = vadd.f32 %v847, %v1230
      %v1232 = vpop.f32.mrb[0].mxu0
      %v1233 = vadd.f32 %v851, %v1232
      %1234 = vmatprep.mubr.bf16.mxu0 %v906
      %1235 = vmatmul.mubr.bf16.gmra.mrb[0].mxu0 %v898
      %v1236 = vpop.f32.mrb[0].mxu0
      %v1237 = vadd.f32 %v847, %v1236
      %v1238 = vpop.f32.mrb[0].mxu0
      %v1239 = vadd.f32 %v851, %v1238
      %v1240 = vpop.f32.mrb[0].mxu0
      %v1241 = vadd.f32 %v847, %v1240
      %v1242 = vpop.f32.mrb[0].mxu0
      %v1243 = vadd.f32 %v851, %v1242
      %1244 = vmatprep.mubr.bf16.mxu0 %v930
      %1245 = vmatmul.mubr.bf16.gmra.mrb[0].mxu0 %v922
      %v1246 = vpop.f32.mrb[0].mxu0
      %v1247 = vadd.f32 %v847, %v1246
      %v1248 = vpop.f32.mrb[0].mxu0
      %v1249 = vadd.f32 %v851, %v1248
      %v1250 = vpop.f32.mrb[0].mxu0
      %v1251 = vadd.f32 %v847, %v1250
      %v1252 = vpop.f32.mrb[0].mxu0
      %v1253 = vadd.f32 %v851, %v1252
      %1254 = vmatprep.mubr.bf16.mxu0 %v954
      %1255 = vmatmul.mubr.bf16.gmra.mrb[0].mxu0 %v946
      %v1256 = vpop.f32.mrb[0].mxu0
      %v1257 = vadd.f32 %v847, %v1256
      %v1258 = vpop.f32.mrb[0].mxu0
      %v1259 = vadd.f32 %v851, %v1258
      %v1260 = vpop.f32.mrb[0].mxu0
      %v1261 = vadd.f32 %v847, %v1260
      %v1262 = vpop.f32.mrb[0].mxu0
      %v1263 = vadd.f32 %v851, %v1262
      %1264 = vmatprep.mubr.bf16.mxu0 %v978
      %1265 = vmatmul.mubr.bf16.gmra.mrb[0].mxu0 %v970
      %v1266 = vpop.f32.mrb[0].mxu0
      %v1267 = vadd.f32 %v847, %v1266
      %v1268 = vpop.f32.mrb[0].mxu0
      %v1269 = vadd.f32 %v851, %v1268
      %v1270 = vpop.f32.mrb[0].mxu0
      %v1271 = vadd.f32 %v847, %v1270
      %v1272 = vpop.f32.mrb[0].mxu0
      %v1273 = vadd.f32 %v851, %v1272
      %1274 = vdwg.mxu0
      %1275 = vmatprep.subr.bf16.mxu0 %v1138
      %1276 = vmatpush1.bf16.msra.mxu0 %v1137
      %1277 = vmatprep.subr.bf16.mxu0 %v1140
      %1278 = vmatpush1.bf16.msra.mxu0 %v1139
      %1279 = vmatprep.subr.bf16.mxu0 0
      %1280 = vmatpush1.bf16.msra.mxu0 0
      %1281 = vmatprep.subr.bf16.mxu0 0
      %1282 = vmatpush1.bf16.msra.mxu0 0
      %1283 = vmatprep.subr.bf16.mxu0 0
      %1284 = vmatpush1.bf16.msra.mxu0 0
      %1285 = vmatprep.subr.bf16.mxu0 0
      %1286 = vmatpush1.bf16.msra.mxu0 0
      %1287 = vmatprep.subr.bf16.mxu0 0
      %1288 = vmatpush1.bf16.msra.mxu0 0
      %1289 = vmatprep.subr.bf16.mxu0 0
      %1290 = vmatpush1.bf16.msra.mxu0 0
      %1291 = vmatprep.subr.bf16.mxu0 0
      %1292 = vmatpush1.bf16.msra.mxu0 0
      %1293 = vmatprep.subr.bf16.mxu0 0
      %1294 = vmatpush1.bf16.msra.mxu0 0
      %1295 = vmatprep.subr.bf16.mxu0 0
      %1296 = vmatpush1.bf16.msra.mxu0 0
      %1297 = vmatprep.subr.bf16.mxu0 0
      %1298 = vmatpush1.bf16.msra.mxu0 0
      %1299 = vmatprep.subr.bf16.mxu0 0
      %1300 = vmatpush1.bf16.msra.mxu0 0
      %1301 = vmatprep.subr.bf16.mxu0 0
      %1302 = vmatpush1.bf16.msra.mxu0 0
      %1303 = vmatprep.subr.bf16.mxu0 0
      %1304 = vmatpush1.bf16.msra.mxu0 0
      %1305 = vmatprep.subr.bf16.mxu0 0
      %1306 = vmatpush1.bf16.msra.mxu0 0
      %1307 = vmatprep.mubr.bf16.mxu0 0
      %1308 = vmatmul.mubr.bf16.gmra.mrb[0].mxu0 %v1178
      %v1309 = vpop.f32.mrb[0].mxu0
      %v1310 = vadd.f32 %v1227, %v1309
      %v1311 = vpop.f32.mrb[0].mxu0
      %v1312 = vadd.f32 %v1229, %v1311
      %v1313 = vpop.f32.mrb[0].mxu0
      %v1314 = vadd.f32 %v1231, %v1313
      %v1315 = vpop.f32.mrb[0].mxu0
      %v1316 = vadd.f32 %v1233, %v1315
      %1317 = vmatprep.mubr.bf16.mxu0 0
      %1318 = vmatmul.mubr.bf16.gmra.mrb[0].mxu0 %v1181
      %v1319 = vpop.f32.mrb[0].mxu0
      %v1320 = vadd.f32 %v1237, %v1319
      %v1321 = vpop.f32.mrb[0].mxu0
      %v1322 = vadd.f32 %v1239, %v1321
      %v1323 = vpop.f32.mrb[0].mxu0
      %v1324 = vadd.f32 %v1241, %v1323
      %v1325 = vpop.f32.mrb[0].mxu0
      %v1326 = vadd.f32 %v1243, %v1325
      %1327 = vmatprep.mubr.bf16.mxu0 0
      %1328 = vmatmul.mubr.bf16.gmra.mrb[0].mxu0 %v1184
      %v1329 = vpop.f32.mrb[0].mxu0
      %v1330 = vadd.f32 %v1247, %v1329
      %v1331 = vpop.f32.mrb[0].mxu0
      %v1332 = vadd.f32 %v1249, %v1331
      %v1333 = vpop.f32.mrb[0].mxu0
      %v1334 = vadd.f32 %v1251, %v1333
      %v1335 = vpop.f32.mrb[0].mxu0
      %v1336 = vadd.f32 %v1253, %v1335
      %1337 = vmatprep.mubr.bf16.mxu0 0
      %1338 = vmatmul.mubr.bf16.gmra.mrb[0].mxu0 %v1187
      %v1339 = vpop.f32.mrb[0].mxu0
      %v1340 = vadd.f32 %v1257, %v1339
      %v1341 = vpop.f32.mrb[0].mxu0
      %v1342 = vadd.f32 %v1259, %v1341
      %v1343 = vpop.f32.mrb[0].mxu0
      %v1344 = vadd.f32 %v1261, %v1343
      %v1345 = vpop.f32.mrb[0].mxu0
      %v1346 = vadd.f32 %v1263, %v1345
      %1347 = vmatprep.mubr.bf16.mxu0 0
      %1348 = vmatmul.mubr.bf16.gmra.mrb[0].mxu0 %v1190
      %v1349 = vpop.f32.mrb[0].mxu0
      %v1350 = vadd.f32 %v1267, %v1349
      %v1351 = vpop.f32.mrb[0].mxu0
      %v1352 = vadd.f32 %v1269, %v1351
      %v1353 = vpop.f32.mrb[0].mxu0
      %v1354 = vadd.f32 %v1271, %v1353
      %v1355 = vpop.f32.mrb[0].mxu0
      %v1356 = vadd.f32 %v1273, %v1355
      %1357 = vdwg.mxu0
      %v1358 = vld [vmem:[%s4] sm:$0xff]
      %v1359 = vld [vmem:[%s4 + $0x8] sm:$0xff]
      %v1360 = vld [vmem:[%s4 + $0x10] sm:$0xff]
      %v1361 = vld [vmem:[%s4 + $0x18] sm:$0xff]
      %v1362 = vld [vmem:[%s4 + $0x20] sm:$0xff]
      %v1363 = vld [vmem:[%s4 + $0x28] sm:$0xff]
      %v1364 = vld [vmem:[%s4 + $0x30] sm:$0xff]
      %v1365 = vld [vmem:[%s4 + $0x38] sm:$0xff]
      %v1366 = vld [vmem:[%s4 + $0x40] sm:$0xff]
      %v1367 = vld [vmem:[%s4 + $0x48] sm:$0xff]
      %vm1368 = vcmp.gt.f32.partialorder %v1358, 0.5
      %vm1369 = vcmp.gt.f32.partialorder %v1359, 0.5
      %vm1370 = vcmp.gt.f32.partialorder %v1360, 0.5
      %vm1371 = vcmp.gt.f32.partialorder %v1361, 0.5
      %vm1372 = vcmp.gt.f32.partialorder %v1362, 0.5
      %vm1373 = vcmp.gt.f32.partialorder %v1363, 0.5
      %vm1374 = vcmp.gt.f32.partialorder %v1364, 0.5
      %vm1375 = vcmp.gt.f32.partialorder %v1365, 0.5
      %vm1376 = vcmp.gt.f32.partialorder %v1366, 0.5
      %vm1377 = vcmp.gt.f32.partialorder %v1367, 0.5
      %v1378 = vsel %vm1368, 1, 0
      %v1379 = vsel %vm1369, 1, 0
      %v1380 = vsel %vm1370, 1, 0
      %v1381 = vsel %vm1371, 1, 0
      %v1382 = vsel %vm1372, 1, 0
      %v1383 = vsel %vm1373, 1, 0
      %v1384 = vsel %vm1374, 1, 0
      %v1385 = vsel %vm1375, 1, 0
      %v1386 = vsel %vm1376, 1, 0
      %v1387 = vsel %vm1377, 1, 0
      %1388 = vset.pattern.permute.xlu0 0
      %1389 = vperm.xlu0 %1388, %v1378
      %v1390 = vpop.permute.xlu0 %1389
      %1391 = vset.pattern.permute.xlu0 0
      %1392 = vperm.xlu0 %1391, %v1379
      %v1393 = vpop.permute.xlu0 %1392
      %1394 = vset.pattern.permute.xlu0 0
      %1395 = vperm.xlu0 %1394, %v1380
      %v1396 = vpop.permute.xlu0 %1395
      %1397 = vset.pattern.permute.xlu0 0
      %1398 = vperm.xlu0 %1397, %v1381
      %v1399 = vpop.permute.xlu0 %1398
      %1400 = vset.pattern.permute.xlu0 0
      %1401 = vperm.xlu0 %1400, %v1382
      %v1402 = vpop.permute.xlu0 %1401
      %1403 = vset.pattern.permute.xlu0 0
      %1404 = vperm.xlu0 %1403, %v1383
      %v1405 = vpop.permute.xlu0 %1404
      %1406 = vset.pattern.permute.xlu0 0
      %1407 = vperm.xlu0 %1406, %v1384
      %v1408 = vpop.permute.xlu0 %1407
      %1409 = vset.pattern.permute.xlu0 0
      %1410 = vperm.xlu0 %1409, %v1385
      %v1411 = vpop.permute.xlu0 %1410
      %1412 = vset.pattern.permute.xlu0 0
      %1413 = vperm.xlu0 %1412, %v1386
      %v1414 = vpop.permute.xlu0 %1413
      %1415 = vset.pattern.permute.xlu0 0
      %1416 = vperm.xlu0 %1415, %v1387
      %v1417 = vpop.permute.xlu0 %1416
      %vm1418 = vcmp.eq.s32.totalorder %v1390, 1
      %vm1419 = vcmp.eq.s32.totalorder %v1393, 1
      %vm1420 = vcmp.eq.s32.totalorder %v1396, 1
      %vm1421 = vcmp.eq.s32.totalorder %v1399, 1
      %vm1422 = vcmp.eq.s32.totalorder %v1402, 1
      %vm1423 = vcmp.eq.s32.totalorder %v1405, 1
      %vm1424 = vcmp.eq.s32.totalorder %v1408, 1
      %vm1425 = vcmp.eq.s32.totalorder %v1411, 1
      %vm1426 = vcmp.eq.s32.totalorder %v1414, 1
      %vm1427 = vcmp.eq.s32.totalorder %v1417, 1
      %v1428 = vsel %vm1418, %v1310, 0.0
      %v1429 = vsel %vm1418, %v1312, 0.0
      %v1430 = vsel %vm1419, %v1314, 0.0
      %v1431 = vsel %vm1419, %v1316, 0.0
      %v1432 = vsel %vm1420, %v1320, 0.0
      %v1433 = vsel %vm1420, %v1322, 0.0
      %v1434 = vsel %vm1421, %v1324, 0.0
      %v1435 = vsel %vm1421, %v1326, 0.0
      %v1436 = vsel %vm1422, %v1330, 0.0
      %v1437 = vsel %vm1422, %v1332, 0.0
      %v1438 = vsel %vm1423, %v1334, 0.0
      %v1439 = vsel %vm1423, %v1336, 0.0
      %v1440 = vsel %vm1424, %v1340, 0.0
      %v1441 = vsel %vm1424, %v1342, 0.0
      %v1442 = vsel %vm1425, %v1344, 0.0
      %v1443 = vsel %vm1425, %v1346, 0.0
      %v1444 = vsel %vm1426, %v1350, 0.0
      %v1445 = vsel %vm1426, %v1352, 0.0
      %v1446 = vsel %vm1427, %v1354, 0.0
      %v1447 = vsel %vm1427, %v1356, 0.0
      %1448 = vst [vmem:[%s334] sm:$0xff] %v1428
      %vm1449 = vcmask 130048
      %1450 = vst.msk [vmem:[%s334 + $0x8] sm:$0xff] %vm1449, %v1429
      %1451 = vst [vmem:[%s334 + $0x10] sm:$0xff] %v1430
      %1452 = vst.msk [vmem:[%s334 + $0x18] sm:$0xff] %vm1449, %v1431
      %1453 = vst [vmem:[%s334 + $0x20] sm:$0xff] %v1432
      %1454 = vst.msk [vmem:[%s334 + $0x28] sm:$0xff] %vm1449, %v1433
      %1455 = vst [vmem:[%s334 + $0x30] sm:$0xff] %v1434
      %1456 = vst.msk [vmem:[%s334 + $0x38] sm:$0xff] %vm1449, %v1435
      %1457 = vst [vmem:[%s334 + $0x40] sm:$0xff] %v1436
      %1458 = vst.msk [vmem:[%s334 + $0x48] sm:$0xff] %vm1449, %v1437
      %1459 = vst [vmem:[%s334 + $0x50] sm:$0xff] %v1438
      %1460 = vst.msk [vmem:[%s334 + $0x58] sm:$0xff] %vm1449, %v1439
      %1461 = vst [vmem:[%s334 + $0x60] sm:$0xff] %v1440
      %1462 = vst.msk [vmem:[%s334 + $0x68] sm:$0xff] %vm1449, %v1441
      %1463 = vst [vmem:[%s334 + $0x70] sm:$0xff] %v1442
      %1464 = vst.msk [vmem:[%s334 + $0x78] sm:$0xff] %vm1449, %v1443
      %1465 = vst [vmem:[%s334 + $0x80] sm:$0xff] %v1444
      %1466 = vst.msk [vmem:[%s334 + $0x88] sm:$0xff] %vm1449, %v1445
      %1467 = vst [vmem:[%s334 + $0x90] sm:$0xff] %v1446
      %1468 = vst.msk [vmem:[%s334 + $0x98] sm:$0xff] %vm1449, %v1447
      %s1469 = smul.u32 10, %s21
      %p1470 = scmp.lt.s32.totalorder %s20, 1
      %s1471 = scalar_select %p1470, %s20, 1
      %p1472 = scmp.lt.s32.totalorder %s1469, 9
      %s1473 = scalar_select %p1472, %s1469, 9
      %s1474 = smul.addr %s1473, 2
      %s1475 = smul.addr %s1471, 20
      %s1476 = sadd.s32 %s1474, %s1475
      %s1477 = smul.addr %s1476, 8
      %s1478 = scalar_lea.vmem %s5, %s1477
      // Predicated region
      $region41: #{sr_context_upsample_forward.14} parent=39 // pred_check
        %p1479 = pneg %p171
      $region42: #{sr_context_upsample_forward.14} parent=39 // pred_check_branch
        %1481 = sbr.rel (%p1479) target = $region44
      $region43: #{sr_context_upsample_forward.14} parent=39 // pred_region
        %s1482 = smul.u32 10, %s21
      $region44: #{sr_context_upsample_forward.14} parent=39 // pred_fallthru
        _
    $region40: #{sr_context_upsample_forward.14} parent=5 // pred_fallthru
      _
    %p1483 = scmp.le.s32.totalorder 2, %s11
    // Predicated region
    $region45: #{sr_context_upsample_forward.14} parent=5 // pred_check
      %p1484 = pneg %p1483
    $region46: #{sr_context_upsample_forward.14} parent=5 // pred_check_branch
      %1486 = sbr.rel (%p1484) target = $region48
    $region47: #{sr_context_upsample_forward.14} parent=5 // pred_region
      %s1487 = ssub.s32 %s11, 2
      // Predicated region
      $region49: #{sr_context_upsample_forward.14} parent=47 // pred_check
        %p1488 = pneg %p177
      $region50: #{sr_context_upsample_forward.14} parent=47 // pred_check_branch
        %1490 = sbr.rel (%p1488) target = $region52
      $region51: #{sr_context_upsample_forward.14} parent=47 // pred_region
        %s1491 = smul.u32 10, %s23
        %p1492 = scmp.lt.s32.totalorder %s22, 1
        %s1493 = scalar_select %p1492, %s22, 1
        %p1494 = scmp.lt.s32.totalorder %s1491, 9
        %s1495 = scalar_select %p1494, %s1491, 9
        %s1496 = smul.addr %s1495, 2
        %s1497 = smul.addr %s1493, 20
        %s1498 = sadd.s32 %s1496, %s1497
        %s1499 = smul.addr %s1498, 8
        %s1500 = scalar_lea.vmem %s5, %s1499
      $region52: #{sr_context_upsample_forward.14} parent=47 // pred_fallthru
        _
    $region48: #{sr_context_upsample_forward.14} parent=5 // pred_fallthru
      _
  $region6: #{sr_context_upsample_forward.14} parent=0 // loop_footer
    %s15 = sadd.s32 1, %s11
  $region7: #{sr_context_upsample_forward.14} parent=0 // loop_footer_branch
    %10 = sbr.rel target = $region3
  $region8: #{sr_context_upsample_forward.14} parent=0 // loop_exit
    _

// kernel: sr_context_upsample_forward.15
$region0: #{sr_context_upsample_forward.15}
  #allocation0 [shape = 'u32[]', space=smem, size = 0x4, offset = 0x4, fixed_abs, tag = 'smem constant byte address 0x4 - core index']
  #allocation1 [shape = 'u32[144,128]{1,0:T(1,128)}', space=vmem, size = 0x12000, scoped, tag = 'internal scratch']
  %s0 = inlined_call_operand.vmem [shape: f32[2,9,32,32], index: 0, kind: input, shape index: {}]
  %s1 = inlined_call_operand.vmem [shape: f32[2,9,32,32], index: 1, kind: input, shape index: {}]
  %s2 = inlined_call_operand.hbm [shape: f32[2,32,32], index: 2, kind: output, shape index: {}]
  %s3 = sld [smem:[#allocation0]]
  $region41: #{sr_context_upsample_forward.15} parent=0
    _
  %s5 = ssub.s32 1, %s3
  %s6 = scalar_select 0, %s5, %s3
  $region1: #{sr_context_upsample_forward.15} parent=0
    #allocation2 [shape = 'u8[32768]{0}', space=vmem, size = 0x8000, scoped, tag = 'output window, operand 0']
    #allocation3 [shape = 's32[2]{0}', space=sflag, size = 0x8, scoped, tag = 'scoped memory for sr_context_upsample_forward.15']
    %7 = vsyncpa [#allocation3], 0
    %s8 = scalar_lea.sflag [#allocation3], 1
    %9 = vsyncpa %s8, 0
    loop: start=0, step=1, limit=4
    $region2: #{sr_context_upsample_forward.15} parent=1 // loop_pre_header
      _
    $region3: #{sr_context_upsample_forward.15} parent=1 // loop_header
      %s11 = sphi 0, %s15
      %p12 = scmp.ge.s32.totalorder %s11, 4
      %s18 = sphi 0, %s30
      %s19 = sphi 0, %s26
      %s20 = sphi 0, %s18
      %s21 = sphi 0, %s19
      %s22 = sphi 0, %s20
      %s23 = sphi 0, %s21
      %s35 = sphi 0, %s37
      %s38 = sphi 0, %s35
      %s39 = sphi 0, %s38
      %s55 = sphi 0, %s39
      %s63 = sphi 0, %s65
      %s66 = sphi 0, %s63
      %s67 = sphi 0, %s66
      %s83 = sphi 0, %s67
      %s91 = sphi 0, %s93
      %s94 = sphi 0, %s91
      %s95 = sphi 0, %s94
      %s111 = sphi 0, %s95
    $region4: #{sr_context_upsample_forward.15} parent=1 // loop_header_branch
      %14 = sbr.rel (%p12) target = $region8
    $region5: #{sr_context_upsample_forward.15} parent=1 // loop_body
      %s16 = ssub.s32 %s11, 1
      %s17 = ssub.s32 %s11, 2
      %s24 = sadd.s32 1, %s19
      %p25 = scmp.ge.s32.totalorder %s24, 1
      %s26 = scalar_select %p25, 0, %s24
      %s27 = sadd.s32 1, %s18
      %s28 = scalar_select %p25, %s27, %s18
      %p29 = scmp.ge.s32.totalorder %s28, 2
      %s30 = scalar_select %p29, 0, %s28
      %s31 = ssub.s32 %s18, %s30
      %s32 = ssub.s32 %s19, %s26
      %s33 = sor.u32 %s31, %s32
      %p34 = scmp.eq.s32.totalorder %s33, 0
      %s36 = sadd.s32 %s35, 1
      %s37 = scalar_select %p34, %s35, %s36
      %p40 = pneg %p34
      %p41 = scmp.eq.s32.totalorder %s11, 1
      %p42 = por %p40, %p41
      %p43 = scmp.ne.s32.totalorder %s35, %s38
      %p44 = scmp.eq.s32.totalorder %s11, 0
      %p45 = por %p43, %p44
      %p46 = scmp.ne.s32.totalorder %s35, %s38
      %p47 = scmp.eq.s32.totalorder %s16, 1
      %p48 = por %p46, %p47
      %p49 = scmp.ne.s32.totalorder %s38, %s39
      %p50 = scmp.eq.s32.totalorder %s16, 0
      %p51 = por %p49, %p50
      %p52 = scmp.ne.s32.totalorder %s38, %s39
      %p53 = scmp.eq.s32.totalorder %s17, 1
      %p54 = por %p52, %p53
      %p56 = scmp.ne.s32.totalorder %s39, %s55
      %p57 = scmp.eq.s32.totalorder %s17, 0
      %p58 = por %p56, %p57
      %s59 = ssub.s32 %s18, %s30
      %s60 = ssub.s32 %s19, %s26
      %s61 = sor.u32 %s59, %s60
      %p62 = scmp.eq.s32.totalorder %s61, 0
      %s64 = sadd.s32 %s63, 1
      %s65 = scalar_select %p62, %s63, %s64
      %p68 = pneg %p62
      %p69 = scmp.eq.s32.totalorder %s11, 1
      %p70 = por %p68, %p69
      %p71 = scmp.ne.s32.totalorder %s63, %s66
      %p72 = scmp.eq.s32.totalorder %s11, 0
      %p73 = por %p71, %p72
      %p74 = scmp.ne.s32.totalorder %s63, %s66
      %p75 = scmp.eq.s32.totalorder %s16, 1
      %p76 = por %p74, %p75
      %p77 = scmp.ne.s32.totalorder %s66, %s67
      %p78 = scmp.eq.s32.totalorder %s16, 0
      %p79 = por %p77, %p78
      %p80 = scmp.ne.s32.totalorder %s66, %s67
      %p81 = scmp.eq.s32.totalorder %s17, 1
      %p82 = por %p80, %p81
      %p84 = scmp.ne.s32.totalorder %s67, %s83
      %p85 = scmp.eq.s32.totalorder %s17, 0
      %p86 = por %p84, %p85
      %s87 = ssub.s32 %s18, %s30
      %s88 = ssub.s32 %s19, %s26
      %s89 = sor.u32 %s87, %s88
      %p90 = scmp.eq.s32.totalorder %s89, 0
      %s92 = sadd.s32 %s91, 1
      %s93 = scalar_select %p90, %s91, %s92
      %p96 = pneg %p90
      %p97 = scmp.eq.s32.totalorder %s11, 1
      %p98 = por %p96, %p97
      %p99 = scmp.ne.s32.totalorder %s91, %s94
      %p100 = scmp.eq.s32.totalorder %s11, 0
      %p101 = por %p99, %p100
      %p102 = scmp.ne.s32.totalorder %s91, %s94
      %p103 = scmp.eq.s32.totalorder %s16, 1
      %p104 = por %p102, %p103
      %p105 = scmp.ne.s32.totalorder %s94, %s95
      %p106 = scmp.eq.s32.totalorder %s16, 0
      %p107 = por %p105, %p106
      %p108 = scmp.ne.s32.totalorder %s94, %s95
      %p109 = scmp.eq.s32.totalorder %s17, 1
      %p110 = por %p108, %p109
      %p112 = scmp.ne.s32.totalorder %s95, %s111
      %p113 = scmp.eq.s32.totalorder %s17, 0
      %p114 = por %p112, %p113
      %p115 = scmp.le.s32.totalorder 1, %s11
      %p116 = scmp.lt.s32.totalorder %s11, 3
      %p117 = pnand %p115, %p116
      %p118 = pneg %p117
      // Predicated region
      $region9: #{sr_context_upsample_forward.15} parent=5 // pred_check
        _
      $region10: #{sr_context_upsample_forward.15} parent=5 // pred_check_branch
        %120 = sbr.rel (%p117) target = $region12
      $region11: #{sr_context_upsample_forward.15} parent=5 // pred_region
        %s121 = ssub.s32 %s11, 1
      $region12: #{sr_context_upsample_forward.15} parent=5 // pred_fallthru
        _
      %p122 = scmp.lt.s32.totalorder %s11, 2
      // Predicated region
      $region13: #{sr_context_upsample_forward.15} parent=5 // pred_check
        %p123 = pneg %p122
      $region14: #{sr_context_upsample_forward.15} parent=5 // pred_check_branch
        %125 = sbr.rel (%p123) target = $region16
      $region15: #{sr_context_upsample_forward.15} parent=5 // pred_region
        // Predicated region
        $region17: #{sr_context_upsample_forward.15} parent=15 // pred_check
          %p126 = pneg %p45
        $region18: #{sr_context_upsample_forward.15} parent=15 // pred_check_branch
          %128 = sbr.rel (%p126) target = $region20
        $region19: #{sr_context_upsample_forward.15} parent=15 // pred_region
          %s129 = smul.u32 4, %s19
          %p130 = scmp.lt.s32.totalorder %s18, 1
          %s131 = scalar_select %p130, %s18, 1
          %p132 = scmp.lt.s32.totalorder %s129, 3
          %s133 = scalar_select %p132, %s129, 3
          %s134 = smul.addr %s131, 36
          %s135 = sadd.s32 %s133, %s134
          %s136 = smul.addr %s135, 8
          %s137 = scalar_lea.vmem %s0, %s136
          %s138 = smul.u32 4, %s19
        $region20: #{sr_context_upsample_forward.15} parent=15 // pred_fallthru
          _
        // Predicated region
        $region21: #{sr_context_upsample_forward.15} parent=15 // pred_check
          %p139 = pneg %p73
        $region22: #{sr_context_upsample_forward.15} parent=15 // pred_check_branch
          %141 = sbr.rel (%p139) target = $region24
        $region23: #{sr_context_upsample_forward.15} parent=15 // pred_region
          %s142 = smul.u32 4, %s19
          %p143 = scmp.lt.s32.totalorder %s18, 1
          %s144 = scalar_select %p143, %s18, 1
          %p145 = scmp.lt.s32.totalorder %s142, 3
          %s146 = scalar_select %p145, %s142, 3
          %s147 = smul.addr %s144, 36
          %s148 = sadd.s32 %s146, %s147
          %s149 = smul.addr %s148, 8
          %s150 = scalar_lea.vmem %s1, %s149
          %s151 = smul.u32 4, %s19
        $region24: #{sr_context_upsample_forward.15} parent=15 // pred_fallthru
          _
      $region16: #{sr_context_upsample_forward.15} parent=5 // pred_fallthru
        _
      %p152 = scmp.le.s32.totalorder 1, %s11
      %p153 = scmp.lt.s32.totalorder %s11, 3
      %p154 = pnand %p152, %p153
      %p155 = pneg %p154
      // Predicated region
      $region25: #{sr_context_upsample_forward.15} parent=5 // pred_check
        _
      $region26: #{sr_context_upsample_forward.15} parent=5 // pred_check_branch
        %157 = sbr.rel (%p154) target = $region28
      $region27: #{sr_context_upsample_forward.15} parent=5 // pred_region
        %s158 = ssub.s32 %s11, 1
        %s159 = smul.u32 4, %s21
        %p160 = scmp.lt.s32.totalorder %s20, 1
        %s161 = scalar_select %p160, %s20, 1
        %p162 = scmp.lt.s32.totalorder %s159, 3
        %s163 = scalar_select %p162, %s159, 3
        %s164 = smul.addr %s161, 36
        %s165 = sadd.s32 %s163, %s164
        %s166 = smul.addr %s165, 8
        %s167 = scalar_lea.vmem %s0, %s166
        %p168 = pneg %p51
        %p169 = pneg %p48
        %s170 = smul.u32 4, %s21
        %p171 = scmp.lt.s32.totalorder %s20, 1
        %s172 = scalar_select %p171, %s20, 1
        %p173 = scmp.lt.s32.totalorder %s170, 3
        %s174 = scalar_select %p173, %s170, 3
        %s175 = smul.addr %s172, 36
        %s176 = sadd.s32 %s174, %s175
        %s177 = smul.addr %s176, 8
        %s178 = scalar_lea.vmem %s1, %s177
        %p179 = pneg %p79
        %p180 = pneg %p76
        %p181 = pneg %p107
        %p182 = pneg %p104
        %s183 = sand.u32 %s94, 1
        %s184 = scalar_lea.sflag [#allocation3], %s183
        %s185 = sand.u32 %s94, 1
        %s186 = smul.addr %s185, 32
        %s187 = scalar_lea.vmem [#allocation2], %s186
        %s188 = smul.u32 4, %s21
        %p189 = scmp.lt.s32.totalorder %s20, 1
        %s190 = scalar_select %p189, %s20, 1
        %p191 = scmp.lt.s32.totalorder %s188, 3
        %s192 = scalar_select %p191, %s188, 3
        %s193 = smul.addr %s190, 36
        %s194 = sadd.s32 %s192, %s193
        %s195 = smul.addr %s194, 8
        %s196 = scalar_lea.vmem %s0, %s195
        %s197 = smul.u32 4, %s21
        %s198 = smul.u32 4, %s21
        %p199 = scmp.lt.s32.totalorder %s20, 1
        %s200 = scalar_select %p199, %s20, 1
        %p201 = scmp.lt.s32.totalorder %s198, 3
        %s202 = scalar_select %p201, %s198, 3
        %s203 = smul.addr %s200, 36
        %s204 = sadd.s32 %s202, %s203
        %s205 = smul.addr %s204, 8
        %s206 = scalar_lea.vmem %s1, %s205
        %s207 = smul.u32 4, %s21
        %s208 = smul.u32 4, %s21
        %v209 = vld [vmem:[%s196] sm:$0xff]
        %v210 = vld [vmem:[%s196 + $0x8] sm:$0xff]
        %v211 = vld [vmem:[%s196 + $0x10] sm:$0xff]
        %v212 = vld [vmem:[%s196 + $0x18] sm:$0xff]
        %v213 = vld [vmem:[%s206] sm:$0xff]
        %v214 = vld [vmem:[%s206 + $0x8] sm:$0xff]
        %v215 = vld [vmem:[%s206 + $0x10] sm:$0xff]
        %v216 = vld [vmem:[%s206 + $0x18] sm:$0xff]
        %v217 = vmul.f32 %v209, %v213
        %v218 = vmul.f32 %v210, %v214
        %v219 = vmul.f32 %v211, %v215
        %v220 = vmul.f32 %v212, %v216
        %s221 = scalar_lea.vmem %s196, 32
        %v222 = vld [vmem:[%s221] sm:$0xff]
        %v223 = vld [vmem:[%s221 + $0x8] sm:$0xff]
        %v224 = vld [vmem:[%s221 + $0x10] sm:$0xff]
        %v225 = vld [vmem:[%s221 + $0x18] sm:$0xff]
        %s226 = scalar_lea.vmem %s206, 32
        %v227 = vld [vmem:[%s226] sm:$0xff]
        %v228 = vld [vmem:[%s226 + $0x8] sm:$0xff]
        %v229 = vld [vmem:[%s226 + $0x10] sm:$0xff]
        %v230 = vld [vmem:[%s226 + $0x18] sm:$0xff]
        %v231 = vmul.f32 %v222, %v227
        %v232 = vmul.f32 %v223, %v228
        %v233 = vmul.f32 %v224, %v229
        %v234 = vmul.f32 %v225, %v230
        %v235 = vadd.f32 %v217, %v231
        %v236 = vadd.f32 %v218, %v232
        %v237 = vadd.f32 %v219, %v233
        %v238 = vadd.f32 %v220, %v234
        %s239 = scalar_lea.vmem %s196, 64
        %v240 = vld [vmem:[%s239] sm:$0xff]
        %v241 = vld [vmem:[%s239 + $0x8] sm:$0xff]
        %v242 = vld [vmem:[%s239 + $0x10] sm:$0xff]
        %v243 = vld [vmem:[%s239 + $0x18] sm:$0xff]
        %s244 = scalar_lea.vmem %s206, 64
        %v245 = vld [vmem:[%s244] sm:$0xff]
        %v246 = vld [vmem:[%s244 + $0x8] sm:$0xff]
        %v247 = vld [vmem:[%s244 + $0x10] sm:$0xff]
        %v248 = vld [vmem:[%s244 + $0x18] sm:$0xff]
        %v249 = vmul.f32 %v240, %v245
        %v250 = vmul.f32 %v241, %v246
        %v251 = vmul.f32 %v242, %v247
        %v252 = vmul.f32 %v243, %v248
        %v253 = vadd.f32 %v235, %v249
        %v254 = vadd.f32 %v236, %v250
        %v255 = vadd.f32 %v237, %v251
        %v256 = vadd.f32 %v238, %v252
        %s257 = scalar_lea.vmem %s196, 96
        %v258 = vld [vmem:[%s257] sm:$0xff]
        %v259 = vld [vmem:[%s257 + $0x8] sm:$0xff]
        %v260 = vld [vmem:[%s257 + $0x10] sm:$0xff]
        %v261 = vld [vmem:[%s257 + $0x18] sm:$0xff]
        %s262 = scalar_lea.vmem %s206, 96
        %v263 = vld [vmem:[%s262] sm:$0xff]
        %v264 = vld [vmem:[%s262 + $0x8] sm:$0xff]
        %v265 = vld [vmem:[%s262 + $0x10] sm:$0xff]
        %v266 = vld [vmem:[%s262 + $0x18] sm:$0xff]
        %v267 = vmul.f32 %v258, %v263
        %v268 = vmul.f32 %v259, %v264
        %v269 = vmul.f32 %v260, %v265
        %v270 = vmul.f32 %v261, %v266
        %v271 = vadd.f32 %v253, %v267
        %v272 = vadd.f32 %v254, %v268
        %v273 = vadd.f32 %v255, %v269
        %v274 = vadd.f32 %v256, %v270
        %s275 = scalar_lea.vmem %s196, 128
        %v276 = vld [vmem:[%s275] sm:$0xff]
        %v277 = vld [vmem:[%s275 + $0x8] sm:$0xff]
        %v278 = vld [vmem:[%s275 + $0x10] sm:$0xff]
        %v279 = vld [vmem:[%s275 + $0x18] sm:$0xff]
        %s280 = scalar_lea.vmem %s206, 128
        %v281 = vld [vmem:[%s280] sm:$0xff]
        %v282 = vld [vmem:[%s280 + $0x8] sm:$0xff]
        %v283 = vld [vmem:[%s280 + $0x10] sm:$0xff]
        %v284 = vld [vmem:[%s280 + $0x18] sm:$0xff]
        %v285 = vmul.f32 %v276, %v281
        %v286 = vmul.f32 %v277, %v282
        %v287 = vmul.f32 %v278, %v283
        %v288 = vmul.f32 %v279, %v284
        %v289 = vadd.f32 %v271, %v285
        %v290 = vadd.f32 %v272, %v286
        %v291 = vadd.f32 %v273, %v287
        %v292 = vadd.f32 %v274, %v288
        %s293 = scalar_lea.vmem %s196, 160
        %v294 = vld [vmem:[%s293] sm:$0xff]
        %v295 = vld [vmem:[%s293 + $0x8] sm:$0xff]
        %v296 = vld [vmem:[%s293 + $0x10] sm:$0xff]
        %v297 = vld [vmem:[%s293 + $0x18] sm:$0xff]
        %s298 = scalar_lea.vmem %s206, 160
        %v299 = vld [vmem:[%s298] sm:$0xff]
        %v300 = vld [vmem:[%s298 + $0x8] sm:$0xff]
        %v301 = vld [vmem:[%s298 + $0x10] sm:$0xff]
        %v302 = vld [vmem:[%s298 + $0x18] sm:$0xff]
        %v303 = vmul.f32 %v294, %v299
        %v304 = vmul.f32 %v295, %v300
        %v305 = vmul.f32 %v296, %v301
        %v306 = vmul.f32 %v297, %v302
        %v307 = vadd.f32 %v289, %v303
        %v308 = vadd.f32 %v290, %v304
        %v309 = vadd.f32 %v291, %v305
        %v310 = vadd.f32 %v292, %v306
        %s311 = scalar_lea.vmem %s196, 192
        %v312 = vld [vmem:[%s311] sm:$0xff]
        %v313 = vld [vmem:[%s311 + $0x8] sm:$0xff]
        %v314 = vld [vmem:[%s311 + $0x10] sm:$0xff]
        %v315 = vld [vmem:[%s311 + $0x18] sm:$0xff]
        %s316 = scalar_lea.vmem %s206, 192
        %v317 = vld [vmem:[%s316] sm:$0xff]
        %v318 = vld [vmem:[%s316 + $0x8] sm:$0xff]
        %v319 = vld [vmem:[%s316 + $0x10] sm:$0xff]
        %v320 = vld [vmem:[%s316 + $0x18] sm:$0xff]
        %v321 = vmul.f32 %v312, %v317
        %v322 = vmul.f32 %v313, %v318
        %v323 = vmul.f32 %v314, %v319
        %v324 = vmul.f32 %v315, %v320
        %v325 = vadd.f32 %v307, %v321
        %v326 = vadd.f32 %v308, %v322
        %v327 = vadd.f32 %v309, %v323
        %v328 = vadd.f32 %v310, %v324
        %s329 = scalar_lea.vmem %s196, 224
        %v330 = vld [vmem:[%s329] sm:$0xff]
        %v331 = vld [vmem:[%s329 + $0x8] sm:$0xff]
        %v332 = vld [vmem:[%s329 + $0x10] sm:$0xff]
        %v333 = vld [vmem:[%s329 + $0x18] sm:$0xff]
        %s334 = scalar_lea.vmem %s206, 224
        %v335 = vld [vmem:[%s334] sm:$0xff]
        %v336 = vld [vmem:[%s334 + $0x8] sm:$0xff]
        %v337 = vld [vmem:[%s334 + $0x10] sm:$0xff]
        %v338 = vld [vmem:[%s334 + $0x18] sm:$0xff]
        %v339 = vmul.f32 %v330, %v335
        %v340 = vmul.f32 %v331, %v336
        %v341 = vmul.f32 %v332, %v337
        %v342 = vmul.f32 %v333, %v338
        %v343 = vadd.f32 %v325, %v339
        %v344 = vadd.f32 %v326, %v340
        %v345 = vadd.f32 %v327, %v341
        %v346 = vadd.f32 %v328, %v342
        %s347 = scalar_lea.vmem %s196, 256
        %v348 = vld [vmem:[%s347] sm:$0xff]
        %v349 = vld [vmem:[%s347 + $0x8] sm:$0xff]
        %v350 = vld [vmem:[%s347 + $0x10] sm:$0xff]
        %v351 = vld [vmem:[%s347 + $0x18] sm:$0xff]
        %s352 = scalar_lea.vmem %s206, 256
        %v353 = vld [vmem:[%s352] sm:$0xff]
        %v354 = vld [vmem:[%s352 + $0x8] sm:$0xff]
        %v355 = vld [vmem:[%s352 + $0x10] sm:$0xff]
        %v356 = vld [vmem:[%s352 + $0x18] sm:$0xff]
        %v357 = vmul.f32 %v348, %v353
        %v358 = vmul.f32 %v349, %v354
        %v359 = vmul.f32 %v350, %v355
        %v360 = vmul.f32 %v351, %v356
        %v361 = vadd.f32 %v343, %v357
        %v362 = vadd.f32 %v344, %v358
        %v363 = vadd.f32 %v345, %v359
        %v364 = vadd.f32 %v346, %v360
        %vm365 = vcmask 261120
        %366 = vst.msk [vmem:[%s187] sm:$0xff] %vm365, %v361
        %367 = vst.msk [vmem:[%s187 + $0x8] sm:$0xff] %vm365, %v362
        %368 = vst.msk [vmem:[%s187 + $0x10] sm:$0xff] %vm365, %v363
        %369 = vst.msk [vmem:[%s187 + $0x18] sm:$0xff] %vm365, %v364
        %s370 = sand.u32 %s94, 1
        %s371 = scalar_lea.sflag [#allocation3], %s370
        %s372 = sand.u32 %s94, 1
        %s373 = smul.addr %s372, 32
        %s374 = scalar_lea.vmem [#allocation2], %s373
        // Predicated region
        $region29: #{sr_context_upsample_forward.15} parent=27 // pred_check
          %p375 = pneg %p104
        $region30: #{sr_context_upsample_forward.15} parent=27 // pred_check_branch
          %377 = sbr.rel (%p375) target = $region32
        $region31: #{sr_context_upsample_forward.15} parent=27 // pred_region
          %s378 = smul.u32 4, %s21
          %s380 = ssub.s32 512, 512
          %381 = vsyncadd %s371, %s380
          %s382 = smul.addr %s20, 4
          %s383 = sadd.s32 %s378, %s382
          %s384 = smul.addr %s383, 128
          %s385 = scalar_lea.hbm %s2, %s384
          %s386 = sshll.u32 %s374, 4
          %s387 = int_to_ptr.vmem [resolvable:$true] %s386
          %392 = dma.vmem_to_hbm [thread:$0]  %s387, 512, %s385, %s371, 128, 128, 8
        $region32: #{sr_context_upsample_forward.15} parent=27 // pred_fallthru
          _
      $region28: #{sr_context_upsample_forward.15} parent=5 // pred_fallthru
        _
      %p393 = scmp.le.s32.totalorder 2, %s11
      // Predicated region
      $region33: #{sr_context_upsample_forward.15} parent=5 // pred_check
        %p394 = pneg %p393
      $region34: #{sr_context_upsample_forward.15} parent=5 // pred_check_branch
        %396 = sbr.rel (%p394) target = $region36
      $region35: #{sr_context_upsample_forward.15} parent=5 // pred_region
        %s397 = ssub.s32 %s11, 2
        // Predicated region
        $region37: #{sr_context_upsample_forward.15} parent=35 // pred_check
          %p398 = pneg %p110
        $region38: #{sr_context_upsample_forward.15} parent=35 // pred_check_branch
          %400 = sbr.rel (%p398) target = $region40
        $region39: #{sr_context_upsample_forward.15} parent=35 // pred_region
          %s401 = sand.u32 %s95, 1
          %s402 = scalar_lea.sflag [#allocation3], %s401
          %s403 = sand.u32 %s95, 1
          %s404 = smul.addr %s403, 32
          %s405 = scalar_lea.vmem [#allocation2], %s404
          %406 = dma.done %s402, 512
        $region40: #{sr_context_upsample_forward.15} parent=35 // pred_fallthru
          _
      $region36: #{sr_context_upsample_forward.15} parent=5 // pred_fallthru
        _
    $region6: #{sr_context_upsample_forward.15} parent=1 // loop_footer
      %s15 = sadd.s32 1, %s11
    $region7: #{sr_context_upsample_forward.15} parent=1 // loop_footer_branch
      %10 = sbr.rel target = $region3
    $region8: #{sr_context_upsample_forward.15} parent=1 // loop_exit
      _
    %407 = vsyncpa [#allocation3], 1
    %s408 = scalar_lea.sflag [#allocation3], 1
    %409 = vsyncpa %s408, 1

</llo_original>
